<compile_context>
chip_gen: v6e
topology: v6e:2x2x1
jax: 0.10.0
libtpu: 0.0.40
codegen_flags: <defaults>
</compile_context>

<pallas_src>
import functools

import jax
import jax.numpy as jnp
from jax import lax
from jax.experimental import pallas as pl
from jax.experimental.pallas import tpu as pltpu

TM_MAX = 512                 # max row tile for the fused matmul kernels (sweep 512-1024)
BN_EPS = 1e-5
ACT_DTYPE = jnp.bfloat16     # MXU input dtype; accumulation / epilogue stay f32


# ----------------------------------------------------------------------------
# helpers copied from the reference (plain python)
# ----------------------------------------------------------------------------
def _round_to_multiple_of(val, divisor, round_up_bias=0.9):
    assert 0.0 < round_up_bias < 1.0
    new_val = max(divisor, int(val + divisor / 2) // divisor * divisor)
    return new_val if new_val >= round_up_bias * val else new_val + divisor


def _get_depths(alpha):
    depths = [32, 16, 24, 40, 80, 96, 192, 320]
    return [_round_to_multiple_of(d * alpha, 8) for d in depths]


# ----------------------------------------------------------------------------
# Pallas kernels
# ----------------------------------------------------------------------------
def _mm1_kernel(x_ref, w_ref, b_ref, o_ref, *, relu):
    acc = jnp.dot(x_ref[...], w_ref[...], preferred_element_type=jnp.float32)
    acc = acc + b_ref[...]
    if relu:
        acc = jnp.maximum(acc, 0.0)
    o_ref[...] = acc.astype(o_ref.dtype)


def _mm2_kernel(x_ref, w1_ref, b1_ref, w2_ref, b2_ref, o_ref, *, relu1, relu2):
    # two back-to-back matmuls; the intermediate tile never leaves VMEM.
    acc = jnp.dot(x_ref[...], w1_ref[...], preferred_element_type=jnp.float32)
    acc = acc + b1_ref[...]
    if relu1:
        acc = jnp.maximum(acc, 0.0)
    acc = jnp.dot(acc.astype(w2_ref.dtype), w2_ref[...],
                  preferred_element_type=jnp.float32)
    acc = acc + b2_ref[...]
    if relu2:
        acc = jnp.maximum(acc, 0.0)
    o_ref[...] = acc.astype(o_ref.dtype)


def _choose_tm(m):
    """Row tile: as big as TM_MAX, but keep >=2 grid steps (megacore) when possible."""
    if m <= 16:
        return m                       # single full-extent block (no 8-alignment needed)
    n_tiles = max(2, -(-m // TM_MAX))
    tm = -(-m // n_tiles)
    return -(-tm // 8) * 8             # multiple of 8 (sublane) when it tiles the dim


def fused_matmul(x, w, shift, relu, out_dtype=ACT_DTYPE):
    """maybe_relu(x @ w + shift);  x:(M,K)  w:(K,N)  shift:(N,).

    No host-side pad/slice: the ragged last row-block is handled by Pallas.
    Rows are independent, so garbage in out-of-bounds input rows only feeds
    out-of-bounds output rows whose stores are dropped.
    """
    M, K = x.shape
    N = w.shape[1]
    tm = _choose_tm(M)
    x = x.astype(ACT_DTYPE)
    w = w.astype(ACT_DTYPE)
    shift = shift.reshape(1, N).astype(jnp.float32)
    out_bytes = M * N * jnp.dtype(out_dtype).itemsize
    ce = pl.CostEstimate(flops=int(2 * M * K * N), transcendentals=0,
                         bytes_accessed=int(x.size * 2 + w.size * 2 + N * 4 + out_bytes))
    return pl.pallas_call(
        functools.partial(_mm1_kernel, relu=relu),
        out_shape=jax.ShapeDtypeStruct((M, N), out_dtype),
        grid=(pl.cdiv(M, tm),),
        in_specs=[
            pl.BlockSpec((tm, K), lambda i: (i, 0)),
            pl.BlockSpec((K, N), lambda i: (0, 0)),
            pl.BlockSpec((1, N), lambda i: (0, 0)),
        ],
        out_specs=pl.BlockSpec((tm, N), lambda i: (i, 0)),
        compiler_params=pltpu.CompilerParams(dimension_semantics=("parallel",)),
        cost_estimate=ce,
    )(x, w, shift)


def fused_matmul2(x, w1, shift1, relu1, w2, shift2, relu2, out_dtype=ACT_DTYPE):
    """relu2?((relu1?(x @ w1 + shift1)) @ w2 + shift2) in a single pallas_call."""
    M, K = x.shape
    N1 = w1.shape[1]
    N2 = w2.shape[1]
    tm = _choose_tm(M)
    x = x.astype(ACT_DTYPE)
    w1 = w1.astype(ACT_DTYPE)
    w2 = w2.astype(ACT_DTYPE)
    shift1 = shift1.reshape(1, N1).astype(jnp.float32)
    shift2 = shift2.reshape(1, N2).astype(jnp.float32)
    out_bytes = M * N2 * jnp.dtype(out_dtype).itemsize
    ce = pl.CostEstimate(flops=int(2 * M * K * N1 + 2 * M * N1 * N2), transcendentals=0,
                         bytes_accessed=int(x.size * 2 + w1.size * 2 + w2.size * 2
                                            + (N1 + N2) * 4 + out_bytes))
    return pl.pallas_call(
        functools.partial(_mm2_kernel, relu1=relu1, relu2=relu2),
        out_shape=jax.ShapeDtypeStruct((M, N2), out_dtype),
        grid=(pl.cdiv(M, tm),),
        in_specs=[
            pl.BlockSpec((tm, K), lambda i: (i, 0)),
            pl.BlockSpec((K, N1), lambda i: (0, 0)),
            pl.BlockSpec((1, N1), lambda i: (0, 0)),
            pl.BlockSpec((N1, N2), lambda i: (0, 0)),
            pl.BlockSpec((1, N2), lambda i: (0, 0)),
        ],
        out_specs=pl.BlockSpec((tm, N2), lambda i: (i, 0)),
        compiler_params=pltpu.CompilerParams(dimension_semantics=("parallel",)),
        cost_estimate=ce,
    )(x, w1, shift1, w2, shift2)


# ----------------------------------------------------------------------------
# conv plumbing (glue in plain JAX, matmuls in Pallas)
# ----------------------------------------------------------------------------
def _im2col(x, kh, kw, stride, pad):
    """x: (B,H,W,C) -> (B*oh*ow, kh*kw*C); column order = (kh, kw, C)."""
    # TODO(synk): this 3x3 tap gather is still materialized in HBM (kh*kw blow-up);
    # fusing it into the kernel (strip-blocked spatial grid + in-VMEM tap slices)
    # is the remaining review item.
    if pad:
        x = jnp.pad(x, ((0, 0), (pad, pad), (pad, pad), (0, 0)))
    B, H, W, C = x.shape
    oh = (H - kh) // stride + 1
    ow = (W - kw) // stride + 1
    cols = []
    for i in range(kh):
        for j in range(kw):
            cols.append(x[:, i:i + (oh - 1) * stride + 1:stride,
                           j:j + (ow - 1) * stride + 1:stride, :])
    patches = jnp.stack(cols, axis=3)             # (B, oh, ow, kh*kw, C)
    return patches.reshape(B * oh * ow, kh * kw * C), (B, oh, ow)


def _patchify(x, ps):
    """Non-overlapping stride==kernel patches (1x traffic, no im2col blow-up)."""
    B, H, W, C = x.shape
    oh, ow = H // ps, W // ps
    x = x.reshape(B, oh, ps, ow, ps, C)
    x = jnp.transpose(x, (0, 1, 3, 2, 4, 5))       # (B, oh, ow, ps, ps, C)
    return x.reshape(B * oh * ow, ps * ps * C), (B, oh, ow)


def bn_fold(bn):
    gamma, beta, mean, var = bn
    scale = gamma / jnp.sqrt(var + BN_EPS)
    shift = beta - mean * scale
    return scale, shift


def conv2d(x, w_oikk, scale, shift, stride, pad, relu):
    """Conv2d (PyTorch weight (Cout,Cin,kh,kw)) + folded BN affine + optional ReLU."""
    co, ci, kh, kw = w_oikk.shape
    patches, (B, oh, ow) = _im2col(x, kh, kw, stride, pad)
    wmat = jnp.transpose(w_oikk, (2, 3, 1, 0)).reshape(kh * kw * ci, co) * scale[None, :]
    y = fused_matmul(patches, wmat, shift, relu)
    return y.reshape(B, oh, ow, co)


def pointwise(x, wmat, scale, shift, relu):
    """1x1 conv as matmul; wmat is (Cin, Cout); BN scale folded into wmat."""
    B, H, W, C = x.shape
    wmat = wmat * scale[None, :]
    y = fused_matmul(x.reshape(B * H * W, C), wmat, shift, relu)
    return y.reshape(B, H, W, wmat.shape[1])


def patch_embed(x, w_oikk, bias, ps):
    co, ci = w_oikk.shape[0], w_oikk.shape[1]
    patches, (B, oh, ow) = _patchify(x, ps)
    wmat = jnp.transpose(w_oikk, (2, 3, 1, 0)).reshape(ps * ps * ci, co)
    y = fused_matmul(patches, wmat, bias, relu=False, out_dtype=jnp.float32)
    return y.reshape(B, oh, ow, co)


# TODO(synk): depthwise (grouped) conv has no clean single-matmul Pallas mapping and
# is a small fraction of total FLOPs; kept on lax.conv_general_dilated (bf16 in, f32 acc).
def depthwise_bn_relu(x, w_c1kk, bn, stride, pad):
    c = w_c1kk.shape[0]
    w_hwio = jnp.transpose(w_c1kk, (2, 3, 1, 0)).astype(ACT_DTYPE)   # (kh,kw,1,C)
    y = lax.conv_general_dilated(
        x.astype(ACT_DTYPE), w_hwio, window_strides=(stride, stride),
        padding=((pad, pad), (pad, pad)),
        dimension_numbers=("NHWC", "HWIO", "NHWC"),
        feature_group_count=c, preferred_element_type=jnp.float32)
    scale, shift = bn_fold(bn)
    return jnp.maximum(y * scale + shift, 0.0).astype(ACT_DTYPE)


# ----------------------------------------------------------------------------
# Transposed conv (5x5, stride 2, pad 2, output_padding 1) via sub-pixel
# decomposition: four parity outputs are regular convs over a 3x3 neighborhood
# of the ORIGINAL input -> no zero-dilated tensor, no 25-tap im2col.
#   y[2a+r, 2b+c] = sum_{dh,dw in {-1,0,1}} x[a+dh, b+dw] * w[:, :, (2+r)-2dh, (2+c)-2dw]
# (terms with kernel index outside [0,4] are zero).
# ----------------------------------------------------------------------------
def _subpixel_weight_5x5_s2(w5):
    """w5: (Cin, Cout, 5, 5) -> (9*Cin, 4*Cout); groups ordered g = r*2 + c."""
    ci, co = w5.shape[0], w5.shape[1]
    zero = jnp.zeros((ci, co), w5.dtype)
    groups = []
    for r in (0, 1):
        for c in (0, 1):
            taps = []
            for dh in (-1, 0, 1):
                for dw in (-1, 0, 1):
                    kh = (2 + r) - 2 * dh
                    kw = (2 + c) - 2 * dw
                    taps.append(w5[:, :, kh, kw] if (0 <= kh <= 4 and 0 <= kw <= 4)
                                else zero)
            groups.append(jnp.stack(taps, axis=0).reshape(9 * ci, co))
    return jnp.concatenate(groups, axis=1)


def deconv_stage(x, w5, w1x1, relu_last):
    """ConvTranspose2d(5x5,s2,p2,op1)+ReLU then ConvTranspose2d(1x1)(+ReLU) fused."""
    cmid = w5.shape[1]
    cin1, cout = w1x1.shape[0], w1x1.shape[1]
    patches, (B, H, W) = _im2col(x, 3, 3, 1, 1)                  # (B*H*W, 9*Cin)
    w_big1 = _subpixel_weight_5x5_s2(w5)                         # (9*Cin, 4*Cmid)
    w2 = w1x1.reshape(cin1, cout)
    w_big2 = jnp.kron(jnp.eye(4, dtype=w2.dtype), w2)            # block-diag (4*Cmid, 4*Cout)
    y = fused_matmul2(patches,
                      w_big1, jnp.zeros((4 * cmid,), jnp.float32), True,
                      w_big2, jnp.zeros((4 * cout,), jnp.float32), relu_last)
    # pixel shuffle: (B*H*W, 4*Cout) -> (B, 2H, 2W, Cout)
    y = y.reshape(B, H, W, 2, 2, cout)
    y = jnp.transpose(y, (0, 1, 3, 2, 4, 5)).reshape(B, 2 * H, 2 * W, cout)
    return y


# ----------------------------------------------------------------------------
# parameter construction (deterministic)
# ----------------------------------------------------------------------------
class ParamGen:
    def __init__(self, seed=0):
        self.key = jax.random.PRNGKey(seed)
        self.count = 0

    def normal(self, shape, std=0.05):
        self.count += 1
        k = jax.random.fold_in(self.key, self.count)
        return std * jax.random.normal(k, shape, jnp.float32)

    def bn(self, c):
        return (1.0 + self.normal((c,)),            # gamma
                self.normal((c,)),                  # beta
                self.normal((c,)),                  # running_mean
                1.0 + jnp.abs(self.normal((c,))))   # running_var


def make_ir(pg, cin, cout, k, stride, exp):
    mid = cin * exp
    return dict(cin=cin, cout=cout, mid=mid, k=k, stride=stride,
                w1=pg.normal((mid, cin, 1, 1)), bn1=pg.bn(mid),
                wd=pg.normal((mid, 1, k, k)),   bnd=pg.bn(mid),
                w2=pg.normal((cout, mid, 1, 1)), bn2=pg.bn(cout))


def apply_ir(p, x):
    s1, b1 = bn_fold(p['bn1'])
    y = pointwise(x, p['w1'].reshape(p['mid'], p['cin']).T, s1, b1, relu=True)
    y = depthwise_bn_relu(y, p['wd'], p['bnd'], p['stride'], p['k'] // 2)
    s2, b2 = bn_fold(p['bn2'])
    y = pointwise(y, p['w2'].reshape(p['cout'], p['mid']).T, s2, b2, relu=False)
    if p['cin'] == p['cout'] and p['stride'] == 1:
        y = y + x
    return y


def build_params(seed, alpha, img_size, patch_size, hidden_size):
    pg = ParamGen(seed)
    d = _get_depths(alpha)                       # [32,16,24,40,80,...] for alpha=1
    P = {}
    # MNASNet layers 0..10
    P['conv0_w'] = pg.normal((d[0], 3, 3, 3));  P['bn0'] = pg.bn(d[0])
    P['convd_w'] = pg.normal((d[0], 1, 3, 3));  P['bnd'] = pg.bn(d[0])
    P['conv1x1_w'] = pg.normal((d[1], d[0], 1, 1)); P['bn1x1'] = pg.bn(d[1])
    P['stack8'] = [make_ir(pg, d[1], d[2], 3, 2, 3)] + \
                  [make_ir(pg, d[2], d[2], 3, 1, 3) for _ in range(2)]
    P['stack9'] = [make_ir(pg, d[2], d[3], 5, 2, 3)] + \
                  [make_ir(pg, d[3], d[3], 5, 1, 3) for _ in range(2)]
    P['stack10'] = [make_ir(pg, d[3], d[4], 5, 2, 6)] + \
                   [make_ir(pg, d[4], d[4], 5, 1, 6) for _ in range(2)]
    # Deconv1..4 (ConvTranspose2d weight layouts: (Cin, Cout, kh, kw))
    def deconv(cin, cout):
        return dict(w5=pg.normal((cin, cin, 5, 5)), w1=pg.normal((cin, cout, 1, 1)))
    P['deconv1'] = deconv(80, 40)
    P['deconv2'] = deconv(40, 20)
    P['deconv3'] = deconv(20, 10)
    P['deconv4'] = deconv(10, 3)
    # ViT patch embedding
    P['patch_w'] = pg.normal((hidden_size, 3, patch_size, patch_size))
    P['patch_b'] = pg.normal((hidden_size,))
    n_patches = (img_size[0] // patch_size) * (img_size[1] // patch_size)
    P['cls_token'] = jnp.zeros((1, 1, hidden_size), jnp.float32)
    P['position_embeddings'] = jnp.zeros((1, n_patches + 1, hidden_size), jnp.float32)
    return P


# ----------------------------------------------------------------------------
# forward pass
# ----------------------------------------------------------------------------
def backbone_embedding_forward(params, x_nchw, patch_size):
    x = jnp.transpose(x_nchw, (0, 2, 3, 1)).astype(ACT_DTYPE)     # NCHW -> NHWC (bf16)

    # --- Encoder: MNASNet layers 0..10 ---
    s, b = bn_fold(params['bn0'])
    x = conv2d(x, params['conv0_w'], s, b, stride=2, pad=1, relu=True)
    x = depthwise_bn_relu(x, params['convd_w'], params['bnd'], 1, 1)
    s, b = bn_fold(params['bn1x1'])
    cout, cin = params['conv1x1_w'].shape[:2]
    x = pointwise(x, params['conv1x1_w'].reshape(cout, cin).T, s, b, relu=False)
    for name in ('stack8', 'stack9', 'stack10'):
        for blk in params[name]:
            x = apply_ir(blk, x)

    # --- Deconv1..Deconv4 (5x5 deconv + its 1x1 fused per stage) ---
    for name, last_relu in (('deconv1', True), ('deconv2', True),
                            ('deconv3', True), ('deconv4', False)):
        p = params[name]
        x = deconv_stage(x, p['w5'], p['w1'], last_relu)

    # --- patch embeddings + cls token + position embeddings ---
    x = patch_embed(x, params['patch_w'], params['patch_b'], patch_size)
    Bn, oh, ow, H = x.shape
    tokens = x.reshape(Bn, oh * ow, H)            # == flatten(2).transpose(-1,-2)
    cls = jnp.broadcast_to(params['cls_token'], (Bn, 1, H)).astype(x.dtype)
    emb = jnp.concatenate([cls, tokens], axis=1)
    emb = emb + params['position_embeddings']     # plain add; XLA fuses it (review item)
    # Dropout(config.transformer['dropout_rate']) -> identity in eval mode.
    return emb


# ----------------------------------------------------------------------------
if __name__ == "__main__":
    IMG = (32, 32)        # small stand-in for (480, 640); must be divisible by 16
    PATCH = 16            # config.patches['size']
    HIDDEN = 32           # config.hidden_size
    BATCH = 2

    params = build_params(seed=0, alpha=1.0, img_size=IMG,
                          patch_size=PATCH, hidden_size=HIDDEN)

    key = jax.random.PRNGKey(0)
    x = jax.random.normal(key, (BATCH, 3, IMG[0], IMG[1]), jnp.float32)

    fwd = jax.jit(lambda inp: backbone_embedding_forward(params, inp, PATCH))
    out = jax.block_until_ready(fwd(x))

    n_patches = (IMG[0] // PATCH) * (IMG[1] // PATCH)
    assert out.shape == (BATCH, n_patches + 1, HIDDEN), out.shape
    assert bool(jnp.all(jnp.isfinite(out)))
    print("KERNEL_OK")
</pallas_src>

<mosaic_0001>
module attributes {stable_mosaic.version = 11 : i64} {
  func.func @_mm1_kernel(%arg0: i32, %arg1: memref<256x27xbf16, #tpu.memory_space<vmem>>, %arg2: memref<27x32xbf16, #tpu.memory_space<vmem>>, %arg3: memref<1x32xf32, #tpu.memory_space<vmem>>, %arg4: memref<256x32xbf16, #tpu.memory_space<vmem>>) attributes {dimension_semantics = [#tpu.dimension_semantics<parallel>], iteration_bounds = array<i64: 2>, scalar_prefetch = 0 : i64, scratch_operands = 0 : i64, tpu.core_type = #tpu.core_type<tc>, window_params = [{transform_indices = @transform_0, window_bounds = array<i64: 256, 27>}, {pipeline_mode = #tpu.pipeline_mode<synchronous>, transform_indices = @transform_1, window_bounds = array<i64: 27, 32>}, {pipeline_mode = #tpu.pipeline_mode<synchronous>, transform_indices = @transform_2, window_bounds = array<i64: 1, 32>}, {transform_indices = @transform_3, window_bounds = array<i64: 256, 32>}]} {
    %c0 = arith.constant 0 : index
    %c0_0 = arith.constant 0 : index
    %0 = vector.load %arg1[%c0, %c0_0] : memref<256x27xbf16, #tpu.memory_space<vmem>>, vector<256x27xbf16>
    %c0_1 = arith.constant 0 : index
    %c0_2 = arith.constant 0 : index
    %1 = vector.load %arg2[%c0_1, %c0_2] : memref<27x32xbf16, #tpu.memory_space<vmem>>, vector<27x32xbf16>
    %cst = arith.constant dense<0.000000e+00> : vector<256x32xf32>
    %2 = tpu.matmul %0, %1, %cst {dimension_numbers = #tpu.dot_dimension_numbers<[1], [0], [0], [1], [0, 0, 1, 1], [], []>} : vector<256x27xbf16>, vector<27x32xbf16>, vector<256x32xf32> -> vector<256x32xf32>
    %c0_3 = arith.constant 0 : index
    %c0_4 = arith.constant 0 : index
    %3 = vector.load %arg3[%c0_3, %c0_4] : memref<1x32xf32, #tpu.memory_space<vmem>>, vector<1x32xf32>
    %4 = vector.broadcast %3 : vector<1x32xf32> to vector<256x32xf32>
    %5 = arith.addf %2, %4 : vector<256x32xf32>
    %cst_5 = arith.constant 0.000000e+00 : f32
    %6 = vector.broadcast %cst_5 : f32 to vector<256x32xf32>
    %7 = arith.maximumf %5, %6 : vector<256x32xf32>
    %8 = arith.truncf %7 : vector<256x32xf32> to vector<256x32xbf16>
    %c0_6 = arith.constant 0 : index
    %c0_7 = arith.constant 0 : index
    %9 = vector.load %arg4[%c0_6, %c0_7] : memref<256x32xbf16, #tpu.memory_space<vmem>>, vector<256x32xbf16>
    tpu.vector_store %arg4[%c0_6, %c0_7], %8 {strides = array<i32>} : memref<256x32xbf16, #tpu.memory_space<vmem>>, vector<256x32xbf16>,
    return
  }
  func.func @transform_0(%arg0: i32) -> (i32, i32) {
    %c0_i32 = arith.constant 0 : i32
    %c0_i32_0 = arith.constant 0 : i32
    return %arg0, %c0_i32 : i32, i32
  }
  func.func @transform_1(%arg0: i32) -> (i32, i32) {
    %c0_i32 = arith.constant 0 : i32
    %c0_i32_0 = arith.constant 0 : i32
    %c0_i32_1 = arith.constant 0 : i32
    return %c0_i32, %c0_i32_0 : i32, i32
  }
  func.func @transform_2(%arg0: i32) -> (i32, i32) {
    %c0_i32 = arith.constant 0 : i32
    %c0_i32_0 = arith.constant 0 : i32
    %c0_i32_1 = arith.constant 0 : i32
    return %c0_i32, %c0_i32_0 : i32, i32
  }
  func.func @transform_3(%arg0: i32) -> (i32, i32) {
    %c0_i32 = arith.constant 0 : i32
    %c0_i32_0 = arith.constant 0 : i32
    return %arg0, %c0_i32 : i32, i32
  }
}

module attributes {stable_mosaic.version = 11 : i64} {
  func.func @_mm1_kernel(%arg0: i32, %arg1: memref<256x32xbf16, #tpu.memory_space<vmem>>, %arg2: memref<32x16xbf16, #tpu.memory_space<vmem>>, %arg3: memref<1x16xf32, #tpu.memory_space<vmem>>, %arg4: memref<256x16xbf16, #tpu.memory_space<vmem>>) attributes {dimension_semantics = [#tpu.dimension_semantics<parallel>], iteration_bounds = array<i64: 2>, scalar_prefetch = 0 : i64, scratch_operands = 0 : i64, tpu.core_type = #tpu.core_type<tc>, window_params = [{transform_indices = @transform_0, window_bounds = array<i64: 256, 32>}, {pipeline_mode = #tpu.pipeline_mode<synchronous>, transform_indices = @transform_1, window_bounds = array<i64: 32, 16>}, {pipeline_mode = #tpu.pipeline_mode<synchronous>, transform_indices = @transform_2, window_bounds = array<i64: 1, 16>}, {transform_indices = @transform_3, window_bounds = array<i64: 256, 16>}]} {
    %c0 = arith.constant 0 : index
    %c0_0 = arith.constant 0 : index
    %0 = vector.load %arg1[%c0, %c0_0] : memref<256x32xbf16, #tpu.memory_space<vmem>>, vector<256x32xbf16>
    %c0_1 = arith.constant 0 : index
    %c0_2 = arith.constant 0 : index
    %1 = vector.load %arg2[%c0_1, %c0_2] : memref<32x16xbf16, #tpu.memory_space<vmem>>, vector<32x16xbf16>
    %cst = arith.constant dense<0.000000e+00> : vector<256x16xf32>
    %2 = tpu.matmul %0, %1, %cst {dimension_numbers = #tpu.dot_dimension_numbers<[1], [0], [0], [1], [0, 0, 1, 1], [], []>} : vector<256x32xbf16>, vector<32x16xbf16>, vector<256x16xf32> -> vector<256x16xf32>
    %c0_3 = arith.constant 0 : index
    %c0_4 = arith.constant 0 : index
    %3 = vector.load %arg3[%c0_3, %c0_4] : memref<1x16xf32, #tpu.memory_space<vmem>>, vector<1x16xf32>
    %4 = vector.broadcast %3 : vector<1x16xf32> to vector<256x16xf32>
    %5 = arith.addf %2, %4 : vector<256x16xf32>
    %6 = arith.truncf %5 : vector<256x16xf32> to vector<256x16xbf16>
    %c0_5 = arith.constant 0 : index
    %c0_6 = arith.constant 0 : index
    %7 = vector.load %arg4[%c0_5, %c0_6] : memref<256x16xbf16, #tpu.memory_space<vmem>>, vector<256x16xbf16>
    tpu.vector_store %arg4[%c0_5, %c0_6], %6 {strides = array<i32>} : memref<256x16xbf16, #tpu.memory_space<vmem>>, vector<256x16xbf16>,
    return
  }
  func.func @transform_0(%arg0: i32) -> (i32, i32) {
    %c0_i32 = arith.constant 0 : i32
    %c0_i32_0 = arith.constant 0 : i32
    return %arg0, %c0_i32 : i32, i32
  }
  func.func @transform_1(%arg0: i32) -> (i32, i32) {
    %c0_i32 = arith.constant 0 : i32
    %c0_i32_0 = arith.constant 0 : i32
    %c0_i32_1 = arith.constant 0 : i32
    return %c0_i32, %c0_i32_0 : i32, i32
  }
  func.func @transform_2(%arg0: i32) -> (i32, i32) {
    %c0_i32 = arith.constant 0 : i32
    %c0_i32_0 = arith.constant 0 : i32
    %c0_i32_1 = arith.constant 0 : i32
    return %c0_i32, %c0_i32_0 : i32, i32
  }
  func.func @transform_3(%arg0: i32) -> (i32, i32) {
    %c0_i32 = arith.constant 0 : i32
    %c0_i32_0 = arith.constant 0 : i32
    return %arg0, %c0_i32 : i32, i32
  }
}

module attributes {stable_mosaic.version = 11 : i64} {
  func.func @_mm1_kernel(%arg0: i32, %arg1: memref<256x16xbf16, #tpu.memory_space<vmem>>, %arg2: memref<16x48xbf16, #tpu.memory_space<vmem>>, %arg3: memref<1x48xf32, #tpu.memory_space<vmem>>, %arg4: memref<256x48xbf16, #tpu.memory_space<vmem>>) attributes {dimension_semantics = [#tpu.dimension_semantics<parallel>], iteration_bounds = array<i64: 2>, scalar_prefetch = 0 : i64, scratch_operands = 0 : i64, tpu.core_type = #tpu.core_type<tc>, window_params = [{transform_indices = @transform_0, window_bounds = array<i64: 256, 16>}, {pipeline_mode = #tpu.pipeline_mode<synchronous>, transform_indices = @transform_1, window_bounds = array<i64: 16, 48>}, {pipeline_mode = #tpu.pipeline_mode<synchronous>, transform_indices = @transform_2, window_bounds = array<i64: 1, 48>}, {transform_indices = @transform_3, window_bounds = array<i64: 256, 48>}]} {
    %c0 = arith.constant 0 : index
    %c0_0 = arith.constant 0 : index
    %0 = vector.load %arg1[%c0, %c0_0] : memref<256x16xbf16, #tpu.memory_space<vmem>>, vector<256x16xbf16>
    %c0_1 = arith.constant 0 : index
    %c0_2 = arith.constant 0 : index
    %1 = vector.load %arg2[%c0_1, %c0_2] : memref<16x48xbf16, #tpu.memory_space<vmem>>, vector<16x48xbf16>
    %cst = arith.constant dense<0.000000e+00> : vector<256x48xf32>
    %2 = tpu.matmul %0, %1, %cst {dimension_numbers = #tpu.dot_dimension_numbers<[1], [0], [0], [1], [0, 0, 1, 1], [], []>} : vector<256x16xbf16>, vector<16x48xbf16>, vector<256x48xf32> -> vector<256x48xf32>
    %c0_3 = arith.constant 0 : index
    %c0_4 = arith.constant 0 : index
    %3 = vector.load %arg3[%c0_3, %c0_4] : memref<1x48xf32, #tpu.memory_space<vmem>>, vector<1x48xf32>
    %4 = vector.broadcast %3 : vector<1x48xf32> to vector<256x48xf32>
    %5 = arith.addf %2, %4 : vector<256x48xf32>
    %cst_5 = arith.constant 0.000000e+00 : f32
    %6 = vector.broadcast %cst_5 : f32 to vector<256x48xf32>
    %7 = arith.maximumf %5, %6 : vector<256x48xf32>
    %8 = arith.truncf %7 : vector<256x48xf32> to vector<256x48xbf16>
    %c0_6 = arith.constant 0 : index
    %c0_7 = arith.constant 0 : index
    %9 = vector.load %arg4[%c0_6, %c0_7] : memref<256x48xbf16, #tpu.memory_space<vmem>>, vector<256x48xbf16>
    tpu.vector_store %arg4[%c0_6, %c0_7], %8 {strides = array<i32>} : memref<256x48xbf16, #tpu.memory_space<vmem>>, vector<256x48xbf16>,
    return
  }
  func.func @transform_0(%arg0: i32) -> (i32, i32) {
    %c0_i32 = arith.constant 0 : i32
    %c0_i32_0 = arith.constant 0 : i32
    return %arg0, %c0_i32 : i32, i32
  }
  func.func @transform_1(%arg0: i32) -> (i32, i32) {
    %c0_i32 = arith.constant 0 : i32
    %c0_i32_0 = arith.constant 0 : i32
    %c0_i32_1 = arith.constant 0 : i32
    return %c0_i32, %c0_i32_0 : i32, i32
  }
  func.func @transform_2(%arg0: i32) -> (i32, i32) {
    %c0_i32 = arith.constant 0 : i32
    %c0_i32_0 = arith.constant 0 : i32
    %c0_i32_1 = arith.constant 0 : i32
    return %c0_i32, %c0_i32_0 : i32, i32
  }
  func.func @transform_3(%arg0: i32) -> (i32, i32) {
    %c0_i32 = arith.constant 0 : i32
    %c0_i32_0 = arith.constant 0 : i32
    return %arg0, %c0_i32 : i32, i32
  }
}

module attributes {stable_mosaic.version = 11 : i64} {
  func.func @_mm1_kernel(%arg0: i32, %arg1: memref<64x48xbf16, #tpu.memory_space<vmem>>, %arg2: memref<48x24xbf16, #tpu.memory_space<vmem>>, %arg3: memref<1x24xf32, #tpu.memory_space<vmem>>, %arg4: memref<64x24xbf16, #tpu.memory_space<vmem>>) attributes {dimension_semantics = [#tpu.dimension_semantics<parallel>], iteration_bounds = array<i64: 2>, scalar_prefetch = 0 : i64, scratch_operands = 0 : i64, tpu.core_type = #tpu.core_type<tc>, window_params = [{transform_indices = @transform_0, window_bounds = array<i64: 64, 48>}, {pipeline_mode = #tpu.pipeline_mode<synchronous>, transform_indices = @transform_1, window_bounds = array<i64: 48, 24>}, {pipeline_mode = #tpu.pipeline_mode<synchronous>, transform_indices = @transform_2, window_bounds = array<i64: 1, 24>}, {transform_indices = @transform_3, window_bounds = array<i64: 64, 24>}]} {
    %c0 = arith.constant 0 : index
    %c0_0 = arith.constant 0 : index
    %0 = vector.load %arg1[%c0, %c0_0] : memref<64x48xbf16, #tpu.memory_space<vmem>>, vector<64x48xbf16>
    %c0_1 = arith.constant 0 : index
    %c0_2 = arith.constant 0 : index
    %1 = vector.load %arg2[%c0_1, %c0_2] : memref<48x24xbf16, #tpu.memory_space<vmem>>, vector<48x24xbf16>
    %cst = arith.constant dense<0.000000e+00> : vector<64x24xf32>
    %2 = tpu.matmul %0, %1, %cst {dimension_numbers = #tpu.dot_dimension_numbers<[1], [0], [0], [1], [0, 0, 1, 1], [], []>} : vector<64x48xbf16>, vector<48x24xbf16>, vector<64x24xf32> -> vector<64x24xf32>
    %c0_3 = arith.constant 0 : index
    %c0_4 = arith.constant 0 : index
    %3 = vector.load %arg3[%c0_3, %c0_4] : memref<1x24xf32, #tpu.memory_space<vmem>>, vector<1x24xf32>
    %4 = vector.broadcast %3 : vector<1x24xf32> to vector<64x24xf32>
    %5 = arith.addf %2, %4 : vector<64x24xf32>
    %6 = arith.truncf %5 : vector<64x24xf32> to vector<64x24xbf16>
    %c0_5 = arith.constant 0 : index
    %c0_6 = arith.constant 0 : index
    %7 = vector.load %arg4[%c0_5, %c0_6] : memref<64x24xbf16, #tpu.memory_space<vmem>>, vector<64x24xbf16>
    tpu.vector_store %arg4[%c0_5, %c0_6], %6 {strides = array<i32>} : memref<64x24xbf16, #tpu.memory_space<vmem>>, vector<64x24xbf16>,
    return
  }
  func.func @transform_0(%arg0: i32) -> (i32, i32) {
    %c0_i32 = arith.constant 0 : i32
    %c0_i32_0 = arith.constant 0 : i32
    return %arg0, %c0_i32 : i32, i32
  }
  func.func @transform_1(%arg0: i32) -> (i32, i32) {
    %c0_i32 = arith.constant 0 : i32
    %c0_i32_0 = arith.constant 0 : i32
    %c0_i32_1 = arith.constant 0 : i32
    return %c0_i32, %c0_i32_0 : i32, i32
  }
  func.func @transform_2(%arg0: i32) -> (i32, i32) {
    %c0_i32 = arith.constant 0 : i32
    %c0_i32_0 = arith.constant 0 : i32
    %c0_i32_1 = arith.constant 0 : i32
    return %c0_i32, %c0_i32_0 : i32, i32
  }
  func.func @transform_3(%arg0: i32) -> (i32, i32) {
    %c0_i32 = arith.constant 0 : i32
    %c0_i32_0 = arith.constant 0 : i32
    return %arg0, %c0_i32 : i32, i32
  }
}

module attributes {stable_mosaic.version = 11 : i64} {
  func.func @_mm1_kernel(%arg0: i32, %arg1: memref<64x24xbf16, #tpu.memory_space<vmem>>, %arg2: memref<24x72xbf16, #tpu.memory_space<vmem>>, %arg3: memref<1x72xf32, #tpu.memory_space<vmem>>, %arg4: memref<64x72xbf16, #tpu.memory_space<vmem>>) attributes {dimension_semantics = [#tpu.dimension_semantics<parallel>], iteration_bounds = array<i64: 2>, scalar_prefetch = 0 : i64, scratch_operands = 0 : i64, tpu.core_type = #tpu.core_type<tc>, window_params = [{transform_indices = @transform_0, window_bounds = array<i64: 64, 24>}, {pipeline_mode = #tpu.pipeline_mode<synchronous>, transform_indices = @transform_1, window_bounds = array<i64: 24, 72>}, {pipeline_mode = #tpu.pipeline_mode<synchronous>, transform_indices = @transform_2, window_bounds = array<i64: 1, 72>}, {transform_indices = @transform_3, window_bounds = array<i64: 64, 72>}]} {
    %c0 = arith.constant 0 : index
    %c0_0 = arith.constant 0 : index
    %0 = vector.load %arg1[%c0, %c0_0] : memref<64x24xbf16, #tpu.memory_space<vmem>>, vector<64x24xbf16>
    %c0_1 = arith.constant 0 : index
    %c0_2 = arith.constant 0 : index
    %1 = vector.load %arg2[%c0_1, %c0_2] : memref<24x72xbf16, #tpu.memory_space<vmem>>, vector<24x72xbf16>
    %cst = arith.constant dense<0.000000e+00> : vector<64x72xf32>
    %2 = tpu.matmul %0, %1, %cst {dimension_numbers = #tpu.dot_dimension_numbers<[1], [0], [0], [1], [0, 0, 1, 1], [], []>} : vector<64x24xbf16>, vector<24x72xbf16>, vector<64x72xf32> -> vector<64x72xf32>
    %c0_3 = arith.constant 0 : index
    %c0_4 = arith.constant 0 : index
    %3 = vector.load %arg3[%c0_3, %c0_4] : memref<1x72xf32, #tpu.memory_space<vmem>>, vector<1x72xf32>
    %4 = vector.broadcast %3 : vector<1x72xf32> to vector<64x72xf32>
    %5 = arith.addf %2, %4 : vector<64x72xf32>
    %cst_5 = arith.constant 0.000000e+00 : f32
    %6 = vector.broadcast %cst_5 : f32 to vector<64x72xf32>
    %7 = arith.maximumf %5, %6 : vector<64x72xf32>
    %8 = arith.truncf %7 : vector<64x72xf32> to vector<64x72xbf16>
    %c0_6 = arith.constant 0 : index
    %c0_7 = arith.constant 0 : index
    %9 = vector.load %arg4[%c0_6, %c0_7] : memref<64x72xbf16, #tpu.memory_space<vmem>>, vector<64x72xbf16>
    tpu.vector_store %arg4[%c0_6, %c0_7], %8 {strides = array<i32>} : memref<64x72xbf16, #tpu.memory_space<vmem>>, vector<64x72xbf16>,
    return
  }
  func.func @transform_0(%arg0: i32) -> (i32, i32) {
    %c0_i32 = arith.constant 0 : i32
    %c0_i32_0 = arith.constant 0 : i32
    return %arg0, %c0_i32 : i32, i32
  }
  func.func @transform_1(%arg0: i32) -> (i32, i32) {
    %c0_i32 = arith.constant 0 : i32
    %c0_i32_0 = arith.constant 0 : i32
    %c0_i32_1 = arith.constant 0 : i32
    return %c0_i32, %c0_i32_0 : i32, i32
  }
  func.func @transform_2(%arg0: i32) -> (i32, i32) {
    %c0_i32 = arith.constant 0 : i32
    %c0_i32_0 = arith.constant 0 : i32
    %c0_i32_1 = arith.constant 0 : i32
    return %c0_i32, %c0_i32_0 : i32, i32
  }
  func.func @transform_3(%arg0: i32) -> (i32, i32) {
    %c0_i32 = arith.constant 0 : i32
    %c0_i32_0 = arith.constant 0 : i32
    return %arg0, %c0_i32 : i32, i32
  }
}

module attributes {stable_mosaic.version = 11 : i64} {
  func.func @_mm1_kernel(%arg0: i32, %arg1: memref<16x72xbf16, #tpu.memory_space<vmem>>, %arg2: memref<72x40xbf16, #tpu.memory_space<vmem>>, %arg3: memref<1x40xf32, #tpu.memory_space<vmem>>, %arg4: memref<16x40xbf16, #tpu.memory_space<vmem>>) attributes {dimension_semantics = [#tpu.dimension_semantics<parallel>], iteration_bounds = array<i64: 2>, scalar_prefetch = 0 : i64, scratch_operands = 0 : i64, tpu.core_type = #tpu.core_type<tc>, window_params = [{transform_indices = @transform_0, window_bounds = array<i64: 16, 72>}, {pipeline_mode = #tpu.pipeline_mode<synchronous>, transform_indices = @transform_1, window_bounds = array<i64: 72, 40>}, {pipeline_mode = #tpu.pipeline_mode<synchronous>, transform_indices = @transform_2, window_bounds = array<i64: 1, 40>}, {transform_indices = @transform_3, window_bounds = array<i64: 16, 40>}]} {
    %c0 = arith.constant 0 : index
    %c0_0 = arith.constant 0 : index
    %0 = vector.load %arg1[%c0, %c0_0] : memref<16x72xbf16, #tpu.memory_space<vmem>>, vector<16x72xbf16>
    %c0_1 = arith.constant 0 : index
    %c0_2 = arith.constant 0 : index
    %1 = vector.load %arg2[%c0_1, %c0_2] : memref<72x40xbf16, #tpu.memory_space<vmem>>, vector<72x40xbf16>
    %cst = arith.constant dense<0.000000e+00> : vector<16x40xf32>
    %2 = tpu.matmul %0, %1, %cst {dimension_numbers = #tpu.dot_dimension_numbers<[1], [0], [0], [1], [0, 0, 1, 1], [], []>} : vector<16x72xbf16>, vector<72x40xbf16>, vector<16x40xf32> -> vector<16x40xf32>
    %c0_3 = arith.constant 0 : index
    %c0_4 = arith.constant 0 : index
    %3 = vector.load %arg3[%c0_3, %c0_4] : memref<1x40xf32, #tpu.memory_space<vmem>>, vector<1x40xf32>
    %4 = vector.broadcast %3 : vector<1x40xf32> to vector<16x40xf32>
    %5 = arith.addf %2, %4 : vector<16x40xf32>
    %6 = arith.truncf %5 : vector<16x40xf32> to vector<16x40xbf16>
    %c0_5 = arith.constant 0 : index
    %c0_6 = arith.constant 0 : index
    %7 = vector.load %arg4[%c0_5, %c0_6] : memref<16x40xbf16, #tpu.memory_space<vmem>>, vector<16x40xbf16>
    tpu.vector_store %arg4[%c0_5, %c0_6], %6 {strides = array<i32>} : memref<16x40xbf16, #tpu.memory_space<vmem>>, vector<16x40xbf16>,
    return
  }
  func.func @transform_0(%arg0: i32) -> (i32, i32) {
    %c0_i32 = arith.constant 0 : i32
    %c0_i32_0 = arith.constant 0 : i32
    return %arg0, %c0_i32 : i32, i32
  }
  func.func @transform_1(%arg0: i32) -> (i32, i32) {
    %c0_i32 = arith.constant 0 : i32
    %c0_i32_0 = arith.constant 0 : i32
    %c0_i32_1 = arith.constant 0 : i32
    return %c0_i32, %c0_i32_0 : i32, i32
  }
  func.func @transform_2(%arg0: i32) -> (i32, i32) {
    %c0_i32 = arith.constant 0 : i32
    %c0_i32_0 = arith.constant 0 : i32
    %c0_i32_1 = arith.constant 0 : i32
    return %c0_i32, %c0_i32_0 : i32, i32
  }
  func.func @transform_3(%arg0: i32) -> (i32, i32) {
    %c0_i32 = arith.constant 0 : i32
    %c0_i32_0 = arith.constant 0 : i32
    return %arg0, %c0_i32 : i32, i32
  }
}

module attributes {stable_mosaic.version = 11 : i64} {
  func.func @_mm1_kernel(%arg0: i32, %arg1: memref<64x72xbf16, #tpu.memory_space<vmem>>, %arg2: memref<72x24xbf16, #tpu.memory_space<vmem>>, %arg3: memref<1x24xf32, #tpu.memory_space<vmem>>, %arg4: memref<64x24xbf16, #tpu.memory_space<vmem>>) attributes {dimension_semantics = [#tpu.dimension_semantics<parallel>], iteration_bounds = array<i64: 2>, scalar_prefetch = 0 : i64, scratch_operands = 0 : i64, tpu.core_type = #tpu.core_type<tc>, window_params = [{transform_indices = @transform_0, window_bounds = array<i64: 64, 72>}, {pipeline_mode = #tpu.pipeline_mode<synchronous>, transform_indices = @transform_1, window_bounds = array<i64: 72, 24>}, {pipeline_mode = #tpu.pipeline_mode<synchronous>, transform_indices = @transform_2, window_bounds = array<i64: 1, 24>}, {transform_indices = @transform_3, window_bounds = array<i64: 64, 24>}]} {
    %c0 = arith.constant 0 : index
    %c0_0 = arith.constant 0 : index
    %0 = vector.load %arg1[%c0, %c0_0] : memref<64x72xbf16, #tpu.memory_space<vmem>>, vector<64x72xbf16>
    %c0_1 = arith.constant 0 : index
    %c0_2 = arith.constant 0 : index
    %1 = vector.load %arg2[%c0_1, %c0_2] : memref<72x24xbf16, #tpu.memory_space<vmem>>, vector<72x24xbf16>
    %cst = arith.constant dense<0.000000e+00> : vector<64x24xf32>
    %2 = tpu.matmul %0, %1, %cst {dimension_numbers = #tpu.dot_dimension_numbers<[1], [0], [0], [1], [0, 0, 1, 1], [], []>} : vector<64x72xbf16>, vector<72x24xbf16>, vector<64x24xf32> -> vector<64x24xf32>
    %c0_3 = arith.constant 0 : index
    %c0_4 = arith.constant 0 : index
    %3 = vector.load %arg3[%c0_3, %c0_4] : memref<1x24xf32, #tpu.memory_space<vmem>>, vector<1x24xf32>
    %4 = vector.broadcast %3 : vector<1x24xf32> to vector<64x24xf32>
    %5 = arith.addf %2, %4 : vector<64x24xf32>
    %6 = arith.truncf %5 : vector<64x24xf32> to vector<64x24xbf16>
    %c0_5 = arith.constant 0 : index
    %c0_6 = arith.constant 0 : index
    %7 = vector.load %arg4[%c0_5, %c0_6] : memref<64x24xbf16, #tpu.memory_space<vmem>>, vector<64x24xbf16>
    tpu.vector_store %arg4[%c0_5, %c0_6], %6 {strides = array<i32>} : memref<64x24xbf16, #tpu.memory_space<vmem>>, vector<64x24xbf16>,
    return
  }
  func.func @transform_0(%arg0: i32) -> (i32, i32) {
    %c0_i32 = arith.constant 0 : i32
    %c0_i32_0 = arith.constant 0 : i32
    return %arg0, %c0_i32 : i32, i32
  }
  func.func @transform_1(%arg0: i32) -> (i32, i32) {
    %c0_i32 = arith.constant 0 : i32
    %c0_i32_0 = arith.constant 0 : i32
    %c0_i32_1 = arith.constant 0 : i32
    return %c0_i32, %c0_i32_0 : i32, i32
  }
  func.func @transform_2(%arg0: i32) -> (i32, i32) {
    %c0_i32 = arith.constant 0 : i32
    %c0_i32_0 = arith.constant 0 : i32
    %c0_i32_1 = arith.constant 0 : i32
    return %c0_i32, %c0_i32_0 : i32, i32
  }
  func.func @transform_3(%arg0: i32) -> (i32, i32) {
    %c0_i32 = arith.constant 0 : i32
    %c0_i32_0 = arith.constant 0 : i32
    return %arg0, %c0_i32 : i32, i32
  }
}

module attributes {stable_mosaic.version = 11 : i64} {
  func.func @_mm1_kernel(%arg0: i32, %arg1: memref<16x40xbf16, #tpu.memory_space<vmem>>, %arg2: memref<40x120xbf16, #tpu.memory_space<vmem>>, %arg3: memref<1x120xf32, #tpu.memory_space<vmem>>, %arg4: memref<16x120xbf16, #tpu.memory_space<vmem>>) attributes {dimension_semantics = [#tpu.dimension_semantics<parallel>], iteration_bounds = array<i64: 2>, scalar_prefetch = 0 : i64, scratch_operands = 0 : i64, tpu.core_type = #tpu.core_type<tc>, window_params = [{transform_indices = @transform_0, window_bounds = array<i64: 16, 40>}, {pipeline_mode = #tpu.pipeline_mode<synchronous>, transform_indices = @transform_1, window_bounds = array<i64: 40, 120>}, {pipeline_mode = #tpu.pipeline_mode<synchronous>, transform_indices = @transform_2, window_bounds = array<i64: 1, 120>}, {transform_indices = @transform_3, window_bounds = array<i64: 16, 120>}]} {
    %c0 = arith.constant 0 : index
    %c0_0 = arith.constant 0 : index
    %0 = vector.load %arg1[%c0, %c0_0] : memref<16x40xbf16, #tpu.memory_space<vmem>>, vector<16x40xbf16>
    %c0_1 = arith.constant 0 : index
    %c0_2 = arith.constant 0 : index
    %1 = vector.load %arg2[%c0_1, %c0_2] : memref<40x120xbf16, #tpu.memory_space<vmem>>, vector<40x120xbf16>
    %cst = arith.constant dense<0.000000e+00> : vector<16x120xf32>
    %2 = tpu.matmul %0, %1, %cst {dimension_numbers = #tpu.dot_dimension_numbers<[1], [0], [0], [1], [0, 0, 1, 1], [], []>} : vector<16x40xbf16>, vector<40x120xbf16>, vector<16x120xf32> -> vector<16x120xf32>
    %c0_3 = arith.constant 0 : index
    %c0_4 = arith.constant 0 : index
    %3 = vector.load %arg3[%c0_3, %c0_4] : memref<1x120xf32, #tpu.memory_space<vmem>>, vector<1x120xf32>
    %4 = vector.broadcast %3 : vector<1x120xf32> to vector<16x120xf32>
    %5 = arith.addf %2, %4 : vector<16x120xf32>
    %cst_5 = arith.constant 0.000000e+00 : f32
    %6 = vector.broadcast %cst_5 : f32 to vector<16x120xf32>
    %7 = arith.maximumf %5, %6 : vector<16x120xf32>
    %8 = arith.truncf %7 : vector<16x120xf32> to vector<16x120xbf16>
    %c0_6 = arith.constant 0 : index
    %c0_7 = arith.constant 0 : index
    %9 = vector.load %arg4[%c0_6, %c0_7] : memref<16x120xbf16, #tpu.memory_space<vmem>>, vector<16x120xbf16>
    tpu.vector_store %arg4[%c0_6, %c0_7], %8 {strides = array<i32>} : memref<16x120xbf16, #tpu.memory_space<vmem>>, vector<16x120xbf16>,
    return
  }
  func.func @transform_0(%arg0: i32) -> (i32, i32) {
    %c0_i32 = arith.constant 0 : i32
    %c0_i32_0 = arith.constant 0 : i32
    return %arg0, %c0_i32 : i32, i32
  }
  func.func @transform_1(%arg0: i32) -> (i32, i32) {
    %c0_i32 = arith.constant 0 : i32
    %c0_i32_0 = arith.constant 0 : i32
    %c0_i32_1 = arith.constant 0 : i32
    return %c0_i32, %c0_i32_0 : i32, i32
  }
  func.func @transform_2(%arg0: i32) -> (i32, i32) {
    %c0_i32 = arith.constant 0 : i32
    %c0_i32_0 = arith.constant 0 : i32
    %c0_i32_1 = arith.constant 0 : i32
    return %c0_i32, %c0_i32_0 : i32, i32
  }
  func.func @transform_3(%arg0: i32) -> (i32, i32) {
    %c0_i32 = arith.constant 0 : i32
    %c0_i32_0 = arith.constant 0 : i32
    return %arg0, %c0_i32 : i32, i32
  }
}

module attributes {stable_mosaic.version = 11 : i64} {
  func.func @_mm1_kernel(%arg0: i32, %arg1: memref<16x120xbf16, #tpu.memory_space<vmem>>, %arg2: memref<120x40xbf16, #tpu.memory_space<vmem>>, %arg3: memref<1x40xf32, #tpu.memory_space<vmem>>, %arg4: memref<16x40xbf16, #tpu.memory_space<vmem>>) attributes {dimension_semantics = [#tpu.dimension_semantics<parallel>], iteration_bounds = array<i64: 2>, scalar_prefetch = 0 : i64, scratch_operands = 0 : i64, tpu.core_type = #tpu.core_type<tc>, window_params = [{transform_indices = @transform_0, window_bounds = array<i64: 16, 120>}, {pipeline_mode = #tpu.pipeline_mode<synchronous>, transform_indices = @transform_1, window_bounds = array<i64: 120, 40>}, {pipeline_mode = #tpu.pipeline_mode<synchronous>, transform_indices = @transform_2, window_bounds = array<i64: 1, 40>}, {transform_indices = @transform_3, window_bounds = array<i64: 16, 40>}]} {
    %c0 = arith.constant 0 : index
    %c0_0 = arith.constant 0 : index
    %0 = vector.load %arg1[%c0, %c0_0] : memref<16x120xbf16, #tpu.memory_space<vmem>>, vector<16x120xbf16>
    %c0_1 = arith.constant 0 : index
    %c0_2 = arith.constant 0 : index
    %1 = vector.load %arg2[%c0_1, %c0_2] : memref<120x40xbf16, #tpu.memory_space<vmem>>, vector<120x40xbf16>
    %cst = arith.constant dense<0.000000e+00> : vector<16x40xf32>
    %2 = tpu.matmul %0, %1, %cst {dimension_numbers = #tpu.dot_dimension_numbers<[1], [0], [0], [1], [0, 0, 1, 1], [], []>} : vector<16x120xbf16>, vector<120x40xbf16>, vector<16x40xf32> -> vector<16x40xf32>
    %c0_3 = arith.constant 0 : index
    %c0_4 = arith.constant 0 : index
    %3 = vector.load %arg3[%c0_3, %c0_4] : memref<1x40xf32, #tpu.memory_space<vmem>>, vector<1x40xf32>
    %4 = vector.broadcast %3 : vector<1x40xf32> to vector<16x40xf32>
    %5 = arith.addf %2, %4 : vector<16x40xf32>
    %6 = arith.truncf %5 : vector<16x40xf32> to vector<16x40xbf16>
    %c0_5 = arith.constant 0 : index
    %c0_6 = arith.constant 0 : index
    %7 = vector.load %arg4[%c0_5, %c0_6] : memref<16x40xbf16, #tpu.memory_space<vmem>>, vector<16x40xbf16>
    tpu.vector_store %arg4[%c0_5, %c0_6], %6 {strides = array<i32>} : memref<16x40xbf16, #tpu.memory_space<vmem>>, vector<16x40xbf16>,
    return
  }
  func.func @transform_0(%arg0: i32) -> (i32, i32) {
    %c0_i32 = arith.constant 0 : i32
    %c0_i32_0 = arith.constant 0 : i32
    return %arg0, %c0_i32 : i32, i32
  }
  func.func @transform_1(%arg0: i32) -> (i32, i32) {
    %c0_i32 = arith.constant 0 : i32
    %c0_i32_0 = arith.constant 0 : i32
    %c0_i32_1 = arith.constant 0 : i32
    return %c0_i32, %c0_i32_0 : i32, i32
  }
  func.func @transform_2(%arg0: i32) -> (i32, i32) {
    %c0_i32 = arith.constant 0 : i32
    %c0_i32_0 = arith.constant 0 : i32
    %c0_i32_1 = arith.constant 0 : i32
    return %c0_i32, %c0_i32_0 : i32, i32
  }
  func.func @transform_3(%arg0: i32) -> (i32, i32) {
    %c0_i32 = arith.constant 0 : i32
    %c0_i32_0 = arith.constant 0 : i32
    return %arg0, %c0_i32 : i32, i32
  }
}

module attributes {stable_mosaic.version = 11 : i64} {
  func.func @_mm1_kernel(%arg0: i32, %arg1: memref<16x40xbf16, #tpu.memory_space<vmem>>, %arg2: memref<40x120xbf16, #tpu.memory_space<vmem>>, %arg3: memref<1x120xf32, #tpu.memory_space<vmem>>, %arg4: memref<16x120xbf16, #tpu.memory_space<vmem>>) attributes {dimension_semantics = [#tpu.dimension_semantics<parallel>], iteration_bounds = array<i64: 2>, scalar_prefetch = 0 : i64, scratch_operands = 0 : i64, tpu.core_type = #tpu.core_type<tc>, window_params = [{transform_indices = @transform_0, window_bounds = array<i64: 16, 40>}, {pipeline_mode = #tpu.pipeline_mode<synchronous>, transform_indices = @transform_1, window_bounds = array<i64: 40, 120>}, {pipeline_mode = #tpu.pipeline_mode<synchronous>, transform_indices = @transform_2, window_bounds = array<i64: 1, 120>}, {transform_indices = @transform_3, window_bounds = array<i64: 16, 120>}]} {
    %c0 = arith.constant 0 : index
    %c0_0 = arith.constant 0 : index
    %0 = vector.load %arg1[%c0, %c0_0] : memref<16x40xbf16, #tpu.memory_space<vmem>>, vector<16x40xbf16>
    %c0_1 = arith.constant 0 : index
    %c0_2 = arith.constant 0 : index
    %1 = vector.load %arg2[%c0_1, %c0_2] : memref<40x120xbf16, #tpu.memory_space<vmem>>, vector<40x120xbf16>
    %cst = arith.constant dense<0.000000e+00> : vector<16x120xf32>
    %2 = tpu.matmul %0, %1, %cst {dimension_numbers = #tpu.dot_dimension_numbers<[1], [0], [0], [1], [0, 0, 1, 1], [], []>} : vector<16x40xbf16>, vector<40x120xbf16>, vector<16x120xf32> -> vector<16x120xf32>
    %c0_3 = arith.constant 0 : index
    %c0_4 = arith.constant 0 : index
    %3 = vector.load %arg3[%c0_3, %c0_4] : memref<1x120xf32, #tpu.memory_space<vmem>>, vector<1x120xf32>
    %4 = vector.broadcast %3 : vector<1x120xf32> to vector<16x120xf32>
    %5 = arith.addf %2, %4 : vector<16x120xf32>
    %cst_5 = arith.constant 0.000000e+00 : f32
    %6 = vector.broadcast %cst_5 : f32 to vector<16x120xf32>
    %7 = arith.maximumf %5, %6 : vector<16x120xf32>
    %8 = arith.truncf %7 : vector<16x120xf32> to vector<16x120xbf16>
    %c0_6 = arith.constant 0 : index
    %c0_7 = arith.constant 0 : index
    %9 = vector.load %arg4[%c0_6, %c0_7] : memref<16x120xbf16, #tpu.memory_space<vmem>>, vector<16x120xbf16>
    tpu.vector_store %arg4[%c0_6, %c0_7], %8 {strides = array<i32>} : memref<16x120xbf16, #tpu.memory_space<vmem>>, vector<16x120xbf16>,
    return
  }
  func.func @transform_0(%arg0: i32) -> (i32, i32) {
    %c0_i32 = arith.constant 0 : i32
    %c0_i32_0 = arith.constant 0 : i32
    return %arg0, %c0_i32 : i32, i32
  }
  func.func @transform_1(%arg0: i32) -> (i32, i32) {
    %c0_i32 = arith.constant 0 : i32
    %c0_i32_0 = arith.constant 0 : i32
    %c0_i32_1 = arith.constant 0 : i32
    return %c0_i32, %c0_i32_0 : i32, i32
  }
  func.func @transform_2(%arg0: i32) -> (i32, i32) {
    %c0_i32 = arith.constant 0 : i32
    %c0_i32_0 = arith.constant 0 : i32
    %c0_i32_1 = arith.constant 0 : i32
    return %c0_i32, %c0_i32_0 : i32, i32
  }
  func.func @transform_3(%arg0: i32) -> (i32, i32) {
    %c0_i32 = arith.constant 0 : i32
    %c0_i32_0 = arith.constant 0 : i32
    return %arg0, %c0_i32 : i32, i32
  }
}

module attributes {stable_mosaic.version = 11 : i64} {
  func.func @_mm1_kernel(%arg0: i32, %arg1: memref<16x40xbf16, #tpu.memory_space<vmem>>, %arg2: memref<40x240xbf16, #tpu.memory_space<vmem>>, %arg3: memref<1x240xf32, #tpu.memory_space<vmem>>, %arg4: memref<16x240xbf16, #tpu.memory_space<vmem>>) attributes {dimension_semantics = [#tpu.dimension_semantics<parallel>], iteration_bounds = array<i64: 2>, scalar_prefetch = 0 : i64, scratch_operands = 0 : i64, tpu.core_type = #tpu.core_type<tc>, window_params = [{transform_indices = @transform_0, window_bounds = array<i64: 16, 40>}, {pipeline_mode = #tpu.pipeline_mode<synchronous>, transform_indices = @transform_1, window_bounds = array<i64: 40, 240>}, {pipeline_mode = #tpu.pipeline_mode<synchronous>, transform_indices = @transform_2, window_bounds = array<i64: 1, 240>}, {transform_indices = @transform_3, window_bounds = array<i64: 16, 240>}]} {
    %c0 = arith.constant 0 : index
    %c0_0 = arith.constant 0 : index
    %0 = vector.load %arg1[%c0, %c0_0] : memref<16x40xbf16, #tpu.memory_space<vmem>>, vector<16x40xbf16>
    %c0_1 = arith.constant 0 : index
    %c0_2 = arith.constant 0 : index
    %1 = vector.load %arg2[%c0_1, %c0_2] : memref<40x240xbf16, #tpu.memory_space<vmem>>, vector<40x240xbf16>
    %cst = arith.constant dense<0.000000e+00> : vector<16x240xf32>
    %2 = tpu.matmul %0, %1, %cst {dimension_numbers = #tpu.dot_dimension_numbers<[1], [0], [0], [1], [0, 0, 1, 1], [], []>} : vector<16x40xbf16>, vector<40x240xbf16>, vector<16x240xf32> -> vector<16x240xf32>
    %c0_3 = arith.constant 0 : index
    %c0_4 = arith.constant 0 : index
    %3 = vector.load %arg3[%c0_3, %c0_4] : memref<1x240xf32, #tpu.memory_space<vmem>>, vector<1x240xf32>
    %4 = vector.broadcast %3 : vector<1x240xf32> to vector<16x240xf32>
    %5 = arith.addf %2, %4 : vector<16x240xf32>
    %cst_5 = arith.constant 0.000000e+00 : f32
    %6 = vector.broadcast %cst_5 : f32 to vector<16x240xf32>
    %7 = arith.maximumf %5, %6 : vector<16x240xf32>
    %8 = arith.truncf %7 : vector<16x240xf32> to vector<16x240xbf16>
    %c0_6 = arith.constant 0 : index
    %c0_7 = arith.constant 0 : index
    %9 = vector.load %arg4[%c0_6, %c0_7] : memref<16x240xbf16, #tpu.memory_space<vmem>>, vector<16x240xbf16>
    tpu.vector_store %arg4[%c0_6, %c0_7], %8 {strides = array<i32>} : memref<16x240xbf16, #tpu.memory_space<vmem>>, vector<16x240xbf16>,
    return
  }
  func.func @transform_0(%arg0: i32) -> (i32, i32) {
    %c0_i32 = arith.constant 0 : i32
    %c0_i32_0 = arith.constant 0 : i32
    return %arg0, %c0_i32 : i32, i32
  }
  func.func @transform_1(%arg0: i32) -> (i32, i32) {
    %c0_i32 = arith.constant 0 : i32
    %c0_i32_0 = arith.constant 0 : i32
    %c0_i32_1 = arith.constant 0 : i32
    return %c0_i32, %c0_i32_0 : i32, i32
  }
  func.func @transform_2(%arg0: i32) -> (i32, i32) {
    %c0_i32 = arith.constant 0 : i32
    %c0_i32_0 = arith.constant 0 : i32
    %c0_i32_1 = arith.constant 0 : i32
    return %c0_i32, %c0_i32_0 : i32, i32
  }
  func.func @transform_3(%arg0: i32) -> (i32, i32) {
    %c0_i32 = arith.constant 0 : i32
    %c0_i32_0 = arith.constant 0 : i32
    return %arg0, %c0_i32 : i32, i32
  }
}

module attributes {stable_mosaic.version = 11 : i64} {
  func.func @_mm1_kernel(%arg0: i32, %arg1: memref<8x240xbf16, #tpu.memory_space<vmem>>, %arg2: memref<240x80xbf16, #tpu.memory_space<vmem>>, %arg3: memref<1x80xf32, #tpu.memory_space<vmem>>, %arg4: memref<8x80xbf16, #tpu.memory_space<vmem>>) attributes {dimension_semantics = [#tpu.dimension_semantics<parallel>], iteration_bounds = array<i64: 1>, scalar_prefetch = 0 : i64, scratch_operands = 0 : i64, tpu.core_type = #tpu.core_type<tc>, window_params = [{transform_indices = @transform_0, window_bounds = array<i64: 8, 240>}, {pipeline_mode = #tpu.pipeline_mode<synchronous>, transform_indices = @transform_1, window_bounds = array<i64: 240, 80>}, {pipeline_mode = #tpu.pipeline_mode<synchronous>, transform_indices = @transform_2, window_bounds = array<i64: 1, 80>}, {transform_indices = @transform_3, window_bounds = array<i64: 8, 80>}]} {
    %c0 = arith.constant 0 : index
    %c0_0 = arith.constant 0 : index
    %0 = vector.load %arg1[%c0, %c0_0] : memref<8x240xbf16, #tpu.memory_space<vmem>>, vector<8x240xbf16>
    %c0_1 = arith.constant 0 : index
    %c0_2 = arith.constant 0 : index
    %1 = vector.load %arg2[%c0_1, %c0_2] : memref<240x80xbf16, #tpu.memory_space<vmem>>, vector<240x80xbf16>
    %cst = arith.constant dense<0.000000e+00> : vector<8x80xf32>
    %2 = tpu.matmul %0, %1, %cst {dimension_numbers = #tpu.dot_dimension_numbers<[1], [0], [0], [1], [0, 0, 1, 1], [], []>} : vector<8x240xbf16>, vector<240x80xbf16>, vector<8x80xf32> -> vector<8x80xf32>
    %c0_3 = arith.constant 0 : index
    %c0_4 = arith.constant 0 : index
    %3 = vector.load %arg3[%c0_3, %c0_4] : memref<1x80xf32, #tpu.memory_space<vmem>>, vector<1x80xf32>
    %4 = vector.broadcast %3 : vector<1x80xf32> to vector<8x80xf32>
    %5 = arith.addf %2, %4 : vector<8x80xf32>
    %6 = arith.truncf %5 : vector<8x80xf32> to vector<8x80xbf16>
    %c0_5 = arith.constant 0 : index
    %c0_6 = arith.constant 0 : index
    %7 = vector.load %arg4[%c0_5, %c0_6] : memref<8x80xbf16, #tpu.memory_space<vmem>>, vector<8x80xbf16>
    tpu.vector_store %arg4[%c0_5, %c0_6], %6 {strides = array<i32>} : memref<8x80xbf16, #tpu.memory_space<vmem>>, vector<8x80xbf16>,
    return
  }
  func.func @transform_0(%arg0: i32) -> (i32, i32) {
    %c0_i32 = arith.constant 0 : i32
    %c0_i32_0 = arith.constant 0 : i32
    return %arg0, %c0_i32 : i32, i32
  }
  func.func @transform_1(%arg0: i32) -> (i32, i32) {
    %c0_i32 = arith.constant 0 : i32
    %c0_i32_0 = arith.constant 0 : i32
    %c0_i32_1 = arith.constant 0 : i32
    return %c0_i32, %c0_i32_0 : i32, i32
  }
  func.func @transform_2(%arg0: i32) -> (i32, i32) {
    %c0_i32 = arith.constant 0 : i32
    %c0_i32_0 = arith.constant 0 : i32
    %c0_i32_1 = arith.constant 0 : i32
    return %c0_i32, %c0_i32_0 : i32, i32
  }
  func.func @transform_3(%arg0: i32) -> (i32, i32) {
    %c0_i32 = arith.constant 0 : i32
    %c0_i32_0 = arith.constant 0 : i32
    return %arg0, %c0_i32 : i32, i32
  }
}

module attributes {stable_mosaic.version = 11 : i64} {
  func.func @_mm1_kernel(%arg0: i32, %arg1: memref<8x80xbf16, #tpu.memory_space<vmem>>, %arg2: memref<80x480xbf16, #tpu.memory_space<vmem>>, %arg3: memref<1x480xf32, #tpu.memory_space<vmem>>, %arg4: memref<8x480xbf16, #tpu.memory_space<vmem>>) attributes {dimension_semantics = [#tpu.dimension_semantics<parallel>], iteration_bounds = array<i64: 1>, scalar_prefetch = 0 : i64, scratch_operands = 0 : i64, tpu.core_type = #tpu.core_type<tc>, window_params = [{transform_indices = @transform_0, window_bounds = array<i64: 8, 80>}, {pipeline_mode = #tpu.pipeline_mode<synchronous>, transform_indices = @transform_1, window_bounds = array<i64: 80, 480>}, {pipeline_mode = #tpu.pipeline_mode<synchronous>, transform_indices = @transform_2, window_bounds = array<i64: 1, 480>}, {transform_indices = @transform_3, window_bounds = array<i64: 8, 480>}]} {
    %c0 = arith.constant 0 : index
    %c0_0 = arith.constant 0 : index
    %0 = vector.load %arg1[%c0, %c0_0] : memref<8x80xbf16, #tpu.memory_space<vmem>>, vector<8x80xbf16>
    %c0_1 = arith.constant 0 : index
    %c0_2 = arith.constant 0 : index
    %1 = vector.load %arg2[%c0_1, %c0_2] : memref<80x480xbf16, #tpu.memory_space<vmem>>, vector<80x480xbf16>
    %cst = arith.constant dense<0.000000e+00> : vector<8x480xf32>
    %2 = tpu.matmul %0, %1, %cst {dimension_numbers = #tpu.dot_dimension_numbers<[1], [0], [0], [1], [0, 0, 1, 1], [], []>} : vector<8x80xbf16>, vector<80x480xbf16>, vector<8x480xf32> -> vector<8x480xf32>
    %c0_3 = arith.constant 0 : index
    %c0_4 = arith.constant 0 : index
    %3 = vector.load %arg3[%c0_3, %c0_4] : memref<1x480xf32, #tpu.memory_space<vmem>>, vector<1x480xf32>
    %4 = vector.broadcast %3 : vector<1x480xf32> to vector<8x480xf32>
    %5 = arith.addf %2, %4 : vector<8x480xf32>
    %cst_5 = arith.constant 0.000000e+00 : f32
    %6 = vector.broadcast %cst_5 : f32 to vector<8x480xf32>
    %7 = arith.maximumf %5, %6 : vector<8x480xf32>
    %8 = arith.truncf %7 : vector<8x480xf32> to vector<8x480xbf16>
    %c0_6 = arith.constant 0 : index
    %c0_7 = arith.constant 0 : index
    %9 = vector.load %arg4[%c0_6, %c0_7] : memref<8x480xbf16, #tpu.memory_space<vmem>>, vector<8x480xbf16>
    tpu.vector_store %arg4[%c0_6, %c0_7], %8 {strides = array<i32>} : memref<8x480xbf16, #tpu.memory_space<vmem>>, vector<8x480xbf16>,
    return
  }
  func.func @transform_0(%arg0: i32) -> (i32, i32) {
    %c0_i32 = arith.constant 0 : i32
    %c0_i32_0 = arith.constant 0 : i32
    return %arg0, %c0_i32 : i32, i32
  }
  func.func @transform_1(%arg0: i32) -> (i32, i32) {
    %c0_i32 = arith.constant 0 : i32
    %c0_i32_0 = arith.constant 0 : i32
    %c0_i32_1 = arith.constant 0 : i32
    return %c0_i32, %c0_i32_0 : i32, i32
  }
  func.func @transform_2(%arg0: i32) -> (i32, i32) {
    %c0_i32 = arith.constant 0 : i32
    %c0_i32_0 = arith.constant 0 : i32
    %c0_i32_1 = arith.constant 0 : i32
    return %c0_i32, %c0_i32_0 : i32, i32
  }
  func.func @transform_3(%arg0: i32) -> (i32, i32) {
    %c0_i32 = arith.constant 0 : i32
    %c0_i32_0 = arith.constant 0 : i32
    return %arg0, %c0_i32 : i32, i32
  }
}

module attributes {stable_mosaic.version = 11 : i64} {
  func.func @_mm1_kernel(%arg0: i32, %arg1: memref<8x480xbf16, #tpu.memory_space<vmem>>, %arg2: memref<480x80xbf16, #tpu.memory_space<vmem>>, %arg3: memref<1x80xf32, #tpu.memory_space<vmem>>, %arg4: memref<8x80xbf16, #tpu.memory_space<vmem>>) attributes {dimension_semantics = [#tpu.dimension_semantics<parallel>], iteration_bounds = array<i64: 1>, scalar_prefetch = 0 : i64, scratch_operands = 0 : i64, tpu.core_type = #tpu.core_type<tc>, window_params = [{transform_indices = @transform_0, window_bounds = array<i64: 8, 480>}, {pipeline_mode = #tpu.pipeline_mode<synchronous>, transform_indices = @transform_1, window_bounds = array<i64: 480, 80>}, {pipeline_mode = #tpu.pipeline_mode<synchronous>, transform_indices = @transform_2, window_bounds = array<i64: 1, 80>}, {transform_indices = @transform_3, window_bounds = array<i64: 8, 80>}]} {
    %c0 = arith.constant 0 : index
    %c0_0 = arith.constant 0 : index
    %0 = vector.load %arg1[%c0, %c0_0] : memref<8x480xbf16, #tpu.memory_space<vmem>>, vector<8x480xbf16>
    %c0_1 = arith.constant 0 : index
    %c0_2 = arith.constant 0 : index
    %1 = vector.load %arg2[%c0_1, %c0_2] : memref<480x80xbf16, #tpu.memory_space<vmem>>, vector<480x80xbf16>
    %cst = arith.constant dense<0.000000e+00> : vector<8x80xf32>
    %2 = tpu.matmul %0, %1, %cst {dimension_numbers = #tpu.dot_dimension_numbers<[1], [0], [0], [1], [0, 0, 1, 1], [], []>} : vector<8x480xbf16>, vector<480x80xbf16>, vector<8x80xf32> -> vector<8x80xf32>
    %c0_3 = arith.constant 0 : index
    %c0_4 = arith.constant 0 : index
    %3 = vector.load %arg3[%c0_3, %c0_4] : memref<1x80xf32, #tpu.memory_space<vmem>>, vector<1x80xf32>
    %4 = vector.broadcast %3 : vector<1x80xf32> to vector<8x80xf32>
    %5 = arith.addf %2, %4 : vector<8x80xf32>
    %6 = arith.truncf %5 : vector<8x80xf32> to vector<8x80xbf16>
    %c0_5 = arith.constant 0 : index
    %c0_6 = arith.constant 0 : index
    %7 = vector.load %arg4[%c0_5, %c0_6] : memref<8x80xbf16, #tpu.memory_space<vmem>>, vector<8x80xbf16>
    tpu.vector_store %arg4[%c0_5, %c0_6], %6 {strides = array<i32>} : memref<8x80xbf16, #tpu.memory_space<vmem>>, vector<8x80xbf16>,
    return
  }
  func.func @transform_0(%arg0: i32) -> (i32, i32) {
    %c0_i32 = arith.constant 0 : i32
    %c0_i32_0 = arith.constant 0 : i32
    return %arg0, %c0_i32 : i32, i32
  }
  func.func @transform_1(%arg0: i32) -> (i32, i32) {
    %c0_i32 = arith.constant 0 : i32
    %c0_i32_0 = arith.constant 0 : i32
    %c0_i32_1 = arith.constant 0 : i32
    return %c0_i32, %c0_i32_0 : i32, i32
  }
  func.func @transform_2(%arg0: i32) -> (i32, i32) {
    %c0_i32 = arith.constant 0 : i32
    %c0_i32_0 = arith.constant 0 : i32
    %c0_i32_1 = arith.constant 0 : i32
    return %c0_i32, %c0_i32_0 : i32, i32
  }
  func.func @transform_3(%arg0: i32) -> (i32, i32) {
    %c0_i32 = arith.constant 0 : i32
    %c0_i32_0 = arith.constant 0 : i32
    return %arg0, %c0_i32 : i32, i32
  }
}

module attributes {stable_mosaic.version = 11 : i64} {
  func.func @_mm2_kernel(%arg0: i32, %arg1: memref<8x720xbf16, #tpu.memory_space<vmem>>, %arg2: memref<720x320xbf16, #tpu.memory_space<vmem>>, %arg3: memref<1x320xf32, #tpu.memory_space<vmem>>, %arg4: memref<320x160xbf16, #tpu.memory_space<vmem>>, %arg5: memref<1x160xf32, #tpu.memory_space<vmem>>, %arg6: memref<8x160xbf16, #tpu.memory_space<vmem>>) attributes {dimension_semantics = [#tpu.dimension_semantics<parallel>], iteration_bounds = array<i64: 1>, scalar_prefetch = 0 : i64, scratch_operands = 0 : i64, tpu.core_type = #tpu.core_type<tc>, window_params = [{transform_indices = @transform_0, window_bounds = array<i64: 8, 720>}, {pipeline_mode = #tpu.pipeline_mode<synchronous>, transform_indices = @transform_1, window_bounds = array<i64: 720, 320>}, {pipeline_mode = #tpu.pipeline_mode<synchronous>, transform_indices = @transform_2, window_bounds = array<i64: 1, 320>}, {pipeline_mode = #tpu.pipeline_mode<synchronous>, transform_indices = @transform_3, window_bounds = array<i64: 320, 160>}, {pipeline_mode = #tpu.pipeline_mode<synchronous>, transform_indices = @transform_4, window_bounds = array<i64: 1, 160>}, {transform_indices = @transform_5, window_bounds = array<i64: 8, 160>}]} {
    %c0 = arith.constant 0 : index
    %c0_0 = arith.constant 0 : index
    %0 = vector.load %arg1[%c0, %c0_0] : memref<8x720xbf16, #tpu.memory_space<vmem>>, vector<8x720xbf16>
    %c0_1 = arith.constant 0 : index
    %c0_2 = arith.constant 0 : index
    %1 = vector.load %arg2[%c0_1, %c0_2] : memref<720x320xbf16, #tpu.memory_space<vmem>>, vector<720x320xbf16>
    %cst = arith.constant dense<0.000000e+00> : vector<8x320xf32>
    %2 = tpu.matmul %0, %1, %cst {dimension_numbers = #tpu.dot_dimension_numbers<[1], [0], [0], [1], [0, 0, 1, 1], [], []>} : vector<8x720xbf16>, vector<720x320xbf16>, vector<8x320xf32> -> vector<8x320xf32>
    %c0_3 = arith.constant 0 : index
    %c0_4 = arith.constant 0 : index
    %3 = vector.load %arg3[%c0_3, %c0_4] : memref<1x320xf32, #tpu.memory_space<vmem>>, vector<1x320xf32>
    %4 = vector.broadcast %3 : vector<1x320xf32> to vector<8x320xf32>
    %5 = arith.addf %2, %4 : vector<8x320xf32>
    %cst_5 = arith.constant 0.000000e+00 : f32
    %6 = vector.broadcast %cst_5 : f32 to vector<8x320xf32>
    %7 = arith.maximumf %5, %6 : vector<8x320xf32>
    %8 = arith.truncf %7 : vector<8x320xf32> to vector<8x320xbf16>
    %c0_6 = arith.constant 0 : index
    %c0_7 = arith.constant 0 : index
    %9 = vector.load %arg4[%c0_6, %c0_7] : memref<320x160xbf16, #tpu.memory_space<vmem>>, vector<320x160xbf16>
    %cst_8 = arith.constant dense<0.000000e+00> : vector<8x160xf32>
    %10 = tpu.matmul %8, %9, %cst_8 {dimension_numbers = #tpu.dot_dimension_numbers<[1], [0], [0], [1], [0, 0, 1, 1], [], []>} : vector<8x320xbf16>, vector<320x160xbf16>, vector<8x160xf32> -> vector<8x160xf32>
    %c0_9 = arith.constant 0 : index
    %c0_10 = arith.constant 0 : index
    %11 = vector.load %arg5[%c0_9, %c0_10] : memref<1x160xf32, #tpu.memory_space<vmem>>, vector<1x160xf32>
    %12 = vector.broadcast %11 : vector<1x160xf32> to vector<8x160xf32>
    %13 = arith.addf %10, %12 : vector<8x160xf32>
    %cst_11 = arith.constant 0.000000e+00 : f32
    %14 = vector.broadcast %cst_11 : f32 to vector<8x160xf32>
    %15 = arith.maximumf %13, %14 : vector<8x160xf32>
    %16 = arith.truncf %15 : vector<8x160xf32> to vector<8x160xbf16>
    %c0_12 = arith.constant 0 : index
    %c0_13 = arith.constant 0 : index
    %17 = vector.load %arg6[%c0_12, %c0_13] : memref<8x160xbf16, #tpu.memory_space<vmem>>, vector<8x160xbf16>
    tpu.vector_store %arg6[%c0_12, %c0_13], %16 {strides = array<i32>} : memref<8x160xbf16, #tpu.memory_space<vmem>>, vector<8x160xbf16>,
    return
  }
  func.func @transform_0(%arg0: i32) -> (i32, i32) {
    %c0_i32 = arith.constant 0 : i32
    %c0_i32_0 = arith.constant 0 : i32
    return %arg0, %c0_i32 : i32, i32
  }
  func.func @transform_1(%arg0: i32) -> (i32, i32) {
    %c0_i32 = arith.constant 0 : i32
    %c0_i32_0 = arith.constant 0 : i32
    %c0_i32_1 = arith.constant 0 : i32
    return %c0_i32, %c0_i32_0 : i32, i32
  }
  func.func @transform_2(%arg0: i32) -> (i32, i32) {
    %c0_i32 = arith.constant 0 : i32
    %c0_i32_0 = arith.constant 0 : i32
    %c0_i32_1 = arith.constant 0 : i32
    return %c0_i32, %c0_i32_0 : i32, i32
  }
  func.func @transform_3(%arg0: i32) -> (i32, i32) {
    %c0_i32 = arith.constant 0 : i32
    %c0_i32_0 = arith.constant 0 : i32
    %c0_i32_1 = arith.constant 0 : i32
    return %c0_i32, %c0_i32_0 : i32, i32
  }
  func.func @transform_4(%arg0: i32) -> (i32, i32) {
    %c0_i32 = arith.constant 0 : i32
    %c0_i32_0 = arith.constant 0 : i32
    %c0_i32_1 = arith.constant 0 : i32
    return %c0_i32, %c0_i32_0 : i32, i32
  }
  func.func @transform_5(%arg0: i32) -> (i32, i32) {
    %c0_i32 = arith.constant 0 : i32
    %c0_i32_0 = arith.constant 0 : i32
    return %arg0, %c0_i32 : i32, i32
  }
}

module attributes {stable_mosaic.version = 11 : i64} {
  func.func @_mm2_kernel(%arg0: i32, %arg1: memref<16x360xbf16, #tpu.memory_space<vmem>>, %arg2: memref<360x160xbf16, #tpu.memory_space<vmem>>, %arg3: memref<1x160xf32, #tpu.memory_space<vmem>>, %arg4: memref<160x80xbf16, #tpu.memory_space<vmem>>, %arg5: memref<1x80xf32, #tpu.memory_space<vmem>>, %arg6: memref<16x80xbf16, #tpu.memory_space<vmem>>) attributes {dimension_semantics = [#tpu.dimension_semantics<parallel>], iteration_bounds = array<i64: 2>, scalar_prefetch = 0 : i64, scratch_operands = 0 : i64, tpu.core_type = #tpu.core_type<tc>, window_params = [{transform_indices = @transform_0, window_bounds = array<i64: 16, 360>}, {pipeline_mode = #tpu.pipeline_mode<synchronous>, transform_indices = @transform_1, window_bounds = array<i64: 360, 160>}, {pipeline_mode = #tpu.pipeline_mode<synchronous>, transform_indices = @transform_2, window_bounds = array<i64: 1, 160>}, {pipeline_mode = #tpu.pipeline_mode<synchronous>, transform_indices = @transform_3, window_bounds = array<i64: 160, 80>}, {pipeline_mode = #tpu.pipeline_mode<synchronous>, transform_indices = @transform_4, window_bounds = array<i64: 1, 80>}, {transform_indices = @transform_5, window_bounds = array<i64: 16, 80>}]} {
    %c0 = arith.constant 0 : index
    %c0_0 = arith.constant 0 : index
    %0 = vector.load %arg1[%c0, %c0_0] : memref<16x360xbf16, #tpu.memory_space<vmem>>, vector<16x360xbf16>
    %c0_1 = arith.constant 0 : index
    %c0_2 = arith.constant 0 : index
    %1 = vector.load %arg2[%c0_1, %c0_2] : memref<360x160xbf16, #tpu.memory_space<vmem>>, vector<360x160xbf16>
    %cst = arith.constant dense<0.000000e+00> : vector<16x160xf32>
    %2 = tpu.matmul %0, %1, %cst {dimension_numbers = #tpu.dot_dimension_numbers<[1], [0], [0], [1], [0, 0, 1, 1], [], []>} : vector<16x360xbf16>, vector<360x160xbf16>, vector<16x160xf32> -> vector<16x160xf32>
    %c0_3 = arith.constant 0 : index
    %c0_4 = arith.constant 0 : index
    %3 = vector.load %arg3[%c0_3, %c0_4] : memref<1x160xf32, #tpu.memory_space<vmem>>, vector<1x160xf32>
    %4 = vector.broadcast %3 : vector<1x160xf32> to vector<16x160xf32>
    %5 = arith.addf %2, %4 : vector<16x160xf32>
    %cst_5 = arith.constant 0.000000e+00 : f32
    %6 = vector.broadcast %cst_5 : f32 to vector<16x160xf32>
    %7 = arith.maximumf %5, %6 : vector<16x160xf32>
    %8 = arith.truncf %7 : vector<16x160xf32> to vector<16x160xbf16>
    %c0_6 = arith.constant 0 : index
    %c0_7 = arith.constant 0 : index
    %9 = vector.load %arg4[%c0_6, %c0_7] : memref<160x80xbf16, #tpu.memory_space<vmem>>, vector<160x80xbf16>
    %cst_8 = arith.constant dense<0.000000e+00> : vector<16x80xf32>
    %10 = tpu.matmul %8, %9, %cst_8 {dimension_numbers = #tpu.dot_dimension_numbers<[1], [0], [0], [1], [0, 0, 1, 1], [], []>} : vector<16x160xbf16>, vector<160x80xbf16>, vector<16x80xf32> -> vector<16x80xf32>
    %c0_9 = arith.constant 0 : index
    %c0_10 = arith.constant 0 : index
    %11 = vector.load %arg5[%c0_9, %c0_10] : memref<1x80xf32, #tpu.memory_space<vmem>>, vector<1x80xf32>
    %12 = vector.broadcast %11 : vector<1x80xf32> to vector<16x80xf32>
    %13 = arith.addf %10, %12 : vector<16x80xf32>
    %cst_11 = arith.constant 0.000000e+00 : f32
    %14 = vector.broadcast %cst_11 : f32 to vector<16x80xf32>
    %15 = arith.maximumf %13, %14 : vector<16x80xf32>
    %16 = arith.truncf %15 : vector<16x80xf32> to vector<16x80xbf16>
    %c0_12 = arith.constant 0 : index
    %c0_13 = arith.constant 0 : index
    %17 = vector.load %arg6[%c0_12, %c0_13] : memref<16x80xbf16, #tpu.memory_space<vmem>>, vector<16x80xbf16>
    tpu.vector_store %arg6[%c0_12, %c0_13], %16 {strides = array<i32>} : memref<16x80xbf16, #tpu.memory_space<vmem>>, vector<16x80xbf16>,
    return
  }
  func.func @transform_0(%arg0: i32) -> (i32, i32) {
    %c0_i32 = arith.constant 0 : i32
    %c0_i32_0 = arith.constant 0 : i32
    return %arg0, %c0_i32 : i32, i32
  }
  func.func @transform_1(%arg0: i32) -> (i32, i32) {
    %c0_i32 = arith.constant 0 : i32
    %c0_i32_0 = arith.constant 0 : i32
    %c0_i32_1 = arith.constant 0 : i32
    return %c0_i32, %c0_i32_0 : i32, i32
  }
  func.func @transform_2(%arg0: i32) -> (i32, i32) {
    %c0_i32 = arith.constant 0 : i32
    %c0_i32_0 = arith.constant 0 : i32
    %c0_i32_1 = arith.constant 0 : i32
    return %c0_i32, %c0_i32_0 : i32, i32
  }
  func.func @transform_3(%arg0: i32) -> (i32, i32) {
    %c0_i32 = arith.constant 0 : i32
    %c0_i32_0 = arith.constant 0 : i32
    %c0_i32_1 = arith.constant 0 : i32
    return %c0_i32, %c0_i32_0 : i32, i32
  }
  func.func @transform_4(%arg0: i32) -> (i32, i32) {
    %c0_i32 = arith.constant 0 : i32
    %c0_i32_0 = arith.constant 0 : i32
    %c0_i32_1 = arith.constant 0 : i32
    return %c0_i32, %c0_i32_0 : i32, i32
  }
  func.func @transform_5(%arg0: i32) -> (i32, i32) {
    %c0_i32 = arith.constant 0 : i32
    %c0_i32_0 = arith.constant 0 : i32
    return %arg0, %c0_i32 : i32, i32
  }
}

module attributes {stable_mosaic.version = 11 : i64} {
  func.func @_mm2_kernel(%arg0: i32, %arg1: memref<64x180xbf16, #tpu.memory_space<vmem>>, %arg2: memref<180x80xbf16, #tpu.memory_space<vmem>>, %arg3: memref<1x80xf32, #tpu.memory_space<vmem>>, %arg4: memref<80x40xbf16, #tpu.memory_space<vmem>>, %arg5: memref<1x40xf32, #tpu.memory_space<vmem>>, %arg6: memref<64x40xbf16, #tpu.memory_space<vmem>>) attributes {dimension_semantics = [#tpu.dimension_semantics<parallel>], iteration_bounds = array<i64: 2>, scalar_prefetch = 0 : i64, scratch_operands = 0 : i64, tpu.core_type = #tpu.core_type<tc>, window_params = [{transform_indices = @transform_0, window_bounds = array<i64: 64, 180>}, {pipeline_mode = #tpu.pipeline_mode<synchronous>, transform_indices = @transform_1, window_bounds = array<i64: 180, 80>}, {pipeline_mode = #tpu.pipeline_mode<synchronous>, transform_indices = @transform_2, window_bounds = array<i64: 1, 80>}, {pipeline_mode = #tpu.pipeline_mode<synchronous>, transform_indices = @transform_3, window_bounds = array<i64: 80, 40>}, {pipeline_mode = #tpu.pipeline_mode<synchronous>, transform_indices = @transform_4, window_bounds = array<i64: 1, 40>}, {transform_indices = @transform_5, window_bounds = array<i64: 64, 40>}]} {
    %c0 = arith.constant 0 : index
    %c0_0 = arith.constant 0 : index
    %0 = vector.load %arg1[%c0, %c0_0] : memref<64x180xbf16, #tpu.memory_space<vmem>>, vector<64x180xbf16>
    %c0_1 = arith.constant 0 : index
    %c0_2 = arith.constant 0 : index
    %1 = vector.load %arg2[%c0_1, %c0_2] : memref<180x80xbf16, #tpu.memory_space<vmem>>, vector<180x80xbf16>
    %cst = arith.constant dense<0.000000e+00> : vector<64x80xf32>
    %2 = tpu.matmul %0, %1, %cst {dimension_numbers = #tpu.dot_dimension_numbers<[1], [0], [0], [1], [0, 0, 1, 1], [], []>} : vector<64x180xbf16>, vector<180x80xbf16>, vector<64x80xf32> -> vector<64x80xf32>
    %c0_3 = arith.constant 0 : index
    %c0_4 = arith.constant 0 : index
    %3 = vector.load %arg3[%c0_3, %c0_4] : memref<1x80xf32, #tpu.memory_space<vmem>>, vector<1x80xf32>
    %4 = vector.broadcast %3 : vector<1x80xf32> to vector<64x80xf32>
    %5 = arith.addf %2, %4 : vector<64x80xf32>
    %cst_5 = arith.constant 0.000000e+00 : f32
    %6 = vector.broadcast %cst_5 : f32 to vector<64x80xf32>
    %7 = arith.maximumf %5, %6 : vector<64x80xf32>
    %8 = arith.truncf %7 : vector<64x80xf32> to vector<64x80xbf16>
    %c0_6 = arith.constant 0 : index
    %c0_7 = arith.constant 0 : index
    %9 = vector.load %arg4[%c0_6, %c0_7] : memref<80x40xbf16, #tpu.memory_space<vmem>>, vector<80x40xbf16>
    %cst_8 = arith.constant dense<0.000000e+00> : vector<64x40xf32>
    %10 = tpu.matmul %8, %9, %cst_8 {dimension_numbers = #tpu.dot_dimension_numbers<[1], [0], [0], [1], [0, 0, 1, 1], [], []>} : vector<64x80xbf16>, vector<80x40xbf16>, vector<64x40xf32> -> vector<64x40xf32>
    %c0_9 = arith.constant 0 : index
    %c0_10 = arith.constant 0 : index
    %11 = vector.load %arg5[%c0_9, %c0_10] : memref<1x40xf32, #tpu.memory_space<vmem>>, vector<1x40xf32>
    %12 = vector.broadcast %11 : vector<1x40xf32> to vector<64x40xf32>
    %13 = arith.addf %10, %12 : vector<64x40xf32>
    %cst_11 = arith.constant 0.000000e+00 : f32
    %14 = vector.broadcast %cst_11 : f32 to vector<64x40xf32>
    %15 = arith.maximumf %13, %14 : vector<64x40xf32>
    %16 = arith.truncf %15 : vector<64x40xf32> to vector<64x40xbf16>
    %c0_12 = arith.constant 0 : index
    %c0_13 = arith.constant 0 : index
    %17 = vector.load %arg6[%c0_12, %c0_13] : memref<64x40xbf16, #tpu.memory_space<vmem>>, vector<64x40xbf16>
    tpu.vector_store %arg6[%c0_12, %c0_13], %16 {strides = array<i32>} : memref<64x40xbf16, #tpu.memory_space<vmem>>, vector<64x40xbf16>,
    return
  }
  func.func @transform_0(%arg0: i32) -> (i32, i32) {
    %c0_i32 = arith.constant 0 : i32
    %c0_i32_0 = arith.constant 0 : i32
    return %arg0, %c0_i32 : i32, i32
  }
  func.func @transform_1(%arg0: i32) -> (i32, i32) {
    %c0_i32 = arith.constant 0 : i32
    %c0_i32_0 = arith.constant 0 : i32
    %c0_i32_1 = arith.constant 0 : i32
    return %c0_i32, %c0_i32_0 : i32, i32
  }
  func.func @transform_2(%arg0: i32) -> (i32, i32) {
    %c0_i32 = arith.constant 0 : i32
    %c0_i32_0 = arith.constant 0 : i32
    %c0_i32_1 = arith.constant 0 : i32
    return %c0_i32, %c0_i32_0 : i32, i32
  }
  func.func @transform_3(%arg0: i32) -> (i32, i32) {
    %c0_i32 = arith.constant 0 : i32
    %c0_i32_0 = arith.constant 0 : i32
    %c0_i32_1 = arith.constant 0 : i32
    return %c0_i32, %c0_i32_0 : i32, i32
  }
  func.func @transform_4(%arg0: i32) -> (i32, i32) {
    %c0_i32 = arith.constant 0 : i32
    %c0_i32_0 = arith.constant 0 : i32
    %c0_i32_1 = arith.constant 0 : i32
    return %c0_i32, %c0_i32_0 : i32, i32
  }
  func.func @transform_5(%arg0: i32) -> (i32, i32) {
    %c0_i32 = arith.constant 0 : i32
    %c0_i32_0 = arith.constant 0 : i32
    return %arg0, %c0_i32 : i32, i32
  }
}

module attributes {stable_mosaic.version = 11 : i64} {
  func.func @_mm2_kernel(%arg0: i32, %arg1: memref<256x90xbf16, #tpu.memory_space<vmem>>, %arg2: memref<90x40xbf16, #tpu.memory_space<vmem>>, %arg3: memref<1x40xf32, #tpu.memory_space<vmem>>, %arg4: memref<40x12xbf16, #tpu.memory_space<vmem>>, %arg5: memref<1x12xf32, #tpu.memory_space<vmem>>, %arg6: memref<256x12xbf16, #tpu.memory_space<vmem>>) attributes {dimension_semantics = [#tpu.dimension_semantics<parallel>], iteration_bounds = array<i64: 2>, scalar_prefetch = 0 : i64, scratch_operands = 0 : i64, tpu.core_type = #tpu.core_type<tc>, window_params = [{transform_indices = @transform_0, window_bounds = array<i64: 256, 90>}, {pipeline_mode = #tpu.pipeline_mode<synchronous>, transform_indices = @transform_1, window_bounds = array<i64: 90, 40>}, {pipeline_mode = #tpu.pipeline_mode<synchronous>, transform_indices = @transform_2, window_bounds = array<i64: 1, 40>}, {pipeline_mode = #tpu.pipeline_mode<synchronous>, transform_indices = @transform_3, window_bounds = array<i64: 40, 12>}, {pipeline_mode = #tpu.pipeline_mode<synchronous>, transform_indices = @transform_4, window_bounds = array<i64: 1, 12>}, {transform_indices = @transform_5, window_bounds = array<i64: 256, 12>}]} {
    %c0 = arith.constant 0 : index
    %c0_0 = arith.constant 0 : index
    %0 = vector.load %arg1[%c0, %c0_0] : memref<256x90xbf16, #tpu.memory_space<vmem>>, vector<256x90xbf16>
    %c0_1 = arith.constant 0 : index
    %c0_2 = arith.constant 0 : index
    %1 = vector.load %arg2[%c0_1, %c0_2] : memref<90x40xbf16, #tpu.memory_space<vmem>>, vector<90x40xbf16>
    %cst = arith.constant dense<0.000000e+00> : vector<256x40xf32>
    %2 = tpu.matmul %0, %1, %cst {dimension_numbers = #tpu.dot_dimension_numbers<[1], [0], [0], [1], [0, 0, 1, 1], [], []>} : vector<256x90xbf16>, vector<90x40xbf16>, vector<256x40xf32> -> vector<256x40xf32>
    %c0_3 = arith.constant 0 : index
    %c0_4 = arith.constant 0 : index
    %3 = vector.load %arg3[%c0_3, %c0_4] : memref<1x40xf32, #tpu.memory_space<vmem>>, vector<1x40xf32>
    %4 = vector.broadcast %3 : vector<1x40xf32> to vector<256x40xf32>
    %5 = arith.addf %2, %4 : vector<256x40xf32>
    %cst_5 = arith.constant 0.000000e+00 : f32
    %6 = vector.broadcast %cst_5 : f32 to vector<256x40xf32>
    %7 = arith.maximumf %5, %6 : vector<256x40xf32>
    %8 = arith.truncf %7 : vector<256x40xf32> to vector<256x40xbf16>
    %c0_6 = arith.constant 0 : index
    %c0_7 = arith.constant 0 : index
    %9 = vector.load %arg4[%c0_6, %c0_7] : memref<40x12xbf16, #tpu.memory_space<vmem>>, vector<40x12xbf16>
    %cst_8 = arith.constant dense<0.000000e+00> : vector<256x12xf32>
    %10 = tpu.matmul %8, %9, %cst_8 {dimension_numbers = #tpu.dot_dimension_numbers<[1], [0], [0], [1], [0, 0, 1, 1], [], []>} : vector<256x40xbf16>, vector<40x12xbf16>, vector<256x12xf32> -> vector<256x12xf32>
    %c0_9 = arith.constant 0 : index
    %c0_10 = arith.constant 0 : index
    %11 = vector.load %arg5[%c0_9, %c0_10] : memref<1x12xf32, #tpu.memory_space<vmem>>, vector<1x12xf32>
    %12 = vector.broadcast %11 : vector<1x12xf32> to vector<256x12xf32>
    %13 = arith.addf %10, %12 : vector<256x12xf32>
    %14 = arith.truncf %13 : vector<256x12xf32> to vector<256x12xbf16>
    %c0_11 = arith.constant 0 : index
    %c0_12 = arith.constant 0 : index
    %15 = vector.load %arg6[%c0_11, %c0_12] : memref<256x12xbf16, #tpu.memory_space<vmem>>, vector<256x12xbf16>
    tpu.vector_store %arg6[%c0_11, %c0_12], %14 {strides = array<i32>} : memref<256x12xbf16, #tpu.memory_space<vmem>>, vector<256x12xbf16>,
    return
  }
  func.func @transform_0(%arg0: i32) -> (i32, i32) {
    %c0_i32 = arith.constant 0 : i32
    %c0_i32_0 = arith.constant 0 : i32
    return %arg0, %c0_i32 : i32, i32
  }
  func.func @transform_1(%arg0: i32) -> (i32, i32) {
    %c0_i32 = arith.constant 0 : i32
    %c0_i32_0 = arith.constant 0 : i32
    %c0_i32_1 = arith.constant 0 : i32
    return %c0_i32, %c0_i32_0 : i32, i32
  }
  func.func @transform_2(%arg0: i32) -> (i32, i32) {
    %c0_i32 = arith.constant 0 : i32
    %c0_i32_0 = arith.constant 0 : i32
    %c0_i32_1 = arith.constant 0 : i32
    return %c0_i32, %c0_i32_0 : i32, i32
  }
  func.func @transform_3(%arg0: i32) -> (i32, i32) {
    %c0_i32 = arith.constant 0 : i32
    %c0_i32_0 = arith.constant 0 : i32
    %c0_i32_1 = arith.constant 0 : i32
    return %c0_i32, %c0_i32_0 : i32, i32
  }
  func.func @transform_4(%arg0: i32) -> (i32, i32) {
    %c0_i32 = arith.constant 0 : i32
    %c0_i32_0 = arith.constant 0 : i32
    %c0_i32_1 = arith.constant 0 : i32
    return %c0_i32, %c0_i32_0 : i32, i32
  }
  func.func @transform_5(%arg0: i32) -> (i32, i32) {
    %c0_i32 = arith.constant 0 : i32
    %c0_i32_0 = arith.constant 0 : i32
    return %arg0, %c0_i32 : i32, i32
  }
}

module attributes {stable_mosaic.version = 11 : i64} {
  func.func @_mm1_kernel(%arg0: i32, %arg1: memref<8x768xbf16, #tpu.memory_space<vmem>>, %arg2: memref<768x32xbf16, #tpu.memory_space<vmem>>, %arg3: memref<1x32xf32, #tpu.memory_space<vmem>>, %arg4: memref<8x32xf32, #tpu.memory_space<vmem>>) attributes {dimension_semantics = [#tpu.dimension_semantics<parallel>], iteration_bounds = array<i64: 1>, scalar_prefetch = 0 : i64, scratch_operands = 0 : i64, tpu.core_type = #tpu.core_type<tc>, window_params = [{transform_indices = @transform_0, window_bounds = array<i64: 8, 768>}, {pipeline_mode = #tpu.pipeline_mode<synchronous>, transform_indices = @transform_1, window_bounds = array<i64: 768, 32>}, {pipeline_mode = #tpu.pipeline_mode<synchronous>, transform_indices = @transform_2, window_bounds = array<i64: 1, 32>}, {transform_indices = @transform_3, window_bounds = array<i64: 8, 32>}]} {
    %c0 = arith.constant 0 : index
    %c0_0 = arith.constant 0 : index
    %0 = vector.load %arg1[%c0, %c0_0] : memref<8x768xbf16, #tpu.memory_space<vmem>>, vector<8x768xbf16>
    %c0_1 = arith.constant 0 : index
    %c0_2 = arith.constant 0 : index
    %1 = vector.load %arg2[%c0_1, %c0_2] : memref<768x32xbf16, #tpu.memory_space<vmem>>, vector<768x32xbf16>
    %cst = arith.constant dense<0.000000e+00> : vector<8x32xf32>
    %2 = tpu.matmul %0, %1, %cst {dimension_numbers = #tpu.dot_dimension_numbers<[1], [0], [0], [1], [0, 0, 1, 1], [], []>} : vector<8x768xbf16>, vector<768x32xbf16>, vector<8x32xf32> -> vector<8x32xf32>
    %c0_3 = arith.constant 0 : index
    %c0_4 = arith.constant 0 : index
    %3 = vector.load %arg3[%c0_3, %c0_4] : memref<1x32xf32, #tpu.memory_space<vmem>>, vector<1x32xf32>
    %4 = vector.broadcast %3 : vector<1x32xf32> to vector<8x32xf32>
    %5 = arith.addf %2, %4 : vector<8x32xf32>
    %c0_5 = arith.constant 0 : index
    %c0_6 = arith.constant 0 : index
    %6 = vector.load %arg4[%c0_5, %c0_6] : memref<8x32xf32, #tpu.memory_space<vmem>>, vector<8x32xf32>
    tpu.vector_store %arg4[%c0_5, %c0_6], %5 {strides = array<i32>} : memref<8x32xf32, #tpu.memory_space<vmem>>, vector<8x32xf32>,
    return
  }
  func.func @transform_0(%arg0: i32) -> (i32, i32) {
    %c0_i32 = arith.constant 0 : i32
    %c0_i32_0 = arith.constant 0 : i32
    return %arg0, %c0_i32 : i32, i32
  }
  func.func @transform_1(%arg0: i32) -> (i32, i32) {
    %c0_i32 = arith.constant 0 : i32
    %c0_i32_0 = arith.constant 0 : i32
    %c0_i32_1 = arith.constant 0 : i32
    return %c0_i32, %c0_i32_0 : i32, i32
  }
  func.func @transform_2(%arg0: i32) -> (i32, i32) {
    %c0_i32 = arith.constant 0 : i32
    %c0_i32_0 = arith.constant 0 : i32
    %c0_i32_1 = arith.constant 0 : i32
    return %c0_i32, %c0_i32_0 : i32, i32
  }
  func.func @transform_3(%arg0: i32) -> (i32, i32) {
    %c0_i32 = arith.constant 0 : i32
    %c0_i32_0 = arith.constant 0 : i32
    return %arg0, %c0_i32 : i32, i32
  }
}

</mosaic_0001>

<llo_original>
// kernel: _lambda_.25
$region0: #{_lambda_.25}
  #allocation0 [shape = 'u32[]', space=smem, size = 0x4, offset = 0x4, fixed_abs, tag = 'smem constant byte address 0x4 - core index']
  #allocation1 [shape = 'u32[144,128]{1,0:T(1,128)}', space=vmem, size = 0x12000, scoped, tag = 'internal scratch']
  %s0 = inlined_call_operand.vmem [shape: bf16[512,27], index: 0, kind: input, shape index: {}]
  %s1 = inlined_call_operand.vmem [shape: bf16[27,32], index: 1, kind: input, shape index: {}]
  %s2 = inlined_call_operand.vmem [shape: f32[1,32], index: 2, kind: input, shape index: {}]
  %s3 = inlined_call_operand.vmem [shape: bf16[512,32], index: 3, kind: output, shape index: {}]
  %s4 = sld [smem:[#allocation0]]
  $region45: #{_lambda_.25} parent=0
    _
  %s6 = ssub.s32 1, %s4
  %s7 = scalar_select 0, %s6, %s4
  loop: start=0, step=1, limit=4
  $region2: #{_lambda_.25} parent=0 // loop_pre_header
    _
  $region3: #{_lambda_.25} parent=0 // loop_header
    %s9 = sphi 0, %s13
    %p10 = scmp.ge.s32.totalorder %s9, 4
    %s19 = sphi 0, %s21
    %s22 = sphi 0, %s19
    %s23 = sphi 0, %s22
    %s39 = sphi 0, %s23
    %s43 = sphi 0, %s43
    %s45 = sphi 0, %s43
    %s46 = sphi 0, %s45
    %s60 = sphi 0, %s46
    %s64 = sphi 0, %s64
    %s66 = sphi 0, %s64
    %s67 = sphi 0, %s66
    %s81 = sphi 0, %s67
    %s87 = sphi 0, %s89
    %s90 = sphi 0, %s87
    %s91 = sphi 0, %s90
    %s107 = sphi 0, %s91
  $region4: #{_lambda_.25} parent=0 // loop_header_branch
    %12 = sbr.rel (%p10) target = $region8
  $region5: #{_lambda_.25} parent=0 // loop_body
    %s14 = ssub.s32 %s9, 1
    %s15 = ssub.s32 %s9, 2
    %s16 = sadd.s32 %s9, 1
    %s17 = ssub.s32 %s9, %s16
    %p18 = scmp.eq.s32.totalorder %s17, 0
    %s20 = sadd.s32 %s19, 1
    %s21 = scalar_select %p18, %s19, %s20
    %p24 = pneg %p18
    %p25 = scmp.eq.s32.totalorder %s9, 1
    %p26 = por %p24, %p25
    %p27 = scmp.ne.s32.totalorder %s19, %s22
    %p28 = scmp.eq.s32.totalorder %s9, 0
    %p29 = por %p27, %p28
    %p30 = scmp.ne.s32.totalorder %s19, %s22
    %p31 = scmp.eq.s32.totalorder %s14, 1
    %p32 = por %p30, %p31
    %p33 = scmp.ne.s32.totalorder %s22, %s23
    %p34 = scmp.eq.s32.totalorder %s14, 0
    %p35 = por %p33, %p34
    %p36 = scmp.ne.s32.totalorder %s22, %s23
    %p37 = scmp.eq.s32.totalorder %s15, 1
    %p38 = por %p36, %p37
    %p40 = scmp.ne.s32.totalorder %s23, %s39
    %p41 = scmp.eq.s32.totalorder %s15, 0
    %p42 = por %p40, %p41
    %s44 = sadd.s32 %s43, 1
    %p47 = scmp.eq.s32.totalorder %s9, 1
    %p48 = scmp.ne.s32.totalorder %s43, %s45
    %p49 = scmp.eq.s32.totalorder %s9, 0
    %p50 = por %p48, %p49
    %p51 = scmp.ne.s32.totalorder %s43, %s45
    %p52 = scmp.eq.s32.totalorder %s14, 1
    %p53 = por %p51, %p52
    %p54 = scmp.ne.s32.totalorder %s45, %s46
    %p55 = scmp.eq.s32.totalorder %s14, 0
    %p56 = por %p54, %p55
    %p57 = scmp.ne.s32.totalorder %s45, %s46
    %p58 = scmp.eq.s32.totalorder %s15, 1
    %p59 = por %p57, %p58
    %p61 = scmp.ne.s32.totalorder %s46, %s60
    %p62 = scmp.eq.s32.totalorder %s15, 0
    %p63 = por %p61, %p62
    %s65 = sadd.s32 %s64, 1
    %p68 = scmp.eq.s32.totalorder %s9, 1
    %p69 = scmp.ne.s32.totalorder %s64, %s66
    %p70 = scmp.eq.s32.totalorder %s9, 0
    %p71 = por %p69, %p70
    %p72 = scmp.ne.s32.totalorder %s64, %s66
    %p73 = scmp.eq.s32.totalorder %s14, 1
    %p74 = por %p72, %p73
    %p75 = scmp.ne.s32.totalorder %s66, %s67
    %p76 = scmp.eq.s32.totalorder %s14, 0
    %p77 = por %p75, %p76
    %p78 = scmp.ne.s32.totalorder %s66, %s67
    %p79 = scmp.eq.s32.totalorder %s15, 1
    %p80 = por %p78, %p79
    %p82 = scmp.ne.s32.totalorder %s67, %s81
    %p83 = scmp.eq.s32.totalorder %s15, 0
    %p84 = por %p82, %p83
    %s85 = ssub.s32 %s9, %s16
    %p86 = scmp.eq.s32.totalorder %s85, 0
    %s88 = sadd.s32 %s87, 1
    %s89 = scalar_select %p86, %s87, %s88
    %p92 = pneg %p86
    %p93 = scmp.eq.s32.totalorder %s9, 1
    %p94 = por %p92, %p93
    %p95 = scmp.ne.s32.totalorder %s87, %s90
    %p96 = scmp.eq.s32.totalorder %s9, 0
    %p97 = por %p95, %p96
    %p98 = scmp.ne.s32.totalorder %s87, %s90
    %p99 = scmp.eq.s32.totalorder %s14, 1
    %p100 = por %p98, %p99
    %p101 = scmp.ne.s32.totalorder %s90, %s91
    %p102 = scmp.eq.s32.totalorder %s14, 0
    %p103 = por %p101, %p102
    %p104 = scmp.ne.s32.totalorder %s90, %s91
    %p105 = scmp.eq.s32.totalorder %s15, 1
    %p106 = por %p104, %p105
    %p108 = scmp.ne.s32.totalorder %s91, %s107
    %p109 = scmp.eq.s32.totalorder %s15, 0
    %p110 = por %p108, %p109
    %p111 = scmp.le.s32.totalorder 1, %s9
    %p112 = scmp.lt.s32.totalorder %s9, 3
    %p113 = pnand %p111, %p112
    %p114 = pneg %p113
    // Predicated region
    $region9: #{_lambda_.25} parent=5 // pred_check
      _
    $region10: #{_lambda_.25} parent=5 // pred_check_branch
      %116 = sbr.rel (%p113) target = $region12
    $region11: #{_lambda_.25} parent=5 // pred_region
      %s117 = ssub.s32 %s9, 1
      // Predicated region
      $region13: #{_lambda_.25} parent=11 // pred_check
        %p118 = pneg %p56
      $region14: #{_lambda_.25} parent=11 // pred_check_branch
        %120 = sbr.rel (%p118) target = $region16
      $region15: #{_lambda_.25} parent=11 // pred_region
        _
      $region16: #{_lambda_.25} parent=11 // pred_fallthru
        _
      // Predicated region
      $region17: #{_lambda_.25} parent=11 // pred_check
        %p121 = pneg %p77
      $region18: #{_lambda_.25} parent=11 // pred_check_branch
        %123 = sbr.rel (%p121) target = $region20
      $region19: #{_lambda_.25} parent=11 // pred_region
        _
      $region20: #{_lambda_.25} parent=11 // pred_fallthru
        _
    $region12: #{_lambda_.25} parent=5 // pred_fallthru
      _
    %p124 = scmp.lt.s32.totalorder %s9, 2
    // Predicated region
    $region21: #{_lambda_.25} parent=5 // pred_check
      %p125 = pneg %p124
    $region22: #{_lambda_.25} parent=5 // pred_check_branch
      %127 = sbr.rel (%p125) target = $region24
    $region23: #{_lambda_.25} parent=5 // pred_region
      // Predicated region
      $region25: #{_lambda_.25} parent=23 // pred_check
        %p128 = pneg %p29
      $region26: #{_lambda_.25} parent=23 // pred_check_branch
        %130 = sbr.rel (%p128) target = $region28
      $region27: #{_lambda_.25} parent=23 // pred_region
        %s131 = smul.u32 32, %s9
        %p132 = scmp.lt.s32.totalorder %s131, 63
        %s133 = scalar_select %p132, %s131, 63
        %s134 = smul.addr %s133, 4
        %s135 = scalar_lea.vmem %s0, %s134
        %s136 = smul.u32 32, %s9
      $region28: #{_lambda_.25} parent=23 // pred_fallthru
        _
    $region24: #{_lambda_.25} parent=5 // pred_fallthru
      _
    %p137 = scmp.le.s32.totalorder 1, %s9
    %p138 = scmp.lt.s32.totalorder %s9, 3
    %p139 = pnand %p137, %p138
    %p140 = pneg %p139
    // Predicated region
    $region29: #{_lambda_.25} parent=5 // pred_check
      _
    $region30: #{_lambda_.25} parent=5 // pred_check_branch
      %142 = sbr.rel (%p139) target = $region32
    $region31: #{_lambda_.25} parent=5 // pred_region
      %s143 = ssub.s32 %s9, 1
      %s144 = smul.u32 32, %s14
      %p145 = scmp.lt.s32.totalorder %s144, 63
      %s146 = scalar_select %p145, %s144, 63
      %s147 = smul.addr %s146, 4
      %s148 = scalar_lea.vmem %s0, %s147
      %p149 = pneg %p35
      %p150 = pneg %p32
      %p151 = pneg %p56
      %p152 = pneg %p53
      %p153 = pneg %p77
      %p154 = pneg %p74
      %p155 = pneg %p103
      %p156 = pneg %p100
      %s157 = smul.u32 32, %s14
      %p158 = scmp.lt.s32.totalorder %s157, 63
      %s159 = scalar_select %p158, %s157, 63
      %s160 = smul.addr %s159, 4
      %s161 = scalar_lea.vmem %s3, %s160
      %s162 = smul.u32 32, %s14
      %p163 = scmp.lt.s32.totalorder %s162, 63
      %s164 = scalar_select %p163, %s162, 63
      %s165 = smul.addr %s164, 4
      %s166 = scalar_lea.vmem %s0, %s165
      %s167 = smul.u32 32, %s14
      %s168 = smul.u32 32, %s14
      %p169 = scmp.lt.s32.totalorder %s168, 63
      %s170 = scalar_select %p169, %s168, 63
      %s171 = smul.addr %s170, 4
      %s172 = scalar_lea.vmem %s3, %s171
      %s173 = smul.u32 32, %s14
      %v175 = vld [vmem:[%s166] sm:$0xf]
      %v176 = vld [vmem:[%s166 + $0x4] sm:$0xf]
      %v177 = vld [vmem:[%s166 + $0x8] sm:$0xf]
      %v178 = vld [vmem:[%s166 + $0xc] sm:$0xf]
      %v179 = vld [vmem:[%s166 + $0x10] sm:$0xf]
      %v180 = vld [vmem:[%s166 + $0x14] sm:$0xf]
      %v181 = vld [vmem:[%s166 + $0x18] sm:$0xf]
      %v182 = vld [vmem:[%s166 + $0x1c] sm:$0xf]
      %v183 = vld [vmem:[%s166 + $0x20] sm:$0xf]
      %v184 = vld [vmem:[%s166 + $0x24] sm:$0xf]
      %v185 = vld [vmem:[%s166 + $0x28] sm:$0xf]
      %v186 = vld [vmem:[%s166 + $0x2c] sm:$0xf]
      %v187 = vld [vmem:[%s166 + $0x30] sm:$0xf]
      %v188 = vld [vmem:[%s166 + $0x34] sm:$0xf]
      %v189 = vld [vmem:[%s166 + $0x38] sm:$0xf]
      %v190 = vld [vmem:[%s166 + $0x3c] sm:$0xf]
      %v191 = vld [vmem:[%s166 + $0x40] sm:$0xf]
      %v192 = vld [vmem:[%s166 + $0x44] sm:$0xf]
      %v193 = vld [vmem:[%s166 + $0x48] sm:$0xf]
      %v194 = vld [vmem:[%s166 + $0x4c] sm:$0xf]
      %v195 = vld [vmem:[%s166 + $0x50] sm:$0xf]
      %v196 = vld [vmem:[%s166 + $0x54] sm:$0xf]
      %v197 = vld [vmem:[%s166 + $0x58] sm:$0xf]
      %v198 = vld [vmem:[%s166 + $0x5c] sm:$0xf]
      %v199 = vld [vmem:[%s166 + $0x60] sm:$0xf]
      %v200 = vld [vmem:[%s166 + $0x64] sm:$0xf]
      %v201 = vld [vmem:[%s166 + $0x68] sm:$0xf]
      %v202 = vld [vmem:[%s166 + $0x6c] sm:$0xf]
      %v203 = vld [vmem:[%s166 + $0x70] sm:$0xf]
      %v204 = vld [vmem:[%s166 + $0x74] sm:$0xf]
      %v205 = vld [vmem:[%s166 + $0x78] sm:$0xf]
      %v206 = vld [vmem:[%s166 + $0x7c] sm:$0xf]
      %v207 = vld [vmem:[%s1] sm:$0xf]
      %v208 = vld [vmem:[%s1 + $0x4] sm:$0xf]
      %v209 = vld [vmem:[%s1 + $0x8] sm:$0xf]
      %v210 = vld [vmem:[%s1 + $0xc] sm:$0x3]
      %v211 = vld [vmem:[%s2] sm:$0x1]
      %v213 = vlaneseq
      %v214 = vshrl.u32 %v213, 7
      %v215 = vsub.s32 0, %v214
      %v216 = vrot.slane %v211, %v215
      %v250 = vunpack.c.l.b16 %v175
      %v251 = vunpack.c.l.b16 %v176
      %v252 = vunpack.c.l.b16 %v177
      %v253 = vunpack.c.l.b16 %v178
      %v254 = vunpack.c.l.b16 %v179
      %v255 = vunpack.c.l.b16 %v180
      %v256 = vunpack.c.l.b16 %v181
      %v257 = vunpack.c.l.b16 %v182
      %v258 = vunpack.c.l.b16 %v183
      %v259 = vunpack.c.l.b16 %v184
      %v260 = vunpack.c.l.b16 %v185
      %v261 = vunpack.c.l.b16 %v186
      %v262 = vunpack.c.l.b16 %v187
      %v263 = vunpack.c.l.b16 %v188
      %v264 = vunpack.c.l.b16 %v189
      %v265 = vunpack.c.l.b16 %v190
      %v266 = vunpack.c.l.b16 %v191
      %v267 = vunpack.c.l.b16 %v192
      %v268 = vunpack.c.l.b16 %v193
      %v269 = vunpack.c.l.b16 %v194
      %v270 = vunpack.c.l.b16 %v195
      %v271 = vunpack.c.l.b16 %v196
      %v272 = vunpack.c.l.b16 %v197
      %v273 = vunpack.c.l.b16 %v198
      %v274 = vunpack.c.l.b16 %v199
      %v275 = vunpack.c.l.b16 %v200
      %v276 = vunpack.c.l.b16 %v201
      %v277 = vunpack.c.l.b16 %v202
      %v278 = vunpack.c.l.b16 %v203
      %v279 = vunpack.c.l.b16 %v204
      %v280 = vunpack.c.l.b16 %v205
      %v281 = vunpack.c.l.b16 %v206
      %v282 = vpack.c.b16 %v251, %v250
      %v283 = vpack.c.b16 %v253, %v252
      %v284 = vpack.c.b16 %v255, %v254
      %v285 = vpack.c.b16 %v257, %v256
      %v286 = vpack.c.b16 %v259, %v258
      %v287 = vpack.c.b16 %v261, %v260
      %v288 = vpack.c.b16 %v263, %v262
      %v289 = vpack.c.b16 %v265, %v264
      %v290 = vpack.c.b16 %v267, %v266
      %v291 = vpack.c.b16 %v269, %v268
      %v292 = vpack.c.b16 %v271, %v270
      %v293 = vpack.c.b16 %v273, %v272
      %v294 = vpack.c.b16 %v275, %v274
      %v295 = vpack.c.b16 %v277, %v276
      %v296 = vpack.c.b16 %v279, %v278
      %v297 = vpack.c.b16 %v281, %v280
      %v302 = vunpack.c.l.b16 %v207
      %v303 = vunpack.c.l.b16 %v208
      %v304 = vunpack.c.l.b16 %v209
      %v305 = vunpack.c.l.b16 %v210
      %v306 = vpack.c.b16 %v303, %v302
      %v307 = vpack.c.b16 %v305, %v304
      %vm309 = vcmask 220160
      %v311 = vsel %vm309, %v282, 0
      %v314 = vsel %vm309, %v283, 0
      %v317 = vsel %vm309, %v284, 0
      %v320 = vsel %vm309, %v285, 0
      %v323 = vsel %vm309, %v286, 0
      %v326 = vsel %vm309, %v287, 0
      %v329 = vsel %vm309, %v288, 0
      %v332 = vsel %vm309, %v289, 0
      %v335 = vsel %vm309, %v290, 0
      %v338 = vsel %vm309, %v291, 0
      %v341 = vsel %vm309, %v292, 0
      %v344 = vsel %vm309, %v293, 0
      %v347 = vsel %vm309, %v294, 0
      %v350 = vsel %vm309, %v295, 0
      %v353 = vsel %vm309, %v296, 0
      %v356 = vsel %vm309, %v297, 0
      %vm358 = vcmask 1044480
      %vm359 = vcmask 1045504
      %v360 = vsel %vm358, 4294967295, 65535
      %v361 = vsel %vm359, %v360, 0
      %v363 = vand.u32 %v307, %v361
      %365 = vmatprep.subr.bf16.mxu0 0
      %366 = vmatpush1.bf16.msra.mxu0 0
      %367 = vmatprep.subr.bf16.mxu0 0
      %368 = vmatpush1.bf16.msra.mxu0 0
      %369 = vmatprep.subr.bf16.mxu0 0
      %370 = vmatpush1.bf16.msra.mxu0 0
      %371 = vmatprep.subr.bf16.mxu0 0
      %372 = vmatpush1.bf16.msra.mxu0 0
      %373 = vmatprep.subr.bf16.mxu0 0
      %374 = vmatpush1.bf16.msra.mxu0 0
      %375 = vmatprep.subr.bf16.mxu0 0
      %376 = vmatpush1.bf16.msra.mxu0 0
      %377 = vmatprep.subr.bf16.mxu0 0
      %378 = vmatpush1.bf16.msra.mxu0 %v363
      %379 = vmatprep.subr.bf16.mxu0 0
      %380 = vmatpush1.bf16.msra.mxu0 %v306
      %381 = vmatprep.subr.bf16.mxu0 0
      %382 = vmatpush2.bf16.msra.mxu0 0
      %383 = vmatprep.subr.bf16.mxu0 0
      %384 = vmatpush2.bf16.msra.mxu0 0
      %385 = vmatprep.subr.bf16.mxu0 0
      %386 = vmatpush2.bf16.msra.mxu0 0
      %387 = vmatprep.subr.bf16.mxu0 0
      %388 = vmatpush2.bf16.msra.mxu0 0
      %389 = vmatprep.subr.bf16.mxu0 0
      %390 = vmatpush2.bf16.msra.mxu0 0
      %391 = vmatprep.subr.bf16.mxu0 0
      %392 = vmatpush2.bf16.msra.mxu0 0
      %393 = vmatprep.subr.bf16.mxu0 0
      %394 = vmatpush2.bf16.msra.mxu0 0
      %395 = vmatprep.subr.bf16.mxu0 0
      %396 = vmatpush2.bf16.msra.mxu0 0
      %397 = vmatprep.mubr.bf16.mxu0 0
      %398 = vmatmul.mubr.bf16.gmra.mxu0 %v311
      %v399 = vpop.f32.mrf.mxu0
      %v400 = vadd.f32 %v216, %v399
      %v401 = vpop.f32.mrf.mxu0
      %v402 = vpop.f32.mrf.mxu0
      %v403 = vadd.f32 %v216, %v402
      %v404 = vpop.f32.mrf.mxu0
      %405 = vmatprep.mubr.bf16.mxu0 0
      %406 = vmatmul.mubr.bf16.gmra.mxu0 %v314
      %v407 = vpop.f32.mrf.mxu0
      %v408 = vadd.f32 %v216, %v407
      %v409 = vpop.f32.mrf.mxu0
      %v410 = vpop.f32.mrf.mxu0
      %v411 = vadd.f32 %v216, %v410
      %v412 = vpop.f32.mrf.mxu0
      %413 = vmatprep.mubr.bf16.mxu0 0
      %414 = vmatmul.mubr.bf16.gmra.mxu0 %v317
      %v415 = vpop.f32.mrf.mxu0
      %v416 = vadd.f32 %v216, %v415
      %v417 = vpop.f32.mrf.mxu0
      %v418 = vpop.f32.mrf.mxu0
      %v419 = vadd.f32 %v216, %v418
      %v420 = vpop.f32.mrf.mxu0
      %421 = vmatprep.mubr.bf16.mxu0 0
      %422 = vmatmul.mubr.bf16.gmra.mxu0 %v320
      %v423 = vpop.f32.mrf.mxu0
      %v424 = vadd.f32 %v216, %v423
      %v425 = vpop.f32.mrf.mxu0
      %v426 = vpop.f32.mrf.mxu0
      %v427 = vadd.f32 %v216, %v426
      %v428 = vpop.f32.mrf.mxu0
      %429 = vmatprep.mubr.bf16.mxu0 0
      %430 = vmatmul.mubr.bf16.gmra.mxu0 %v323
      %v431 = vpop.f32.mrf.mxu0
      %v432 = vadd.f32 %v216, %v431
      %v433 = vpop.f32.mrf.mxu0
      %v434 = vpop.f32.mrf.mxu0
      %v435 = vadd.f32 %v216, %v434
      %v436 = vpop.f32.mrf.mxu0
      %437 = vmatprep.mubr.bf16.mxu0 0
      %438 = vmatmul.mubr.bf16.gmra.mxu0 %v326
      %v439 = vpop.f32.mrf.mxu0
      %v440 = vadd.f32 %v216, %v439
      %v441 = vpop.f32.mrf.mxu0
      %v442 = vpop.f32.mrf.mxu0
      %v443 = vadd.f32 %v216, %v442
      %v444 = vpop.f32.mrf.mxu0
      %445 = vmatprep.mubr.bf16.mxu0 0
      %446 = vmatmul.mubr.bf16.gmra.mxu0 %v329
      %v447 = vpop.f32.mrf.mxu0
      %v448 = vadd.f32 %v216, %v447
      %v449 = vpop.f32.mrf.mxu0
      %v450 = vpop.f32.mrf.mxu0
      %v451 = vadd.f32 %v216, %v450
      %v452 = vpop.f32.mrf.mxu0
      %453 = vmatprep.mubr.bf16.mxu0 0
      %454 = vmatmul.mubr.bf16.gmra.mxu0 %v332
      %v455 = vpop.f32.mrf.mxu0
      %v456 = vadd.f32 %v216, %v455
      %v457 = vpop.f32.mrf.mxu0
      %v458 = vpop.f32.mrf.mxu0
      %v459 = vadd.f32 %v216, %v458
      %v460 = vpop.f32.mrf.mxu0
      %461 = vmatprep.mubr.bf16.mxu0 0
      %462 = vmatmul.mubr.bf16.gmra.mxu0 %v335
      %v463 = vpop.f32.mrf.mxu0
      %v464 = vadd.f32 %v216, %v463
      %v465 = vpop.f32.mrf.mxu0
      %v466 = vpop.f32.mrf.mxu0
      %v467 = vadd.f32 %v216, %v466
      %v468 = vpop.f32.mrf.mxu0
      %469 = vmatprep.mubr.bf16.mxu0 0
      %470 = vmatmul.mubr.bf16.gmra.mxu0 %v338
      %v471 = vpop.f32.mrf.mxu0
      %v472 = vadd.f32 %v216, %v471
      %v473 = vpop.f32.mrf.mxu0
      %v474 = vpop.f32.mrf.mxu0
      %v475 = vadd.f32 %v216, %v474
      %v476 = vpop.f32.mrf.mxu0
      %477 = vmatprep.mubr.bf16.mxu0 0
      %478 = vmatmul.mubr.bf16.gmra.mxu0 %v341
      %v479 = vpop.f32.mrf.mxu0
      %v480 = vadd.f32 %v216, %v479
      %v481 = vpop.f32.mrf.mxu0
      %v482 = vpop.f32.mrf.mxu0
      %v483 = vadd.f32 %v216, %v482
      %v484 = vpop.f32.mrf.mxu0
      %485 = vmatprep.mubr.bf16.mxu0 0
      %486 = vmatmul.mubr.bf16.gmra.mxu0 %v344
      %v487 = vpop.f32.mrf.mxu0
      %v488 = vadd.f32 %v216, %v487
      %v489 = vpop.f32.mrf.mxu0
      %v490 = vpop.f32.mrf.mxu0
      %v491 = vadd.f32 %v216, %v490
      %v492 = vpop.f32.mrf.mxu0
      %493 = vmatprep.mubr.bf16.mxu0 0
      %494 = vmatmul.mubr.bf16.gmra.mxu0 %v347
      %v495 = vpop.f32.mrf.mxu0
      %v496 = vadd.f32 %v216, %v495
      %v497 = vpop.f32.mrf.mxu0
      %v498 = vpop.f32.mrf.mxu0
      %v499 = vadd.f32 %v216, %v498
      %v500 = vpop.f32.mrf.mxu0
      %501 = vmatprep.mubr.bf16.mxu0 0
      %502 = vmatmul.mubr.bf16.gmra.mxu0 %v350
      %v503 = vpop.f32.mrf.mxu0
      %v504 = vadd.f32 %v216, %v503
      %v505 = vpop.f32.mrf.mxu0
      %v506 = vpop.f32.mrf.mxu0
      %v507 = vadd.f32 %v216, %v506
      %v508 = vpop.f32.mrf.mxu0
      %509 = vmatprep.mubr.bf16.mxu0 0
      %510 = vmatmul.mubr.bf16.gmra.mxu0 %v353
      %v511 = vpop.f32.mrf.mxu0
      %v512 = vadd.f32 %v216, %v511
      %v513 = vpop.f32.mrf.mxu0
      %v514 = vpop.f32.mrf.mxu0
      %v515 = vadd.f32 %v216, %v514
      %v516 = vpop.f32.mrf.mxu0
      %517 = vmatprep.mubr.bf16.mxu0 0
      %518 = vmatmul.mubr.bf16.gmra.mxu0 %v356
      %v519 = vpop.f32.mrf.mxu0
      %v520 = vadd.f32 %v216, %v519
      %v521 = vpop.f32.mrf.mxu0
      %v522 = vpop.f32.mrf.mxu0
      %v523 = vadd.f32 %v216, %v522
      %v524 = vpop.f32.mrf.mxu0
      %525 = vdwg.mxu0
      %v526 = vmax.f32 %v400, 0.0
      %v527 = vmax.f32 %v403, 0.0
      %v528 = vmax.f32 %v408, 0.0
      %v529 = vmax.f32 %v411, 0.0
      %v530 = vmax.f32 %v416, 0.0
      %v531 = vmax.f32 %v419, 0.0
      %v532 = vmax.f32 %v424, 0.0
      %v533 = vmax.f32 %v427, 0.0
      %v534 = vmax.f32 %v432, 0.0
      %v535 = vmax.f32 %v435, 0.0
      %v536 = vmax.f32 %v440, 0.0
      %v537 = vmax.f32 %v443, 0.0
      %v538 = vmax.f32 %v448, 0.0
      %v539 = vmax.f32 %v451, 0.0
      %v540 = vmax.f32 %v456, 0.0
      %v541 = vmax.f32 %v459, 0.0
      %v542 = vmax.f32 %v464, 0.0
      %v543 = vmax.f32 %v467, 0.0
      %v544 = vmax.f32 %v472, 0.0
      %v545 = vmax.f32 %v475, 0.0
      %v546 = vmax.f32 %v480, 0.0
      %v547 = vmax.f32 %v483, 0.0
      %v548 = vmax.f32 %v488, 0.0
      %v549 = vmax.f32 %v491, 0.0
      %v550 = vmax.f32 %v496, 0.0
      %v551 = vmax.f32 %v499, 0.0
      %v552 = vmax.f32 %v504, 0.0
      %v553 = vmax.f32 %v507, 0.0
      %v554 = vmax.f32 %v512, 0.0
      %v555 = vmax.f32 %v515, 0.0
      %v556 = vmax.f32 %v520, 0.0
      %v557 = vmax.f32 %v523, 0.0
      %v558 = vpack.c.bf16 %v527, %v526
      %v559 = vpack.c.bf16 %v529, %v528
      %v560 = vpack.c.bf16 %v531, %v530
      %v561 = vpack.c.bf16 %v533, %v532
      %v562 = vpack.c.bf16 %v535, %v534
      %v563 = vpack.c.bf16 %v537, %v536
      %v564 = vpack.c.bf16 %v539, %v538
      %v565 = vpack.c.bf16 %v541, %v540
      %v566 = vpack.c.bf16 %v543, %v542
      %v567 = vpack.c.bf16 %v545, %v544
      %v568 = vpack.c.bf16 %v547, %v546
      %v569 = vpack.c.bf16 %v549, %v548
      %v570 = vpack.c.bf16 %v551, %v550
      %v571 = vpack.c.bf16 %v553, %v552
      %v572 = vpack.c.bf16 %v555, %v554
      %v573 = vpack.c.bf16 %v557, %v556
      %v590 = vunpack.c.l.b16 %v558
      %v591 = vunpack.c.h.b16 %v558
      %v592 = vunpack.c.l.b16 %v559
      %v593 = vunpack.c.h.b16 %v559
      %v594 = vunpack.c.l.b16 %v560
      %v595 = vunpack.c.h.b16 %v560
      %v596 = vunpack.c.l.b16 %v561
      %v597 = vunpack.c.h.b16 %v561
      %v598 = vunpack.c.l.b16 %v562
      %v599 = vunpack.c.h.b16 %v562
      %v600 = vunpack.c.l.b16 %v563
      %v601 = vunpack.c.h.b16 %v563
      %v602 = vunpack.c.l.b16 %v564
      %v603 = vunpack.c.h.b16 %v564
      %v604 = vunpack.c.l.b16 %v565
      %v605 = vunpack.c.h.b16 %v565
      %v606 = vunpack.c.l.b16 %v566
      %v607 = vunpack.c.h.b16 %v566
      %v608 = vunpack.c.l.b16 %v567
      %v609 = vunpack.c.h.b16 %v567
      %v610 = vunpack.c.l.b16 %v568
      %v611 = vunpack.c.h.b16 %v568
      %v612 = vunpack.c.l.b16 %v569
      %v613 = vunpack.c.h.b16 %v569
      %v614 = vunpack.c.l.b16 %v570
      %v615 = vunpack.c.h.b16 %v570
      %v616 = vunpack.c.l.b16 %v571
      %v617 = vunpack.c.h.b16 %v571
      %v618 = vunpack.c.l.b16 %v572
      %v619 = vunpack.c.h.b16 %v572
      %v620 = vunpack.c.l.b16 %v573
      %v621 = vunpack.c.h.b16 %v573
      %v622 = vpack.c.b16 %v590, %v590
      %v623 = vpack.c.b16 %v591, %v591
      %v624 = vpack.c.b16 %v592, %v592
      %v625 = vpack.c.b16 %v593, %v593
      %v626 = vpack.c.b16 %v594, %v594
      %v627 = vpack.c.b16 %v595, %v595
      %v628 = vpack.c.b16 %v596, %v596
      %v629 = vpack.c.b16 %v597, %v597
      %v630 = vpack.c.b16 %v598, %v598
      %v631 = vpack.c.b16 %v599, %v599
      %v632 = vpack.c.b16 %v600, %v600
      %v633 = vpack.c.b16 %v601, %v601
      %v634 = vpack.c.b16 %v602, %v602
      %v635 = vpack.c.b16 %v603, %v603
      %v636 = vpack.c.b16 %v604, %v604
      %v637 = vpack.c.b16 %v605, %v605
      %v638 = vpack.c.b16 %v606, %v606
      %v639 = vpack.c.b16 %v607, %v607
      %v640 = vpack.c.b16 %v608, %v608
      %v641 = vpack.c.b16 %v609, %v609
      %v642 = vpack.c.b16 %v610, %v610
      %v643 = vpack.c.b16 %v611, %v611
      %v644 = vpack.c.b16 %v612, %v612
      %v645 = vpack.c.b16 %v613, %v613
      %v646 = vpack.c.b16 %v614, %v614
      %v647 = vpack.c.b16 %v615, %v615
      %v648 = vpack.c.b16 %v616, %v616
      %v649 = vpack.c.b16 %v617, %v617
      %v650 = vpack.c.b16 %v618, %v618
      %v651 = vpack.c.b16 %v619, %v619
      %v652 = vpack.c.b16 %v620, %v620
      %v653 = vpack.c.b16 %v621, %v621
      %vm686 = vcmask 257024
      %687 = vst.msk [vmem:[%s172] sm:$0xf] %vm686, %v622
      %688 = vst.msk [vmem:[%s172 + $0x4] sm:$0xf] %vm686, %v623
      %689 = vst.msk [vmem:[%s172 + $0x8] sm:$0xf] %vm686, %v624
      %690 = vst.msk [vmem:[%s172 + $0xc] sm:$0xf] %vm686, %v625
      %691 = vst.msk [vmem:[%s172 + $0x10] sm:$0xf] %vm686, %v626
      %692 = vst.msk [vmem:[%s172 + $0x14] sm:$0xf] %vm686, %v627
      %693 = vst.msk [vmem:[%s172 + $0x18] sm:$0xf] %vm686, %v628
      %694 = vst.msk [vmem:[%s172 + $0x1c] sm:$0xf] %vm686, %v629
      %695 = vst.msk [vmem:[%s172 + $0x20] sm:$0xf] %vm686, %v630
      %696 = vst.msk [vmem:[%s172 + $0x24] sm:$0xf] %vm686, %v631
      %697 = vst.msk [vmem:[%s172 + $0x28] sm:$0xf] %vm686, %v632
      %698 = vst.msk [vmem:[%s172 + $0x2c] sm:$0xf] %vm686, %v633
      %699 = vst.msk [vmem:[%s172 + $0x30] sm:$0xf] %vm686, %v634
      %700 = vst.msk [vmem:[%s172 + $0x34] sm:$0xf] %vm686, %v635
      %701 = vst.msk [vmem:[%s172 + $0x38] sm:$0xf] %vm686, %v636
      %702 = vst.msk [vmem:[%s172 + $0x3c] sm:$0xf] %vm686, %v637
      %703 = vst.msk [vmem:[%s172 + $0x40] sm:$0xf] %vm686, %v638
      %704 = vst.msk [vmem:[%s172 + $0x44] sm:$0xf] %vm686, %v639
      %705 = vst.msk [vmem:[%s172 + $0x48] sm:$0xf] %vm686, %v640
      %706 = vst.msk [vmem:[%s172 + $0x4c] sm:$0xf] %vm686, %v641
      %707 = vst.msk [vmem:[%s172 + $0x50] sm:$0xf] %vm686, %v642
      %708 = vst.msk [vmem:[%s172 + $0x54] sm:$0xf] %vm686, %v643
      %709 = vst.msk [vmem:[%s172 + $0x58] sm:$0xf] %vm686, %v644
      %710 = vst.msk [vmem:[%s172 + $0x5c] sm:$0xf] %vm686, %v645
      %711 = vst.msk [vmem:[%s172 + $0x60] sm:$0xf] %vm686, %v646
      %712 = vst.msk [vmem:[%s172 + $0x64] sm:$0xf] %vm686, %v647
      %713 = vst.msk [vmem:[%s172 + $0x68] sm:$0xf] %vm686, %v648
      %714 = vst.msk [vmem:[%s172 + $0x6c] sm:$0xf] %vm686, %v649
      %715 = vst.msk [vmem:[%s172 + $0x70] sm:$0xf] %vm686, %v650
      %716 = vst.msk [vmem:[%s172 + $0x74] sm:$0xf] %vm686, %v651
      %717 = vst.msk [vmem:[%s172 + $0x78] sm:$0xf] %vm686, %v652
      %718 = vst.msk [vmem:[%s172 + $0x7c] sm:$0xf] %vm686, %v653
      %s719 = smul.u32 32, %s14
      %p720 = scmp.lt.s32.totalorder %s719, 63
      %s721 = scalar_select %p720, %s719, 63
      %s722 = smul.addr %s721, 4
      %s723 = scalar_lea.vmem %s3, %s722
      // Predicated region
      $region33: #{_lambda_.25} parent=31 // pred_check
        %p724 = pneg %p100
      $region34: #{_lambda_.25} parent=31 // pred_check_branch
        %726 = sbr.rel (%p724) target = $region36
      $region35: #{_lambda_.25} parent=31 // pred_region
        %s727 = smul.u32 32, %s14
      $region36: #{_lambda_.25} parent=31 // pred_fallthru
        _
    $region32: #{_lambda_.25} parent=5 // pred_fallthru
      _
    %p728 = scmp.le.s32.totalorder 2, %s9
    // Predicated region
    $region37: #{_lambda_.25} parent=5 // pred_check
      %p729 = pneg %p728
    $region38: #{_lambda_.25} parent=5 // pred_check_branch
      %731 = sbr.rel (%p729) target = $region40
    $region39: #{_lambda_.25} parent=5 // pred_region
      %s732 = ssub.s32 %s9, 2
      // Predicated region
      $region41: #{_lambda_.25} parent=39 // pred_check
        %p733 = pneg %p106
      $region42: #{_lambda_.25} parent=39 // pred_check_branch
        %735 = sbr.rel (%p733) target = $region44
      $region43: #{_lambda_.25} parent=39 // pred_region
        %s736 = smul.u32 32, %s15
        %p737 = scmp.lt.s32.totalorder %s736, 63
        %s738 = scalar_select %p737, %s736, 63
        %s739 = smul.addr %s738, 4
        %s740 = scalar_lea.vmem %s3, %s739
      $region44: #{_lambda_.25} parent=39 // pred_fallthru
        _
    $region40: #{_lambda_.25} parent=5 // pred_fallthru
      _
  $region6: #{_lambda_.25} parent=0 // loop_footer
    %s13 = sadd.s32 1, %s9
  $region7: #{_lambda_.25} parent=0 // loop_footer_branch
    %8 = sbr.rel target = $region3
  $region8: #{_lambda_.25} parent=0 // loop_exit
    _

// kernel: _lambda_.26
$region0: #{_lambda_.26}
  #allocation0 [shape = 'u32[]', space=smem, size = 0x4, offset = 0x4, fixed_abs, tag = 'smem constant byte address 0x4 - core index']
  #allocation1 [shape = 'u32[144,128]{1,0:T(1,128)}', space=vmem, size = 0x12000, scoped, tag = 'internal scratch']
  %s0 = inlined_call_operand.vmem [shape: bf16[512,32], index: 0, kind: input, shape index: {}]
  %s1 = inlined_call_operand.vmem [shape: bf16[32,16], index: 1, kind: input, shape index: {}]
  %s2 = inlined_call_operand.vmem [shape: f32[1,16], index: 2, kind: input, shape index: {}]
  %s3 = inlined_call_operand.vmem [shape: bf16[512,16], index: 3, kind: output, shape index: {}]
  %s4 = sld [smem:[#allocation0]]
  $region45: #{_lambda_.26} parent=0
    _
  %s6 = ssub.s32 1, %s4
  %s7 = scalar_select 0, %s6, %s4
  loop: start=0, step=1, limit=4
  $region2: #{_lambda_.26} parent=0 // loop_pre_header
    _
  $region3: #{_lambda_.26} parent=0 // loop_header
    %s9 = sphi 0, %s13
    %p10 = scmp.ge.s32.totalorder %s9, 4
    %s19 = sphi 0, %s21
    %s22 = sphi 0, %s19
    %s23 = sphi 0, %s22
    %s39 = sphi 0, %s23
    %s43 = sphi 0, %s43
    %s45 = sphi 0, %s43
    %s46 = sphi 0, %s45
    %s60 = sphi 0, %s46
    %s64 = sphi 0, %s64
    %s66 = sphi 0, %s64
    %s67 = sphi 0, %s66
    %s81 = sphi 0, %s67
    %s87 = sphi 0, %s89
    %s90 = sphi 0, %s87
    %s91 = sphi 0, %s90
    %s107 = sphi 0, %s91
  $region4: #{_lambda_.26} parent=0 // loop_header_branch
    %12 = sbr.rel (%p10) target = $region8
  $region5: #{_lambda_.26} parent=0 // loop_body
    %s14 = ssub.s32 %s9, 1
    %s15 = ssub.s32 %s9, 2
    %s16 = sadd.s32 %s9, 1
    %s17 = ssub.s32 %s9, %s16
    %p18 = scmp.eq.s32.totalorder %s17, 0
    %s20 = sadd.s32 %s19, 1
    %s21 = scalar_select %p18, %s19, %s20
    %p24 = pneg %p18
    %p25 = scmp.eq.s32.totalorder %s9, 1
    %p26 = por %p24, %p25
    %p27 = scmp.ne.s32.totalorder %s19, %s22
    %p28 = scmp.eq.s32.totalorder %s9, 0
    %p29 = por %p27, %p28
    %p30 = scmp.ne.s32.totalorder %s19, %s22
    %p31 = scmp.eq.s32.totalorder %s14, 1
    %p32 = por %p30, %p31
    %p33 = scmp.ne.s32.totalorder %s22, %s23
    %p34 = scmp.eq.s32.totalorder %s14, 0
    %p35 = por %p33, %p34
    %p36 = scmp.ne.s32.totalorder %s22, %s23
    %p37 = scmp.eq.s32.totalorder %s15, 1
    %p38 = por %p36, %p37
    %p40 = scmp.ne.s32.totalorder %s23, %s39
    %p41 = scmp.eq.s32.totalorder %s15, 0
    %p42 = por %p40, %p41
    %s44 = sadd.s32 %s43, 1
    %p47 = scmp.eq.s32.totalorder %s9, 1
    %p48 = scmp.ne.s32.totalorder %s43, %s45
    %p49 = scmp.eq.s32.totalorder %s9, 0
    %p50 = por %p48, %p49
    %p51 = scmp.ne.s32.totalorder %s43, %s45
    %p52 = scmp.eq.s32.totalorder %s14, 1
    %p53 = por %p51, %p52
    %p54 = scmp.ne.s32.totalorder %s45, %s46
    %p55 = scmp.eq.s32.totalorder %s14, 0
    %p56 = por %p54, %p55
    %p57 = scmp.ne.s32.totalorder %s45, %s46
    %p58 = scmp.eq.s32.totalorder %s15, 1
    %p59 = por %p57, %p58
    %p61 = scmp.ne.s32.totalorder %s46, %s60
    %p62 = scmp.eq.s32.totalorder %s15, 0
    %p63 = por %p61, %p62
    %s65 = sadd.s32 %s64, 1
    %p68 = scmp.eq.s32.totalorder %s9, 1
    %p69 = scmp.ne.s32.totalorder %s64, %s66
    %p70 = scmp.eq.s32.totalorder %s9, 0
    %p71 = por %p69, %p70
    %p72 = scmp.ne.s32.totalorder %s64, %s66
    %p73 = scmp.eq.s32.totalorder %s14, 1
    %p74 = por %p72, %p73
    %p75 = scmp.ne.s32.totalorder %s66, %s67
    %p76 = scmp.eq.s32.totalorder %s14, 0
    %p77 = por %p75, %p76
    %p78 = scmp.ne.s32.totalorder %s66, %s67
    %p79 = scmp.eq.s32.totalorder %s15, 1
    %p80 = por %p78, %p79
    %p82 = scmp.ne.s32.totalorder %s67, %s81
    %p83 = scmp.eq.s32.totalorder %s15, 0
    %p84 = por %p82, %p83
    %s85 = ssub.s32 %s9, %s16
    %p86 = scmp.eq.s32.totalorder %s85, 0
    %s88 = sadd.s32 %s87, 1
    %s89 = scalar_select %p86, %s87, %s88
    %p92 = pneg %p86
    %p93 = scmp.eq.s32.totalorder %s9, 1
    %p94 = por %p92, %p93
    %p95 = scmp.ne.s32.totalorder %s87, %s90
    %p96 = scmp.eq.s32.totalorder %s9, 0
    %p97 = por %p95, %p96
    %p98 = scmp.ne.s32.totalorder %s87, %s90
    %p99 = scmp.eq.s32.totalorder %s14, 1
    %p100 = por %p98, %p99
    %p101 = scmp.ne.s32.totalorder %s90, %s91
    %p102 = scmp.eq.s32.totalorder %s14, 0
    %p103 = por %p101, %p102
    %p104 = scmp.ne.s32.totalorder %s90, %s91
    %p105 = scmp.eq.s32.totalorder %s15, 1
    %p106 = por %p104, %p105
    %p108 = scmp.ne.s32.totalorder %s91, %s107
    %p109 = scmp.eq.s32.totalorder %s15, 0
    %p110 = por %p108, %p109
    %p111 = scmp.le.s32.totalorder 1, %s9
    %p112 = scmp.lt.s32.totalorder %s9, 3
    %p113 = pnand %p111, %p112
    %p114 = pneg %p113
    // Predicated region
    $region9: #{_lambda_.26} parent=5 // pred_check
      _
    $region10: #{_lambda_.26} parent=5 // pred_check_branch
      %116 = sbr.rel (%p113) target = $region12
    $region11: #{_lambda_.26} parent=5 // pred_region
      %s117 = ssub.s32 %s9, 1
      // Predicated region
      $region13: #{_lambda_.26} parent=11 // pred_check
        %p118 = pneg %p56
      $region14: #{_lambda_.26} parent=11 // pred_check_branch
        %120 = sbr.rel (%p118) target = $region16
      $region15: #{_lambda_.26} parent=11 // pred_region
        _
      $region16: #{_lambda_.26} parent=11 // pred_fallthru
        _
      // Predicated region
      $region17: #{_lambda_.26} parent=11 // pred_check
        %p121 = pneg %p77
      $region18: #{_lambda_.26} parent=11 // pred_check_branch
        %123 = sbr.rel (%p121) target = $region20
      $region19: #{_lambda_.26} parent=11 // pred_region
        _
      $region20: #{_lambda_.26} parent=11 // pred_fallthru
        _
    $region12: #{_lambda_.26} parent=5 // pred_fallthru
      _
    %p124 = scmp.lt.s32.totalorder %s9, 2
    // Predicated region
    $region21: #{_lambda_.26} parent=5 // pred_check
      %p125 = pneg %p124
    $region22: #{_lambda_.26} parent=5 // pred_check_branch
      %127 = sbr.rel (%p125) target = $region24
    $region23: #{_lambda_.26} parent=5 // pred_region
      // Predicated region
      $region25: #{_lambda_.26} parent=23 // pred_check
        %p128 = pneg %p29
      $region26: #{_lambda_.26} parent=23 // pred_check_branch
        %130 = sbr.rel (%p128) target = $region28
      $region27: #{_lambda_.26} parent=23 // pred_region
        %s131 = smul.u32 32, %s9
        %p132 = scmp.lt.s32.totalorder %s131, 63
        %s133 = scalar_select %p132, %s131, 63
        %s134 = smul.addr %s133, 4
        %s135 = scalar_lea.vmem %s0, %s134
        %s136 = smul.u32 32, %s9
      $region28: #{_lambda_.26} parent=23 // pred_fallthru
        _
    $region24: #{_lambda_.26} parent=5 // pred_fallthru
      _
    %p137 = scmp.le.s32.totalorder 1, %s9
    %p138 = scmp.lt.s32.totalorder %s9, 3
    %p139 = pnand %p137, %p138
    %p140 = pneg %p139
    // Predicated region
    $region29: #{_lambda_.26} parent=5 // pred_check
      _
    $region30: #{_lambda_.26} parent=5 // pred_check_branch
      %142 = sbr.rel (%p139) target = $region32
    $region31: #{_lambda_.26} parent=5 // pred_region
      %s143 = ssub.s32 %s9, 1
      %s144 = smul.u32 32, %s14
      %p145 = scmp.lt.s32.totalorder %s144, 63
      %s146 = scalar_select %p145, %s144, 63
      %s147 = smul.addr %s146, 4
      %s148 = scalar_lea.vmem %s0, %s147
      %p149 = pneg %p35
      %p150 = pneg %p32
      %p151 = pneg %p56
      %p152 = pneg %p53
      %p153 = pneg %p77
      %p154 = pneg %p74
      %p155 = pneg %p103
      %p156 = pneg %p100
      %s157 = smul.u32 32, %s14
      %p158 = scmp.lt.s32.totalorder %s157, 63
      %s159 = scalar_select %p158, %s157, 63
      %s160 = smul.addr %s159, 4
      %s161 = scalar_lea.vmem %s3, %s160
      %s162 = smul.u32 32, %s14
      %p163 = scmp.lt.s32.totalorder %s162, 63
      %s164 = scalar_select %p163, %s162, 63
      %s165 = smul.addr %s164, 4
      %s166 = scalar_lea.vmem %s0, %s165
      %s167 = smul.u32 32, %s14
      %s168 = smul.u32 32, %s14
      %p169 = scmp.lt.s32.totalorder %s168, 63
      %s170 = scalar_select %p169, %s168, 63
      %s171 = smul.addr %s170, 4
      %s172 = scalar_lea.vmem %s3, %s171
      %s173 = smul.u32 32, %s14
      %v175 = vld [vmem:[%s166] sm:$0xf]
      %v176 = vld [vmem:[%s166 + $0x4] sm:$0xf]
      %v177 = vld [vmem:[%s166 + $0x8] sm:$0xf]
      %v178 = vld [vmem:[%s166 + $0xc] sm:$0xf]
      %v179 = vld [vmem:[%s166 + $0x10] sm:$0xf]
      %v180 = vld [vmem:[%s166 + $0x14] sm:$0xf]
      %v181 = vld [vmem:[%s166 + $0x18] sm:$0xf]
      %v182 = vld [vmem:[%s166 + $0x1c] sm:$0xf]
      %v183 = vld [vmem:[%s166 + $0x20] sm:$0xf]
      %v184 = vld [vmem:[%s166 + $0x24] sm:$0xf]
      %v185 = vld [vmem:[%s166 + $0x28] sm:$0xf]
      %v186 = vld [vmem:[%s166 + $0x2c] sm:$0xf]
      %v187 = vld [vmem:[%s166 + $0x30] sm:$0xf]
      %v188 = vld [vmem:[%s166 + $0x34] sm:$0xf]
      %v189 = vld [vmem:[%s166 + $0x38] sm:$0xf]
      %v190 = vld [vmem:[%s166 + $0x3c] sm:$0xf]
      %v191 = vld [vmem:[%s166 + $0x40] sm:$0xf]
      %v192 = vld [vmem:[%s166 + $0x44] sm:$0xf]
      %v193 = vld [vmem:[%s166 + $0x48] sm:$0xf]
      %v194 = vld [vmem:[%s166 + $0x4c] sm:$0xf]
      %v195 = vld [vmem:[%s166 + $0x50] sm:$0xf]
      %v196 = vld [vmem:[%s166 + $0x54] sm:$0xf]
      %v197 = vld [vmem:[%s166 + $0x58] sm:$0xf]
      %v198 = vld [vmem:[%s166 + $0x5c] sm:$0xf]
      %v199 = vld [vmem:[%s166 + $0x60] sm:$0xf]
      %v200 = vld [vmem:[%s166 + $0x64] sm:$0xf]
      %v201 = vld [vmem:[%s166 + $0x68] sm:$0xf]
      %v202 = vld [vmem:[%s166 + $0x6c] sm:$0xf]
      %v203 = vld [vmem:[%s166 + $0x70] sm:$0xf]
      %v204 = vld [vmem:[%s166 + $0x74] sm:$0xf]
      %v205 = vld [vmem:[%s166 + $0x78] sm:$0xf]
      %v206 = vld [vmem:[%s166 + $0x7c] sm:$0xf]
      %v207 = vld [vmem:[%s1] sm:$0xf]
      %v208 = vld [vmem:[%s1 + $0x4] sm:$0xf]
      %v209 = vld [vmem:[%s1 + $0x8] sm:$0xf]
      %v210 = vld [vmem:[%s1 + $0xc] sm:$0xf]
      %v211 = vld [vmem:[%s2] sm:$0x1]
      %v213 = vlaneseq
      %v214 = vshrl.u32 %v213, 7
      %v215 = vsub.s32 0, %v214
      %v216 = vrot.slane %v211, %v215
      %v250 = vunpack.c.l.b16 %v175
      %v251 = vunpack.c.l.b16 %v176
      %v252 = vunpack.c.l.b16 %v177
      %v253 = vunpack.c.l.b16 %v178
      %v254 = vunpack.c.l.b16 %v179
      %v255 = vunpack.c.l.b16 %v180
      %v256 = vunpack.c.l.b16 %v181
      %v257 = vunpack.c.l.b16 %v182
      %v258 = vunpack.c.l.b16 %v183
      %v259 = vunpack.c.l.b16 %v184
      %v260 = vunpack.c.l.b16 %v185
      %v261 = vunpack.c.l.b16 %v186
      %v262 = vunpack.c.l.b16 %v187
      %v263 = vunpack.c.l.b16 %v188
      %v264 = vunpack.c.l.b16 %v189
      %v265 = vunpack.c.l.b16 %v190
      %v266 = vunpack.c.l.b16 %v191
      %v267 = vunpack.c.l.b16 %v192
      %v268 = vunpack.c.l.b16 %v193
      %v269 = vunpack.c.l.b16 %v194
      %v270 = vunpack.c.l.b16 %v195
      %v271 = vunpack.c.l.b16 %v196
      %v272 = vunpack.c.l.b16 %v197
      %v273 = vunpack.c.l.b16 %v198
      %v274 = vunpack.c.l.b16 %v199
      %v275 = vunpack.c.l.b16 %v200
      %v276 = vunpack.c.l.b16 %v201
      %v277 = vunpack.c.l.b16 %v202
      %v278 = vunpack.c.l.b16 %v203
      %v279 = vunpack.c.l.b16 %v204
      %v280 = vunpack.c.l.b16 %v205
      %v281 = vunpack.c.l.b16 %v206
      %v282 = vpack.c.b16 %v251, %v250
      %v283 = vpack.c.b16 %v253, %v252
      %v284 = vpack.c.b16 %v255, %v254
      %v285 = vpack.c.b16 %v257, %v256
      %v286 = vpack.c.b16 %v259, %v258
      %v287 = vpack.c.b16 %v261, %v260
      %v288 = vpack.c.b16 %v263, %v262
      %v289 = vpack.c.b16 %v265, %v264
      %v290 = vpack.c.b16 %v267, %v266
      %v291 = vpack.c.b16 %v269, %v268
      %v292 = vpack.c.b16 %v271, %v270
      %v293 = vpack.c.b16 %v273, %v272
      %v294 = vpack.c.b16 %v275, %v274
      %v295 = vpack.c.b16 %v277, %v276
      %v296 = vpack.c.b16 %v279, %v278
      %v297 = vpack.c.b16 %v281, %v280
      %v302 = vunpack.c.l.b16 %v207
      %v303 = vunpack.c.l.b16 %v208
      %v304 = vunpack.c.l.b16 %v209
      %v305 = vunpack.c.l.b16 %v210
      %v306 = vpack.c.b16 %v303, %v302
      %v307 = vpack.c.b16 %v305, %v304
      %vm310 = vcmask 261120
      %v312 = vsel %vm310, %v282, 0
      %v315 = vsel %vm310, %v283, 0
      %v318 = vsel %vm310, %v284, 0
      %v321 = vsel %vm310, %v285, 0
      %v324 = vsel %vm310, %v286, 0
      %v327 = vsel %vm310, %v287, 0
      %v330 = vsel %vm310, %v288, 0
      %v333 = vsel %vm310, %v289, 0
      %v336 = vsel %vm310, %v290, 0
      %v339 = vsel %vm310, %v291, 0
      %v342 = vsel %vm310, %v292, 0
      %v345 = vsel %vm310, %v293, 0
      %v348 = vsel %vm310, %v294, 0
      %v351 = vsel %vm310, %v295, 0
      %v354 = vsel %vm310, %v296, 0
      %v357 = vsel %vm310, %v297, 0
      %359 = vmatprep.subr.bf16.mxu0 0
      %360 = vmatpush1.bf16.msra.mxu0 0
      %361 = vmatprep.subr.bf16.mxu0 0
      %362 = vmatpush1.bf16.msra.mxu0 0
      %363 = vmatprep.subr.bf16.mxu0 0
      %364 = vmatpush1.bf16.msra.mxu0 0
      %365 = vmatprep.subr.bf16.mxu0 0
      %366 = vmatpush1.bf16.msra.mxu0 0
      %367 = vmatprep.subr.bf16.mxu0 0
      %368 = vmatpush1.bf16.msra.mxu0 0
      %369 = vmatprep.subr.bf16.mxu0 0
      %370 = vmatpush1.bf16.msra.mxu0 0
      %371 = vmatprep.subr.bf16.mxu0 0
      %372 = vmatpush1.bf16.msra.mxu0 %v307
      %373 = vmatprep.subr.bf16.mxu0 0
      %374 = vmatpush1.bf16.msra.mxu0 %v306
      %375 = vmatprep.subr.bf16.mxu0 0
      %376 = vmatpush2.bf16.msra.mxu0 0
      %377 = vmatprep.subr.bf16.mxu0 0
      %378 = vmatpush2.bf16.msra.mxu0 0
      %379 = vmatprep.subr.bf16.mxu0 0
      %380 = vmatpush2.bf16.msra.mxu0 0
      %381 = vmatprep.subr.bf16.mxu0 0
      %382 = vmatpush2.bf16.msra.mxu0 0
      %383 = vmatprep.subr.bf16.mxu0 0
      %384 = vmatpush2.bf16.msra.mxu0 0
      %385 = vmatprep.subr.bf16.mxu0 0
      %386 = vmatpush2.bf16.msra.mxu0 0
      %387 = vmatprep.subr.bf16.mxu0 0
      %388 = vmatpush2.bf16.msra.mxu0 0
      %389 = vmatprep.subr.bf16.mxu0 0
      %390 = vmatpush2.bf16.msra.mxu0 0
      %391 = vmatprep.mubr.bf16.mxu0 0
      %392 = vmatmul.mubr.bf16.gmra.mxu0 %v312
      %v393 = vpop.f32.mrf.mxu0
      %v394 = vadd.f32 %v216, %v393
      %v395 = vpop.f32.mrf.mxu0
      %v396 = vpop.f32.mrf.mxu0
      %v397 = vadd.f32 %v216, %v396
      %v398 = vpop.f32.mrf.mxu0
      %399 = vmatprep.mubr.bf16.mxu0 0
      %400 = vmatmul.mubr.bf16.gmra.mxu0 %v315
      %v401 = vpop.f32.mrf.mxu0
      %v402 = vadd.f32 %v216, %v401
      %v403 = vpop.f32.mrf.mxu0
      %v404 = vpop.f32.mrf.mxu0
      %v405 = vadd.f32 %v216, %v404
      %v406 = vpop.f32.mrf.mxu0
      %407 = vmatprep.mubr.bf16.mxu0 0
      %408 = vmatmul.mubr.bf16.gmra.mxu0 %v318
      %v409 = vpop.f32.mrf.mxu0
      %v410 = vadd.f32 %v216, %v409
      %v411 = vpop.f32.mrf.mxu0
      %v412 = vpop.f32.mrf.mxu0
      %v413 = vadd.f32 %v216, %v412
      %v414 = vpop.f32.mrf.mxu0
      %415 = vmatprep.mubr.bf16.mxu0 0
      %416 = vmatmul.mubr.bf16.gmra.mxu0 %v321
      %v417 = vpop.f32.mrf.mxu0
      %v418 = vadd.f32 %v216, %v417
      %v419 = vpop.f32.mrf.mxu0
      %v420 = vpop.f32.mrf.mxu0
      %v421 = vadd.f32 %v216, %v420
      %v422 = vpop.f32.mrf.mxu0
      %423 = vmatprep.mubr.bf16.mxu0 0
      %424 = vmatmul.mubr.bf16.gmra.mxu0 %v324
      %v425 = vpop.f32.mrf.mxu0
      %v426 = vadd.f32 %v216, %v425
      %v427 = vpop.f32.mrf.mxu0
      %v428 = vpop.f32.mrf.mxu0
      %v429 = vadd.f32 %v216, %v428
      %v430 = vpop.f32.mrf.mxu0
      %431 = vmatprep.mubr.bf16.mxu0 0
      %432 = vmatmul.mubr.bf16.gmra.mxu0 %v327
      %v433 = vpop.f32.mrf.mxu0
      %v434 = vadd.f32 %v216, %v433
      %v435 = vpop.f32.mrf.mxu0
      %v436 = vpop.f32.mrf.mxu0
      %v437 = vadd.f32 %v216, %v436
      %v438 = vpop.f32.mrf.mxu0
      %439 = vmatprep.mubr.bf16.mxu0 0
      %440 = vmatmul.mubr.bf16.gmra.mxu0 %v330
      %v441 = vpop.f32.mrf.mxu0
      %v442 = vadd.f32 %v216, %v441
      %v443 = vpop.f32.mrf.mxu0
      %v444 = vpop.f32.mrf.mxu0
      %v445 = vadd.f32 %v216, %v444
      %v446 = vpop.f32.mrf.mxu0
      %447 = vmatprep.mubr.bf16.mxu0 0
      %448 = vmatmul.mubr.bf16.gmra.mxu0 %v333
      %v449 = vpop.f32.mrf.mxu0
      %v450 = vadd.f32 %v216, %v449
      %v451 = vpop.f32.mrf.mxu0
      %v452 = vpop.f32.mrf.mxu0
      %v453 = vadd.f32 %v216, %v452
      %v454 = vpop.f32.mrf.mxu0
      %455 = vmatprep.mubr.bf16.mxu0 0
      %456 = vmatmul.mubr.bf16.gmra.mxu0 %v336
      %v457 = vpop.f32.mrf.mxu0
      %v458 = vadd.f32 %v216, %v457
      %v459 = vpop.f32.mrf.mxu0
      %v460 = vpop.f32.mrf.mxu0
      %v461 = vadd.f32 %v216, %v460
      %v462 = vpop.f32.mrf.mxu0
      %463 = vmatprep.mubr.bf16.mxu0 0
      %464 = vmatmul.mubr.bf16.gmra.mxu0 %v339
      %v465 = vpop.f32.mrf.mxu0
      %v466 = vadd.f32 %v216, %v465
      %v467 = vpop.f32.mrf.mxu0
      %v468 = vpop.f32.mrf.mxu0
      %v469 = vadd.f32 %v216, %v468
      %v470 = vpop.f32.mrf.mxu0
      %471 = vmatprep.mubr.bf16.mxu0 0
      %472 = vmatmul.mubr.bf16.gmra.mxu0 %v342
      %v473 = vpop.f32.mrf.mxu0
      %v474 = vadd.f32 %v216, %v473
      %v475 = vpop.f32.mrf.mxu0
      %v476 = vpop.f32.mrf.mxu0
      %v477 = vadd.f32 %v216, %v476
      %v478 = vpop.f32.mrf.mxu0
      %479 = vmatprep.mubr.bf16.mxu0 0
      %480 = vmatmul.mubr.bf16.gmra.mxu0 %v345
      %v481 = vpop.f32.mrf.mxu0
      %v482 = vadd.f32 %v216, %v481
      %v483 = vpop.f32.mrf.mxu0
      %v484 = vpop.f32.mrf.mxu0
      %v485 = vadd.f32 %v216, %v484
      %v486 = vpop.f32.mrf.mxu0
      %487 = vmatprep.mubr.bf16.mxu0 0
      %488 = vmatmul.mubr.bf16.gmra.mxu0 %v348
      %v489 = vpop.f32.mrf.mxu0
      %v490 = vadd.f32 %v216, %v489
      %v491 = vpop.f32.mrf.mxu0
      %v492 = vpop.f32.mrf.mxu0
      %v493 = vadd.f32 %v216, %v492
      %v494 = vpop.f32.mrf.mxu0
      %495 = vmatprep.mubr.bf16.mxu0 0
      %496 = vmatmul.mubr.bf16.gmra.mxu0 %v351
      %v497 = vpop.f32.mrf.mxu0
      %v498 = vadd.f32 %v216, %v497
      %v499 = vpop.f32.mrf.mxu0
      %v500 = vpop.f32.mrf.mxu0
      %v501 = vadd.f32 %v216, %v500
      %v502 = vpop.f32.mrf.mxu0
      %503 = vmatprep.mubr.bf16.mxu0 0
      %504 = vmatmul.mubr.bf16.gmra.mxu0 %v354
      %v505 = vpop.f32.mrf.mxu0
      %v506 = vadd.f32 %v216, %v505
      %v507 = vpop.f32.mrf.mxu0
      %v508 = vpop.f32.mrf.mxu0
      %v509 = vadd.f32 %v216, %v508
      %v510 = vpop.f32.mrf.mxu0
      %511 = vmatprep.mubr.bf16.mxu0 0
      %512 = vmatmul.mubr.bf16.gmra.mxu0 %v357
      %v513 = vpop.f32.mrf.mxu0
      %v514 = vadd.f32 %v216, %v513
      %v515 = vpop.f32.mrf.mxu0
      %v516 = vpop.f32.mrf.mxu0
      %v517 = vadd.f32 %v216, %v516
      %v518 = vpop.f32.mrf.mxu0
      %519 = vdwg.mxu0
      %v520 = vpack.c.bf16 %v397, %v394
      %v521 = vpack.c.bf16 %v405, %v402
      %v522 = vpack.c.bf16 %v413, %v410
      %v523 = vpack.c.bf16 %v421, %v418
      %v524 = vpack.c.bf16 %v429, %v426
      %v525 = vpack.c.bf16 %v437, %v434
      %v526 = vpack.c.bf16 %v445, %v442
      %v527 = vpack.c.bf16 %v453, %v450
      %v528 = vpack.c.bf16 %v461, %v458
      %v529 = vpack.c.bf16 %v469, %v466
      %v530 = vpack.c.bf16 %v477, %v474
      %v531 = vpack.c.bf16 %v485, %v482
      %v532 = vpack.c.bf16 %v493, %v490
      %v533 = vpack.c.bf16 %v501, %v498
      %v534 = vpack.c.bf16 %v509, %v506
      %v535 = vpack.c.bf16 %v517, %v514
      %v552 = vunpack.c.l.b16 %v520
      %v553 = vunpack.c.h.b16 %v520
      %v554 = vunpack.c.l.b16 %v521
      %v555 = vunpack.c.h.b16 %v521
      %v556 = vunpack.c.l.b16 %v522
      %v557 = vunpack.c.h.b16 %v522
      %v558 = vunpack.c.l.b16 %v523
      %v559 = vunpack.c.h.b16 %v523
      %v560 = vunpack.c.l.b16 %v524
      %v561 = vunpack.c.h.b16 %v524
      %v562 = vunpack.c.l.b16 %v525
      %v563 = vunpack.c.h.b16 %v525
      %v564 = vunpack.c.l.b16 %v526
      %v565 = vunpack.c.h.b16 %v526
      %v566 = vunpack.c.l.b16 %v527
      %v567 = vunpack.c.h.b16 %v527
      %v568 = vunpack.c.l.b16 %v528
      %v569 = vunpack.c.h.b16 %v528
      %v570 = vunpack.c.l.b16 %v529
      %v571 = vunpack.c.h.b16 %v529
      %v572 = vunpack.c.l.b16 %v530
      %v573 = vunpack.c.h.b16 %v530
      %v574 = vunpack.c.l.b16 %v531
      %v575 = vunpack.c.h.b16 %v531
      %v576 = vunpack.c.l.b16 %v532
      %v577 = vunpack.c.h.b16 %v532
      %v578 = vunpack.c.l.b16 %v533
      %v579 = vunpack.c.h.b16 %v533
      %v580 = vunpack.c.l.b16 %v534
      %v581 = vunpack.c.h.b16 %v534
      %v582 = vunpack.c.l.b16 %v535
      %v583 = vunpack.c.h.b16 %v535
      %v584 = vpack.c.b16 %v552, %v552
      %v585 = vpack.c.b16 %v553, %v553
      %v586 = vpack.c.b16 %v554, %v554
      %v587 = vpack.c.b16 %v555, %v555
      %v588 = vpack.c.b16 %v556, %v556
      %v589 = vpack.c.b16 %v557, %v557
      %v590 = vpack.c.b16 %v558, %v558
      %v591 = vpack.c.b16 %v559, %v559
      %v592 = vpack.c.b16 %v560, %v560
      %v593 = vpack.c.b16 %v561, %v561
      %v594 = vpack.c.b16 %v562, %v562
      %v595 = vpack.c.b16 %v563, %v563
      %v596 = vpack.c.b16 %v564, %v564
      %v597 = vpack.c.b16 %v565, %v565
      %v598 = vpack.c.b16 %v566, %v566
      %v599 = vpack.c.b16 %v567, %v567
      %v600 = vpack.c.b16 %v568, %v568
      %v601 = vpack.c.b16 %v569, %v569
      %v602 = vpack.c.b16 %v570, %v570
      %v603 = vpack.c.b16 %v571, %v571
      %v604 = vpack.c.b16 %v572, %v572
      %v605 = vpack.c.b16 %v573, %v573
      %v606 = vpack.c.b16 %v574, %v574
      %v607 = vpack.c.b16 %v575, %v575
      %v608 = vpack.c.b16 %v576, %v576
      %v609 = vpack.c.b16 %v577, %v577
      %v610 = vpack.c.b16 %v578, %v578
      %v611 = vpack.c.b16 %v579, %v579
      %v612 = vpack.c.b16 %v580, %v580
      %v613 = vpack.c.b16 %v581, %v581
      %v614 = vpack.c.b16 %v582, %v582
      %v615 = vpack.c.b16 %v583, %v583
      %vm648 = vcmask 125952
      %649 = vst.msk [vmem:[%s172] sm:$0xf] %vm648, %v584
      %650 = vst.msk [vmem:[%s172 + $0x4] sm:$0xf] %vm648, %v585
      %651 = vst.msk [vmem:[%s172 + $0x8] sm:$0xf] %vm648, %v586
      %652 = vst.msk [vmem:[%s172 + $0xc] sm:$0xf] %vm648, %v587
      %653 = vst.msk [vmem:[%s172 + $0x10] sm:$0xf] %vm648, %v588
      %654 = vst.msk [vmem:[%s172 + $0x14] sm:$0xf] %vm648, %v589
      %655 = vst.msk [vmem:[%s172 + $0x18] sm:$0xf] %vm648, %v590
      %656 = vst.msk [vmem:[%s172 + $0x1c] sm:$0xf] %vm648, %v591
      %657 = vst.msk [vmem:[%s172 + $0x20] sm:$0xf] %vm648, %v592
      %658 = vst.msk [vmem:[%s172 + $0x24] sm:$0xf] %vm648, %v593
      %659 = vst.msk [vmem:[%s172 + $0x28] sm:$0xf] %vm648, %v594
      %660 = vst.msk [vmem:[%s172 + $0x2c] sm:$0xf] %vm648, %v595
      %661 = vst.msk [vmem:[%s172 + $0x30] sm:$0xf] %vm648, %v596
      %662 = vst.msk [vmem:[%s172 + $0x34] sm:$0xf] %vm648, %v597
      %663 = vst.msk [vmem:[%s172 + $0x38] sm:$0xf] %vm648, %v598
      %664 = vst.msk [vmem:[%s172 + $0x3c] sm:$0xf] %vm648, %v599
      %665 = vst.msk [vmem:[%s172 + $0x40] sm:$0xf] %vm648, %v600
      %666 = vst.msk [vmem:[%s172 + $0x44] sm:$0xf] %vm648, %v601
      %667 = vst.msk [vmem:[%s172 + $0x48] sm:$0xf] %vm648, %v602
      %668 = vst.msk [vmem:[%s172 + $0x4c] sm:$0xf] %vm648, %v603
      %669 = vst.msk [vmem:[%s172 + $0x50] sm:$0xf] %vm648, %v604
      %670 = vst.msk [vmem:[%s172 + $0x54] sm:$0xf] %vm648, %v605
      %671 = vst.msk [vmem:[%s172 + $0x58] sm:$0xf] %vm648, %v606
      %672 = vst.msk [vmem:[%s172 + $0x5c] sm:$0xf] %vm648, %v607
      %673 = vst.msk [vmem:[%s172 + $0x60] sm:$0xf] %vm648, %v608
      %674 = vst.msk [vmem:[%s172 + $0x64] sm:$0xf] %vm648, %v609
      %675 = vst.msk [vmem:[%s172 + $0x68] sm:$0xf] %vm648, %v610
      %676 = vst.msk [vmem:[%s172 + $0x6c] sm:$0xf] %vm648, %v611
      %677 = vst.msk [vmem:[%s172 + $0x70] sm:$0xf] %vm648, %v612
      %678 = vst.msk [vmem:[%s172 + $0x74] sm:$0xf] %vm648, %v613
      %679 = vst.msk [vmem:[%s172 + $0x78] sm:$0xf] %vm648, %v614
      %680 = vst.msk [vmem:[%s172 + $0x7c] sm:$0xf] %vm648, %v615
      %s681 = smul.u32 32, %s14
      %p682 = scmp.lt.s32.totalorder %s681, 63
      %s683 = scalar_select %p682, %s681, 63
      %s684 = smul.addr %s683, 4
      %s685 = scalar_lea.vmem %s3, %s684
      // Predicated region
      $region33: #{_lambda_.26} parent=31 // pred_check
        %p686 = pneg %p100
      $region34: #{_lambda_.26} parent=31 // pred_check_branch
        %688 = sbr.rel (%p686) target = $region36
      $region35: #{_lambda_.26} parent=31 // pred_region
        %s689 = smul.u32 32, %s14
      $region36: #{_lambda_.26} parent=31 // pred_fallthru
        _
    $region32: #{_lambda_.26} parent=5 // pred_fallthru
      _
    %p690 = scmp.le.s32.totalorder 2, %s9
    // Predicated region
    $region37: #{_lambda_.26} parent=5 // pred_check
      %p691 = pneg %p690
    $region38: #{_lambda_.26} parent=5 // pred_check_branch
      %693 = sbr.rel (%p691) target = $region40
    $region39: #{_lambda_.26} parent=5 // pred_region
      %s694 = ssub.s32 %s9, 2
      // Predicated region
      $region41: #{_lambda_.26} parent=39 // pred_check
        %p695 = pneg %p106
      $region42: #{_lambda_.26} parent=39 // pred_check_branch
        %697 = sbr.rel (%p695) target = $region44
      $region43: #{_lambda_.26} parent=39 // pred_region
        %s698 = smul.u32 32, %s15
        %p699 = scmp.lt.s32.totalorder %s698, 63
        %s700 = scalar_select %p699, %s698, 63
        %s701 = smul.addr %s700, 4
        %s702 = scalar_lea.vmem %s3, %s701
      $region44: #{_lambda_.26} parent=39 // pred_fallthru
        _
    $region40: #{_lambda_.26} parent=5 // pred_fallthru
      _
  $region6: #{_lambda_.26} parent=0 // loop_footer
    %s13 = sadd.s32 1, %s9
  $region7: #{_lambda_.26} parent=0 // loop_footer_branch
    %8 = sbr.rel target = $region3
  $region8: #{_lambda_.26} parent=0 // loop_exit
    _

// kernel: _lambda_.27
$region0: #{_lambda_.27}
  #allocation0 [shape = 'u32[]', space=smem, size = 0x4, offset = 0x4, fixed_abs, tag = 'smem constant byte address 0x4 - core index']
  #allocation1 [shape = 'u32[144,128]{1,0:T(1,128)}', space=vmem, size = 0x12000, scoped, tag = 'internal scratch']
  %s0 = inlined_call_operand.vmem [shape: bf16[512,16], index: 0, kind: input, shape index: {}]
  %s1 = inlined_call_operand.vmem [shape: bf16[16,48], index: 1, kind: input, shape index: {}]
  %s2 = inlined_call_operand.vmem [shape: f32[1,48], index: 2, kind: input, shape index: {}]
  %s3 = inlined_call_operand.vmem [shape: bf16[512,48], index: 3, kind: output, shape index: {}]
  %s4 = sld [smem:[#allocation0]]
  $region45: #{_lambda_.27} parent=0
    _
  %s6 = ssub.s32 1, %s4
  %s7 = scalar_select 0, %s6, %s4
  loop: start=0, step=1, limit=4
  $region2: #{_lambda_.27} parent=0 // loop_pre_header
    _
  $region3: #{_lambda_.27} parent=0 // loop_header
    %s9 = sphi 0, %s13
    %p10 = scmp.ge.s32.totalorder %s9, 4
    %s19 = sphi 0, %s21
    %s22 = sphi 0, %s19
    %s23 = sphi 0, %s22
    %s39 = sphi 0, %s23
    %s43 = sphi 0, %s43
    %s45 = sphi 0, %s43
    %s46 = sphi 0, %s45
    %s60 = sphi 0, %s46
    %s64 = sphi 0, %s64
    %s66 = sphi 0, %s64
    %s67 = sphi 0, %s66
    %s81 = sphi 0, %s67
    %s87 = sphi 0, %s89
    %s90 = sphi 0, %s87
    %s91 = sphi 0, %s90
    %s107 = sphi 0, %s91
  $region4: #{_lambda_.27} parent=0 // loop_header_branch
    %12 = sbr.rel (%p10) target = $region8
  $region5: #{_lambda_.27} parent=0 // loop_body
    %s14 = ssub.s32 %s9, 1
    %s15 = ssub.s32 %s9, 2
    %s16 = sadd.s32 %s9, 1
    %s17 = ssub.s32 %s9, %s16
    %p18 = scmp.eq.s32.totalorder %s17, 0
    %s20 = sadd.s32 %s19, 1
    %s21 = scalar_select %p18, %s19, %s20
    %p24 = pneg %p18
    %p25 = scmp.eq.s32.totalorder %s9, 1
    %p26 = por %p24, %p25
    %p27 = scmp.ne.s32.totalorder %s19, %s22
    %p28 = scmp.eq.s32.totalorder %s9, 0
    %p29 = por %p27, %p28
    %p30 = scmp.ne.s32.totalorder %s19, %s22
    %p31 = scmp.eq.s32.totalorder %s14, 1
    %p32 = por %p30, %p31
    %p33 = scmp.ne.s32.totalorder %s22, %s23
    %p34 = scmp.eq.s32.totalorder %s14, 0
    %p35 = por %p33, %p34
    %p36 = scmp.ne.s32.totalorder %s22, %s23
    %p37 = scmp.eq.s32.totalorder %s15, 1
    %p38 = por %p36, %p37
    %p40 = scmp.ne.s32.totalorder %s23, %s39
    %p41 = scmp.eq.s32.totalorder %s15, 0
    %p42 = por %p40, %p41
    %s44 = sadd.s32 %s43, 1
    %p47 = scmp.eq.s32.totalorder %s9, 1
    %p48 = scmp.ne.s32.totalorder %s43, %s45
    %p49 = scmp.eq.s32.totalorder %s9, 0
    %p50 = por %p48, %p49
    %p51 = scmp.ne.s32.totalorder %s43, %s45
    %p52 = scmp.eq.s32.totalorder %s14, 1
    %p53 = por %p51, %p52
    %p54 = scmp.ne.s32.totalorder %s45, %s46
    %p55 = scmp.eq.s32.totalorder %s14, 0
    %p56 = por %p54, %p55
    %p57 = scmp.ne.s32.totalorder %s45, %s46
    %p58 = scmp.eq.s32.totalorder %s15, 1
    %p59 = por %p57, %p58
    %p61 = scmp.ne.s32.totalorder %s46, %s60
    %p62 = scmp.eq.s32.totalorder %s15, 0
    %p63 = por %p61, %p62
    %s65 = sadd.s32 %s64, 1
    %p68 = scmp.eq.s32.totalorder %s9, 1
    %p69 = scmp.ne.s32.totalorder %s64, %s66
    %p70 = scmp.eq.s32.totalorder %s9, 0
    %p71 = por %p69, %p70
    %p72 = scmp.ne.s32.totalorder %s64, %s66
    %p73 = scmp.eq.s32.totalorder %s14, 1
    %p74 = por %p72, %p73
    %p75 = scmp.ne.s32.totalorder %s66, %s67
    %p76 = scmp.eq.s32.totalorder %s14, 0
    %p77 = por %p75, %p76
    %p78 = scmp.ne.s32.totalorder %s66, %s67
    %p79 = scmp.eq.s32.totalorder %s15, 1
    %p80 = por %p78, %p79
    %p82 = scmp.ne.s32.totalorder %s67, %s81
    %p83 = scmp.eq.s32.totalorder %s15, 0
    %p84 = por %p82, %p83
    %s85 = ssub.s32 %s9, %s16
    %p86 = scmp.eq.s32.totalorder %s85, 0
    %s88 = sadd.s32 %s87, 1
    %s89 = scalar_select %p86, %s87, %s88
    %p92 = pneg %p86
    %p93 = scmp.eq.s32.totalorder %s9, 1
    %p94 = por %p92, %p93
    %p95 = scmp.ne.s32.totalorder %s87, %s90
    %p96 = scmp.eq.s32.totalorder %s9, 0
    %p97 = por %p95, %p96
    %p98 = scmp.ne.s32.totalorder %s87, %s90
    %p99 = scmp.eq.s32.totalorder %s14, 1
    %p100 = por %p98, %p99
    %p101 = scmp.ne.s32.totalorder %s90, %s91
    %p102 = scmp.eq.s32.totalorder %s14, 0
    %p103 = por %p101, %p102
    %p104 = scmp.ne.s32.totalorder %s90, %s91
    %p105 = scmp.eq.s32.totalorder %s15, 1
    %p106 = por %p104, %p105
    %p108 = scmp.ne.s32.totalorder %s91, %s107
    %p109 = scmp.eq.s32.totalorder %s15, 0
    %p110 = por %p108, %p109
    %p111 = scmp.le.s32.totalorder 1, %s9
    %p112 = scmp.lt.s32.totalorder %s9, 3
    %p113 = pnand %p111, %p112
    %p114 = pneg %p113
    // Predicated region
    $region9: #{_lambda_.27} parent=5 // pred_check
      _
    $region10: #{_lambda_.27} parent=5 // pred_check_branch
      %116 = sbr.rel (%p113) target = $region12
    $region11: #{_lambda_.27} parent=5 // pred_region
      %s117 = ssub.s32 %s9, 1
      // Predicated region
      $region13: #{_lambda_.27} parent=11 // pred_check
        %p118 = pneg %p56
      $region14: #{_lambda_.27} parent=11 // pred_check_branch
        %120 = sbr.rel (%p118) target = $region16
      $region15: #{_lambda_.27} parent=11 // pred_region
        _
      $region16: #{_lambda_.27} parent=11 // pred_fallthru
        _
      // Predicated region
      $region17: #{_lambda_.27} parent=11 // pred_check
        %p121 = pneg %p77
      $region18: #{_lambda_.27} parent=11 // pred_check_branch
        %123 = sbr.rel (%p121) target = $region20
      $region19: #{_lambda_.27} parent=11 // pred_region
        _
      $region20: #{_lambda_.27} parent=11 // pred_fallthru
        _
    $region12: #{_lambda_.27} parent=5 // pred_fallthru
      _
    %p124 = scmp.lt.s32.totalorder %s9, 2
    // Predicated region
    $region21: #{_lambda_.27} parent=5 // pred_check
      %p125 = pneg %p124
    $region22: #{_lambda_.27} parent=5 // pred_check_branch
      %127 = sbr.rel (%p125) target = $region24
    $region23: #{_lambda_.27} parent=5 // pred_region
      // Predicated region
      $region25: #{_lambda_.27} parent=23 // pred_check
        %p128 = pneg %p29
      $region26: #{_lambda_.27} parent=23 // pred_check_branch
        %130 = sbr.rel (%p128) target = $region28
      $region27: #{_lambda_.27} parent=23 // pred_region
        %s131 = smul.u32 32, %s9
        %p132 = scmp.lt.s32.totalorder %s131, 63
        %s133 = scalar_select %p132, %s131, 63
        %s134 = smul.addr %s133, 4
        %s135 = scalar_lea.vmem %s0, %s134
        %s136 = smul.u32 32, %s9
      $region28: #{_lambda_.27} parent=23 // pred_fallthru
        _
    $region24: #{_lambda_.27} parent=5 // pred_fallthru
      _
    %p137 = scmp.le.s32.totalorder 1, %s9
    %p138 = scmp.lt.s32.totalorder %s9, 3
    %p139 = pnand %p137, %p138
    %p140 = pneg %p139
    // Predicated region
    $region29: #{_lambda_.27} parent=5 // pred_check
      _
    $region30: #{_lambda_.27} parent=5 // pred_check_branch
      %142 = sbr.rel (%p139) target = $region32
    $region31: #{_lambda_.27} parent=5 // pred_region
      %s143 = ssub.s32 %s9, 1
      %s144 = smul.u32 32, %s14
      %p145 = scmp.lt.s32.totalorder %s144, 63
      %s146 = scalar_select %p145, %s144, 63
      %s147 = smul.addr %s146, 4
      %s148 = scalar_lea.vmem %s0, %s147
      %p149 = pneg %p35
      %p150 = pneg %p32
      %p151 = pneg %p56
      %p152 = pneg %p53
      %p153 = pneg %p77
      %p154 = pneg %p74
      %p155 = pneg %p103
      %p156 = pneg %p100
      %s157 = smul.u32 32, %s14
      %p158 = scmp.lt.s32.totalorder %s157, 63
      %s159 = scalar_select %p158, %s157, 63
      %s160 = smul.addr %s159, 4
      %s161 = scalar_lea.vmem %s3, %s160
      %s162 = smul.u32 32, %s14
      %p163 = scmp.lt.s32.totalorder %s162, 63
      %s164 = scalar_select %p163, %s162, 63
      %s165 = smul.addr %s164, 4
      %s166 = scalar_lea.vmem %s0, %s165
      %s167 = smul.u32 32, %s14
      %s168 = smul.u32 32, %s14
      %p169 = scmp.lt.s32.totalorder %s168, 63
      %s170 = scalar_select %p169, %s168, 63
      %s171 = smul.addr %s170, 4
      %s172 = scalar_lea.vmem %s3, %s171
      %s173 = smul.u32 32, %s14
      %v175 = vld [vmem:[%s166] sm:$0xf]
      %v176 = vld [vmem:[%s166 + $0x4] sm:$0xf]
      %v177 = vld [vmem:[%s166 + $0x8] sm:$0xf]
      %v178 = vld [vmem:[%s166 + $0xc] sm:$0xf]
      %v179 = vld [vmem:[%s166 + $0x10] sm:$0xf]
      %v180 = vld [vmem:[%s166 + $0x14] sm:$0xf]
      %v181 = vld [vmem:[%s166 + $0x18] sm:$0xf]
      %v182 = vld [vmem:[%s166 + $0x1c] sm:$0xf]
      %v183 = vld [vmem:[%s166 + $0x20] sm:$0xf]
      %v184 = vld [vmem:[%s166 + $0x24] sm:$0xf]
      %v185 = vld [vmem:[%s166 + $0x28] sm:$0xf]
      %v186 = vld [vmem:[%s166 + $0x2c] sm:$0xf]
      %v187 = vld [vmem:[%s166 + $0x30] sm:$0xf]
      %v188 = vld [vmem:[%s166 + $0x34] sm:$0xf]
      %v189 = vld [vmem:[%s166 + $0x38] sm:$0xf]
      %v190 = vld [vmem:[%s166 + $0x3c] sm:$0xf]
      %v191 = vld [vmem:[%s166 + $0x40] sm:$0xf]
      %v192 = vld [vmem:[%s166 + $0x44] sm:$0xf]
      %v193 = vld [vmem:[%s166 + $0x48] sm:$0xf]
      %v194 = vld [vmem:[%s166 + $0x4c] sm:$0xf]
      %v195 = vld [vmem:[%s166 + $0x50] sm:$0xf]
      %v196 = vld [vmem:[%s166 + $0x54] sm:$0xf]
      %v197 = vld [vmem:[%s166 + $0x58] sm:$0xf]
      %v198 = vld [vmem:[%s166 + $0x5c] sm:$0xf]
      %v199 = vld [vmem:[%s166 + $0x60] sm:$0xf]
      %v200 = vld [vmem:[%s166 + $0x64] sm:$0xf]
      %v201 = vld [vmem:[%s166 + $0x68] sm:$0xf]
      %v202 = vld [vmem:[%s166 + $0x6c] sm:$0xf]
      %v203 = vld [vmem:[%s166 + $0x70] sm:$0xf]
      %v204 = vld [vmem:[%s166 + $0x74] sm:$0xf]
      %v205 = vld [vmem:[%s166 + $0x78] sm:$0xf]
      %v206 = vld [vmem:[%s166 + $0x7c] sm:$0xf]
      %v207 = vld [vmem:[%s1] sm:$0xf]
      %v208 = vld [vmem:[%s1 + $0x4] sm:$0xf]
      %v209 = vld [vmem:[%s2] sm:$0x1]
      %v211 = vlaneseq
      %v212 = vshrl.u32 %v211, 7
      %v213 = vsub.s32 0, %v212
      %v214 = vrot.slane %v209, %v213
      %v248 = vunpack.c.l.b16 %v175
      %v249 = vunpack.c.l.b16 %v176
      %v250 = vunpack.c.l.b16 %v177
      %v251 = vunpack.c.l.b16 %v178
      %v252 = vunpack.c.l.b16 %v179
      %v253 = vunpack.c.l.b16 %v180
      %v254 = vunpack.c.l.b16 %v181
      %v255 = vunpack.c.l.b16 %v182
      %v256 = vunpack.c.l.b16 %v183
      %v257 = vunpack.c.l.b16 %v184
      %v258 = vunpack.c.l.b16 %v185
      %v259 = vunpack.c.l.b16 %v186
      %v260 = vunpack.c.l.b16 %v187
      %v261 = vunpack.c.l.b16 %v188
      %v262 = vunpack.c.l.b16 %v189
      %v263 = vunpack.c.l.b16 %v190
      %v264 = vunpack.c.l.b16 %v191
      %v265 = vunpack.c.l.b16 %v192
      %v266 = vunpack.c.l.b16 %v193
      %v267 = vunpack.c.l.b16 %v194
      %v268 = vunpack.c.l.b16 %v195
      %v269 = vunpack.c.l.b16 %v196
      %v270 = vunpack.c.l.b16 %v197
      %v271 = vunpack.c.l.b16 %v198
      %v272 = vunpack.c.l.b16 %v199
      %v273 = vunpack.c.l.b16 %v200
      %v274 = vunpack.c.l.b16 %v201
      %v275 = vunpack.c.l.b16 %v202
      %v276 = vunpack.c.l.b16 %v203
      %v277 = vunpack.c.l.b16 %v204
      %v278 = vunpack.c.l.b16 %v205
      %v279 = vunpack.c.l.b16 %v206
      %v280 = vpack.c.b16 %v249, %v248
      %v281 = vpack.c.b16 %v251, %v250
      %v282 = vpack.c.b16 %v253, %v252
      %v283 = vpack.c.b16 %v255, %v254
      %v284 = vpack.c.b16 %v257, %v256
      %v285 = vpack.c.b16 %v259, %v258
      %v286 = vpack.c.b16 %v261, %v260
      %v287 = vpack.c.b16 %v263, %v262
      %v288 = vpack.c.b16 %v265, %v264
      %v289 = vpack.c.b16 %v267, %v266
      %v290 = vpack.c.b16 %v269, %v268
      %v291 = vpack.c.b16 %v271, %v270
      %v292 = vpack.c.b16 %v273, %v272
      %v293 = vpack.c.b16 %v275, %v274
      %v294 = vpack.c.b16 %v277, %v276
      %v295 = vpack.c.b16 %v279, %v278
      %v298 = vunpack.c.l.b16 %v207
      %v299 = vunpack.c.l.b16 %v208
      %v300 = vpack.c.b16 %v299, %v298
      %vm302 = vcmask 130048
      %v304 = vsel %vm302, %v280, 0
      %v307 = vsel %vm302, %v281, 0
      %v310 = vsel %vm302, %v282, 0
      %v313 = vsel %vm302, %v283, 0
      %v316 = vsel %vm302, %v284, 0
      %v319 = vsel %vm302, %v285, 0
      %v322 = vsel %vm302, %v286, 0
      %v325 = vsel %vm302, %v287, 0
      %v328 = vsel %vm302, %v288, 0
      %v331 = vsel %vm302, %v289, 0
      %v334 = vsel %vm302, %v290, 0
      %v337 = vsel %vm302, %v291, 0
      %v340 = vsel %vm302, %v292, 0
      %v343 = vsel %vm302, %v293, 0
      %v346 = vsel %vm302, %v294, 0
      %v349 = vsel %vm302, %v295, 0
      %351 = vmatprep.subr.bf16.mxu0 0
      %352 = vmatpush1.bf16.msra.mxu0 0
      %353 = vmatprep.subr.bf16.mxu0 0
      %354 = vmatpush1.bf16.msra.mxu0 0
      %355 = vmatprep.subr.bf16.mxu0 0
      %356 = vmatpush1.bf16.msra.mxu0 0
      %357 = vmatprep.subr.bf16.mxu0 0
      %358 = vmatpush1.bf16.msra.mxu0 0
      %359 = vmatprep.subr.bf16.mxu0 0
      %360 = vmatpush1.bf16.msra.mxu0 0
      %361 = vmatprep.subr.bf16.mxu0 0
      %362 = vmatpush1.bf16.msra.mxu0 0
      %363 = vmatprep.subr.bf16.mxu0 0
      %364 = vmatpush1.bf16.msra.mxu0 0
      %365 = vmatprep.subr.bf16.mxu0 0
      %366 = vmatpush1.bf16.msra.mxu0 %v300
      %367 = vmatprep.subr.bf16.mxu0 0
      %368 = vmatpush2.bf16.msra.mxu0 0
      %369 = vmatprep.subr.bf16.mxu0 0
      %370 = vmatpush2.bf16.msra.mxu0 0
      %371 = vmatprep.subr.bf16.mxu0 0
      %372 = vmatpush2.bf16.msra.mxu0 0
      %373 = vmatprep.subr.bf16.mxu0 0
      %374 = vmatpush2.bf16.msra.mxu0 0
      %375 = vmatprep.subr.bf16.mxu0 0
      %376 = vmatpush2.bf16.msra.mxu0 0
      %377 = vmatprep.subr.bf16.mxu0 0
      %378 = vmatpush2.bf16.msra.mxu0 0
      %379 = vmatprep.subr.bf16.mxu0 0
      %380 = vmatpush2.bf16.msra.mxu0 0
      %381 = vmatprep.subr.bf16.mxu0 0
      %382 = vmatpush2.bf16.msra.mxu0 0
      %383 = vmatprep.mubr.bf16.mxu0 0
      %384 = vmatmul.mubr.bf16.gmra.mxu0 %v304
      %v385 = vpop.f32.mrf.mxu0
      %v386 = vadd.f32 %v214, %v385
      %v387 = vpop.f32.mrf.mxu0
      %v388 = vpop.f32.mrf.mxu0
      %v389 = vadd.f32 %v214, %v388
      %v390 = vpop.f32.mrf.mxu0
      %391 = vmatprep.mubr.bf16.mxu0 0
      %392 = vmatmul.mubr.bf16.gmra.mxu0 %v307
      %v393 = vpop.f32.mrf.mxu0
      %v394 = vadd.f32 %v214, %v393
      %v395 = vpop.f32.mrf.mxu0
      %v396 = vpop.f32.mrf.mxu0
      %v397 = vadd.f32 %v214, %v396
      %v398 = vpop.f32.mrf.mxu0
      %399 = vmatprep.mubr.bf16.mxu0 0
      %400 = vmatmul.mubr.bf16.gmra.mxu0 %v310
      %v401 = vpop.f32.mrf.mxu0
      %v402 = vadd.f32 %v214, %v401
      %v403 = vpop.f32.mrf.mxu0
      %v404 = vpop.f32.mrf.mxu0
      %v405 = vadd.f32 %v214, %v404
      %v406 = vpop.f32.mrf.mxu0
      %407 = vmatprep.mubr.bf16.mxu0 0
      %408 = vmatmul.mubr.bf16.gmra.mxu0 %v313
      %v409 = vpop.f32.mrf.mxu0
      %v410 = vadd.f32 %v214, %v409
      %v411 = vpop.f32.mrf.mxu0
      %v412 = vpop.f32.mrf.mxu0
      %v413 = vadd.f32 %v214, %v412
      %v414 = vpop.f32.mrf.mxu0
      %415 = vmatprep.mubr.bf16.mxu0 0
      %416 = vmatmul.mubr.bf16.gmra.mxu0 %v316
      %v417 = vpop.f32.mrf.mxu0
      %v418 = vadd.f32 %v214, %v417
      %v419 = vpop.f32.mrf.mxu0
      %v420 = vpop.f32.mrf.mxu0
      %v421 = vadd.f32 %v214, %v420
      %v422 = vpop.f32.mrf.mxu0
      %423 = vmatprep.mubr.bf16.mxu0 0
      %424 = vmatmul.mubr.bf16.gmra.mxu0 %v319
      %v425 = vpop.f32.mrf.mxu0
      %v426 = vadd.f32 %v214, %v425
      %v427 = vpop.f32.mrf.mxu0
      %v428 = vpop.f32.mrf.mxu0
      %v429 = vadd.f32 %v214, %v428
      %v430 = vpop.f32.mrf.mxu0
      %431 = vmatprep.mubr.bf16.mxu0 0
      %432 = vmatmul.mubr.bf16.gmra.mxu0 %v322
      %v433 = vpop.f32.mrf.mxu0
      %v434 = vadd.f32 %v214, %v433
      %v435 = vpop.f32.mrf.mxu0
      %v436 = vpop.f32.mrf.mxu0
      %v437 = vadd.f32 %v214, %v436
      %v438 = vpop.f32.mrf.mxu0
      %439 = vmatprep.mubr.bf16.mxu0 0
      %440 = vmatmul.mubr.bf16.gmra.mxu0 %v325
      %v441 = vpop.f32.mrf.mxu0
      %v442 = vadd.f32 %v214, %v441
      %v443 = vpop.f32.mrf.mxu0
      %v444 = vpop.f32.mrf.mxu0
      %v445 = vadd.f32 %v214, %v444
      %v446 = vpop.f32.mrf.mxu0
      %447 = vmatprep.mubr.bf16.mxu0 0
      %448 = vmatmul.mubr.bf16.gmra.mxu0 %v328
      %v449 = vpop.f32.mrf.mxu0
      %v450 = vadd.f32 %v214, %v449
      %v451 = vpop.f32.mrf.mxu0
      %v452 = vpop.f32.mrf.mxu0
      %v453 = vadd.f32 %v214, %v452
      %v454 = vpop.f32.mrf.mxu0
      %455 = vmatprep.mubr.bf16.mxu0 0
      %456 = vmatmul.mubr.bf16.gmra.mxu0 %v331
      %v457 = vpop.f32.mrf.mxu0
      %v458 = vadd.f32 %v214, %v457
      %v459 = vpop.f32.mrf.mxu0
      %v460 = vpop.f32.mrf.mxu0
      %v461 = vadd.f32 %v214, %v460
      %v462 = vpop.f32.mrf.mxu0
      %463 = vmatprep.mubr.bf16.mxu0 0
      %464 = vmatmul.mubr.bf16.gmra.mxu0 %v334
      %v465 = vpop.f32.mrf.mxu0
      %v466 = vadd.f32 %v214, %v465
      %v467 = vpop.f32.mrf.mxu0
      %v468 = vpop.f32.mrf.mxu0
      %v469 = vadd.f32 %v214, %v468
      %v470 = vpop.f32.mrf.mxu0
      %471 = vmatprep.mubr.bf16.mxu0 0
      %472 = vmatmul.mubr.bf16.gmra.mxu0 %v337
      %v473 = vpop.f32.mrf.mxu0
      %v474 = vadd.f32 %v214, %v473
      %v475 = vpop.f32.mrf.mxu0
      %v476 = vpop.f32.mrf.mxu0
      %v477 = vadd.f32 %v214, %v476
      %v478 = vpop.f32.mrf.mxu0
      %479 = vmatprep.mubr.bf16.mxu0 0
      %480 = vmatmul.mubr.bf16.gmra.mxu0 %v340
      %v481 = vpop.f32.mrf.mxu0
      %v482 = vadd.f32 %v214, %v481
      %v483 = vpop.f32.mrf.mxu0
      %v484 = vpop.f32.mrf.mxu0
      %v485 = vadd.f32 %v214, %v484
      %v486 = vpop.f32.mrf.mxu0
      %487 = vmatprep.mubr.bf16.mxu0 0
      %488 = vmatmul.mubr.bf16.gmra.mxu0 %v343
      %v489 = vpop.f32.mrf.mxu0
      %v490 = vadd.f32 %v214, %v489
      %v491 = vpop.f32.mrf.mxu0
      %v492 = vpop.f32.mrf.mxu0
      %v493 = vadd.f32 %v214, %v492
      %v494 = vpop.f32.mrf.mxu0
      %495 = vmatprep.mubr.bf16.mxu0 0
      %496 = vmatmul.mubr.bf16.gmra.mxu0 %v346
      %v497 = vpop.f32.mrf.mxu0
      %v498 = vadd.f32 %v214, %v497
      %v499 = vpop.f32.mrf.mxu0
      %v500 = vpop.f32.mrf.mxu0
      %v501 = vadd.f32 %v214, %v500
      %v502 = vpop.f32.mrf.mxu0
      %503 = vmatprep.mubr.bf16.mxu0 0
      %504 = vmatmul.mubr.bf16.gmra.mxu0 %v349
      %v505 = vpop.f32.mrf.mxu0
      %v506 = vadd.f32 %v214, %v505
      %v507 = vpop.f32.mrf.mxu0
      %v508 = vpop.f32.mrf.mxu0
      %v509 = vadd.f32 %v214, %v508
      %v510 = vpop.f32.mrf.mxu0
      %511 = vdwg.mxu0
      %v512 = vmax.f32 %v386, 0.0
      %v513 = vmax.f32 %v389, 0.0
      %v514 = vmax.f32 %v394, 0.0
      %v515 = vmax.f32 %v397, 0.0
      %v516 = vmax.f32 %v402, 0.0
      %v517 = vmax.f32 %v405, 0.0
      %v518 = vmax.f32 %v410, 0.0
      %v519 = vmax.f32 %v413, 0.0
      %v520 = vmax.f32 %v418, 0.0
      %v521 = vmax.f32 %v421, 0.0
      %v522 = vmax.f32 %v426, 0.0
      %v523 = vmax.f32 %v429, 0.0
      %v524 = vmax.f32 %v434, 0.0
      %v525 = vmax.f32 %v437, 0.0
      %v526 = vmax.f32 %v442, 0.0
      %v527 = vmax.f32 %v445, 0.0
      %v528 = vmax.f32 %v450, 0.0
      %v529 = vmax.f32 %v453, 0.0
      %v530 = vmax.f32 %v458, 0.0
      %v531 = vmax.f32 %v461, 0.0
      %v532 = vmax.f32 %v466, 0.0
      %v533 = vmax.f32 %v469, 0.0
      %v534 = vmax.f32 %v474, 0.0
      %v535 = vmax.f32 %v477, 0.0
      %v536 = vmax.f32 %v482, 0.0
      %v537 = vmax.f32 %v485, 0.0
      %v538 = vmax.f32 %v490, 0.0
      %v539 = vmax.f32 %v493, 0.0
      %v540 = vmax.f32 %v498, 0.0
      %v541 = vmax.f32 %v501, 0.0
      %v542 = vmax.f32 %v506, 0.0
      %v543 = vmax.f32 %v509, 0.0
      %v544 = vpack.c.bf16 %v513, %v512
      %v545 = vpack.c.bf16 %v515, %v514
      %v546 = vpack.c.bf16 %v517, %v516
      %v547 = vpack.c.bf16 %v519, %v518
      %v548 = vpack.c.bf16 %v521, %v520
      %v549 = vpack.c.bf16 %v523, %v522
      %v550 = vpack.c.bf16 %v525, %v524
      %v551 = vpack.c.bf16 %v527, %v526
      %v552 = vpack.c.bf16 %v529, %v528
      %v553 = vpack.c.bf16 %v531, %v530
      %v554 = vpack.c.bf16 %v533, %v532
      %v555 = vpack.c.bf16 %v535, %v534
      %v556 = vpack.c.bf16 %v537, %v536
      %v557 = vpack.c.bf16 %v539, %v538
      %v558 = vpack.c.bf16 %v541, %v540
      %v559 = vpack.c.bf16 %v543, %v542
      %v576 = vunpack.c.l.b16 %v544
      %v577 = vunpack.c.h.b16 %v544
      %v578 = vunpack.c.l.b16 %v545
      %v579 = vunpack.c.h.b16 %v545
      %v580 = vunpack.c.l.b16 %v546
      %v581 = vunpack.c.h.b16 %v546
      %v582 = vunpack.c.l.b16 %v547
      %v583 = vunpack.c.h.b16 %v547
      %v584 = vunpack.c.l.b16 %v548
      %v585 = vunpack.c.h.b16 %v548
      %v586 = vunpack.c.l.b16 %v549
      %v587 = vunpack.c.h.b16 %v549
      %v588 = vunpack.c.l.b16 %v550
      %v589 = vunpack.c.h.b16 %v550
      %v590 = vunpack.c.l.b16 %v551
      %v591 = vunpack.c.h.b16 %v551
      %v592 = vunpack.c.l.b16 %v552
      %v593 = vunpack.c.h.b16 %v552
      %v594 = vunpack.c.l.b16 %v553
      %v595 = vunpack.c.h.b16 %v553
      %v596 = vunpack.c.l.b16 %v554
      %v597 = vunpack.c.h.b16 %v554
      %v598 = vunpack.c.l.b16 %v555
      %v599 = vunpack.c.h.b16 %v555
      %v600 = vunpack.c.l.b16 %v556
      %v601 = vunpack.c.h.b16 %v556
      %v602 = vunpack.c.l.b16 %v557
      %v603 = vunpack.c.h.b16 %v557
      %v604 = vunpack.c.l.b16 %v558
      %v605 = vunpack.c.h.b16 %v558
      %v606 = vunpack.c.l.b16 %v559
      %v607 = vunpack.c.h.b16 %v559
      %v608 = vpack.c.b16 %v576, %v576
      %v609 = vpack.c.b16 %v577, %v577
      %v610 = vpack.c.b16 %v578, %v578
      %v611 = vpack.c.b16 %v579, %v579
      %v612 = vpack.c.b16 %v580, %v580
      %v613 = vpack.c.b16 %v581, %v581
      %v614 = vpack.c.b16 %v582, %v582
      %v615 = vpack.c.b16 %v583, %v583
      %v616 = vpack.c.b16 %v584, %v584
      %v617 = vpack.c.b16 %v585, %v585
      %v618 = vpack.c.b16 %v586, %v586
      %v619 = vpack.c.b16 %v587, %v587
      %v620 = vpack.c.b16 %v588, %v588
      %v621 = vpack.c.b16 %v589, %v589
      %v622 = vpack.c.b16 %v590, %v590
      %v623 = vpack.c.b16 %v591, %v591
      %v624 = vpack.c.b16 %v592, %v592
      %v625 = vpack.c.b16 %v593, %v593
      %v626 = vpack.c.b16 %v594, %v594
      %v627 = vpack.c.b16 %v595, %v595
      %v628 = vpack.c.b16 %v596, %v596
      %v629 = vpack.c.b16 %v597, %v597
      %v630 = vpack.c.b16 %v598, %v598
      %v631 = vpack.c.b16 %v599, %v599
      %v632 = vpack.c.b16 %v600, %v600
      %v633 = vpack.c.b16 %v601, %v601
      %v634 = vpack.c.b16 %v602, %v602
      %v635 = vpack.c.b16 %v603, %v603
      %v636 = vpack.c.b16 %v604, %v604
      %v637 = vpack.c.b16 %v605, %v605
      %v638 = vpack.c.b16 %v606, %v606
      %v639 = vpack.c.b16 %v607, %v607
      %vm672 = vcmask 388096
      %673 = vst.msk [vmem:[%s172] sm:$0xf] %vm672, %v608
      %674 = vst.msk [vmem:[%s172 + $0x4] sm:$0xf] %vm672, %v609
      %675 = vst.msk [vmem:[%s172 + $0x8] sm:$0xf] %vm672, %v610
      %676 = vst.msk [vmem:[%s172 + $0xc] sm:$0xf] %vm672, %v611
      %677 = vst.msk [vmem:[%s172 + $0x10] sm:$0xf] %vm672, %v612
      %678 = vst.msk [vmem:[%s172 + $0x14] sm:$0xf] %vm672, %v613
      %679 = vst.msk [vmem:[%s172 + $0x18] sm:$0xf] %vm672, %v614
      %680 = vst.msk [vmem:[%s172 + $0x1c] sm:$0xf] %vm672, %v615
      %681 = vst.msk [vmem:[%s172 + $0x20] sm:$0xf] %vm672, %v616
      %682 = vst.msk [vmem:[%s172 + $0x24] sm:$0xf] %vm672, %v617
      %683 = vst.msk [vmem:[%s172 + $0x28] sm:$0xf] %vm672, %v618
      %684 = vst.msk [vmem:[%s172 + $0x2c] sm:$0xf] %vm672, %v619
      %685 = vst.msk [vmem:[%s172 + $0x30] sm:$0xf] %vm672, %v620
      %686 = vst.msk [vmem:[%s172 + $0x34] sm:$0xf] %vm672, %v621
      %687 = vst.msk [vmem:[%s172 + $0x38] sm:$0xf] %vm672, %v622
      %688 = vst.msk [vmem:[%s172 + $0x3c] sm:$0xf] %vm672, %v623
      %689 = vst.msk [vmem:[%s172 + $0x40] sm:$0xf] %vm672, %v624
      %690 = vst.msk [vmem:[%s172 + $0x44] sm:$0xf] %vm672, %v625
      %691 = vst.msk [vmem:[%s172 + $0x48] sm:$0xf] %vm672, %v626
      %692 = vst.msk [vmem:[%s172 + $0x4c] sm:$0xf] %vm672, %v627
      %693 = vst.msk [vmem:[%s172 + $0x50] sm:$0xf] %vm672, %v628
      %694 = vst.msk [vmem:[%s172 + $0x54] sm:$0xf] %vm672, %v629
      %695 = vst.msk [vmem:[%s172 + $0x58] sm:$0xf] %vm672, %v630
      %696 = vst.msk [vmem:[%s172 + $0x5c] sm:$0xf] %vm672, %v631
      %697 = vst.msk [vmem:[%s172 + $0x60] sm:$0xf] %vm672, %v632
      %698 = vst.msk [vmem:[%s172 + $0x64] sm:$0xf] %vm672, %v633
      %699 = vst.msk [vmem:[%s172 + $0x68] sm:$0xf] %vm672, %v634
      %700 = vst.msk [vmem:[%s172 + $0x6c] sm:$0xf] %vm672, %v635
      %701 = vst.msk [vmem:[%s172 + $0x70] sm:$0xf] %vm672, %v636
      %702 = vst.msk [vmem:[%s172 + $0x74] sm:$0xf] %vm672, %v637
      %703 = vst.msk [vmem:[%s172 + $0x78] sm:$0xf] %vm672, %v638
      %704 = vst.msk [vmem:[%s172 + $0x7c] sm:$0xf] %vm672, %v639
      %s705 = smul.u32 32, %s14
      %p706 = scmp.lt.s32.totalorder %s705, 63
      %s707 = scalar_select %p706, %s705, 63
      %s708 = smul.addr %s707, 4
      %s709 = scalar_lea.vmem %s3, %s708
      // Predicated region
      $region33: #{_lambda_.27} parent=31 // pred_check
        %p710 = pneg %p100
      $region34: #{_lambda_.27} parent=31 // pred_check_branch
        %712 = sbr.rel (%p710) target = $region36
      $region35: #{_lambda_.27} parent=31 // pred_region
        %s713 = smul.u32 32, %s14
      $region36: #{_lambda_.27} parent=31 // pred_fallthru
        _
    $region32: #{_lambda_.27} parent=5 // pred_fallthru
      _
    %p714 = scmp.le.s32.totalorder 2, %s9
    // Predicated region
    $region37: #{_lambda_.27} parent=5 // pred_check
      %p715 = pneg %p714
    $region38: #{_lambda_.27} parent=5 // pred_check_branch
      %717 = sbr.rel (%p715) target = $region40
    $region39: #{_lambda_.27} parent=5 // pred_region
      %s718 = ssub.s32 %s9, 2
      // Predicated region
      $region41: #{_lambda_.27} parent=39 // pred_check
        %p719 = pneg %p106
      $region42: #{_lambda_.27} parent=39 // pred_check_branch
        %721 = sbr.rel (%p719) target = $region44
      $region43: #{_lambda_.27} parent=39 // pred_region
        %s722 = smul.u32 32, %s15
        %p723 = scmp.lt.s32.totalorder %s722, 63
        %s724 = scalar_select %p723, %s722, 63
        %s725 = smul.addr %s724, 4
        %s726 = scalar_lea.vmem %s3, %s725
      $region44: #{_lambda_.27} parent=39 // pred_fallthru
        _
    $region40: #{_lambda_.27} parent=5 // pred_fallthru
      _
  $region6: #{_lambda_.27} parent=0 // loop_footer
    %s13 = sadd.s32 1, %s9
  $region7: #{_lambda_.27} parent=0 // loop_footer_branch
    %8 = sbr.rel target = $region3
  $region8: #{_lambda_.27} parent=0 // loop_exit
    _

// kernel: _lambda_.28
$region0: #{_lambda_.28}
  #allocation0 [shape = 'u32[]', space=smem, size = 0x4, offset = 0x4, fixed_abs, tag = 'smem constant byte address 0x4 - core index']
  #allocation1 [shape = 'u32[144,128]{1,0:T(1,128)}', space=vmem, size = 0x12000, scoped, tag = 'internal scratch']
  %s0 = inlined_call_operand.vmem [shape: bf16[128,48], index: 0, kind: input, shape index: {}]
  %s1 = inlined_call_operand.vmem [shape: bf16[48,24], index: 1, kind: input, shape index: {}]
  %s2 = inlined_call_operand.vmem [shape: f32[1,24], index: 2, kind: input, shape index: {}]
  %s3 = inlined_call_operand.vmem [shape: bf16[128,24], index: 3, kind: output, shape index: {}]
  %s4 = sld [smem:[#allocation0]]
  $region45: #{_lambda_.28} parent=0
    _
  %s6 = ssub.s32 1, %s4
  %s7 = scalar_select 0, %s6, %s4
  loop: start=0, step=1, limit=4
  $region2: #{_lambda_.28} parent=0 // loop_pre_header
    _
  $region3: #{_lambda_.28} parent=0 // loop_header
    %s9 = sphi 0, %s13
    %p10 = scmp.ge.s32.totalorder %s9, 4
    %s19 = sphi 0, %s21
    %s22 = sphi 0, %s19
    %s23 = sphi 0, %s22
    %s39 = sphi 0, %s23
    %s43 = sphi 0, %s43
    %s45 = sphi 0, %s43
    %s46 = sphi 0, %s45
    %s60 = sphi 0, %s46
    %s64 = sphi 0, %s64
    %s66 = sphi 0, %s64
    %s67 = sphi 0, %s66
    %s81 = sphi 0, %s67
    %s87 = sphi 0, %s89
    %s90 = sphi 0, %s87
    %s91 = sphi 0, %s90
    %s107 = sphi 0, %s91
  $region4: #{_lambda_.28} parent=0 // loop_header_branch
    %12 = sbr.rel (%p10) target = $region8
  $region5: #{_lambda_.28} parent=0 // loop_body
    %s14 = ssub.s32 %s9, 1
    %s15 = ssub.s32 %s9, 2
    %s16 = sadd.s32 %s9, 1
    %s17 = ssub.s32 %s9, %s16
    %p18 = scmp.eq.s32.totalorder %s17, 0
    %s20 = sadd.s32 %s19, 1
    %s21 = scalar_select %p18, %s19, %s20
    %p24 = pneg %p18
    %p25 = scmp.eq.s32.totalorder %s9, 1
    %p26 = por %p24, %p25
    %p27 = scmp.ne.s32.totalorder %s19, %s22
    %p28 = scmp.eq.s32.totalorder %s9, 0
    %p29 = por %p27, %p28
    %p30 = scmp.ne.s32.totalorder %s19, %s22
    %p31 = scmp.eq.s32.totalorder %s14, 1
    %p32 = por %p30, %p31
    %p33 = scmp.ne.s32.totalorder %s22, %s23
    %p34 = scmp.eq.s32.totalorder %s14, 0
    %p35 = por %p33, %p34
    %p36 = scmp.ne.s32.totalorder %s22, %s23
    %p37 = scmp.eq.s32.totalorder %s15, 1
    %p38 = por %p36, %p37
    %p40 = scmp.ne.s32.totalorder %s23, %s39
    %p41 = scmp.eq.s32.totalorder %s15, 0
    %p42 = por %p40, %p41
    %s44 = sadd.s32 %s43, 1
    %p47 = scmp.eq.s32.totalorder %s9, 1
    %p48 = scmp.ne.s32.totalorder %s43, %s45
    %p49 = scmp.eq.s32.totalorder %s9, 0
    %p50 = por %p48, %p49
    %p51 = scmp.ne.s32.totalorder %s43, %s45
    %p52 = scmp.eq.s32.totalorder %s14, 1
    %p53 = por %p51, %p52
    %p54 = scmp.ne.s32.totalorder %s45, %s46
    %p55 = scmp.eq.s32.totalorder %s14, 0
    %p56 = por %p54, %p55
    %p57 = scmp.ne.s32.totalorder %s45, %s46
    %p58 = scmp.eq.s32.totalorder %s15, 1
    %p59 = por %p57, %p58
    %p61 = scmp.ne.s32.totalorder %s46, %s60
    %p62 = scmp.eq.s32.totalorder %s15, 0
    %p63 = por %p61, %p62
    %s65 = sadd.s32 %s64, 1
    %p68 = scmp.eq.s32.totalorder %s9, 1
    %p69 = scmp.ne.s32.totalorder %s64, %s66
    %p70 = scmp.eq.s32.totalorder %s9, 0
    %p71 = por %p69, %p70
    %p72 = scmp.ne.s32.totalorder %s64, %s66
    %p73 = scmp.eq.s32.totalorder %s14, 1
    %p74 = por %p72, %p73
    %p75 = scmp.ne.s32.totalorder %s66, %s67
    %p76 = scmp.eq.s32.totalorder %s14, 0
    %p77 = por %p75, %p76
    %p78 = scmp.ne.s32.totalorder %s66, %s67
    %p79 = scmp.eq.s32.totalorder %s15, 1
    %p80 = por %p78, %p79
    %p82 = scmp.ne.s32.totalorder %s67, %s81
    %p83 = scmp.eq.s32.totalorder %s15, 0
    %p84 = por %p82, %p83
    %s85 = ssub.s32 %s9, %s16
    %p86 = scmp.eq.s32.totalorder %s85, 0
    %s88 = sadd.s32 %s87, 1
    %s89 = scalar_select %p86, %s87, %s88
    %p92 = pneg %p86
    %p93 = scmp.eq.s32.totalorder %s9, 1
    %p94 = por %p92, %p93
    %p95 = scmp.ne.s32.totalorder %s87, %s90
    %p96 = scmp.eq.s32.totalorder %s9, 0
    %p97 = por %p95, %p96
    %p98 = scmp.ne.s32.totalorder %s87, %s90
    %p99 = scmp.eq.s32.totalorder %s14, 1
    %p100 = por %p98, %p99
    %p101 = scmp.ne.s32.totalorder %s90, %s91
    %p102 = scmp.eq.s32.totalorder %s14, 0
    %p103 = por %p101, %p102
    %p104 = scmp.ne.s32.totalorder %s90, %s91
    %p105 = scmp.eq.s32.totalorder %s15, 1
    %p106 = por %p104, %p105
    %p108 = scmp.ne.s32.totalorder %s91, %s107
    %p109 = scmp.eq.s32.totalorder %s15, 0
    %p110 = por %p108, %p109
    %p111 = scmp.le.s32.totalorder 1, %s9
    %p112 = scmp.lt.s32.totalorder %s9, 3
    %p113 = pnand %p111, %p112
    %p114 = pneg %p113
    // Predicated region
    $region9: #{_lambda_.28} parent=5 // pred_check
      _
    $region10: #{_lambda_.28} parent=5 // pred_check_branch
      %116 = sbr.rel (%p113) target = $region12
    $region11: #{_lambda_.28} parent=5 // pred_region
      %s117 = ssub.s32 %s9, 1
      // Predicated region
      $region13: #{_lambda_.28} parent=11 // pred_check
        %p118 = pneg %p56
      $region14: #{_lambda_.28} parent=11 // pred_check_branch
        %120 = sbr.rel (%p118) target = $region16
      $region15: #{_lambda_.28} parent=11 // pred_region
        _
      $region16: #{_lambda_.28} parent=11 // pred_fallthru
        _
      // Predicated region
      $region17: #{_lambda_.28} parent=11 // pred_check
        %p121 = pneg %p77
      $region18: #{_lambda_.28} parent=11 // pred_check_branch
        %123 = sbr.rel (%p121) target = $region20
      $region19: #{_lambda_.28} parent=11 // pred_region
        _
      $region20: #{_lambda_.28} parent=11 // pred_fallthru
        _
    $region12: #{_lambda_.28} parent=5 // pred_fallthru
      _
    %p124 = scmp.lt.s32.totalorder %s9, 2
    // Predicated region
    $region21: #{_lambda_.28} parent=5 // pred_check
      %p125 = pneg %p124
    $region22: #{_lambda_.28} parent=5 // pred_check_branch
      %127 = sbr.rel (%p125) target = $region24
    $region23: #{_lambda_.28} parent=5 // pred_region
      // Predicated region
      $region25: #{_lambda_.28} parent=23 // pred_check
        %p128 = pneg %p29
      $region26: #{_lambda_.28} parent=23 // pred_check_branch
        %130 = sbr.rel (%p128) target = $region28
      $region27: #{_lambda_.28} parent=23 // pred_region
        %s131 = smul.u32 8, %s9
        %p132 = scmp.lt.s32.totalorder %s131, 15
        %s133 = scalar_select %p132, %s131, 15
        %s134 = smul.addr %s133, 4
        %s135 = scalar_lea.vmem %s0, %s134
        %s136 = smul.u32 8, %s9
      $region28: #{_lambda_.28} parent=23 // pred_fallthru
        _
    $region24: #{_lambda_.28} parent=5 // pred_fallthru
      _
    %p137 = scmp.le.s32.totalorder 1, %s9
    %p138 = scmp.lt.s32.totalorder %s9, 3
    %p139 = pnand %p137, %p138
    %p140 = pneg %p139
    // Predicated region
    $region29: #{_lambda_.28} parent=5 // pred_check
      _
    $region30: #{_lambda_.28} parent=5 // pred_check_branch
      %142 = sbr.rel (%p139) target = $region32
    $region31: #{_lambda_.28} parent=5 // pred_region
      %s143 = ssub.s32 %s9, 1
      %s144 = smul.u32 8, %s14
      %p145 = scmp.lt.s32.totalorder %s144, 15
      %s146 = scalar_select %p145, %s144, 15
      %s147 = smul.addr %s146, 4
      %s148 = scalar_lea.vmem %s0, %s147
      %p149 = pneg %p35
      %p150 = pneg %p32
      %p151 = pneg %p56
      %p152 = pneg %p53
      %p153 = pneg %p77
      %p154 = pneg %p74
      %p155 = pneg %p103
      %p156 = pneg %p100
      %s157 = smul.u32 8, %s14
      %p158 = scmp.lt.s32.totalorder %s157, 15
      %s159 = scalar_select %p158, %s157, 15
      %s160 = smul.addr %s159, 4
      %s161 = scalar_lea.vmem %s3, %s160
      %s162 = smul.u32 8, %s14
      %p163 = scmp.lt.s32.totalorder %s162, 15
      %s164 = scalar_select %p163, %s162, 15
      %s165 = smul.addr %s164, 4
      %s166 = scalar_lea.vmem %s0, %s165
      %s167 = smul.u32 8, %s14
      %s168 = smul.u32 8, %s14
      %p169 = scmp.lt.s32.totalorder %s168, 15
      %s170 = scalar_select %p169, %s168, 15
      %s171 = smul.addr %s170, 4
      %s172 = scalar_lea.vmem %s3, %s171
      %s173 = smul.u32 8, %s14
      %v175 = vld [vmem:[%s166] sm:$0xf]
      %v176 = vld [vmem:[%s166 + $0x4] sm:$0xf]
      %v177 = vld [vmem:[%s166 + $0x8] sm:$0xf]
      %v178 = vld [vmem:[%s166 + $0xc] sm:$0xf]
      %v179 = vld [vmem:[%s166 + $0x10] sm:$0xf]
      %v180 = vld [vmem:[%s166 + $0x14] sm:$0xf]
      %v181 = vld [vmem:[%s166 + $0x18] sm:$0xf]
      %v182 = vld [vmem:[%s166 + $0x1c] sm:$0xf]
      %v183 = vld [vmem:[%s1] sm:$0xf]
      %v184 = vld [vmem:[%s1 + $0x4] sm:$0xf]
      %v185 = vld [vmem:[%s1 + $0x8] sm:$0xf]
      %v186 = vld [vmem:[%s1 + $0xc] sm:$0xf]
      %v187 = vld [vmem:[%s1 + $0x10] sm:$0xf]
      %v188 = vld [vmem:[%s1 + $0x14] sm:$0xf]
      %v189 = vld [vmem:[%s2] sm:$0x1]
      %v191 = vlaneseq
      %v192 = vshrl.u32 %v191, 7
      %v193 = vsub.s32 0, %v192
      %v194 = vrot.slane %v189, %v193
      %v204 = vunpack.c.l.b16 %v175
      %v205 = vunpack.c.l.b16 %v176
      %v206 = vunpack.c.l.b16 %v177
      %v207 = vunpack.c.l.b16 %v178
      %v208 = vunpack.c.l.b16 %v179
      %v209 = vunpack.c.l.b16 %v180
      %v210 = vunpack.c.l.b16 %v181
      %v211 = vunpack.c.l.b16 %v182
      %v212 = vpack.c.b16 %v205, %v204
      %v213 = vpack.c.b16 %v207, %v206
      %v214 = vpack.c.b16 %v209, %v208
      %v215 = vpack.c.b16 %v211, %v210
      %v222 = vunpack.c.l.b16 %v183
      %v223 = vunpack.c.l.b16 %v184
      %v224 = vunpack.c.l.b16 %v185
      %v225 = vunpack.c.l.b16 %v186
      %v226 = vunpack.c.l.b16 %v187
      %v227 = vunpack.c.l.b16 %v188
      %v228 = vpack.c.b16 %v223, %v222
      %v229 = vpack.c.b16 %v225, %v224
      %v230 = vpack.c.b16 %v227, %v226
      %vm234 = vcmask 392192
      %v236 = vsel %vm234, %v212, 0
      %v239 = vsel %vm234, %v213, 0
      %v242 = vsel %vm234, %v214, 0
      %v245 = vsel %vm234, %v215, 0
      %247 = vmatprep.subr.bf16.mxu0 0
      %248 = vmatpush1.bf16.msra.mxu0 0
      %249 = vmatprep.subr.bf16.mxu0 0
      %250 = vmatpush1.bf16.msra.mxu0 0
      %251 = vmatprep.subr.bf16.mxu0 0
      %252 = vmatpush1.bf16.msra.mxu0 0
      %253 = vmatprep.subr.bf16.mxu0 0
      %254 = vmatpush1.bf16.msra.mxu0 0
      %255 = vmatprep.subr.bf16.mxu0 0
      %256 = vmatpush1.bf16.msra.mxu0 0
      %257 = vmatprep.subr.bf16.mxu0 0
      %258 = vmatpush1.bf16.msra.mxu0 %v230
      %259 = vmatprep.subr.bf16.mxu0 0
      %260 = vmatpush1.bf16.msra.mxu0 %v229
      %261 = vmatprep.subr.bf16.mxu0 0
      %262 = vmatpush1.bf16.msra.mxu0 %v228
      %263 = vmatprep.subr.bf16.mxu0 0
      %264 = vmatpush2.bf16.msra.mxu0 0
      %265 = vmatprep.subr.bf16.mxu0 0
      %266 = vmatpush2.bf16.msra.mxu0 0
      %267 = vmatprep.subr.bf16.mxu0 0
      %268 = vmatpush2.bf16.msra.mxu0 0
      %269 = vmatprep.subr.bf16.mxu0 0
      %270 = vmatpush2.bf16.msra.mxu0 0
      %271 = vmatprep.subr.bf16.mxu0 0
      %272 = vmatpush2.bf16.msra.mxu0 0
      %273 = vmatprep.subr.bf16.mxu0 0
      %274 = vmatpush2.bf16.msra.mxu0 0
      %275 = vmatprep.subr.bf16.mxu0 0
      %276 = vmatpush2.bf16.msra.mxu0 0
      %277 = vmatprep.subr.bf16.mxu0 0
      %278 = vmatpush2.bf16.msra.mxu0 0
      %279 = vmatprep.mubr.bf16.mxu0 0
      %280 = vmatmul.mubr.bf16.gmra.mxu0 %v236
      %v281 = vpop.f32.mrf.mxu0
      %v282 = vadd.f32 %v194, %v281
      %v283 = vpop.f32.mrf.mxu0
      %v284 = vpop.f32.mrf.mxu0
      %v285 = vadd.f32 %v194, %v284
      %v286 = vpop.f32.mrf.mxu0
      %287 = vmatprep.mubr.bf16.mxu0 0
      %288 = vmatmul.mubr.bf16.gmra.mxu0 %v239
      %v289 = vpop.f32.mrf.mxu0
      %v290 = vadd.f32 %v194, %v289
      %v291 = vpop.f32.mrf.mxu0
      %v292 = vpop.f32.mrf.mxu0
      %v293 = vadd.f32 %v194, %v292
      %v294 = vpop.f32.mrf.mxu0
      %295 = vmatprep.mubr.bf16.mxu0 0
      %296 = vmatmul.mubr.bf16.gmra.mxu0 %v242
      %v297 = vpop.f32.mrf.mxu0
      %v298 = vadd.f32 %v194, %v297
      %v299 = vpop.f32.mrf.mxu0
      %v300 = vpop.f32.mrf.mxu0
      %v301 = vadd.f32 %v194, %v300
      %v302 = vpop.f32.mrf.mxu0
      %303 = vmatprep.mubr.bf16.mxu0 0
      %304 = vmatmul.mubr.bf16.gmra.mxu0 %v245
      %v305 = vpop.f32.mrf.mxu0
      %v306 = vadd.f32 %v194, %v305
      %v307 = vpop.f32.mrf.mxu0
      %v308 = vpop.f32.mrf.mxu0
      %v309 = vadd.f32 %v194, %v308
      %v310 = vpop.f32.mrf.mxu0
      %311 = vdwg.mxu0
      %v312 = vpack.c.bf16 %v285, %v282
      %v313 = vpack.c.bf16 %v293, %v290
      %v314 = vpack.c.bf16 %v301, %v298
      %v315 = vpack.c.bf16 %v309, %v306
      %v320 = vunpack.c.l.b16 %v312
      %v321 = vunpack.c.h.b16 %v312
      %v322 = vunpack.c.l.b16 %v313
      %v323 = vunpack.c.h.b16 %v313
      %v324 = vunpack.c.l.b16 %v314
      %v325 = vunpack.c.h.b16 %v314
      %v326 = vunpack.c.l.b16 %v315
      %v327 = vunpack.c.h.b16 %v315
      %v328 = vpack.c.b16 %v320, %v320
      %v329 = vpack.c.b16 %v321, %v321
      %v330 = vpack.c.b16 %v322, %v322
      %v331 = vpack.c.b16 %v323, %v323
      %v332 = vpack.c.b16 %v324, %v324
      %v333 = vpack.c.b16 %v325, %v325
      %v334 = vpack.c.b16 %v326, %v326
      %v335 = vpack.c.b16 %v327, %v327
      %vm344 = vcmask 191488
      %345 = vst.msk [vmem:[%s172] sm:$0xf] %vm344, %v328
      %346 = vst.msk [vmem:[%s172 + $0x4] sm:$0xf] %vm344, %v329
      %347 = vst.msk [vmem:[%s172 + $0x8] sm:$0xf] %vm344, %v330
      %348 = vst.msk [vmem:[%s172 + $0xc] sm:$0xf] %vm344, %v331
      %349 = vst.msk [vmem:[%s172 + $0x10] sm:$0xf] %vm344, %v332
      %350 = vst.msk [vmem:[%s172 + $0x14] sm:$0xf] %vm344, %v333
      %351 = vst.msk [vmem:[%s172 + $0x18] sm:$0xf] %vm344, %v334
      %352 = vst.msk [vmem:[%s172 + $0x1c] sm:$0xf] %vm344, %v335
      %s353 = smul.u32 8, %s14
      %p354 = scmp.lt.s32.totalorder %s353, 15
      %s355 = scalar_select %p354, %s353, 15
      %s356 = smul.addr %s355, 4
      %s357 = scalar_lea.vmem %s3, %s356
      // Predicated region
      $region33: #{_lambda_.28} parent=31 // pred_check
        %p358 = pneg %p100
      $region34: #{_lambda_.28} parent=31 // pred_check_branch
        %360 = sbr.rel (%p358) target = $region36
      $region35: #{_lambda_.28} parent=31 // pred_region
        %s361 = smul.u32 8, %s14
      $region36: #{_lambda_.28} parent=31 // pred_fallthru
        _
    $region32: #{_lambda_.28} parent=5 // pred_fallthru
      _
    %p362 = scmp.le.s32.totalorder 2, %s9
    // Predicated region
    $region37: #{_lambda_.28} parent=5 // pred_check
      %p363 = pneg %p362
    $region38: #{_lambda_.28} parent=5 // pred_check_branch
      %365 = sbr.rel (%p363) target = $region40
    $region39: #{_lambda_.28} parent=5 // pred_region
      %s366 = ssub.s32 %s9, 2
      // Predicated region
      $region41: #{_lambda_.28} parent=39 // pred_check
        %p367 = pneg %p106
      $region42: #{_lambda_.28} parent=39 // pred_check_branch
        %369 = sbr.rel (%p367) target = $region44
      $region43: #{_lambda_.28} parent=39 // pred_region
        %s370 = smul.u32 8, %s15
        %p371 = scmp.lt.s32.totalorder %s370, 15
        %s372 = scalar_select %p371, %s370, 15
        %s373 = smul.addr %s372, 4
        %s374 = scalar_lea.vmem %s3, %s373
      $region44: #{_lambda_.28} parent=39 // pred_fallthru
        _
    $region40: #{_lambda_.28} parent=5 // pred_fallthru
      _
  $region6: #{_lambda_.28} parent=0 // loop_footer
    %s13 = sadd.s32 1, %s9
  $region7: #{_lambda_.28} parent=0 // loop_footer_branch
    %8 = sbr.rel target = $region3
  $region8: #{_lambda_.28} parent=0 // loop_exit
    _

// kernel: _lambda_.29
$region0: #{_lambda_.29}
  #allocation0 [shape = 'u32[]', space=smem, size = 0x4, offset = 0x4, fixed_abs, tag = 'smem constant byte address 0x4 - core index']
  #allocation1 [shape = 'u32[144,128]{1,0:T(1,128)}', space=vmem, size = 0x12000, scoped, tag = 'internal scratch']
  %s0 = inlined_call_operand.vmem [shape: bf16[128,24], index: 0, kind: input, shape index: {}]
  %s1 = inlined_call_operand.vmem [shape: bf16[24,72], index: 1, kind: input, shape index: {}]
  %s2 = inlined_call_operand.vmem [shape: f32[1,72], index: 2, kind: input, shape index: {}]
  %s3 = inlined_call_operand.vmem [shape: bf16[128,72], index: 3, kind: output, shape index: {}]
  %s4 = sld [smem:[#allocation0]]
  $region45: #{_lambda_.29} parent=0
    _
  %s6 = ssub.s32 1, %s4
  %s7 = scalar_select 0, %s6, %s4
  loop: start=0, step=1, limit=4
  $region2: #{_lambda_.29} parent=0 // loop_pre_header
    _
  $region3: #{_lambda_.29} parent=0 // loop_header
    %s9 = sphi 0, %s13
    %p10 = scmp.ge.s32.totalorder %s9, 4
    %s19 = sphi 0, %s21
    %s22 = sphi 0, %s19
    %s23 = sphi 0, %s22
    %s39 = sphi 0, %s23
    %s43 = sphi 0, %s43
    %s45 = sphi 0, %s43
    %s46 = sphi 0, %s45
    %s60 = sphi 0, %s46
    %s64 = sphi 0, %s64
    %s66 = sphi 0, %s64
    %s67 = sphi 0, %s66
    %s81 = sphi 0, %s67
    %s87 = sphi 0, %s89
    %s90 = sphi 0, %s87
    %s91 = sphi 0, %s90
    %s107 = sphi 0, %s91
  $region4: #{_lambda_.29} parent=0 // loop_header_branch
    %12 = sbr.rel (%p10) target = $region8
  $region5: #{_lambda_.29} parent=0 // loop_body
    %s14 = ssub.s32 %s9, 1
    %s15 = ssub.s32 %s9, 2
    %s16 = sadd.s32 %s9, 1
    %s17 = ssub.s32 %s9, %s16
    %p18 = scmp.eq.s32.totalorder %s17, 0
    %s20 = sadd.s32 %s19, 1
    %s21 = scalar_select %p18, %s19, %s20
    %p24 = pneg %p18
    %p25 = scmp.eq.s32.totalorder %s9, 1
    %p26 = por %p24, %p25
    %p27 = scmp.ne.s32.totalorder %s19, %s22
    %p28 = scmp.eq.s32.totalorder %s9, 0
    %p29 = por %p27, %p28
    %p30 = scmp.ne.s32.totalorder %s19, %s22
    %p31 = scmp.eq.s32.totalorder %s14, 1
    %p32 = por %p30, %p31
    %p33 = scmp.ne.s32.totalorder %s22, %s23
    %p34 = scmp.eq.s32.totalorder %s14, 0
    %p35 = por %p33, %p34
    %p36 = scmp.ne.s32.totalorder %s22, %s23
    %p37 = scmp.eq.s32.totalorder %s15, 1
    %p38 = por %p36, %p37
    %p40 = scmp.ne.s32.totalorder %s23, %s39
    %p41 = scmp.eq.s32.totalorder %s15, 0
    %p42 = por %p40, %p41
    %s44 = sadd.s32 %s43, 1
    %p47 = scmp.eq.s32.totalorder %s9, 1
    %p48 = scmp.ne.s32.totalorder %s43, %s45
    %p49 = scmp.eq.s32.totalorder %s9, 0
    %p50 = por %p48, %p49
    %p51 = scmp.ne.s32.totalorder %s43, %s45
    %p52 = scmp.eq.s32.totalorder %s14, 1
    %p53 = por %p51, %p52
    %p54 = scmp.ne.s32.totalorder %s45, %s46
    %p55 = scmp.eq.s32.totalorder %s14, 0
    %p56 = por %p54, %p55
    %p57 = scmp.ne.s32.totalorder %s45, %s46
    %p58 = scmp.eq.s32.totalorder %s15, 1
    %p59 = por %p57, %p58
    %p61 = scmp.ne.s32.totalorder %s46, %s60
    %p62 = scmp.eq.s32.totalorder %s15, 0
    %p63 = por %p61, %p62
    %s65 = sadd.s32 %s64, 1
    %p68 = scmp.eq.s32.totalorder %s9, 1
    %p69 = scmp.ne.s32.totalorder %s64, %s66
    %p70 = scmp.eq.s32.totalorder %s9, 0
    %p71 = por %p69, %p70
    %p72 = scmp.ne.s32.totalorder %s64, %s66
    %p73 = scmp.eq.s32.totalorder %s14, 1
    %p74 = por %p72, %p73
    %p75 = scmp.ne.s32.totalorder %s66, %s67
    %p76 = scmp.eq.s32.totalorder %s14, 0
    %p77 = por %p75, %p76
    %p78 = scmp.ne.s32.totalorder %s66, %s67
    %p79 = scmp.eq.s32.totalorder %s15, 1
    %p80 = por %p78, %p79
    %p82 = scmp.ne.s32.totalorder %s67, %s81
    %p83 = scmp.eq.s32.totalorder %s15, 0
    %p84 = por %p82, %p83
    %s85 = ssub.s32 %s9, %s16
    %p86 = scmp.eq.s32.totalorder %s85, 0
    %s88 = sadd.s32 %s87, 1
    %s89 = scalar_select %p86, %s87, %s88
    %p92 = pneg %p86
    %p93 = scmp.eq.s32.totalorder %s9, 1
    %p94 = por %p92, %p93
    %p95 = scmp.ne.s32.totalorder %s87, %s90
    %p96 = scmp.eq.s32.totalorder %s9, 0
    %p97 = por %p95, %p96
    %p98 = scmp.ne.s32.totalorder %s87, %s90
    %p99 = scmp.eq.s32.totalorder %s14, 1
    %p100 = por %p98, %p99
    %p101 = scmp.ne.s32.totalorder %s90, %s91
    %p102 = scmp.eq.s32.totalorder %s14, 0
    %p103 = por %p101, %p102
    %p104 = scmp.ne.s32.totalorder %s90, %s91
    %p105 = scmp.eq.s32.totalorder %s15, 1
    %p106 = por %p104, %p105
    %p108 = scmp.ne.s32.totalorder %s91, %s107
    %p109 = scmp.eq.s32.totalorder %s15, 0
    %p110 = por %p108, %p109
    %p111 = scmp.le.s32.totalorder 1, %s9
    %p112 = scmp.lt.s32.totalorder %s9, 3
    %p113 = pnand %p111, %p112
    %p114 = pneg %p113
    // Predicated region
    $region9: #{_lambda_.29} parent=5 // pred_check
      _
    $region10: #{_lambda_.29} parent=5 // pred_check_branch
      %116 = sbr.rel (%p113) target = $region12
    $region11: #{_lambda_.29} parent=5 // pred_region
      %s117 = ssub.s32 %s9, 1
      // Predicated region
      $region13: #{_lambda_.29} parent=11 // pred_check
        %p118 = pneg %p56
      $region14: #{_lambda_.29} parent=11 // pred_check_branch
        %120 = sbr.rel (%p118) target = $region16
      $region15: #{_lambda_.29} parent=11 // pred_region
        _
      $region16: #{_lambda_.29} parent=11 // pred_fallthru
        _
      // Predicated region
      $region17: #{_lambda_.29} parent=11 // pred_check
        %p121 = pneg %p77
      $region18: #{_lambda_.29} parent=11 // pred_check_branch
        %123 = sbr.rel (%p121) target = $region20
      $region19: #{_lambda_.29} parent=11 // pred_region
        _
      $region20: #{_lambda_.29} parent=11 // pred_fallthru
        _
    $region12: #{_lambda_.29} parent=5 // pred_fallthru
      _
    %p124 = scmp.lt.s32.totalorder %s9, 2
    // Predicated region
    $region21: #{_lambda_.29} parent=5 // pred_check
      %p125 = pneg %p124
    $region22: #{_lambda_.29} parent=5 // pred_check_branch
      %127 = sbr.rel (%p125) target = $region24
    $region23: #{_lambda_.29} parent=5 // pred_region
      // Predicated region
      $region25: #{_lambda_.29} parent=23 // pred_check
        %p128 = pneg %p29
      $region26: #{_lambda_.29} parent=23 // pred_check_branch
        %130 = sbr.rel (%p128) target = $region28
      $region27: #{_lambda_.29} parent=23 // pred_region
        %s131 = smul.u32 8, %s9
        %p132 = scmp.lt.s32.totalorder %s131, 15
        %s133 = scalar_select %p132, %s131, 15
        %s134 = smul.addr %s133, 4
        %s135 = scalar_lea.vmem %s0, %s134
        %s136 = smul.u32 8, %s9
      $region28: #{_lambda_.29} parent=23 // pred_fallthru
        _
    $region24: #{_lambda_.29} parent=5 // pred_fallthru
      _
    %p137 = scmp.le.s32.totalorder 1, %s9
    %p138 = scmp.lt.s32.totalorder %s9, 3
    %p139 = pnand %p137, %p138
    %p140 = pneg %p139
    // Predicated region
    $region29: #{_lambda_.29} parent=5 // pred_check
      _
    $region30: #{_lambda_.29} parent=5 // pred_check_branch
      %142 = sbr.rel (%p139) target = $region32
    $region31: #{_lambda_.29} parent=5 // pred_region
      %s143 = ssub.s32 %s9, 1
      %s144 = smul.u32 8, %s14
      %p145 = scmp.lt.s32.totalorder %s144, 15
      %s146 = scalar_select %p145, %s144, 15
      %s147 = smul.addr %s146, 4
      %s148 = scalar_lea.vmem %s0, %s147
      %p149 = pneg %p35
      %p150 = pneg %p32
      %p151 = pneg %p56
      %p152 = pneg %p53
      %p153 = pneg %p77
      %p154 = pneg %p74
      %p155 = pneg %p103
      %p156 = pneg %p100
      %s157 = smul.u32 8, %s14
      %p158 = scmp.lt.s32.totalorder %s157, 15
      %s159 = scalar_select %p158, %s157, 15
      %s160 = smul.addr %s159, 4
      %s161 = scalar_lea.vmem %s3, %s160
      %s162 = smul.u32 8, %s14
      %p163 = scmp.lt.s32.totalorder %s162, 15
      %s164 = scalar_select %p163, %s162, 15
      %s165 = smul.addr %s164, 4
      %s166 = scalar_lea.vmem %s0, %s165
      %s167 = smul.u32 8, %s14
      %s168 = smul.u32 8, %s14
      %p169 = scmp.lt.s32.totalorder %s168, 15
      %s170 = scalar_select %p169, %s168, 15
      %s171 = smul.addr %s170, 4
      %s172 = scalar_lea.vmem %s3, %s171
      %s173 = smul.u32 8, %s14
      %v175 = vld [vmem:[%s166] sm:$0xf]
      %v176 = vld [vmem:[%s166 + $0x4] sm:$0xf]
      %v177 = vld [vmem:[%s166 + $0x8] sm:$0xf]
      %v178 = vld [vmem:[%s166 + $0xc] sm:$0xf]
      %v179 = vld [vmem:[%s166 + $0x10] sm:$0xf]
      %v180 = vld [vmem:[%s166 + $0x14] sm:$0xf]
      %v181 = vld [vmem:[%s166 + $0x18] sm:$0xf]
      %v182 = vld [vmem:[%s166 + $0x1c] sm:$0xf]
      %v183 = vld [vmem:[%s1] sm:$0xf]
      %v184 = vld [vmem:[%s1 + $0x4] sm:$0xf]
      %v185 = vld [vmem:[%s1 + $0x8] sm:$0xf]
      %v186 = vld [vmem:[%s2] sm:$0x1]
      %v188 = vlaneseq
      %v189 = vshrl.u32 %v188, 7
      %v190 = vsub.s32 0, %v189
      %v191 = vrot.slane %v186, %v190
      %v201 = vunpack.c.l.b16 %v175
      %v202 = vunpack.c.l.b16 %v176
      %v203 = vunpack.c.l.b16 %v177
      %v204 = vunpack.c.l.b16 %v178
      %v205 = vunpack.c.l.b16 %v179
      %v206 = vunpack.c.l.b16 %v180
      %v207 = vunpack.c.l.b16 %v181
      %v208 = vunpack.c.l.b16 %v182
      %v209 = vpack.c.b16 %v202, %v201
      %v210 = vpack.c.b16 %v204, %v203
      %v211 = vpack.c.b16 %v206, %v205
      %v212 = vpack.c.b16 %v208, %v207
      %v216 = vunpack.c.l.b16 %v183
      %v217 = vunpack.c.l.b16 %v184
      %v218 = vunpack.c.l.b16 %v185
      %v219 = vpack.c.b16 %v217, %v216
      %v220 = vpack.c.b16 %v218, %v218
      %vm222 = vcmask 195584
      %v224 = vsel %vm222, %v209, 0
      %v227 = vsel %vm222, %v210, 0
      %v230 = vsel %vm222, %v211, 0
      %v233 = vsel %vm222, %v212, 0
      %vm235 = vcmask 1043456
      %v237 = vsel %vm235, %v220, 0
      %239 = vmatprep.subr.bf16.mxu0 0
      %240 = vmatpush1.bf16.msra.mxu0 0
      %241 = vmatprep.subr.bf16.mxu0 0
      %242 = vmatpush1.bf16.msra.mxu0 0
      %243 = vmatprep.subr.bf16.mxu0 0
      %244 = vmatpush1.bf16.msra.mxu0 0
      %245 = vmatprep.subr.bf16.mxu0 0
      %246 = vmatpush1.bf16.msra.mxu0 0
      %247 = vmatprep.subr.bf16.mxu0 0
      %248 = vmatpush1.bf16.msra.mxu0 0
      %249 = vmatprep.subr.bf16.mxu0 0
      %250 = vmatpush1.bf16.msra.mxu0 0
      %251 = vmatprep.subr.bf16.mxu0 0
      %252 = vmatpush1.bf16.msra.mxu0 %v237
      %253 = vmatprep.subr.bf16.mxu0 0
      %254 = vmatpush1.bf16.msra.mxu0 %v219
      %255 = vmatprep.subr.bf16.mxu0 0
      %256 = vmatpush2.bf16.msra.mxu0 0
      %257 = vmatprep.subr.bf16.mxu0 0
      %258 = vmatpush2.bf16.msra.mxu0 0
      %259 = vmatprep.subr.bf16.mxu0 0
      %260 = vmatpush2.bf16.msra.mxu0 0
      %261 = vmatprep.subr.bf16.mxu0 0
      %262 = vmatpush2.bf16.msra.mxu0 0
      %263 = vmatprep.subr.bf16.mxu0 0
      %264 = vmatpush2.bf16.msra.mxu0 0
      %265 = vmatprep.subr.bf16.mxu0 0
      %266 = vmatpush2.bf16.msra.mxu0 0
      %267 = vmatprep.subr.bf16.mxu0 0
      %268 = vmatpush2.bf16.msra.mxu0 0
      %269 = vmatprep.subr.bf16.mxu0 0
      %270 = vmatpush2.bf16.msra.mxu0 0
      %271 = vmatprep.mubr.bf16.mxu0 0
      %272 = vmatmul.mubr.bf16.gmra.mxu0 %v224
      %v273 = vpop.f32.mrf.mxu0
      %v274 = vadd.f32 %v191, %v273
      %v275 = vpop.f32.mrf.mxu0
      %v276 = vpop.f32.mrf.mxu0
      %v277 = vadd.f32 %v191, %v276
      %v278 = vpop.f32.mrf.mxu0
      %279 = vmatprep.mubr.bf16.mxu0 0
      %280 = vmatmul.mubr.bf16.gmra.mxu0 %v227
      %v281 = vpop.f32.mrf.mxu0
      %v282 = vadd.f32 %v191, %v281
      %v283 = vpop.f32.mrf.mxu0
      %v284 = vpop.f32.mrf.mxu0
      %v285 = vadd.f32 %v191, %v284
      %v286 = vpop.f32.mrf.mxu0
      %287 = vmatprep.mubr.bf16.mxu0 0
      %288 = vmatmul.mubr.bf16.gmra.mxu0 %v230
      %v289 = vpop.f32.mrf.mxu0
      %v290 = vadd.f32 %v191, %v289
      %v291 = vpop.f32.mrf.mxu0
      %v292 = vpop.f32.mrf.mxu0
      %v293 = vadd.f32 %v191, %v292
      %v294 = vpop.f32.mrf.mxu0
      %295 = vmatprep.mubr.bf16.mxu0 0
      %296 = vmatmul.mubr.bf16.gmra.mxu0 %v233
      %v297 = vpop.f32.mrf.mxu0
      %v298 = vadd.f32 %v191, %v297
      %v299 = vpop.f32.mrf.mxu0
      %v300 = vpop.f32.mrf.mxu0
      %v301 = vadd.f32 %v191, %v300
      %v302 = vpop.f32.mrf.mxu0
      %303 = vdwg.mxu0
      %v304 = vmax.f32 %v274, 0.0
      %v305 = vmax.f32 %v277, 0.0
      %v306 = vmax.f32 %v282, 0.0
      %v307 = vmax.f32 %v285, 0.0
      %v308 = vmax.f32 %v290, 0.0
      %v309 = vmax.f32 %v293, 0.0
      %v310 = vmax.f32 %v298, 0.0
      %v311 = vmax.f32 %v301, 0.0
      %v312 = vpack.c.bf16 %v305, %v304
      %v313 = vpack.c.bf16 %v307, %v306
      %v314 = vpack.c.bf16 %v309, %v308
      %v315 = vpack.c.bf16 %v311, %v310
      %v320 = vunpack.c.l.b16 %v312
      %v321 = vunpack.c.h.b16 %v312
      %v322 = vunpack.c.l.b16 %v313
      %v323 = vunpack.c.h.b16 %v313
      %v324 = vunpack.c.l.b16 %v314
      %v325 = vunpack.c.h.b16 %v314
      %v326 = vunpack.c.l.b16 %v315
      %v327 = vunpack.c.h.b16 %v315
      %v328 = vpack.c.b16 %v320, %v320
      %v329 = vpack.c.b16 %v321, %v321
      %v330 = vpack.c.b16 %v322, %v322
      %v331 = vpack.c.b16 %v323, %v323
      %v332 = vpack.c.b16 %v324, %v324
      %v333 = vpack.c.b16 %v325, %v325
      %v334 = vpack.c.b16 %v326, %v326
      %v335 = vpack.c.b16 %v327, %v327
      %vm344 = vcmask 584704
      %345 = vst.msk [vmem:[%s172] sm:$0xf] %vm344, %v328
      %346 = vst.msk [vmem:[%s172 + $0x4] sm:$0xf] %vm344, %v329
      %347 = vst.msk [vmem:[%s172 + $0x8] sm:$0xf] %vm344, %v330
      %348 = vst.msk [vmem:[%s172 + $0xc] sm:$0xf] %vm344, %v331
      %349 = vst.msk [vmem:[%s172 + $0x10] sm:$0xf] %vm344, %v332
      %350 = vst.msk [vmem:[%s172 + $0x14] sm:$0xf] %vm344, %v333
      %351 = vst.msk [vmem:[%s172 + $0x18] sm:$0xf] %vm344, %v334
      %352 = vst.msk [vmem:[%s172 + $0x1c] sm:$0xf] %vm344, %v335
      %s353 = smul.u32 8, %s14
      %p354 = scmp.lt.s32.totalorder %s353, 15
      %s355 = scalar_select %p354, %s353, 15
      %s356 = smul.addr %s355, 4
      %s357 = scalar_lea.vmem %s3, %s356
      // Predicated region
      $region33: #{_lambda_.29} parent=31 // pred_check
        %p358 = pneg %p100
      $region34: #{_lambda_.29} parent=31 // pred_check_branch
        %360 = sbr.rel (%p358) target = $region36
      $region35: #{_lambda_.29} parent=31 // pred_region
        %s361 = smul.u32 8, %s14
      $region36: #{_lambda_.29} parent=31 // pred_fallthru
        _
    $region32: #{_lambda_.29} parent=5 // pred_fallthru
      _
    %p362 = scmp.le.s32.totalorder 2, %s9
    // Predicated region
    $region37: #{_lambda_.29} parent=5 // pred_check
      %p363 = pneg %p362
    $region38: #{_lambda_.29} parent=5 // pred_check_branch
      %365 = sbr.rel (%p363) target = $region40
    $region39: #{_lambda_.29} parent=5 // pred_region
      %s366 = ssub.s32 %s9, 2
      // Predicated region
      $region41: #{_lambda_.29} parent=39 // pred_check
        %p367 = pneg %p106
      $region42: #{_lambda_.29} parent=39 // pred_check_branch
        %369 = sbr.rel (%p367) target = $region44
      $region43: #{_lambda_.29} parent=39 // pred_region
        %s370 = smul.u32 8, %s15
        %p371 = scmp.lt.s32.totalorder %s370, 15
        %s372 = scalar_select %p371, %s370, 15
        %s373 = smul.addr %s372, 4
        %s374 = scalar_lea.vmem %s3, %s373
      $region44: #{_lambda_.29} parent=39 // pred_fallthru
        _
    $region40: #{_lambda_.29} parent=5 // pred_fallthru
      _
  $region6: #{_lambda_.29} parent=0 // loop_footer
    %s13 = sadd.s32 1, %s9
  $region7: #{_lambda_.29} parent=0 // loop_footer_branch
    %8 = sbr.rel target = $region3
  $region8: #{_lambda_.29} parent=0 // loop_exit
    _

// kernel: _lambda_.34
$region0: #{_lambda_.34}
  #allocation0 [shape = 'u32[]', space=smem, size = 0x4, offset = 0x4, fixed_abs, tag = 'smem constant byte address 0x4 - core index']
  #allocation1 [shape = 'u32[144,128]{1,0:T(1,128)}', space=vmem, size = 0x12000, scoped, tag = 'internal scratch']
  %s0 = inlined_call_operand.vmem [shape: bf16[32,72], index: 0, kind: input, shape index: {}]
  %s1 = inlined_call_operand.vmem [shape: bf16[72,40], index: 1, kind: input, shape index: {}]
  %s2 = inlined_call_operand.vmem [shape: f32[1,40], index: 2, kind: input, shape index: {}]
  %s3 = inlined_call_operand.vmem [shape: bf16[32,40], index: 3, kind: output, shape index: {}]
  %s4 = sld [smem:[#allocation0]]
  $region45: #{_lambda_.34} parent=0
    _
  %s6 = ssub.s32 1, %s4
  %s7 = scalar_select 0, %s6, %s4
  loop: start=0, step=1, limit=4
  $region2: #{_lambda_.34} parent=0 // loop_pre_header
    _
  $region3: #{_lambda_.34} parent=0 // loop_header
    %s9 = sphi 0, %s13
    %p10 = scmp.ge.s32.totalorder %s9, 4
    %s19 = sphi 0, %s21
    %s22 = sphi 0, %s19
    %s23 = sphi 0, %s22
    %s39 = sphi 0, %s23
    %s43 = sphi 0, %s43
    %s45 = sphi 0, %s43
    %s46 = sphi 0, %s45
    %s60 = sphi 0, %s46
    %s64 = sphi 0, %s64
    %s66 = sphi 0, %s64
    %s67 = sphi 0, %s66
    %s81 = sphi 0, %s67
    %s87 = sphi 0, %s89
    %s90 = sphi 0, %s87
    %s91 = sphi 0, %s90
    %s107 = sphi 0, %s91
  $region4: #{_lambda_.34} parent=0 // loop_header_branch
    %12 = sbr.rel (%p10) target = $region8
  $region5: #{_lambda_.34} parent=0 // loop_body
    %s14 = ssub.s32 %s9, 1
    %s15 = ssub.s32 %s9, 2
    %s16 = sadd.s32 %s9, 1
    %s17 = ssub.s32 %s9, %s16
    %p18 = scmp.eq.s32.totalorder %s17, 0
    %s20 = sadd.s32 %s19, 1
    %s21 = scalar_select %p18, %s19, %s20
    %p24 = pneg %p18
    %p25 = scmp.eq.s32.totalorder %s9, 1
    %p26 = por %p24, %p25
    %p27 = scmp.ne.s32.totalorder %s19, %s22
    %p28 = scmp.eq.s32.totalorder %s9, 0
    %p29 = por %p27, %p28
    %p30 = scmp.ne.s32.totalorder %s19, %s22
    %p31 = scmp.eq.s32.totalorder %s14, 1
    %p32 = por %p30, %p31
    %p33 = scmp.ne.s32.totalorder %s22, %s23
    %p34 = scmp.eq.s32.totalorder %s14, 0
    %p35 = por %p33, %p34
    %p36 = scmp.ne.s32.totalorder %s22, %s23
    %p37 = scmp.eq.s32.totalorder %s15, 1
    %p38 = por %p36, %p37
    %p40 = scmp.ne.s32.totalorder %s23, %s39
    %p41 = scmp.eq.s32.totalorder %s15, 0
    %p42 = por %p40, %p41
    %s44 = sadd.s32 %s43, 1
    %p47 = scmp.eq.s32.totalorder %s9, 1
    %p48 = scmp.ne.s32.totalorder %s43, %s45
    %p49 = scmp.eq.s32.totalorder %s9, 0
    %p50 = por %p48, %p49
    %p51 = scmp.ne.s32.totalorder %s43, %s45
    %p52 = scmp.eq.s32.totalorder %s14, 1
    %p53 = por %p51, %p52
    %p54 = scmp.ne.s32.totalorder %s45, %s46
    %p55 = scmp.eq.s32.totalorder %s14, 0
    %p56 = por %p54, %p55
    %p57 = scmp.ne.s32.totalorder %s45, %s46
    %p58 = scmp.eq.s32.totalorder %s15, 1
    %p59 = por %p57, %p58
    %p61 = scmp.ne.s32.totalorder %s46, %s60
    %p62 = scmp.eq.s32.totalorder %s15, 0
    %p63 = por %p61, %p62
    %s65 = sadd.s32 %s64, 1
    %p68 = scmp.eq.s32.totalorder %s9, 1
    %p69 = scmp.ne.s32.totalorder %s64, %s66
    %p70 = scmp.eq.s32.totalorder %s9, 0
    %p71 = por %p69, %p70
    %p72 = scmp.ne.s32.totalorder %s64, %s66
    %p73 = scmp.eq.s32.totalorder %s14, 1
    %p74 = por %p72, %p73
    %p75 = scmp.ne.s32.totalorder %s66, %s67
    %p76 = scmp.eq.s32.totalorder %s14, 0
    %p77 = por %p75, %p76
    %p78 = scmp.ne.s32.totalorder %s66, %s67
    %p79 = scmp.eq.s32.totalorder %s15, 1
    %p80 = por %p78, %p79
    %p82 = scmp.ne.s32.totalorder %s67, %s81
    %p83 = scmp.eq.s32.totalorder %s15, 0
    %p84 = por %p82, %p83
    %s85 = ssub.s32 %s9, %s16
    %p86 = scmp.eq.s32.totalorder %s85, 0
    %s88 = sadd.s32 %s87, 1
    %s89 = scalar_select %p86, %s87, %s88
    %p92 = pneg %p86
    %p93 = scmp.eq.s32.totalorder %s9, 1
    %p94 = por %p92, %p93
    %p95 = scmp.ne.s32.totalorder %s87, %s90
    %p96 = scmp.eq.s32.totalorder %s9, 0
    %p97 = por %p95, %p96
    %p98 = scmp.ne.s32.totalorder %s87, %s90
    %p99 = scmp.eq.s32.totalorder %s14, 1
    %p100 = por %p98, %p99
    %p101 = scmp.ne.s32.totalorder %s90, %s91
    %p102 = scmp.eq.s32.totalorder %s14, 0
    %p103 = por %p101, %p102
    %p104 = scmp.ne.s32.totalorder %s90, %s91
    %p105 = scmp.eq.s32.totalorder %s15, 1
    %p106 = por %p104, %p105
    %p108 = scmp.ne.s32.totalorder %s91, %s107
    %p109 = scmp.eq.s32.totalorder %s15, 0
    %p110 = por %p108, %p109
    %p111 = scmp.le.s32.totalorder 1, %s9
    %p112 = scmp.lt.s32.totalorder %s9, 3
    %p113 = pnand %p111, %p112
    %p114 = pneg %p113
    // Predicated region
    $region9: #{_lambda_.34} parent=5 // pred_check
      _
    $region10: #{_lambda_.34} parent=5 // pred_check_branch
      %116 = sbr.rel (%p113) target = $region12
    $region11: #{_lambda_.34} parent=5 // pred_region
      %s117 = ssub.s32 %s9, 1
      // Predicated region
      $region13: #{_lambda_.34} parent=11 // pred_check
        %p118 = pneg %p56
      $region14: #{_lambda_.34} parent=11 // pred_check_branch
        %120 = sbr.rel (%p118) target = $region16
      $region15: #{_lambda_.34} parent=11 // pred_region
        _
      $region16: #{_lambda_.34} parent=11 // pred_fallthru
        _
      // Predicated region
      $region17: #{_lambda_.34} parent=11 // pred_check
        %p121 = pneg %p77
      $region18: #{_lambda_.34} parent=11 // pred_check_branch
        %123 = sbr.rel (%p121) target = $region20
      $region19: #{_lambda_.34} parent=11 // pred_region
        _
      $region20: #{_lambda_.34} parent=11 // pred_fallthru
        _
    $region12: #{_lambda_.34} parent=5 // pred_fallthru
      _
    %p124 = scmp.lt.s32.totalorder %s9, 2
    // Predicated region
    $region21: #{_lambda_.34} parent=5 // pred_check
      %p125 = pneg %p124
    $region22: #{_lambda_.34} parent=5 // pred_check_branch
      %127 = sbr.rel (%p125) target = $region24
    $region23: #{_lambda_.34} parent=5 // pred_region
      // Predicated region
      $region25: #{_lambda_.34} parent=23 // pred_check
        %p128 = pneg %p29
      $region26: #{_lambda_.34} parent=23 // pred_check_branch
        %130 = sbr.rel (%p128) target = $region28
      $region27: #{_lambda_.34} parent=23 // pred_region
        %s131 = smul.u32 2, %s9
        %p132 = scmp.lt.s32.totalorder %s131, 3
        %s133 = scalar_select %p132, %s131, 3
        %s134 = smul.addr %s133, 4
        %s135 = scalar_lea.vmem %s0, %s134
        %s136 = smul.u32 2, %s9
      $region28: #{_lambda_.34} parent=23 // pred_fallthru
        _
    $region24: #{_lambda_.34} parent=5 // pred_fallthru
      _
    %p137 = scmp.le.s32.totalorder 1, %s9
    %p138 = scmp.lt.s32.totalorder %s9, 3
    %p139 = pnand %p137, %p138
    %p140 = pneg %p139
    // Predicated region
    $region29: #{_lambda_.34} parent=5 // pred_check
      _
    $region30: #{_lambda_.34} parent=5 // pred_check_branch
      %142 = sbr.rel (%p139) target = $region32
    $region31: #{_lambda_.34} parent=5 // pred_region
      %s143 = ssub.s32 %s9, 1
      %s144 = smul.u32 2, %s14
      %p145 = scmp.lt.s32.totalorder %s144, 3
      %s146 = scalar_select %p145, %s144, 3
      %s147 = smul.addr %s146, 4
      %s148 = scalar_lea.vmem %s0, %s147
      %p149 = pneg %p35
      %p150 = pneg %p32
      %p151 = pneg %p56
      %p152 = pneg %p53
      %p153 = pneg %p77
      %p154 = pneg %p74
      %p155 = pneg %p103
      %p156 = pneg %p100
      %s157 = smul.u32 2, %s14
      %p158 = scmp.lt.s32.totalorder %s157, 3
      %s159 = scalar_select %p158, %s157, 3
      %s160 = smul.addr %s159, 4
      %s161 = scalar_lea.vmem %s3, %s160
      %s162 = smul.u32 2, %s14
      %p163 = scmp.lt.s32.totalorder %s162, 3
      %s164 = scalar_select %p163, %s162, 3
      %s165 = smul.addr %s164, 4
      %s166 = scalar_lea.vmem %s0, %s165
      %s167 = smul.u32 2, %s14
      %s168 = smul.u32 2, %s14
      %p169 = scmp.lt.s32.totalorder %s168, 3
      %s170 = scalar_select %p169, %s168, 3
      %s171 = smul.addr %s170, 4
      %s172 = scalar_lea.vmem %s3, %s171
      %s173 = smul.u32 2, %s14
      %v175 = vld [vmem:[%s166] sm:$0xf]
      %v176 = vld [vmem:[%s166 + $0x4] sm:$0xf]
      %v177 = vld [vmem:[%s1] sm:$0xf]
      %v178 = vld [vmem:[%s1 + $0x4] sm:$0xf]
      %v179 = vld [vmem:[%s1 + $0x8] sm:$0xf]
      %v180 = vld [vmem:[%s1 + $0xc] sm:$0xf]
      %v181 = vld [vmem:[%s1 + $0x10] sm:$0xf]
      %v182 = vld [vmem:[%s1 + $0x14] sm:$0xf]
      %v183 = vld [vmem:[%s1 + $0x18] sm:$0xf]
      %v184 = vld [vmem:[%s1 + $0x1c] sm:$0xf]
      %v185 = vld [vmem:[%s1 + $0x20] sm:$0xf]
      %v186 = vld [vmem:[%s2] sm:$0x1]
      %v188 = vlaneseq
      %v189 = vshrl.u32 %v188, 7
      %v190 = vsub.s32 0, %v189
      %v191 = vrot.slane %v186, %v190
      %v195 = vunpack.c.l.b16 %v175
      %v196 = vunpack.c.l.b16 %v176
      %v197 = vpack.c.b16 %v196, %v195
      %v207 = vunpack.c.l.b16 %v177
      %v208 = vunpack.c.l.b16 %v178
      %v209 = vunpack.c.l.b16 %v179
      %v210 = vunpack.c.l.b16 %v180
      %v211 = vunpack.c.l.b16 %v181
      %v212 = vunpack.c.l.b16 %v182
      %v213 = vunpack.c.l.b16 %v183
      %v214 = vunpack.c.l.b16 %v184
      %v215 = vunpack.c.l.b16 %v185
      %v216 = vpack.c.b16 %v208, %v207
      %v217 = vpack.c.b16 %v210, %v209
      %v218 = vpack.c.b16 %v212, %v211
      %v219 = vpack.c.b16 %v214, %v213
      %v220 = vpack.c.b16 %v215, %v215
      %vm225 = vcmask 588800
      %v227 = vsel %vm225, %v197, 0
      %vm229 = vcmask 1043456
      %v231 = vsel %vm229, %v220, 0
      %233 = vmatprep.subr.bf16.mxu0 0
      %234 = vmatpush1.bf16.msra.mxu0 0
      %235 = vmatprep.subr.bf16.mxu0 0
      %236 = vmatpush1.bf16.msra.mxu0 0
      %237 = vmatprep.subr.bf16.mxu0 0
      %238 = vmatpush1.bf16.msra.mxu0 0
      %239 = vmatprep.subr.bf16.mxu0 0
      %240 = vmatpush1.bf16.msra.mxu0 %v231
      %241 = vmatprep.subr.bf16.mxu0 0
      %242 = vmatpush1.bf16.msra.mxu0 %v219
      %243 = vmatprep.subr.bf16.mxu0 0
      %244 = vmatpush1.bf16.msra.mxu0 %v218
      %245 = vmatprep.subr.bf16.mxu0 0
      %246 = vmatpush1.bf16.msra.mxu0 %v217
      %247 = vmatprep.subr.bf16.mxu0 0
      %248 = vmatpush1.bf16.msra.mxu0 %v216
      %249 = vmatprep.subr.bf16.mxu0 0
      %250 = vmatpush2.bf16.msra.mxu0 0
      %251 = vmatprep.subr.bf16.mxu0 0
      %252 = vmatpush2.bf16.msra.mxu0 0
      %253 = vmatprep.subr.bf16.mxu0 0
      %254 = vmatpush2.bf16.msra.mxu0 0
      %255 = vmatprep.subr.bf16.mxu0 0
      %256 = vmatpush2.bf16.msra.mxu0 0
      %257 = vmatprep.subr.bf16.mxu0 0
      %258 = vmatpush2.bf16.msra.mxu0 0
      %259 = vmatprep.subr.bf16.mxu0 0
      %260 = vmatpush2.bf16.msra.mxu0 0
      %261 = vmatprep.subr.bf16.mxu0 0
      %262 = vmatpush2.bf16.msra.mxu0 0
      %263 = vmatprep.subr.bf16.mxu0 0
      %264 = vmatpush2.bf16.msra.mxu0 0
      %265 = vmatprep.mubr.bf16.mxu0 0
      %266 = vmatmul.mubr.bf16.gmra.mxu0 %v227
      %v267 = vpop.f32.mrf.mxu0
      %v268 = vadd.f32 %v191, %v267
      %v269 = vpop.f32.mrf.mxu0
      %v270 = vpop.f32.mrf.mxu0
      %v271 = vadd.f32 %v191, %v270
      %v272 = vpop.f32.mrf.mxu0
      %273 = vdwg.mxu0
      %v274 = vpack.c.bf16 %v271, %v268
      %v276 = vunpack.c.l.b16 %v274
      %v277 = vunpack.c.h.b16 %v274
      %v278 = vpack.c.b16 %v276, %v276
      %v279 = vpack.c.b16 %v277, %v277
      %vm282 = vcmask 322560
      %283 = vst.msk [vmem:[%s172] sm:$0xf] %vm282, %v278
      %284 = vst.msk [vmem:[%s172 + $0x4] sm:$0xf] %vm282, %v279
      %s285 = smul.u32 2, %s14
      %p286 = scmp.lt.s32.totalorder %s285, 3
      %s287 = scalar_select %p286, %s285, 3
      %s288 = smul.addr %s287, 4
      %s289 = scalar_lea.vmem %s3, %s288
      // Predicated region
      $region33: #{_lambda_.34} parent=31 // pred_check
        %p290 = pneg %p100
      $region34: #{_lambda_.34} parent=31 // pred_check_branch
        %292 = sbr.rel (%p290) target = $region36
      $region35: #{_lambda_.34} parent=31 // pred_region
        %s293 = smul.u32 2, %s14
      $region36: #{_lambda_.34} parent=31 // pred_fallthru
        _
    $region32: #{_lambda_.34} parent=5 // pred_fallthru
      _
    %p294 = scmp.le.s32.totalorder 2, %s9
    // Predicated region
    $region37: #{_lambda_.34} parent=5 // pred_check
      %p295 = pneg %p294
    $region38: #{_lambda_.34} parent=5 // pred_check_branch
      %297 = sbr.rel (%p295) target = $region40
    $region39: #{_lambda_.34} parent=5 // pred_region
      %s298 = ssub.s32 %s9, 2
      // Predicated region
      $region41: #{_lambda_.34} parent=39 // pred_check
        %p299 = pneg %p106
      $region42: #{_lambda_.34} parent=39 // pred_check_branch
        %301 = sbr.rel (%p299) target = $region44
      $region43: #{_lambda_.34} parent=39 // pred_region
        %s302 = smul.u32 2, %s15
        %p303 = scmp.lt.s32.totalorder %s302, 3
        %s304 = scalar_select %p303, %s302, 3
        %s305 = smul.addr %s304, 4
        %s306 = scalar_lea.vmem %s3, %s305
      $region44: #{_lambda_.34} parent=39 // pred_fallthru
        _
    $region40: #{_lambda_.34} parent=5 // pred_fallthru
      _
  $region6: #{_lambda_.34} parent=0 // loop_footer
    %s13 = sadd.s32 1, %s9
  $region7: #{_lambda_.34} parent=0 // loop_footer_branch
    %8 = sbr.rel target = $region3
  $region8: #{_lambda_.34} parent=0 // loop_exit
    _

// kernel: _lambda_.30
$region0: #{_lambda_.30}
  #allocation0 [shape = 'u32[]', space=smem, size = 0x4, offset = 0x4, fixed_abs, tag = 'smem constant byte address 0x4 - core index']
  #allocation1 [shape = 'u32[144,128]{1,0:T(1,128)}', space=vmem, size = 0x12000, scoped, tag = 'internal scratch']
  %s0 = inlined_call_operand.vmem [shape: bf16[128,72], index: 0, kind: input, shape index: {}]
  %s1 = inlined_call_operand.vmem [shape: bf16[72,24], index: 1, kind: input, shape index: {}]
  %s2 = inlined_call_operand.vmem [shape: f32[1,24], index: 2, kind: input, shape index: {}]
  %s3 = inlined_call_operand.vmem [shape: bf16[128,24], index: 3, kind: output, shape index: {}]
  %s4 = sld [smem:[#allocation0]]
  $region45: #{_lambda_.30} parent=0
    _
  %s6 = ssub.s32 1, %s4
  %s7 = scalar_select 0, %s6, %s4
  loop: start=0, step=1, limit=4
  $region2: #{_lambda_.30} parent=0 // loop_pre_header
    _
  $region3: #{_lambda_.30} parent=0 // loop_header
    %s9 = sphi 0, %s13
    %p10 = scmp.ge.s32.totalorder %s9, 4
    %s19 = sphi 0, %s21
    %s22 = sphi 0, %s19
    %s23 = sphi 0, %s22
    %s39 = sphi 0, %s23
    %s43 = sphi 0, %s43
    %s45 = sphi 0, %s43
    %s46 = sphi 0, %s45
    %s60 = sphi 0, %s46
    %s64 = sphi 0, %s64
    %s66 = sphi 0, %s64
    %s67 = sphi 0, %s66
    %s81 = sphi 0, %s67
    %s87 = sphi 0, %s89
    %s90 = sphi 0, %s87
    %s91 = sphi 0, %s90
    %s107 = sphi 0, %s91
  $region4: #{_lambda_.30} parent=0 // loop_header_branch
    %12 = sbr.rel (%p10) target = $region8
  $region5: #{_lambda_.30} parent=0 // loop_body
    %s14 = ssub.s32 %s9, 1
    %s15 = ssub.s32 %s9, 2
    %s16 = sadd.s32 %s9, 1
    %s17 = ssub.s32 %s9, %s16
    %p18 = scmp.eq.s32.totalorder %s17, 0
    %s20 = sadd.s32 %s19, 1
    %s21 = scalar_select %p18, %s19, %s20
    %p24 = pneg %p18
    %p25 = scmp.eq.s32.totalorder %s9, 1
    %p26 = por %p24, %p25
    %p27 = scmp.ne.s32.totalorder %s19, %s22
    %p28 = scmp.eq.s32.totalorder %s9, 0
    %p29 = por %p27, %p28
    %p30 = scmp.ne.s32.totalorder %s19, %s22
    %p31 = scmp.eq.s32.totalorder %s14, 1
    %p32 = por %p30, %p31
    %p33 = scmp.ne.s32.totalorder %s22, %s23
    %p34 = scmp.eq.s32.totalorder %s14, 0
    %p35 = por %p33, %p34
    %p36 = scmp.ne.s32.totalorder %s22, %s23
    %p37 = scmp.eq.s32.totalorder %s15, 1
    %p38 = por %p36, %p37
    %p40 = scmp.ne.s32.totalorder %s23, %s39
    %p41 = scmp.eq.s32.totalorder %s15, 0
    %p42 = por %p40, %p41
    %s44 = sadd.s32 %s43, 1
    %p47 = scmp.eq.s32.totalorder %s9, 1
    %p48 = scmp.ne.s32.totalorder %s43, %s45
    %p49 = scmp.eq.s32.totalorder %s9, 0
    %p50 = por %p48, %p49
    %p51 = scmp.ne.s32.totalorder %s43, %s45
    %p52 = scmp.eq.s32.totalorder %s14, 1
    %p53 = por %p51, %p52
    %p54 = scmp.ne.s32.totalorder %s45, %s46
    %p55 = scmp.eq.s32.totalorder %s14, 0
    %p56 = por %p54, %p55
    %p57 = scmp.ne.s32.totalorder %s45, %s46
    %p58 = scmp.eq.s32.totalorder %s15, 1
    %p59 = por %p57, %p58
    %p61 = scmp.ne.s32.totalorder %s46, %s60
    %p62 = scmp.eq.s32.totalorder %s15, 0
    %p63 = por %p61, %p62
    %s65 = sadd.s32 %s64, 1
    %p68 = scmp.eq.s32.totalorder %s9, 1
    %p69 = scmp.ne.s32.totalorder %s64, %s66
    %p70 = scmp.eq.s32.totalorder %s9, 0
    %p71 = por %p69, %p70
    %p72 = scmp.ne.s32.totalorder %s64, %s66
    %p73 = scmp.eq.s32.totalorder %s14, 1
    %p74 = por %p72, %p73
    %p75 = scmp.ne.s32.totalorder %s66, %s67
    %p76 = scmp.eq.s32.totalorder %s14, 0
    %p77 = por %p75, %p76
    %p78 = scmp.ne.s32.totalorder %s66, %s67
    %p79 = scmp.eq.s32.totalorder %s15, 1
    %p80 = por %p78, %p79
    %p82 = scmp.ne.s32.totalorder %s67, %s81
    %p83 = scmp.eq.s32.totalorder %s15, 0
    %p84 = por %p82, %p83
    %s85 = ssub.s32 %s9, %s16
    %p86 = scmp.eq.s32.totalorder %s85, 0
    %s88 = sadd.s32 %s87, 1
    %s89 = scalar_select %p86, %s87, %s88
    %p92 = pneg %p86
    %p93 = scmp.eq.s32.totalorder %s9, 1
    %p94 = por %p92, %p93
    %p95 = scmp.ne.s32.totalorder %s87, %s90
    %p96 = scmp.eq.s32.totalorder %s9, 0
    %p97 = por %p95, %p96
    %p98 = scmp.ne.s32.totalorder %s87, %s90
    %p99 = scmp.eq.s32.totalorder %s14, 1
    %p100 = por %p98, %p99
    %p101 = scmp.ne.s32.totalorder %s90, %s91
    %p102 = scmp.eq.s32.totalorder %s14, 0
    %p103 = por %p101, %p102
    %p104 = scmp.ne.s32.totalorder %s90, %s91
    %p105 = scmp.eq.s32.totalorder %s15, 1
    %p106 = por %p104, %p105
    %p108 = scmp.ne.s32.totalorder %s91, %s107
    %p109 = scmp.eq.s32.totalorder %s15, 0
    %p110 = por %p108, %p109
    %p111 = scmp.le.s32.totalorder 1, %s9
    %p112 = scmp.lt.s32.totalorder %s9, 3
    %p113 = pnand %p111, %p112
    %p114 = pneg %p113
    // Predicated region
    $region9: #{_lambda_.30} parent=5 // pred_check
      _
    $region10: #{_lambda_.30} parent=5 // pred_check_branch
      %116 = sbr.rel (%p113) target = $region12
    $region11: #{_lambda_.30} parent=5 // pred_region
      %s117 = ssub.s32 %s9, 1
      // Predicated region
      $region13: #{_lambda_.30} parent=11 // pred_check
        %p118 = pneg %p56
      $region14: #{_lambda_.30} parent=11 // pred_check_branch
        %120 = sbr.rel (%p118) target = $region16
      $region15: #{_lambda_.30} parent=11 // pred_region
        _
      $region16: #{_lambda_.30} parent=11 // pred_fallthru
        _
      // Predicated region
      $region17: #{_lambda_.30} parent=11 // pred_check
        %p121 = pneg %p77
      $region18: #{_lambda_.30} parent=11 // pred_check_branch
        %123 = sbr.rel (%p121) target = $region20
      $region19: #{_lambda_.30} parent=11 // pred_region
        _
      $region20: #{_lambda_.30} parent=11 // pred_fallthru
        _
    $region12: #{_lambda_.30} parent=5 // pred_fallthru
      _
    %p124 = scmp.lt.s32.totalorder %s9, 2
    // Predicated region
    $region21: #{_lambda_.30} parent=5 // pred_check
      %p125 = pneg %p124
    $region22: #{_lambda_.30} parent=5 // pred_check_branch
      %127 = sbr.rel (%p125) target = $region24
    $region23: #{_lambda_.30} parent=5 // pred_region
      // Predicated region
      $region25: #{_lambda_.30} parent=23 // pred_check
        %p128 = pneg %p29
      $region26: #{_lambda_.30} parent=23 // pred_check_branch
        %130 = sbr.rel (%p128) target = $region28
      $region27: #{_lambda_.30} parent=23 // pred_region
        %s131 = smul.u32 8, %s9
        %p132 = scmp.lt.s32.totalorder %s131, 15
        %s133 = scalar_select %p132, %s131, 15
        %s134 = smul.addr %s133, 4
        %s135 = scalar_lea.vmem %s0, %s134
        %s136 = smul.u32 8, %s9
      $region28: #{_lambda_.30} parent=23 // pred_fallthru
        _
    $region24: #{_lambda_.30} parent=5 // pred_fallthru
      _
    %p137 = scmp.le.s32.totalorder 1, %s9
    %p138 = scmp.lt.s32.totalorder %s9, 3
    %p139 = pnand %p137, %p138
    %p140 = pneg %p139
    // Predicated region
    $region29: #{_lambda_.30} parent=5 // pred_check
      _
    $region30: #{_lambda_.30} parent=5 // pred_check_branch
      %142 = sbr.rel (%p139) target = $region32
    $region31: #{_lambda_.30} parent=5 // pred_region
      %s143 = ssub.s32 %s9, 1
      %s144 = smul.u32 8, %s14
      %p145 = scmp.lt.s32.totalorder %s144, 15
      %s146 = scalar_select %p145, %s144, 15
      %s147 = smul.addr %s146, 4
      %s148 = scalar_lea.vmem %s0, %s147
      %p149 = pneg %p35
      %p150 = pneg %p32
      %p151 = pneg %p56
      %p152 = pneg %p53
      %p153 = pneg %p77
      %p154 = pneg %p74
      %p155 = pneg %p103
      %p156 = pneg %p100
      %s157 = smul.u32 8, %s14
      %p158 = scmp.lt.s32.totalorder %s157, 15
      %s159 = scalar_select %p158, %s157, 15
      %s160 = smul.addr %s159, 4
      %s161 = scalar_lea.vmem %s3, %s160
      %s162 = smul.u32 8, %s14
      %p163 = scmp.lt.s32.totalorder %s162, 15
      %s164 = scalar_select %p163, %s162, 15
      %s165 = smul.addr %s164, 4
      %s166 = scalar_lea.vmem %s0, %s165
      %s167 = smul.u32 8, %s14
      %s168 = smul.u32 8, %s14
      %p169 = scmp.lt.s32.totalorder %s168, 15
      %s170 = scalar_select %p169, %s168, 15
      %s171 = smul.addr %s170, 4
      %s172 = scalar_lea.vmem %s3, %s171
      %s173 = smul.u32 8, %s14
      %v175 = vld [vmem:[%s166] sm:$0xf]
      %v176 = vld [vmem:[%s166 + $0x4] sm:$0xf]
      %v177 = vld [vmem:[%s166 + $0x8] sm:$0xf]
      %v178 = vld [vmem:[%s166 + $0xc] sm:$0xf]
      %v179 = vld [vmem:[%s166 + $0x10] sm:$0xf]
      %v180 = vld [vmem:[%s166 + $0x14] sm:$0xf]
      %v181 = vld [vmem:[%s166 + $0x18] sm:$0xf]
      %v182 = vld [vmem:[%s166 + $0x1c] sm:$0xf]
      %v183 = vld [vmem:[%s1] sm:$0xf]
      %v184 = vld [vmem:[%s1 + $0x4] sm:$0xf]
      %v185 = vld [vmem:[%s1 + $0x8] sm:$0xf]
      %v186 = vld [vmem:[%s1 + $0xc] sm:$0xf]
      %v187 = vld [vmem:[%s1 + $0x10] sm:$0xf]
      %v188 = vld [vmem:[%s1 + $0x14] sm:$0xf]
      %v189 = vld [vmem:[%s1 + $0x18] sm:$0xf]
      %v190 = vld [vmem:[%s1 + $0x1c] sm:$0xf]
      %v191 = vld [vmem:[%s1 + $0x20] sm:$0xf]
      %v192 = vld [vmem:[%s2] sm:$0x1]
      %v194 = vlaneseq
      %v195 = vshrl.u32 %v194, 7
      %v196 = vsub.s32 0, %v195
      %v197 = vrot.slane %v192, %v196
      %v207 = vunpack.c.l.b16 %v175
      %v208 = vunpack.c.l.b16 %v176
      %v209 = vunpack.c.l.b16 %v177
      %v210 = vunpack.c.l.b16 %v178
      %v211 = vunpack.c.l.b16 %v179
      %v212 = vunpack.c.l.b16 %v180
      %v213 = vunpack.c.l.b16 %v181
      %v214 = vunpack.c.l.b16 %v182
      %v215 = vpack.c.b16 %v208, %v207
      %v216 = vpack.c.b16 %v210, %v209
      %v217 = vpack.c.b16 %v212, %v211
      %v218 = vpack.c.b16 %v214, %v213
      %v228 = vunpack.c.l.b16 %v183
      %v229 = vunpack.c.l.b16 %v184
      %v230 = vunpack.c.l.b16 %v185
      %v231 = vunpack.c.l.b16 %v186
      %v232 = vunpack.c.l.b16 %v187
      %v233 = vunpack.c.l.b16 %v188
      %v234 = vunpack.c.l.b16 %v189
      %v235 = vunpack.c.l.b16 %v190
      %v236 = vunpack.c.l.b16 %v191
      %v237 = vpack.c.b16 %v229, %v228
      %v238 = vpack.c.b16 %v231, %v230
      %v239 = vpack.c.b16 %v233, %v232
      %v240 = vpack.c.b16 %v235, %v234
      %v241 = vpack.c.b16 %v236, %v236
      %vm246 = vcmask 588800
      %v248 = vsel %vm246, %v215, 0
      %v251 = vsel %vm246, %v216, 0
      %v254 = vsel %vm246, %v217, 0
      %v257 = vsel %vm246, %v218, 0
      %vm259 = vcmask 1043456
      %v261 = vsel %vm259, %v241, 0
      %263 = vmatprep.subr.bf16.mxu0 0
      %264 = vmatpush1.bf16.msra.mxu0 0
      %265 = vmatprep.subr.bf16.mxu0 0
      %266 = vmatpush1.bf16.msra.mxu0 0
      %267 = vmatprep.subr.bf16.mxu0 0
      %268 = vmatpush1.bf16.msra.mxu0 0
      %269 = vmatprep.subr.bf16.mxu0 0
      %270 = vmatpush1.bf16.msra.mxu0 %v261
      %271 = vmatprep.subr.bf16.mxu0 0
      %272 = vmatpush1.bf16.msra.mxu0 %v240
      %273 = vmatprep.subr.bf16.mxu0 0
      %274 = vmatpush1.bf16.msra.mxu0 %v239
      %275 = vmatprep.subr.bf16.mxu0 0
      %276 = vmatpush1.bf16.msra.mxu0 %v238
      %277 = vmatprep.subr.bf16.mxu0 0
      %278 = vmatpush1.bf16.msra.mxu0 %v237
      %279 = vmatprep.subr.bf16.mxu0 0
      %280 = vmatpush2.bf16.msra.mxu0 0
      %281 = vmatprep.subr.bf16.mxu0 0
      %282 = vmatpush2.bf16.msra.mxu0 0
      %283 = vmatprep.subr.bf16.mxu0 0
      %284 = vmatpush2.bf16.msra.mxu0 0
      %285 = vmatprep.subr.bf16.mxu0 0
      %286 = vmatpush2.bf16.msra.mxu0 0
      %287 = vmatprep.subr.bf16.mxu0 0
      %288 = vmatpush2.bf16.msra.mxu0 0
      %289 = vmatprep.subr.bf16.mxu0 0
      %290 = vmatpush2.bf16.msra.mxu0 0
      %291 = vmatprep.subr.bf16.mxu0 0
      %292 = vmatpush2.bf16.msra.mxu0 0
      %293 = vmatprep.subr.bf16.mxu0 0
      %294 = vmatpush2.bf16.msra.mxu0 0
      %295 = vmatprep.mubr.bf16.mxu0 0
      %296 = vmatmul.mubr.bf16.gmra.mxu0 %v248
      %v297 = vpop.f32.mrf.mxu0
      %v298 = vadd.f32 %v197, %v297
      %v299 = vpop.f32.mrf.mxu0
      %v300 = vpop.f32.mrf.mxu0
      %v301 = vadd.f32 %v197, %v300
      %v302 = vpop.f32.mrf.mxu0
      %303 = vmatprep.mubr.bf16.mxu0 0
      %304 = vmatmul.mubr.bf16.gmra.mxu0 %v251
      %v305 = vpop.f32.mrf.mxu0
      %v306 = vadd.f32 %v197, %v305
      %v307 = vpop.f32.mrf.mxu0
      %v308 = vpop.f32.mrf.mxu0
      %v309 = vadd.f32 %v197, %v308
      %v310 = vpop.f32.mrf.mxu0
      %311 = vmatprep.mubr.bf16.mxu0 0
      %312 = vmatmul.mubr.bf16.gmra.mxu0 %v254
      %v313 = vpop.f32.mrf.mxu0
      %v314 = vadd.f32 %v197, %v313
      %v315 = vpop.f32.mrf.mxu0
      %v316 = vpop.f32.mrf.mxu0
      %v317 = vadd.f32 %v197, %v316
      %v318 = vpop.f32.mrf.mxu0
      %319 = vmatprep.mubr.bf16.mxu0 0
      %320 = vmatmul.mubr.bf16.gmra.mxu0 %v257
      %v321 = vpop.f32.mrf.mxu0
      %v322 = vadd.f32 %v197, %v321
      %v323 = vpop.f32.mrf.mxu0
      %v324 = vpop.f32.mrf.mxu0
      %v325 = vadd.f32 %v197, %v324
      %v326 = vpop.f32.mrf.mxu0
      %327 = vdwg.mxu0
      %v328 = vpack.c.bf16 %v301, %v298
      %v329 = vpack.c.bf16 %v309, %v306
      %v330 = vpack.c.bf16 %v317, %v314
      %v331 = vpack.c.bf16 %v325, %v322
      %v336 = vunpack.c.l.b16 %v328
      %v337 = vunpack.c.h.b16 %v328
      %v338 = vunpack.c.l.b16 %v329
      %v339 = vunpack.c.h.b16 %v329
      %v340 = vunpack.c.l.b16 %v330
      %v341 = vunpack.c.h.b16 %v330
      %v342 = vunpack.c.l.b16 %v331
      %v343 = vunpack.c.h.b16 %v331
      %v344 = vpack.c.b16 %v336, %v336
      %v345 = vpack.c.b16 %v337, %v337
      %v346 = vpack.c.b16 %v338, %v338
      %v347 = vpack.c.b16 %v339, %v339
      %v348 = vpack.c.b16 %v340, %v340
      %v349 = vpack.c.b16 %v341, %v341
      %v350 = vpack.c.b16 %v342, %v342
      %v351 = vpack.c.b16 %v343, %v343
      %vm360 = vcmask 191488
      %361 = vst.msk [vmem:[%s172] sm:$0xf] %vm360, %v344
      %362 = vst.msk [vmem:[%s172 + $0x4] sm:$0xf] %vm360, %v345
      %363 = vst.msk [vmem:[%s172 + $0x8] sm:$0xf] %vm360, %v346
      %364 = vst.msk [vmem:[%s172 + $0xc] sm:$0xf] %vm360, %v347
      %365 = vst.msk [vmem:[%s172 + $0x10] sm:$0xf] %vm360, %v348
      %366 = vst.msk [vmem:[%s172 + $0x14] sm:$0xf] %vm360, %v349
      %367 = vst.msk [vmem:[%s172 + $0x18] sm:$0xf] %vm360, %v350
      %368 = vst.msk [vmem:[%s172 + $0x1c] sm:$0xf] %vm360, %v351
      %s369 = smul.u32 8, %s14
      %p370 = scmp.lt.s32.totalorder %s369, 15
      %s371 = scalar_select %p370, %s369, 15
      %s372 = smul.addr %s371, 4
      %s373 = scalar_lea.vmem %s3, %s372
      // Predicated region
      $region33: #{_lambda_.30} parent=31 // pred_check
        %p374 = pneg %p100
      $region34: #{_lambda_.30} parent=31 // pred_check_branch
        %376 = sbr.rel (%p374) target = $region36
      $region35: #{_lambda_.30} parent=31 // pred_region
        %s377 = smul.u32 8, %s14
      $region36: #{_lambda_.30} parent=31 // pred_fallthru
        _
    $region32: #{_lambda_.30} parent=5 // pred_fallthru
      _
    %p378 = scmp.le.s32.totalorder 2, %s9
    // Predicated region
    $region37: #{_lambda_.30} parent=5 // pred_check
      %p379 = pneg %p378
    $region38: #{_lambda_.30} parent=5 // pred_check_branch
      %381 = sbr.rel (%p379) target = $region40
    $region39: #{_lambda_.30} parent=5 // pred_region
      %s382 = ssub.s32 %s9, 2
      // Predicated region
      $region41: #{_lambda_.30} parent=39 // pred_check
        %p383 = pneg %p106
      $region42: #{_lambda_.30} parent=39 // pred_check_branch
        %385 = sbr.rel (%p383) target = $region44
      $region43: #{_lambda_.30} parent=39 // pred_region
        %s386 = smul.u32 8, %s15
        %p387 = scmp.lt.s32.totalorder %s386, 15
        %s388 = scalar_select %p387, %s386, 15
        %s389 = smul.addr %s388, 4
        %s390 = scalar_lea.vmem %s3, %s389
      $region44: #{_lambda_.30} parent=39 // pred_fallthru
        _
    $region40: #{_lambda_.30} parent=5 // pred_fallthru
      _
  $region6: #{_lambda_.30} parent=0 // loop_footer
    %s13 = sadd.s32 1, %s9
  $region7: #{_lambda_.30} parent=0 // loop_footer_branch
    %8 = sbr.rel target = $region3
  $region8: #{_lambda_.30} parent=0 // loop_exit
    _

// kernel: _lambda_.35
$region0: #{_lambda_.35}
  #allocation0 [shape = 'u32[]', space=smem, size = 0x4, offset = 0x4, fixed_abs, tag = 'smem constant byte address 0x4 - core index']
  #allocation1 [shape = 'u32[144,128]{1,0:T(1,128)}', space=vmem, size = 0x12000, scoped, tag = 'internal scratch']
  %s0 = inlined_call_operand.vmem [shape: bf16[32,40], index: 0, kind: input, shape index: {}]
  %s1 = inlined_call_operand.vmem [shape: bf16[40,120], index: 1, kind: input, shape index: {}]
  %s2 = inlined_call_operand.hbm [shape: f32[1,120], index: 2, kind: input, shape index: {}]
  %s3 = inlined_call_operand.vmem [shape: bf16[32,120], index: 3, kind: output, shape index: {}]
  %s4 = sld [smem:[#allocation0]]
  $region49: #{_lambda_.35} parent=0
    _
  %s6 = ssub.s32 1, %s4
  %s7 = scalar_select 0, %s6, %s4
  $region1: #{_lambda_.35} parent=0
    #allocation2 [shape = 'u8[512]{0}', space=vmem, size = 0x400, scoped, tag = 'input window, operand 2, single buffered']
    #allocation3 [shape = 's32[2]{0}', space=sflag, size = 0x8, scoped, tag = 'scoped memory for _lambda_.35']
    %8 = vsyncpa [#allocation3], 0
    loop: start=0, step=1, limit=4
    $region2: #{_lambda_.35} parent=1 // loop_pre_header
      _
    $region3: #{_lambda_.35} parent=1 // loop_header
      %s10 = sphi 0, %s14
      %p11 = scmp.ge.s32.totalorder %s10, 4
      %s20 = sphi 0, %s22
      %s23 = sphi 0, %s20
      %s24 = sphi 0, %s23
      %s40 = sphi 0, %s24
      %s44 = sphi 0, %s44
      %s46 = sphi 0, %s44
      %s47 = sphi 0, %s46
      %s61 = sphi 0, %s47
      %s65 = sphi 0, %s65
      %s67 = sphi 0, %s65
      %s68 = sphi 0, %s67
      %s82 = sphi 0, %s68
      %s88 = sphi 0, %s90
      %s91 = sphi 0, %s88
      %s92 = sphi 0, %s91
      %s108 = sphi 0, %s92
    $region4: #{_lambda_.35} parent=1 // loop_header_branch
      %13 = sbr.rel (%p11) target = $region8
    $region5: #{_lambda_.35} parent=1 // loop_body
      %s15 = ssub.s32 %s10, 1
      %s16 = ssub.s32 %s10, 2
      %s17 = sadd.s32 %s10, 1
      %s18 = ssub.s32 %s10, %s17
      %p19 = scmp.eq.s32.totalorder %s18, 0
      %s21 = sadd.s32 %s20, 1
      %s22 = scalar_select %p19, %s20, %s21
      %p25 = pneg %p19
      %p26 = scmp.eq.s32.totalorder %s10, 1
      %p27 = por %p25, %p26
      %p28 = scmp.ne.s32.totalorder %s20, %s23
      %p29 = scmp.eq.s32.totalorder %s10, 0
      %p30 = por %p28, %p29
      %p31 = scmp.ne.s32.totalorder %s20, %s23
      %p32 = scmp.eq.s32.totalorder %s15, 1
      %p33 = por %p31, %p32
      %p34 = scmp.ne.s32.totalorder %s23, %s24
      %p35 = scmp.eq.s32.totalorder %s15, 0
      %p36 = por %p34, %p35
      %p37 = scmp.ne.s32.totalorder %s23, %s24
      %p38 = scmp.eq.s32.totalorder %s16, 1
      %p39 = por %p37, %p38
      %p41 = scmp.ne.s32.totalorder %s24, %s40
      %p42 = scmp.eq.s32.totalorder %s16, 0
      %p43 = por %p41, %p42
      %s45 = sadd.s32 %s44, 1
      %p48 = scmp.eq.s32.totalorder %s10, 1
      %p49 = scmp.ne.s32.totalorder %s44, %s46
      %p50 = scmp.eq.s32.totalorder %s10, 0
      %p51 = por %p49, %p50
      %p52 = scmp.ne.s32.totalorder %s44, %s46
      %p53 = scmp.eq.s32.totalorder %s15, 1
      %p54 = por %p52, %p53
      %p55 = scmp.ne.s32.totalorder %s46, %s47
      %p56 = scmp.eq.s32.totalorder %s15, 0
      %p57 = por %p55, %p56
      %p58 = scmp.ne.s32.totalorder %s46, %s47
      %p59 = scmp.eq.s32.totalorder %s16, 1
      %p60 = por %p58, %p59
      %p62 = scmp.ne.s32.totalorder %s47, %s61
      %p63 = scmp.eq.s32.totalorder %s16, 0
      %p64 = por %p62, %p63
      %s66 = sadd.s32 %s65, 1
      %p69 = scmp.eq.s32.totalorder %s10, 1
      %p70 = scmp.ne.s32.totalorder %s65, %s67
      %p71 = scmp.eq.s32.totalorder %s10, 0
      %p72 = por %p70, %p71
      %p73 = scmp.ne.s32.totalorder %s65, %s67
      %p74 = scmp.eq.s32.totalorder %s15, 1
      %p75 = por %p73, %p74
      %p76 = scmp.ne.s32.totalorder %s67, %s68
      %p77 = scmp.eq.s32.totalorder %s15, 0
      %p78 = por %p76, %p77
      %p79 = scmp.ne.s32.totalorder %s67, %s68
      %p80 = scmp.eq.s32.totalorder %s16, 1
      %p81 = por %p79, %p80
      %p83 = scmp.ne.s32.totalorder %s68, %s82
      %p84 = scmp.eq.s32.totalorder %s16, 0
      %p85 = por %p83, %p84
      %s86 = ssub.s32 %s10, %s17
      %p87 = scmp.eq.s32.totalorder %s86, 0
      %s89 = sadd.s32 %s88, 1
      %s90 = scalar_select %p87, %s88, %s89
      %p93 = pneg %p87
      %p94 = scmp.eq.s32.totalorder %s10, 1
      %p95 = por %p93, %p94
      %p96 = scmp.ne.s32.totalorder %s88, %s91
      %p97 = scmp.eq.s32.totalorder %s10, 0
      %p98 = por %p96, %p97
      %p99 = scmp.ne.s32.totalorder %s88, %s91
      %p100 = scmp.eq.s32.totalorder %s15, 1
      %p101 = por %p99, %p100
      %p102 = scmp.ne.s32.totalorder %s91, %s92
      %p103 = scmp.eq.s32.totalorder %s15, 0
      %p104 = por %p102, %p103
      %p105 = scmp.ne.s32.totalorder %s91, %s92
      %p106 = scmp.eq.s32.totalorder %s16, 1
      %p107 = por %p105, %p106
      %p109 = scmp.ne.s32.totalorder %s92, %s108
      %p110 = scmp.eq.s32.totalorder %s16, 0
      %p111 = por %p109, %p110
      %p112 = scmp.le.s32.totalorder 1, %s10
      %p113 = scmp.lt.s32.totalorder %s10, 3
      %p114 = pnand %p112, %p113
      %p115 = pneg %p114
      // Predicated region
      $region9: #{_lambda_.35} parent=5 // pred_check
        _
      $region10: #{_lambda_.35} parent=5 // pred_check_branch
        %117 = sbr.rel (%p114) target = $region12
      $region11: #{_lambda_.35} parent=5 // pred_region
        %s118 = ssub.s32 %s10, 1
        // Predicated region
        $region13: #{_lambda_.35} parent=11 // pred_check
          %p119 = pneg %p57
        $region14: #{_lambda_.35} parent=11 // pred_check_branch
          %121 = sbr.rel (%p119) target = $region16
        $region15: #{_lambda_.35} parent=11 // pred_region
          _
        $region16: #{_lambda_.35} parent=11 // pred_fallthru
          _
        // Predicated region
        $region17: #{_lambda_.35} parent=11 // pred_check
          %p122 = pneg %p78
        $region18: #{_lambda_.35} parent=11 // pred_check_branch
          %124 = sbr.rel (%p122) target = $region20
        $region19: #{_lambda_.35} parent=11 // pred_region
          %s126 = ssub.s32 16, 16
          %127 = vsyncadd [#allocation3], %s126
          %s129 = sshll.u32 [#allocation2], 4
          %s130 = int_to_ptr.vmem [resolvable:$true] %s129
          %132 = dma.hbm_to_vmem [thread:$0]  %s2, 16, %s130, [#allocation3]
        $region20: #{_lambda_.35} parent=11 // pred_fallthru
          _
      $region12: #{_lambda_.35} parent=5 // pred_fallthru
        _
      %p133 = scmp.lt.s32.totalorder %s10, 2
      // Predicated region
      $region21: #{_lambda_.35} parent=5 // pred_check
        %p134 = pneg %p133
      $region22: #{_lambda_.35} parent=5 // pred_check_branch
        %136 = sbr.rel (%p134) target = $region24
      $region23: #{_lambda_.35} parent=5 // pred_region
        // Predicated region
        $region25: #{_lambda_.35} parent=23 // pred_check
          %p137 = pneg %p30
        $region26: #{_lambda_.35} parent=23 // pred_check_branch
          %139 = sbr.rel (%p137) target = $region28
        $region27: #{_lambda_.35} parent=23 // pred_region
          %s140 = smul.u32 2, %s10
          %p141 = scmp.lt.s32.totalorder %s140, 3
          %s142 = scalar_select %p141, %s140, 3
          %s143 = smul.addr %s142, 4
          %s144 = scalar_lea.vmem %s0, %s143
          %s145 = smul.u32 2, %s10
        $region28: #{_lambda_.35} parent=23 // pred_fallthru
          _
      $region24: #{_lambda_.35} parent=5 // pred_fallthru
        _
      %p146 = scmp.le.s32.totalorder 1, %s10
      %p147 = scmp.lt.s32.totalorder %s10, 3
      %p148 = pnand %p146, %p147
      %p149 = pneg %p148
      // Predicated region
      $region29: #{_lambda_.35} parent=5 // pred_check
        _
      $region30: #{_lambda_.35} parent=5 // pred_check_branch
        %151 = sbr.rel (%p148) target = $region32
      $region31: #{_lambda_.35} parent=5 // pred_region
        %s152 = ssub.s32 %s10, 1
        // Predicated region
        $region33: #{_lambda_.35} parent=31 // pred_check
          %p153 = pneg %p78
        $region34: #{_lambda_.35} parent=31 // pred_check_branch
          %155 = sbr.rel (%p153) target = $region36
        $region35: #{_lambda_.35} parent=31 // pred_region
          %156 = dma.done [#allocation3], 16
        $region36: #{_lambda_.35} parent=31 // pred_fallthru
          _
        %s157 = smul.u32 2, %s15
        %p158 = scmp.lt.s32.totalorder %s157, 3
        %s159 = scalar_select %p158, %s157, 3
        %s160 = smul.addr %s159, 4
        %s161 = scalar_lea.vmem %s0, %s160
        %p162 = pneg %p36
        %p163 = pneg %p33
        %p164 = pneg %p57
        %p165 = pneg %p54
        %p166 = pneg %p78
        %p167 = pneg %p75
        %p168 = pneg %p104
        %p169 = pneg %p101
        %s170 = smul.u32 2, %s15
        %p171 = scmp.lt.s32.totalorder %s170, 3
        %s172 = scalar_select %p171, %s170, 3
        %s173 = smul.addr %s172, 4
        %s174 = scalar_lea.vmem %s3, %s173
        %s175 = smul.u32 2, %s15
        %p176 = scmp.lt.s32.totalorder %s175, 3
        %s177 = scalar_select %p176, %s175, 3
        %s178 = smul.addr %s177, 4
        %s179 = scalar_lea.vmem %s0, %s178
        %s180 = smul.u32 2, %s15
        %s181 = smul.u32 2, %s15
        %p182 = scmp.lt.s32.totalorder %s181, 3
        %s183 = scalar_select %p182, %s181, 3
        %s184 = smul.addr %s183, 4
        %s185 = scalar_lea.vmem %s3, %s184
        %s186 = smul.u32 2, %s15
        %v188 = vld [vmem:[%s179] sm:$0xf]
        %v189 = vld [vmem:[%s179 + $0x4] sm:$0xf]
        %v190 = vld [vmem:[%s1] sm:$0xf]
        %v191 = vld [vmem:[%s1 + $0x4] sm:$0xf]
        %v192 = vld [vmem:[%s1 + $0x8] sm:$0xf]
        %v193 = vld [vmem:[%s1 + $0xc] sm:$0xf]
        %v194 = vld [vmem:[%s1 + $0x10] sm:$0xf]
        %v195 = vld [vmem:[#allocation2] sm:$0x1]
        %v197 = vlaneseq
        %v198 = vshrl.u32 %v197, 7
        %v199 = vsub.s32 0, %v198
        %v200 = vrot.slane %v195, %v199
        %v204 = vunpack.c.l.b16 %v188
        %v205 = vunpack.c.l.b16 %v189
        %v206 = vpack.c.b16 %v205, %v204
        %v212 = vunpack.c.l.b16 %v190
        %v213 = vunpack.c.l.b16 %v191
        %v214 = vunpack.c.l.b16 %v192
        %v215 = vunpack.c.l.b16 %v193
        %v216 = vunpack.c.l.b16 %v194
        %v217 = vpack.c.b16 %v213, %v212
        %v218 = vpack.c.b16 %v215, %v214
        %v219 = vpack.c.b16 %v216, %v216
        %vm222 = vcmask 326656
        %v224 = vsel %vm222, %v206, 0
        %vm226 = vcmask 1043456
        %v228 = vsel %vm226, %v219, 0
        %230 = vmatprep.subr.bf16.mxu0 0
        %231 = vmatpush1.bf16.msra.mxu0 0
        %232 = vmatprep.subr.bf16.mxu0 0
        %233 = vmatpush1.bf16.msra.mxu0 0
        %234 = vmatprep.subr.bf16.mxu0 0
        %235 = vmatpush1.bf16.msra.mxu0 0
        %236 = vmatprep.subr.bf16.mxu0 0
        %237 = vmatpush1.bf16.msra.mxu0 0
        %238 = vmatprep.subr.bf16.mxu0 0
        %239 = vmatpush1.bf16.msra.mxu0 0
        %240 = vmatprep.subr.bf16.mxu0 0
        %241 = vmatpush1.bf16.msra.mxu0 %v228
        %242 = vmatprep.subr.bf16.mxu0 0
        %243 = vmatpush1.bf16.msra.mxu0 %v218
        %244 = vmatprep.subr.bf16.mxu0 0
        %245 = vmatpush1.bf16.msra.mxu0 %v217
        %246 = vmatprep.subr.bf16.mxu0 0
        %247 = vmatpush2.bf16.msra.mxu0 0
        %248 = vmatprep.subr.bf16.mxu0 0
        %249 = vmatpush2.bf16.msra.mxu0 0
        %250 = vmatprep.subr.bf16.mxu0 0
        %251 = vmatpush2.bf16.msra.mxu0 0
        %252 = vmatprep.subr.bf16.mxu0 0
        %253 = vmatpush2.bf16.msra.mxu0 0
        %254 = vmatprep.subr.bf16.mxu0 0
        %255 = vmatpush2.bf16.msra.mxu0 0
        %256 = vmatprep.subr.bf16.mxu0 0
        %257 = vmatpush2.bf16.msra.mxu0 0
        %258 = vmatprep.subr.bf16.mxu0 0
        %259 = vmatpush2.bf16.msra.mxu0 0
        %260 = vmatprep.subr.bf16.mxu0 0
        %261 = vmatpush2.bf16.msra.mxu0 0
        %262 = vmatprep.mubr.bf16.mxu0 0
        %263 = vmatmul.mubr.bf16.gmra.mxu0 %v224
        %v264 = vpop.f32.mrf.mxu0
        %v265 = vadd.f32 %v200, %v264
        %v266 = vpop.f32.mrf.mxu0
        %v267 = vpop.f32.mrf.mxu0
        %v268 = vadd.f32 %v200, %v267
        %v269 = vpop.f32.mrf.mxu0
        %270 = vdwg.mxu0
        %v271 = vmax.f32 %v265, 0.0
        %v272 = vmax.f32 %v268, 0.0
        %v273 = vpack.c.bf16 %v272, %v271
        %v275 = vunpack.c.l.b16 %v273
        %v276 = vunpack.c.h.b16 %v273
        %v277 = vpack.c.b16 %v275, %v275
        %v278 = vpack.c.b16 %v276, %v276
        %vm281 = vcmask 977920
        %282 = vst.msk [vmem:[%s185] sm:$0xf] %vm281, %v277
        %283 = vst.msk [vmem:[%s185 + $0x4] sm:$0xf] %vm281, %v278
        %s284 = smul.u32 2, %s15
        %p285 = scmp.lt.s32.totalorder %s284, 3
        %s286 = scalar_select %p285, %s284, 3
        %s287 = smul.addr %s286, 4
        %s288 = scalar_lea.vmem %s3, %s287
        // Predicated region
        $region37: #{_lambda_.35} parent=31 // pred_check
          %p289 = pneg %p101
        $region38: #{_lambda_.35} parent=31 // pred_check_branch
          %291 = sbr.rel (%p289) target = $region40
        $region39: #{_lambda_.35} parent=31 // pred_region
          %s292 = smul.u32 2, %s15
        $region40: #{_lambda_.35} parent=31 // pred_fallthru
          _
      $region32: #{_lambda_.35} parent=5 // pred_fallthru
        _
      %p293 = scmp.le.s32.totalorder 2, %s10
      // Predicated region
      $region41: #{_lambda_.35} parent=5 // pred_check
        %p294 = pneg %p293
      $region42: #{_lambda_.35} parent=5 // pred_check_branch
        %296 = sbr.rel (%p294) target = $region44
      $region43: #{_lambda_.35} parent=5 // pred_region
        %s297 = ssub.s32 %s10, 2
        // Predicated region
        $region45: #{_lambda_.35} parent=43 // pred_check
          %p298 = pneg %p107
        $region46: #{_lambda_.35} parent=43 // pred_check_branch
          %300 = sbr.rel (%p298) target = $region48
        $region47: #{_lambda_.35} parent=43 // pred_region
          %s301 = smul.u32 2, %s16
          %p302 = scmp.lt.s32.totalorder %s301, 3
          %s303 = scalar_select %p302, %s301, 3
          %s304 = smul.addr %s303, 4
          %s305 = scalar_lea.vmem %s3, %s304
        $region48: #{_lambda_.35} parent=43 // pred_fallthru
          _
      $region44: #{_lambda_.35} parent=5 // pred_fallthru
        _
    $region6: #{_lambda_.35} parent=1 // loop_footer
      %s14 = sadd.s32 1, %s10
    $region7: #{_lambda_.35} parent=1 // loop_footer_branch
      %9 = sbr.rel target = $region3
    $region8: #{_lambda_.35} parent=1 // loop_exit
      _
    %306 = vsyncpa [#allocation3], 1
    %s307 = scalar_lea.sflag [#allocation3], 1
    %308 = vsyncpa %s307, 1

// kernel: _lambda_.36
$region0: #{_lambda_.36}
  #allocation0 [shape = 'u32[]', space=smem, size = 0x4, offset = 0x4, fixed_abs, tag = 'smem constant byte address 0x4 - core index']
  #allocation1 [shape = 'u32[144,128]{1,0:T(1,128)}', space=vmem, size = 0x12000, scoped, tag = 'internal scratch']
  %s0 = inlined_call_operand.vmem [shape: bf16[32,120], index: 0, kind: input, shape index: {}]
  %s1 = inlined_call_operand.vmem [shape: bf16[120,40], index: 1, kind: input, shape index: {}]
  %s2 = inlined_call_operand.vmem [shape: f32[1,40], index: 2, kind: input, shape index: {}]
  %s3 = inlined_call_operand.vmem [shape: bf16[32,40], index: 3, kind: output, shape index: {}]
  %s4 = sld [smem:[#allocation0]]
  $region45: #{_lambda_.36} parent=0
    _
  %s6 = ssub.s32 1, %s4
  %s7 = scalar_select 0, %s6, %s4
  loop: start=0, step=1, limit=4
  $region2: #{_lambda_.36} parent=0 // loop_pre_header
    _
  $region3: #{_lambda_.36} parent=0 // loop_header
    %s9 = sphi 0, %s13
    %p10 = scmp.ge.s32.totalorder %s9, 4
    %s19 = sphi 0, %s21
    %s22 = sphi 0, %s19
    %s23 = sphi 0, %s22
    %s39 = sphi 0, %s23
    %s43 = sphi 0, %s43
    %s45 = sphi 0, %s43
    %s46 = sphi 0, %s45
    %s60 = sphi 0, %s46
    %s64 = sphi 0, %s64
    %s66 = sphi 0, %s64
    %s67 = sphi 0, %s66
    %s81 = sphi 0, %s67
    %s87 = sphi 0, %s89
    %s90 = sphi 0, %s87
    %s91 = sphi 0, %s90
    %s107 = sphi 0, %s91
  $region4: #{_lambda_.36} parent=0 // loop_header_branch
    %12 = sbr.rel (%p10) target = $region8
  $region5: #{_lambda_.36} parent=0 // loop_body
    %s14 = ssub.s32 %s9, 1
    %s15 = ssub.s32 %s9, 2
    %s16 = sadd.s32 %s9, 1
    %s17 = ssub.s32 %s9, %s16
    %p18 = scmp.eq.s32.totalorder %s17, 0
    %s20 = sadd.s32 %s19, 1
    %s21 = scalar_select %p18, %s19, %s20
    %p24 = pneg %p18
    %p25 = scmp.eq.s32.totalorder %s9, 1
    %p26 = por %p24, %p25
    %p27 = scmp.ne.s32.totalorder %s19, %s22
    %p28 = scmp.eq.s32.totalorder %s9, 0
    %p29 = por %p27, %p28
    %p30 = scmp.ne.s32.totalorder %s19, %s22
    %p31 = scmp.eq.s32.totalorder %s14, 1
    %p32 = por %p30, %p31
    %p33 = scmp.ne.s32.totalorder %s22, %s23
    %p34 = scmp.eq.s32.totalorder %s14, 0
    %p35 = por %p33, %p34
    %p36 = scmp.ne.s32.totalorder %s22, %s23
    %p37 = scmp.eq.s32.totalorder %s15, 1
    %p38 = por %p36, %p37
    %p40 = scmp.ne.s32.totalorder %s23, %s39
    %p41 = scmp.eq.s32.totalorder %s15, 0
    %p42 = por %p40, %p41
    %s44 = sadd.s32 %s43, 1
    %p47 = scmp.eq.s32.totalorder %s9, 1
    %p48 = scmp.ne.s32.totalorder %s43, %s45
    %p49 = scmp.eq.s32.totalorder %s9, 0
    %p50 = por %p48, %p49
    %p51 = scmp.ne.s32.totalorder %s43, %s45
    %p52 = scmp.eq.s32.totalorder %s14, 1
    %p53 = por %p51, %p52
    %p54 = scmp.ne.s32.totalorder %s45, %s46
    %p55 = scmp.eq.s32.totalorder %s14, 0
    %p56 = por %p54, %p55
    %p57 = scmp.ne.s32.totalorder %s45, %s46
    %p58 = scmp.eq.s32.totalorder %s15, 1
    %p59 = por %p57, %p58
    %p61 = scmp.ne.s32.totalorder %s46, %s60
    %p62 = scmp.eq.s32.totalorder %s15, 0
    %p63 = por %p61, %p62
    %s65 = sadd.s32 %s64, 1
    %p68 = scmp.eq.s32.totalorder %s9, 1
    %p69 = scmp.ne.s32.totalorder %s64, %s66
    %p70 = scmp.eq.s32.totalorder %s9, 0
    %p71 = por %p69, %p70
    %p72 = scmp.ne.s32.totalorder %s64, %s66
    %p73 = scmp.eq.s32.totalorder %s14, 1
    %p74 = por %p72, %p73
    %p75 = scmp.ne.s32.totalorder %s66, %s67
    %p76 = scmp.eq.s32.totalorder %s14, 0
    %p77 = por %p75, %p76
    %p78 = scmp.ne.s32.totalorder %s66, %s67
    %p79 = scmp.eq.s32.totalorder %s15, 1
    %p80 = por %p78, %p79
    %p82 = scmp.ne.s32.totalorder %s67, %s81
    %p83 = scmp.eq.s32.totalorder %s15, 0
    %p84 = por %p82, %p83
    %s85 = ssub.s32 %s9, %s16
    %p86 = scmp.eq.s32.totalorder %s85, 0
    %s88 = sadd.s32 %s87, 1
    %s89 = scalar_select %p86, %s87, %s88
    %p92 = pneg %p86
    %p93 = scmp.eq.s32.totalorder %s9, 1
    %p94 = por %p92, %p93
    %p95 = scmp.ne.s32.totalorder %s87, %s90
    %p96 = scmp.eq.s32.totalorder %s9, 0
    %p97 = por %p95, %p96
    %p98 = scmp.ne.s32.totalorder %s87, %s90
    %p99 = scmp.eq.s32.totalorder %s14, 1
    %p100 = por %p98, %p99
    %p101 = scmp.ne.s32.totalorder %s90, %s91
    %p102 = scmp.eq.s32.totalorder %s14, 0
    %p103 = por %p101, %p102
    %p104 = scmp.ne.s32.totalorder %s90, %s91
    %p105 = scmp.eq.s32.totalorder %s15, 1
    %p106 = por %p104, %p105
    %p108 = scmp.ne.s32.totalorder %s91, %s107
    %p109 = scmp.eq.s32.totalorder %s15, 0
    %p110 = por %p108, %p109
    %p111 = scmp.le.s32.totalorder 1, %s9
    %p112 = scmp.lt.s32.totalorder %s9, 3
    %p113 = pnand %p111, %p112
    %p114 = pneg %p113
    // Predicated region
    $region9: #{_lambda_.36} parent=5 // pred_check
      _
    $region10: #{_lambda_.36} parent=5 // pred_check_branch
      %116 = sbr.rel (%p113) target = $region12
    $region11: #{_lambda_.36} parent=5 // pred_region
      %s117 = ssub.s32 %s9, 1
      // Predicated region
      $region13: #{_lambda_.36} parent=11 // pred_check
        %p118 = pneg %p56
      $region14: #{_lambda_.36} parent=11 // pred_check_branch
        %120 = sbr.rel (%p118) target = $region16
      $region15: #{_lambda_.36} parent=11 // pred_region
        _
      $region16: #{_lambda_.36} parent=11 // pred_fallthru
        _
      // Predicated region
      $region17: #{_lambda_.36} parent=11 // pred_check
        %p121 = pneg %p77
      $region18: #{_lambda_.36} parent=11 // pred_check_branch
        %123 = sbr.rel (%p121) target = $region20
      $region19: #{_lambda_.36} parent=11 // pred_region
        _
      $region20: #{_lambda_.36} parent=11 // pred_fallthru
        _
    $region12: #{_lambda_.36} parent=5 // pred_fallthru
      _
    %p124 = scmp.lt.s32.totalorder %s9, 2
    // Predicated region
    $region21: #{_lambda_.36} parent=5 // pred_check
      %p125 = pneg %p124
    $region22: #{_lambda_.36} parent=5 // pred_check_branch
      %127 = sbr.rel (%p125) target = $region24
    $region23: #{_lambda_.36} parent=5 // pred_region
      // Predicated region
      $region25: #{_lambda_.36} parent=23 // pred_check
        %p128 = pneg %p29
      $region26: #{_lambda_.36} parent=23 // pred_check_branch
        %130 = sbr.rel (%p128) target = $region28
      $region27: #{_lambda_.36} parent=23 // pred_region
        %s131 = smul.u32 2, %s9
        %p132 = scmp.lt.s32.totalorder %s131, 3
        %s133 = scalar_select %p132, %s131, 3
        %s134 = smul.addr %s133, 4
        %s135 = scalar_lea.vmem %s0, %s134
        %s136 = smul.u32 2, %s9
      $region28: #{_lambda_.36} parent=23 // pred_fallthru
        _
    $region24: #{_lambda_.36} parent=5 // pred_fallthru
      _
    %p137 = scmp.le.s32.totalorder 1, %s9
    %p138 = scmp.lt.s32.totalorder %s9, 3
    %p139 = pnand %p137, %p138
    %p140 = pneg %p139
    // Predicated region
    $region29: #{_lambda_.36} parent=5 // pred_check
      _
    $region30: #{_lambda_.36} parent=5 // pred_check_branch
      %142 = sbr.rel (%p139) target = $region32
    $region31: #{_lambda_.36} parent=5 // pred_region
      %s143 = ssub.s32 %s9, 1
      %s144 = smul.u32 2, %s14
      %p145 = scmp.lt.s32.totalorder %s144, 3
      %s146 = scalar_select %p145, %s144, 3
      %s147 = smul.addr %s146, 4
      %s148 = scalar_lea.vmem %s0, %s147
      %p149 = pneg %p35
      %p150 = pneg %p32
      %p151 = pneg %p56
      %p152 = pneg %p53
      %p153 = pneg %p77
      %p154 = pneg %p74
      %p155 = pneg %p103
      %p156 = pneg %p100
      %s157 = smul.u32 2, %s14
      %p158 = scmp.lt.s32.totalorder %s157, 3
      %s159 = scalar_select %p158, %s157, 3
      %s160 = smul.addr %s159, 4
      %s161 = scalar_lea.vmem %s3, %s160
      %s162 = smul.u32 2, %s14
      %p163 = scmp.lt.s32.totalorder %s162, 3
      %s164 = scalar_select %p163, %s162, 3
      %s165 = smul.addr %s164, 4
      %s166 = scalar_lea.vmem %s0, %s165
      %s167 = smul.u32 2, %s14
      %s168 = smul.u32 2, %s14
      %p169 = scmp.lt.s32.totalorder %s168, 3
      %s170 = scalar_select %p169, %s168, 3
      %s171 = smul.addr %s170, 4
      %s172 = scalar_lea.vmem %s3, %s171
      %s173 = smul.u32 2, %s14
      %v175 = vld [vmem:[%s166] sm:$0xf]
      %v176 = vld [vmem:[%s166 + $0x4] sm:$0xf]
      %v177 = vld [vmem:[%s1] sm:$0xf]
      %v178 = vld [vmem:[%s1 + $0x4] sm:$0xf]
      %v179 = vld [vmem:[%s1 + $0x8] sm:$0xf]
      %v180 = vld [vmem:[%s1 + $0xc] sm:$0xf]
      %v181 = vld [vmem:[%s1 + $0x10] sm:$0xf]
      %v182 = vld [vmem:[%s1 + $0x14] sm:$0xf]
      %v183 = vld [vmem:[%s1 + $0x18] sm:$0xf]
      %v184 = vld [vmem:[%s1 + $0x1c] sm:$0xf]
      %v185 = vld [vmem:[%s1 + $0x20] sm:$0xf]
      %v186 = vld [vmem:[%s1 + $0x24] sm:$0xf]
      %v187 = vld [vmem:[%s1 + $0x28] sm:$0xf]
      %v188 = vld [vmem:[%s1 + $0x2c] sm:$0xf]
      %v189 = vld [vmem:[%s1 + $0x30] sm:$0xf]
      %v190 = vld [vmem:[%s1 + $0x34] sm:$0xf]
      %v191 = vld [vmem:[%s1 + $0x38] sm:$0xf]
      %v192 = vld [vmem:[%s2] sm:$0x1]
      %v194 = vlaneseq
      %v195 = vshrl.u32 %v194, 7
      %v196 = vsub.s32 0, %v195
      %v197 = vrot.slane %v192, %v196
      %v201 = vunpack.c.l.b16 %v175
      %v202 = vunpack.c.l.b16 %v176
      %v203 = vpack.c.b16 %v202, %v201
      %v219 = vunpack.c.l.b16 %v177
      %v220 = vunpack.c.l.b16 %v178
      %v221 = vunpack.c.l.b16 %v179
      %v222 = vunpack.c.l.b16 %v180
      %v223 = vunpack.c.l.b16 %v181
      %v224 = vunpack.c.l.b16 %v182
      %v225 = vunpack.c.l.b16 %v183
      %v226 = vunpack.c.l.b16 %v184
      %v227 = vunpack.c.l.b16 %v185
      %v228 = vunpack.c.l.b16 %v186
      %v229 = vunpack.c.l.b16 %v187
      %v230 = vunpack.c.l.b16 %v188
      %v231 = vunpack.c.l.b16 %v189
      %v232 = vunpack.c.l.b16 %v190
      %v233 = vunpack.c.l.b16 %v191
      %v234 = vpack.c.b16 %v220, %v219
      %v235 = vpack.c.b16 %v222, %v221
      %v236 = vpack.c.b16 %v224, %v223
      %v237 = vpack.c.b16 %v226, %v225
      %v238 = vpack.c.b16 %v228, %v227
      %v239 = vpack.c.b16 %v230, %v229
      %v240 = vpack.c.b16 %v232, %v231
      %v241 = vpack.c.b16 %v233, %v233
      %vm249 = vcmask 982016
      %v251 = vsel %vm249, %v203, 0
      %vm253 = vcmask 1043456
      %v255 = vsel %vm253, %v241, 0
      %257 = vmatprep.subr.bf16.mxu0 0
      %258 = vmatpush1.bf16.msra.mxu0 %v255
      %259 = vmatprep.subr.bf16.mxu0 0
      %260 = vmatpush1.bf16.msra.mxu0 %v240
      %261 = vmatprep.subr.bf16.mxu0 0
      %262 = vmatpush1.bf16.msra.mxu0 %v239
      %263 = vmatprep.subr.bf16.mxu0 0
      %264 = vmatpush1.bf16.msra.mxu0 %v238
      %265 = vmatprep.subr.bf16.mxu0 0
      %266 = vmatpush1.bf16.msra.mxu0 %v237
      %267 = vmatprep.subr.bf16.mxu0 0
      %268 = vmatpush1.bf16.msra.mxu0 %v236
      %269 = vmatprep.subr.bf16.mxu0 0
      %270 = vmatpush1.bf16.msra.mxu0 %v235
      %271 = vmatprep.subr.bf16.mxu0 0
      %272 = vmatpush1.bf16.msra.mxu0 %v234
      %273 = vmatprep.subr.bf16.mxu0 0
      %274 = vmatpush2.bf16.msra.mxu0 0
      %275 = vmatprep.subr.bf16.mxu0 0
      %276 = vmatpush2.bf16.msra.mxu0 0
      %277 = vmatprep.subr.bf16.mxu0 0
      %278 = vmatpush2.bf16.msra.mxu0 0
      %279 = vmatprep.subr.bf16.mxu0 0
      %280 = vmatpush2.bf16.msra.mxu0 0
      %281 = vmatprep.subr.bf16.mxu0 0
      %282 = vmatpush2.bf16.msra.mxu0 0
      %283 = vmatprep.subr.bf16.mxu0 0
      %284 = vmatpush2.bf16.msra.mxu0 0
      %285 = vmatprep.subr.bf16.mxu0 0
      %286 = vmatpush2.bf16.msra.mxu0 0
      %287 = vmatprep.subr.bf16.mxu0 0
      %288 = vmatpush2.bf16.msra.mxu0 0
      %289 = vmatprep.mubr.bf16.mxu0 0
      %290 = vmatmul.mubr.bf16.gmra.mxu0 %v251
      %v291 = vpop.f32.mrf.mxu0
      %v292 = vadd.f32 %v197, %v291
      %v293 = vpop.f32.mrf.mxu0
      %v294 = vpop.f32.mrf.mxu0
      %v295 = vadd.f32 %v197, %v294
      %v296 = vpop.f32.mrf.mxu0
      %297 = vdwg.mxu0
      %v298 = vpack.c.bf16 %v295, %v292
      %v300 = vunpack.c.l.b16 %v298
      %v301 = vunpack.c.h.b16 %v298
      %v302 = vpack.c.b16 %v300, %v300
      %v303 = vpack.c.b16 %v301, %v301
      %vm306 = vcmask 322560
      %307 = vst.msk [vmem:[%s172] sm:$0xf] %vm306, %v302
      %308 = vst.msk [vmem:[%s172 + $0x4] sm:$0xf] %vm306, %v303
      %s309 = smul.u32 2, %s14
      %p310 = scmp.lt.s32.totalorder %s309, 3
      %s311 = scalar_select %p310, %s309, 3
      %s312 = smul.addr %s311, 4
      %s313 = scalar_lea.vmem %s3, %s312
      // Predicated region
      $region33: #{_lambda_.36} parent=31 // pred_check
        %p314 = pneg %p100
      $region34: #{_lambda_.36} parent=31 // pred_check_branch
        %316 = sbr.rel (%p314) target = $region36
      $region35: #{_lambda_.36} parent=31 // pred_region
        %s317 = smul.u32 2, %s14
      $region36: #{_lambda_.36} parent=31 // pred_fallthru
        _
    $region32: #{_lambda_.36} parent=5 // pred_fallthru
      _
    %p318 = scmp.le.s32.totalorder 2, %s9
    // Predicated region
    $region37: #{_lambda_.36} parent=5 // pred_check
      %p319 = pneg %p318
    $region38: #{_lambda_.36} parent=5 // pred_check_branch
      %321 = sbr.rel (%p319) target = $region40
    $region39: #{_lambda_.36} parent=5 // pred_region
      %s322 = ssub.s32 %s9, 2
      // Predicated region
      $region41: #{_lambda_.36} parent=39 // pred_check
        %p323 = pneg %p106
      $region42: #{_lambda_.36} parent=39 // pred_check_branch
        %325 = sbr.rel (%p323) target = $region44
      $region43: #{_lambda_.36} parent=39 // pred_region
        %s326 = smul.u32 2, %s15
        %p327 = scmp.lt.s32.totalorder %s326, 3
        %s328 = scalar_select %p327, %s326, 3
        %s329 = smul.addr %s328, 4
        %s330 = scalar_lea.vmem %s3, %s329
      $region44: #{_lambda_.36} parent=39 // pred_fallthru
        _
    $region40: #{_lambda_.36} parent=5 // pred_fallthru
      _
  $region6: #{_lambda_.36} parent=0 // loop_footer
    %s13 = sadd.s32 1, %s9
  $region7: #{_lambda_.36} parent=0 // loop_footer_branch
    %8 = sbr.rel target = $region3
  $region8: #{_lambda_.36} parent=0 // loop_exit
    _

// kernel: _lambda_.37
$region0: #{_lambda_.37}
  #allocation0 [shape = 'u32[]', space=smem, size = 0x4, offset = 0x4, fixed_abs, tag = 'smem constant byte address 0x4 - core index']
  #allocation1 [shape = 'u32[144,128]{1,0:T(1,128)}', space=vmem, size = 0x12000, scoped, tag = 'internal scratch']
  %s0 = inlined_call_operand.vmem [shape: bf16[32,40], index: 0, kind: input, shape index: {}]
  %s1 = inlined_call_operand.vmem [shape: bf16[40,120], index: 1, kind: input, shape index: {}]
  %s2 = inlined_call_operand.vmem [shape: f32[1,120], index: 2, kind: input, shape index: {}]
  %s3 = inlined_call_operand.vmem [shape: bf16[32,120], index: 3, kind: output, shape index: {}]
  %s4 = sld [smem:[#allocation0]]
  $region45: #{_lambda_.37} parent=0
    _
  %s6 = ssub.s32 1, %s4
  %s7 = scalar_select 0, %s6, %s4
  loop: start=0, step=1, limit=4
  $region2: #{_lambda_.37} parent=0 // loop_pre_header
    _
  $region3: #{_lambda_.37} parent=0 // loop_header
    %s9 = sphi 0, %s13
    %p10 = scmp.ge.s32.totalorder %s9, 4
    %s19 = sphi 0, %s21
    %s22 = sphi 0, %s19
    %s23 = sphi 0, %s22
    %s39 = sphi 0, %s23
    %s43 = sphi 0, %s43
    %s45 = sphi 0, %s43
    %s46 = sphi 0, %s45
    %s60 = sphi 0, %s46
    %s64 = sphi 0, %s64
    %s66 = sphi 0, %s64
    %s67 = sphi 0, %s66
    %s81 = sphi 0, %s67
    %s87 = sphi 0, %s89
    %s90 = sphi 0, %s87
    %s91 = sphi 0, %s90
    %s107 = sphi 0, %s91
  $region4: #{_lambda_.37} parent=0 // loop_header_branch
    %12 = sbr.rel (%p10) target = $region8
  $region5: #{_lambda_.37} parent=0 // loop_body
    %s14 = ssub.s32 %s9, 1
    %s15 = ssub.s32 %s9, 2
    %s16 = sadd.s32 %s9, 1
    %s17 = ssub.s32 %s9, %s16
    %p18 = scmp.eq.s32.totalorder %s17, 0
    %s20 = sadd.s32 %s19, 1
    %s21 = scalar_select %p18, %s19, %s20
    %p24 = pneg %p18
    %p25 = scmp.eq.s32.totalorder %s9, 1
    %p26 = por %p24, %p25
    %p27 = scmp.ne.s32.totalorder %s19, %s22
    %p28 = scmp.eq.s32.totalorder %s9, 0
    %p29 = por %p27, %p28
    %p30 = scmp.ne.s32.totalorder %s19, %s22
    %p31 = scmp.eq.s32.totalorder %s14, 1
    %p32 = por %p30, %p31
    %p33 = scmp.ne.s32.totalorder %s22, %s23
    %p34 = scmp.eq.s32.totalorder %s14, 0
    %p35 = por %p33, %p34
    %p36 = scmp.ne.s32.totalorder %s22, %s23
    %p37 = scmp.eq.s32.totalorder %s15, 1
    %p38 = por %p36, %p37
    %p40 = scmp.ne.s32.totalorder %s23, %s39
    %p41 = scmp.eq.s32.totalorder %s15, 0
    %p42 = por %p40, %p41
    %s44 = sadd.s32 %s43, 1
    %p47 = scmp.eq.s32.totalorder %s9, 1
    %p48 = scmp.ne.s32.totalorder %s43, %s45
    %p49 = scmp.eq.s32.totalorder %s9, 0
    %p50 = por %p48, %p49
    %p51 = scmp.ne.s32.totalorder %s43, %s45
    %p52 = scmp.eq.s32.totalorder %s14, 1
    %p53 = por %p51, %p52
    %p54 = scmp.ne.s32.totalorder %s45, %s46
    %p55 = scmp.eq.s32.totalorder %s14, 0
    %p56 = por %p54, %p55
    %p57 = scmp.ne.s32.totalorder %s45, %s46
    %p58 = scmp.eq.s32.totalorder %s15, 1
    %p59 = por %p57, %p58
    %p61 = scmp.ne.s32.totalorder %s46, %s60
    %p62 = scmp.eq.s32.totalorder %s15, 0
    %p63 = por %p61, %p62
    %s65 = sadd.s32 %s64, 1
    %p68 = scmp.eq.s32.totalorder %s9, 1
    %p69 = scmp.ne.s32.totalorder %s64, %s66
    %p70 = scmp.eq.s32.totalorder %s9, 0
    %p71 = por %p69, %p70
    %p72 = scmp.ne.s32.totalorder %s64, %s66
    %p73 = scmp.eq.s32.totalorder %s14, 1
    %p74 = por %p72, %p73
    %p75 = scmp.ne.s32.totalorder %s66, %s67
    %p76 = scmp.eq.s32.totalorder %s14, 0
    %p77 = por %p75, %p76
    %p78 = scmp.ne.s32.totalorder %s66, %s67
    %p79 = scmp.eq.s32.totalorder %s15, 1
    %p80 = por %p78, %p79
    %p82 = scmp.ne.s32.totalorder %s67, %s81
    %p83 = scmp.eq.s32.totalorder %s15, 0
    %p84 = por %p82, %p83
    %s85 = ssub.s32 %s9, %s16
    %p86 = scmp.eq.s32.totalorder %s85, 0
    %s88 = sadd.s32 %s87, 1
    %s89 = scalar_select %p86, %s87, %s88
    %p92 = pneg %p86
    %p93 = scmp.eq.s32.totalorder %s9, 1
    %p94 = por %p92, %p93
    %p95 = scmp.ne.s32.totalorder %s87, %s90
    %p96 = scmp.eq.s32.totalorder %s9, 0
    %p97 = por %p95, %p96
    %p98 = scmp.ne.s32.totalorder %s87, %s90
    %p99 = scmp.eq.s32.totalorder %s14, 1
    %p100 = por %p98, %p99
    %p101 = scmp.ne.s32.totalorder %s90, %s91
    %p102 = scmp.eq.s32.totalorder %s14, 0
    %p103 = por %p101, %p102
    %p104 = scmp.ne.s32.totalorder %s90, %s91
    %p105 = scmp.eq.s32.totalorder %s15, 1
    %p106 = por %p104, %p105
    %p108 = scmp.ne.s32.totalorder %s91, %s107
    %p109 = scmp.eq.s32.totalorder %s15, 0
    %p110 = por %p108, %p109
    %p111 = scmp.le.s32.totalorder 1, %s9
    %p112 = scmp.lt.s32.totalorder %s9, 3
    %p113 = pnand %p111, %p112
    %p114 = pneg %p113
    // Predicated region
    $region9: #{_lambda_.37} parent=5 // pred_check
      _
    $region10: #{_lambda_.37} parent=5 // pred_check_branch
      %116 = sbr.rel (%p113) target = $region12
    $region11: #{_lambda_.37} parent=5 // pred_region
      %s117 = ssub.s32 %s9, 1
      // Predicated region
      $region13: #{_lambda_.37} parent=11 // pred_check
        %p118 = pneg %p56
      $region14: #{_lambda_.37} parent=11 // pred_check_branch
        %120 = sbr.rel (%p118) target = $region16
      $region15: #{_lambda_.37} parent=11 // pred_region
        _
      $region16: #{_lambda_.37} parent=11 // pred_fallthru
        _
      // Predicated region
      $region17: #{_lambda_.37} parent=11 // pred_check
        %p121 = pneg %p77
      $region18: #{_lambda_.37} parent=11 // pred_check_branch
        %123 = sbr.rel (%p121) target = $region20
      $region19: #{_lambda_.37} parent=11 // pred_region
        _
      $region20: #{_lambda_.37} parent=11 // pred_fallthru
        _
    $region12: #{_lambda_.37} parent=5 // pred_fallthru
      _
    %p124 = scmp.lt.s32.totalorder %s9, 2
    // Predicated region
    $region21: #{_lambda_.37} parent=5 // pred_check
      %p125 = pneg %p124
    $region22: #{_lambda_.37} parent=5 // pred_check_branch
      %127 = sbr.rel (%p125) target = $region24
    $region23: #{_lambda_.37} parent=5 // pred_region
      // Predicated region
      $region25: #{_lambda_.37} parent=23 // pred_check
        %p128 = pneg %p29
      $region26: #{_lambda_.37} parent=23 // pred_check_branch
        %130 = sbr.rel (%p128) target = $region28
      $region27: #{_lambda_.37} parent=23 // pred_region
        %s131 = smul.u32 2, %s9
        %p132 = scmp.lt.s32.totalorder %s131, 3
        %s133 = scalar_select %p132, %s131, 3
        %s134 = smul.addr %s133, 4
        %s135 = scalar_lea.vmem %s0, %s134
        %s136 = smul.u32 2, %s9
      $region28: #{_lambda_.37} parent=23 // pred_fallthru
        _
    $region24: #{_lambda_.37} parent=5 // pred_fallthru
      _
    %p137 = scmp.le.s32.totalorder 1, %s9
    %p138 = scmp.lt.s32.totalorder %s9, 3
    %p139 = pnand %p137, %p138
    %p140 = pneg %p139
    // Predicated region
    $region29: #{_lambda_.37} parent=5 // pred_check
      _
    $region30: #{_lambda_.37} parent=5 // pred_check_branch
      %142 = sbr.rel (%p139) target = $region32
    $region31: #{_lambda_.37} parent=5 // pred_region
      %s143 = ssub.s32 %s9, 1
      %s144 = smul.u32 2, %s14
      %p145 = scmp.lt.s32.totalorder %s144, 3
      %s146 = scalar_select %p145, %s144, 3
      %s147 = smul.addr %s146, 4
      %s148 = scalar_lea.vmem %s0, %s147
      %p149 = pneg %p35
      %p150 = pneg %p32
      %p151 = pneg %p56
      %p152 = pneg %p53
      %p153 = pneg %p77
      %p154 = pneg %p74
      %p155 = pneg %p103
      %p156 = pneg %p100
      %s157 = smul.u32 2, %s14
      %p158 = scmp.lt.s32.totalorder %s157, 3
      %s159 = scalar_select %p158, %s157, 3
      %s160 = smul.addr %s159, 4
      %s161 = scalar_lea.vmem %s3, %s160
      %s162 = smul.u32 2, %s14
      %p163 = scmp.lt.s32.totalorder %s162, 3
      %s164 = scalar_select %p163, %s162, 3
      %s165 = smul.addr %s164, 4
      %s166 = scalar_lea.vmem %s0, %s165
      %s167 = smul.u32 2, %s14
      %s168 = smul.u32 2, %s14
      %p169 = scmp.lt.s32.totalorder %s168, 3
      %s170 = scalar_select %p169, %s168, 3
      %s171 = smul.addr %s170, 4
      %s172 = scalar_lea.vmem %s3, %s171
      %s173 = smul.u32 2, %s14
      %v175 = vld [vmem:[%s166] sm:$0xf]
      %v176 = vld [vmem:[%s166 + $0x4] sm:$0xf]
      %v177 = vld [vmem:[%s1] sm:$0xf]
      %v178 = vld [vmem:[%s1 + $0x4] sm:$0xf]
      %v179 = vld [vmem:[%s1 + $0x8] sm:$0xf]
      %v180 = vld [vmem:[%s1 + $0xc] sm:$0xf]
      %v181 = vld [vmem:[%s1 + $0x10] sm:$0xf]
      %v182 = vld [vmem:[%s2] sm:$0x1]
      %v184 = vlaneseq
      %v185 = vshrl.u32 %v184, 7
      %v186 = vsub.s32 0, %v185
      %v187 = vrot.slane %v182, %v186
      %v191 = vunpack.c.l.b16 %v175
      %v192 = vunpack.c.l.b16 %v176
      %v193 = vpack.c.b16 %v192, %v191
      %v199 = vunpack.c.l.b16 %v177
      %v200 = vunpack.c.l.b16 %v178
      %v201 = vunpack.c.l.b16 %v179
      %v202 = vunpack.c.l.b16 %v180
      %v203 = vunpack.c.l.b16 %v181
      %v204 = vpack.c.b16 %v200, %v199
      %v205 = vpack.c.b16 %v202, %v201
      %v206 = vpack.c.b16 %v203, %v203
      %vm209 = vcmask 326656
      %v211 = vsel %vm209, %v193, 0
      %vm213 = vcmask 1043456
      %v215 = vsel %vm213, %v206, 0
      %217 = vmatprep.subr.bf16.mxu0 0
      %218 = vmatpush1.bf16.msra.mxu0 0
      %219 = vmatprep.subr.bf16.mxu0 0
      %220 = vmatpush1.bf16.msra.mxu0 0
      %221 = vmatprep.subr.bf16.mxu0 0
      %222 = vmatpush1.bf16.msra.mxu0 0
      %223 = vmatprep.subr.bf16.mxu0 0
      %224 = vmatpush1.bf16.msra.mxu0 0
      %225 = vmatprep.subr.bf16.mxu0 0
      %226 = vmatpush1.bf16.msra.mxu0 0
      %227 = vmatprep.subr.bf16.mxu0 0
      %228 = vmatpush1.bf16.msra.mxu0 %v215
      %229 = vmatprep.subr.bf16.mxu0 0
      %230 = vmatpush1.bf16.msra.mxu0 %v205
      %231 = vmatprep.subr.bf16.mxu0 0
      %232 = vmatpush1.bf16.msra.mxu0 %v204
      %233 = vmatprep.subr.bf16.mxu0 0
      %234 = vmatpush2.bf16.msra.mxu0 0
      %235 = vmatprep.subr.bf16.mxu0 0
      %236 = vmatpush2.bf16.msra.mxu0 0
      %237 = vmatprep.subr.bf16.mxu0 0
      %238 = vmatpush2.bf16.msra.mxu0 0
      %239 = vmatprep.subr.bf16.mxu0 0
      %240 = vmatpush2.bf16.msra.mxu0 0
      %241 = vmatprep.subr.bf16.mxu0 0
      %242 = vmatpush2.bf16.msra.mxu0 0
      %243 = vmatprep.subr.bf16.mxu0 0
      %244 = vmatpush2.bf16.msra.mxu0 0
      %245 = vmatprep.subr.bf16.mxu0 0
      %246 = vmatpush2.bf16.msra.mxu0 0
      %247 = vmatprep.subr.bf16.mxu0 0
      %248 = vmatpush2.bf16.msra.mxu0 0
      %249 = vmatprep.mubr.bf16.mxu0 0
      %250 = vmatmul.mubr.bf16.gmra.mxu0 %v211
      %v251 = vpop.f32.mrf.mxu0
      %v252 = vadd.f32 %v187, %v251
      %v253 = vpop.f32.mrf.mxu0
      %v254 = vpop.f32.mrf.mxu0
      %v255 = vadd.f32 %v187, %v254
      %v256 = vpop.f32.mrf.mxu0
      %257 = vdwg.mxu0
      %v258 = vmax.f32 %v252, 0.0
      %v259 = vmax.f32 %v255, 0.0
      %v260 = vpack.c.bf16 %v259, %v258
      %v262 = vunpack.c.l.b16 %v260
      %v263 = vunpack.c.h.b16 %v260
      %v264 = vpack.c.b16 %v262, %v262
      %v265 = vpack.c.b16 %v263, %v263
      %vm268 = vcmask 977920
      %269 = vst.msk [vmem:[%s172] sm:$0xf] %vm268, %v264
      %270 = vst.msk [vmem:[%s172 + $0x4] sm:$0xf] %vm268, %v265
      %s271 = smul.u32 2, %s14
      %p272 = scmp.lt.s32.totalorder %s271, 3
      %s273 = scalar_select %p272, %s271, 3
      %s274 = smul.addr %s273, 4
      %s275 = scalar_lea.vmem %s3, %s274
      // Predicated region
      $region33: #{_lambda_.37} parent=31 // pred_check
        %p276 = pneg %p100
      $region34: #{_lambda_.37} parent=31 // pred_check_branch
        %278 = sbr.rel (%p276) target = $region36
      $region35: #{_lambda_.37} parent=31 // pred_region
        %s279 = smul.u32 2, %s14
      $region36: #{_lambda_.37} parent=31 // pred_fallthru
        _
    $region32: #{_lambda_.37} parent=5 // pred_fallthru
      _
    %p280 = scmp.le.s32.totalorder 2, %s9
    // Predicated region
    $region37: #{_lambda_.37} parent=5 // pred_check
      %p281 = pneg %p280
    $region38: #{_lambda_.37} parent=5 // pred_check_branch
      %283 = sbr.rel (%p281) target = $region40
    $region39: #{_lambda_.37} parent=5 // pred_region
      %s284 = ssub.s32 %s9, 2
      // Predicated region
      $region41: #{_lambda_.37} parent=39 // pred_check
        %p285 = pneg %p106
      $region42: #{_lambda_.37} parent=39 // pred_check_branch
        %287 = sbr.rel (%p285) target = $region44
      $region43: #{_lambda_.37} parent=39 // pred_region
        %s288 = smul.u32 2, %s15
        %p289 = scmp.lt.s32.totalorder %s288, 3
        %s290 = scalar_select %p289, %s288, 3
        %s291 = smul.addr %s290, 4
        %s292 = scalar_lea.vmem %s3, %s291
      $region44: #{_lambda_.37} parent=39 // pred_fallthru
        _
    $region40: #{_lambda_.37} parent=5 // pred_fallthru
      _
  $region6: #{_lambda_.37} parent=0 // loop_footer
    %s13 = sadd.s32 1, %s9
  $region7: #{_lambda_.37} parent=0 // loop_footer_branch
    %8 = sbr.rel target = $region3
  $region8: #{_lambda_.37} parent=0 // loop_exit
    _

// kernel: _lambda_.39
$region0: #{_lambda_.39}
  #allocation0 [shape = 'u32[]', space=smem, size = 0x4, offset = 0x4, fixed_abs, tag = 'smem constant byte address 0x4 - core index']
  #allocation1 [shape = 'u32[144,128]{1,0:T(1,128)}', space=vmem, size = 0x12000, scoped, tag = 'internal scratch']
  %s0 = inlined_call_operand.vmem [shape: bf16[32,40], index: 0, kind: input, shape index: {}]
  %s1 = inlined_call_operand.vmem [shape: bf16[40,240], index: 1, kind: input, shape index: {}]
  %s2 = inlined_call_operand.vmem [shape: f32[1,240], index: 2, kind: input, shape index: {}]
  %s3 = inlined_call_operand.vmem [shape: bf16[32,240], index: 3, kind: output, shape index: {}]
  %s4 = sld [smem:[#allocation0]]
  $region45: #{_lambda_.39} parent=0
    _
  %s6 = ssub.s32 1, %s4
  %s7 = scalar_select 0, %s6, %s4
  loop: start=0, step=1, limit=4
  $region2: #{_lambda_.39} parent=0 // loop_pre_header
    _
  $region3: #{_lambda_.39} parent=0 // loop_header
    %s9 = sphi 0, %s13
    %p10 = scmp.ge.s32.totalorder %s9, 4
    %s19 = sphi 0, %s21
    %s22 = sphi 0, %s19
    %s23 = sphi 0, %s22
    %s39 = sphi 0, %s23
    %s43 = sphi 0, %s43
    %s45 = sphi 0, %s43
    %s46 = sphi 0, %s45
    %s60 = sphi 0, %s46
    %s64 = sphi 0, %s64
    %s66 = sphi 0, %s64
    %s67 = sphi 0, %s66
    %s81 = sphi 0, %s67
    %s87 = sphi 0, %s89
    %s90 = sphi 0, %s87
    %s91 = sphi 0, %s90
    %s107 = sphi 0, %s91
  $region4: #{_lambda_.39} parent=0 // loop_header_branch
    %12 = sbr.rel (%p10) target = $region8
  $region5: #{_lambda_.39} parent=0 // loop_body
    %s14 = ssub.s32 %s9, 1
    %s15 = ssub.s32 %s9, 2
    %s16 = sadd.s32 %s9, 1
    %s17 = ssub.s32 %s9, %s16
    %p18 = scmp.eq.s32.totalorder %s17, 0
    %s20 = sadd.s32 %s19, 1
    %s21 = scalar_select %p18, %s19, %s20
    %p24 = pneg %p18
    %p25 = scmp.eq.s32.totalorder %s9, 1
    %p26 = por %p24, %p25
    %p27 = scmp.ne.s32.totalorder %s19, %s22
    %p28 = scmp.eq.s32.totalorder %s9, 0
    %p29 = por %p27, %p28
    %p30 = scmp.ne.s32.totalorder %s19, %s22
    %p31 = scmp.eq.s32.totalorder %s14, 1
    %p32 = por %p30, %p31
    %p33 = scmp.ne.s32.totalorder %s22, %s23
    %p34 = scmp.eq.s32.totalorder %s14, 0
    %p35 = por %p33, %p34
    %p36 = scmp.ne.s32.totalorder %s22, %s23
    %p37 = scmp.eq.s32.totalorder %s15, 1
    %p38 = por %p36, %p37
    %p40 = scmp.ne.s32.totalorder %s23, %s39
    %p41 = scmp.eq.s32.totalorder %s15, 0
    %p42 = por %p40, %p41
    %s44 = sadd.s32 %s43, 1
    %p47 = scmp.eq.s32.totalorder %s9, 1
    %p48 = scmp.ne.s32.totalorder %s43, %s45
    %p49 = scmp.eq.s32.totalorder %s9, 0
    %p50 = por %p48, %p49
    %p51 = scmp.ne.s32.totalorder %s43, %s45
    %p52 = scmp.eq.s32.totalorder %s14, 1
    %p53 = por %p51, %p52
    %p54 = scmp.ne.s32.totalorder %s45, %s46
    %p55 = scmp.eq.s32.totalorder %s14, 0
    %p56 = por %p54, %p55
    %p57 = scmp.ne.s32.totalorder %s45, %s46
    %p58 = scmp.eq.s32.totalorder %s15, 1
    %p59 = por %p57, %p58
    %p61 = scmp.ne.s32.totalorder %s46, %s60
    %p62 = scmp.eq.s32.totalorder %s15, 0
    %p63 = por %p61, %p62
    %s65 = sadd.s32 %s64, 1
    %p68 = scmp.eq.s32.totalorder %s9, 1
    %p69 = scmp.ne.s32.totalorder %s64, %s66
    %p70 = scmp.eq.s32.totalorder %s9, 0
    %p71 = por %p69, %p70
    %p72 = scmp.ne.s32.totalorder %s64, %s66
    %p73 = scmp.eq.s32.totalorder %s14, 1
    %p74 = por %p72, %p73
    %p75 = scmp.ne.s32.totalorder %s66, %s67
    %p76 = scmp.eq.s32.totalorder %s14, 0
    %p77 = por %p75, %p76
    %p78 = scmp.ne.s32.totalorder %s66, %s67
    %p79 = scmp.eq.s32.totalorder %s15, 1
    %p80 = por %p78, %p79
    %p82 = scmp.ne.s32.totalorder %s67, %s81
    %p83 = scmp.eq.s32.totalorder %s15, 0
    %p84 = por %p82, %p83
    %s85 = ssub.s32 %s9, %s16
    %p86 = scmp.eq.s32.totalorder %s85, 0
    %s88 = sadd.s32 %s87, 1
    %s89 = scalar_select %p86, %s87, %s88
    %p92 = pneg %p86
    %p93 = scmp.eq.s32.totalorder %s9, 1
    %p94 = por %p92, %p93
    %p95 = scmp.ne.s32.totalorder %s87, %s90
    %p96 = scmp.eq.s32.totalorder %s9, 0
    %p97 = por %p95, %p96
    %p98 = scmp.ne.s32.totalorder %s87, %s90
    %p99 = scmp.eq.s32.totalorder %s14, 1
    %p100 = por %p98, %p99
    %p101 = scmp.ne.s32.totalorder %s90, %s91
    %p102 = scmp.eq.s32.totalorder %s14, 0
    %p103 = por %p101, %p102
    %p104 = scmp.ne.s32.totalorder %s90, %s91
    %p105 = scmp.eq.s32.totalorder %s15, 1
    %p106 = por %p104, %p105
    %p108 = scmp.ne.s32.totalorder %s91, %s107
    %p109 = scmp.eq.s32.totalorder %s15, 0
    %p110 = por %p108, %p109
    %p111 = scmp.le.s32.totalorder 1, %s9
    %p112 = scmp.lt.s32.totalorder %s9, 3
    %p113 = pnand %p111, %p112
    %p114 = pneg %p113
    // Predicated region
    $region9: #{_lambda_.39} parent=5 // pred_check
      _
    $region10: #{_lambda_.39} parent=5 // pred_check_branch
      %116 = sbr.rel (%p113) target = $region12
    $region11: #{_lambda_.39} parent=5 // pred_region
      %s117 = ssub.s32 %s9, 1
      // Predicated region
      $region13: #{_lambda_.39} parent=11 // pred_check
        %p118 = pneg %p56
      $region14: #{_lambda_.39} parent=11 // pred_check_branch
        %120 = sbr.rel (%p118) target = $region16
      $region15: #{_lambda_.39} parent=11 // pred_region
        _
      $region16: #{_lambda_.39} parent=11 // pred_fallthru
        _
      // Predicated region
      $region17: #{_lambda_.39} parent=11 // pred_check
        %p121 = pneg %p77
      $region18: #{_lambda_.39} parent=11 // pred_check_branch
        %123 = sbr.rel (%p121) target = $region20
      $region19: #{_lambda_.39} parent=11 // pred_region
        _
      $region20: #{_lambda_.39} parent=11 // pred_fallthru
        _
    $region12: #{_lambda_.39} parent=5 // pred_fallthru
      _
    %p124 = scmp.lt.s32.totalorder %s9, 2
    // Predicated region
    $region21: #{_lambda_.39} parent=5 // pred_check
      %p125 = pneg %p124
    $region22: #{_lambda_.39} parent=5 // pred_check_branch
      %127 = sbr.rel (%p125) target = $region24
    $region23: #{_lambda_.39} parent=5 // pred_region
      // Predicated region
      $region25: #{_lambda_.39} parent=23 // pred_check
        %p128 = pneg %p29
      $region26: #{_lambda_.39} parent=23 // pred_check_branch
        %130 = sbr.rel (%p128) target = $region28
      $region27: #{_lambda_.39} parent=23 // pred_region
        %s131 = smul.u32 2, %s9
        %p132 = scmp.lt.s32.totalorder %s131, 3
        %s133 = scalar_select %p132, %s131, 3
        %s134 = smul.addr %s133, 4
        %s135 = scalar_lea.vmem %s0, %s134
        %s136 = smul.u32 2, %s9
      $region28: #{_lambda_.39} parent=23 // pred_fallthru
        _
    $region24: #{_lambda_.39} parent=5 // pred_fallthru
      _
    %p137 = scmp.le.s32.totalorder 1, %s9
    %p138 = scmp.lt.s32.totalorder %s9, 3
    %p139 = pnand %p137, %p138
    %p140 = pneg %p139
    // Predicated region
    $region29: #{_lambda_.39} parent=5 // pred_check
      _
    $region30: #{_lambda_.39} parent=5 // pred_check_branch
      %142 = sbr.rel (%p139) target = $region32
    $region31: #{_lambda_.39} parent=5 // pred_region
      %s143 = ssub.s32 %s9, 1
      %s144 = smul.u32 2, %s14
      %p145 = scmp.lt.s32.totalorder %s144, 3
      %s146 = scalar_select %p145, %s144, 3
      %s147 = smul.addr %s146, 4
      %s148 = scalar_lea.vmem %s0, %s147
      %p149 = pneg %p35
      %p150 = pneg %p32
      %p151 = pneg %p56
      %p152 = pneg %p53
      %p153 = pneg %p77
      %p154 = pneg %p74
      %p155 = pneg %p103
      %p156 = pneg %p100
      %s157 = smul.u32 2, %s14
      %p158 = scmp.lt.s32.totalorder %s157, 3
      %s159 = scalar_select %p158, %s157, 3
      %s160 = smul.addr %s159, 2
      %s161 = smul.addr %s160, 4
      %s162 = scalar_lea.vmem %s3, %s161
      %s163 = smul.u32 2, %s14
      %p164 = scmp.lt.s32.totalorder %s163, 3
      %s165 = scalar_select %p164, %s163, 3
      %s166 = smul.addr %s165, 4
      %s167 = scalar_lea.vmem %s0, %s166
      %s168 = smul.u32 2, %s14
      %s169 = smul.u32 2, %s14
      %p170 = scmp.lt.s32.totalorder %s169, 3
      %s171 = scalar_select %p170, %s169, 3
      %s172 = smul.addr %s171, 2
      %s173 = smul.addr %s172, 4
      %s174 = scalar_lea.vmem %s3, %s173
      %s175 = smul.u32 2, %s14
      %v177 = vld [vmem:[%s167] sm:$0xf]
      %v178 = vld [vmem:[%s167 + $0x4] sm:$0xf]
      %v179 = vld [vmem:[%s1] sm:$0xff]
      %v180 = vld [vmem:[%s1 + $0x8] sm:$0xff]
      %v181 = vld [vmem:[%s1 + $0x10] sm:$0xff]
      %v182 = vld [vmem:[%s1 + $0x18] sm:$0xff]
      %v183 = vld [vmem:[%s1 + $0x20] sm:$0xff]
      %v184 = vld [vmem:[%s2] sm:$0x3]
      %v186 = vlaneseq
      %v187 = vshrl.u32 %v186, 7
      %v188 = vsub.s32 0, %v187
      %v189 = vrot.slane %v184, %v188
      %v190 = vlaneseq
      %v191 = vshrl.u32 %v190, 7
      %v192 = vsub.s32 1, %v191
      %v193 = vrot.slane %v184, %v192
      %v198 = vunpack.c.l.b16 %v177
      %v199 = vunpack.c.l.b16 %v178
      %v200 = vpack.c.b16 %v199, %v198
      %v206 = vunpack.c.l.b16 %v179
      %v207 = vunpack.c.h.b16 %v179
      %v208 = vunpack.c.l.b16 %v180
      %v209 = vunpack.c.h.b16 %v180
      %v210 = vunpack.c.l.b16 %v181
      %v211 = vunpack.c.h.b16 %v181
      %v212 = vunpack.c.l.b16 %v182
      %v213 = vunpack.c.h.b16 %v182
      %v214 = vunpack.c.l.b16 %v183
      %v215 = vunpack.c.h.b16 %v183
      %v216 = vpack.c.b16 %v208, %v206
      %v217 = vpack.c.b16 %v209, %v207
      %v218 = vpack.c.b16 %v212, %v210
      %v219 = vpack.c.b16 %v213, %v211
      %v220 = vpack.c.b16 %v214, %v214
      %v221 = vpack.c.b16 %v215, %v215
      %vm226 = vcmask 326656
      %v228 = vsel %vm226, %v200, 0
      %vm230 = vcmask 1043456
      %v232 = vsel %vm230, %v220, 0
      %v235 = vsel %vm230, %v221, 0
      %237 = vmatprep.subr.bf16.mxu0 0
      %238 = vmatpush1.bf16.msra.mxu0 0
      %239 = vmatprep.subr.bf16.mxu0 0
      %240 = vmatpush1.bf16.msra.mxu0 0
      %241 = vmatprep.subr.bf16.mxu0 0
      %242 = vmatpush1.bf16.msra.mxu0 0
      %243 = vmatprep.subr.bf16.mxu0 0
      %244 = vmatpush1.bf16.msra.mxu0 0
      %245 = vmatprep.subr.bf16.mxu0 0
      %246 = vmatpush1.bf16.msra.mxu0 0
      %247 = vmatprep.subr.bf16.mxu0 %v235
      %248 = vmatpush1.bf16.msra.mxu0 %v232
      %249 = vmatprep.subr.bf16.mxu0 %v219
      %250 = vmatpush1.bf16.msra.mxu0 %v218
      %251 = vmatprep.subr.bf16.mxu0 %v217
      %252 = vmatpush1.bf16.msra.mxu0 %v216
      %253 = vmatprep.subr.bf16.mxu0 0
      %254 = vmatpush2.bf16.msra.mxu0 0
      %255 = vmatprep.subr.bf16.mxu0 0
      %256 = vmatpush2.bf16.msra.mxu0 0
      %257 = vmatprep.subr.bf16.mxu0 0
      %258 = vmatpush2.bf16.msra.mxu0 0
      %259 = vmatprep.subr.bf16.mxu0 0
      %260 = vmatpush2.bf16.msra.mxu0 0
      %261 = vmatprep.subr.bf16.mxu0 0
      %262 = vmatpush2.bf16.msra.mxu0 0
      %263 = vmatprep.subr.bf16.mxu0 0
      %264 = vmatpush2.bf16.msra.mxu0 0
      %265 = vmatprep.subr.bf16.mxu0 0
      %266 = vmatpush2.bf16.msra.mxu0 0
      %267 = vmatprep.subr.bf16.mxu0 0
      %268 = vmatpush2.bf16.msra.mxu0 0
      %269 = vmatprep.mubr.bf16.mxu0 0
      %270 = vmatmul.mubr.bf16.gmra.mxu0 %v228
      %v271 = vpop.f32.mrf.mxu0
      %v272 = vadd.f32 %v189, %v271
      %v273 = vpop.f32.mrf.mxu0
      %v274 = vadd.f32 %v193, %v273
      %v275 = vpop.f32.mrf.mxu0
      %v276 = vadd.f32 %v189, %v275
      %v277 = vpop.f32.mrf.mxu0
      %v278 = vadd.f32 %v193, %v277
      %279 = vdwg.mxu0
      %v280 = vmax.f32 %v272, 0.0
      %v281 = vmax.f32 %v274, 0.0
      %v282 = vmax.f32 %v276, 0.0
      %v283 = vmax.f32 %v278, 0.0
      %v284 = vpack.c.bf16 %v282, %v280
      %v285 = vpack.c.bf16 %v283, %v281
      %v288 = vunpack.c.l.b16 %v284
      %v289 = vunpack.c.l.b16 %v285
      %v290 = vunpack.c.h.b16 %v284
      %v291 = vunpack.c.h.b16 %v285
      %v292 = vpack.c.b16 %v289, %v288
      %v293 = vpack.c.b16 %v291, %v290
      %vm296 = vcmask 916484
      %vm297 = vmor %vm296, %vm230
      %298 = vst.msk [vmem:[%s174] sm:$0xff] %vm297, %v292
      %299 = vst.msk [vmem:[%s174 + $0x8] sm:$0xff] %vm297, %v293
      %s300 = smul.u32 2, %s14
      %p301 = scmp.lt.s32.totalorder %s300, 3
      %s302 = scalar_select %p301, %s300, 3
      %s303 = smul.addr %s302, 2
      %s304 = smul.addr %s303, 4
      %s305 = scalar_lea.vmem %s3, %s304
      // Predicated region
      $region33: #{_lambda_.39} parent=31 // pred_check
        %p306 = pneg %p100
      $region34: #{_lambda_.39} parent=31 // pred_check_branch
        %308 = sbr.rel (%p306) target = $region36
      $region35: #{_lambda_.39} parent=31 // pred_region
        %s309 = smul.u32 2, %s14
      $region36: #{_lambda_.39} parent=31 // pred_fallthru
        _
    $region32: #{_lambda_.39} parent=5 // pred_fallthru
      _
    %p310 = scmp.le.s32.totalorder 2, %s9
    // Predicated region
    $region37: #{_lambda_.39} parent=5 // pred_check
      %p311 = pneg %p310
    $region38: #{_lambda_.39} parent=5 // pred_check_branch
      %313 = sbr.rel (%p311) target = $region40
    $region39: #{_lambda_.39} parent=5 // pred_region
      %s314 = ssub.s32 %s9, 2
      // Predicated region
      $region41: #{_lambda_.39} parent=39 // pred_check
        %p315 = pneg %p106
      $region42: #{_lambda_.39} parent=39 // pred_check_branch
        %317 = sbr.rel (%p315) target = $region44
      $region43: #{_lambda_.39} parent=39 // pred_region
        %s318 = smul.u32 2, %s15
        %p319 = scmp.lt.s32.totalorder %s318, 3
        %s320 = scalar_select %p319, %s318, 3
        %s321 = smul.addr %s320, 2
        %s322 = smul.addr %s321, 4
        %s323 = scalar_lea.vmem %s3, %s322
      $region44: #{_lambda_.39} parent=39 // pred_fallthru
        _
    $region40: #{_lambda_.39} parent=5 // pred_fallthru
      _
  $region6: #{_lambda_.39} parent=0 // loop_footer
    %s13 = sadd.s32 1, %s9
  $region7: #{_lambda_.39} parent=0 // loop_footer_branch
    %8 = sbr.rel target = $region3
  $region8: #{_lambda_.39} parent=0 // loop_exit
    _

// kernel: _lambda_.40
$region0: #{_lambda_.40}
  #allocation0 [shape = 'u32[]', space=smem, size = 0x4, offset = 0x4, fixed_abs, tag = 'smem constant byte address 0x4 - core index']
  #allocation1 [shape = 'u32[144,128]{1,0:T(1,128)}', space=vmem, size = 0x12000, scoped, tag = 'internal scratch']
  %s0 = inlined_call_operand.vmem [shape: bf16[8,240], index: 0, kind: input, shape index: {}]
  %s1 = inlined_call_operand.vmem [shape: bf16[240,80], index: 1, kind: input, shape index: {}]
  %s2 = inlined_call_operand.vmem [shape: f32[1,80], index: 2, kind: input, shape index: {}]
  %s3 = inlined_call_operand.vmem [shape: bf16[8,80], index: 3, kind: output, shape index: {}]
  %s4 = sld [smem:[#allocation0]]
  $region22: #{_lambda_.40} parent=0
    _
  %s6 = ssub.s32 1, %s4
  %s7 = scalar_select 0, %s6, %s4
  // Predicated region
  $region2: #{_lambda_.40} parent=0 // pred_check
    _
  $region3: #{_lambda_.40} parent=0 // pred_check_branch
    %9 = sbr.rel (0) target = $region5
  $region4: #{_lambda_.40} parent=0 // pred_region
    _
  $region5: #{_lambda_.40} parent=0 // pred_fallthru
    _
  // Predicated region
  $region6: #{_lambda_.40} parent=0 // pred_check
    _
  $region7: #{_lambda_.40} parent=0 // pred_check_branch
    %11 = sbr.rel (0) target = $region9
  $region8: #{_lambda_.40} parent=0 // pred_region
    _
  $region9: #{_lambda_.40} parent=0 // pred_fallthru
    _
  // Predicated region
  $region10: #{_lambda_.40} parent=0 // pred_check
    _
  $region11: #{_lambda_.40} parent=0 // pred_check_branch
    %13 = sbr.rel (0) target = $region13
  $region12: #{_lambda_.40} parent=0 // pred_region
    _
  $region13: #{_lambda_.40} parent=0 // pred_fallthru
    _
  %v15 = vld [vmem:[%s0] sm:$0xff]
  %v16 = vld [vmem:[%s1] sm:$0xf]
  %v17 = vld [vmem:[%s1 + $0x4] sm:$0xf]
  %v18 = vld [vmem:[%s1 + $0x8] sm:$0xf]
  %v19 = vld [vmem:[%s1 + $0xc] sm:$0xf]
  %v20 = vld [vmem:[%s1 + $0x10] sm:$0xf]
  %v21 = vld [vmem:[%s1 + $0x14] sm:$0xf]
  %v22 = vld [vmem:[%s1 + $0x18] sm:$0xf]
  %v23 = vld [vmem:[%s1 + $0x1c] sm:$0xf]
  %v24 = vld [vmem:[%s1 + $0x20] sm:$0xf]
  %v25 = vld [vmem:[%s1 + $0x24] sm:$0xf]
  %v26 = vld [vmem:[%s1 + $0x28] sm:$0xf]
  %v27 = vld [vmem:[%s1 + $0x2c] sm:$0xf]
  %v28 = vld [vmem:[%s1 + $0x30] sm:$0xf]
  %v29 = vld [vmem:[%s1 + $0x34] sm:$0xf]
  %v30 = vld [vmem:[%s1 + $0x38] sm:$0xf]
  %v31 = vld [vmem:[%s1 + $0x3c] sm:$0xf]
  %v32 = vld [vmem:[%s1 + $0x40] sm:$0xf]
  %v33 = vld [vmem:[%s1 + $0x44] sm:$0xf]
  %v34 = vld [vmem:[%s1 + $0x48] sm:$0xf]
  %v35 = vld [vmem:[%s1 + $0x4c] sm:$0xf]
  %v36 = vld [vmem:[%s1 + $0x50] sm:$0xf]
  %v37 = vld [vmem:[%s1 + $0x54] sm:$0xf]
  %v38 = vld [vmem:[%s1 + $0x58] sm:$0xf]
  %v39 = vld [vmem:[%s1 + $0x5c] sm:$0xf]
  %v40 = vld [vmem:[%s1 + $0x60] sm:$0xf]
  %v41 = vld [vmem:[%s1 + $0x64] sm:$0xf]
  %v42 = vld [vmem:[%s1 + $0x68] sm:$0xf]
  %v43 = vld [vmem:[%s1 + $0x6c] sm:$0xf]
  %v44 = vld [vmem:[%s1 + $0x70] sm:$0xf]
  %v45 = vld [vmem:[%s1 + $0x74] sm:$0xf]
  %v46 = vld [vmem:[%s2] sm:$0x1]
  %v48 = vlaneseq
  %v49 = vshrl.u32 %v48, 7
  %v50 = vsub.s32 0, %v49
  %v51 = vrot.slane %v46, %v50
  %v54 = vunpack.c.l.b16 %v15
  %v55 = vunpack.c.h.b16 %v15
  %v56 = vpack.c.b16 %v54, %v54
  %v57 = vpack.c.b16 %v55, %v55
  %v89 = vunpack.c.l.b16 %v16
  %v90 = vunpack.c.l.b16 %v17
  %v91 = vunpack.c.l.b16 %v18
  %v92 = vunpack.c.l.b16 %v19
  %v93 = vunpack.c.l.b16 %v20
  %v94 = vunpack.c.l.b16 %v21
  %v95 = vunpack.c.l.b16 %v22
  %v96 = vunpack.c.l.b16 %v23
  %v97 = vunpack.c.l.b16 %v24
  %v98 = vunpack.c.l.b16 %v25
  %v99 = vunpack.c.l.b16 %v26
  %v100 = vunpack.c.l.b16 %v27
  %v101 = vunpack.c.l.b16 %v28
  %v102 = vunpack.c.l.b16 %v29
  %v103 = vunpack.c.l.b16 %v30
  %v104 = vunpack.c.l.b16 %v31
  %v105 = vunpack.c.l.b16 %v32
  %v106 = vunpack.c.l.b16 %v33
  %v107 = vunpack.c.l.b16 %v34
  %v108 = vunpack.c.l.b16 %v35
  %v109 = vunpack.c.l.b16 %v36
  %v110 = vunpack.c.l.b16 %v37
  %v111 = vunpack.c.l.b16 %v38
  %v112 = vunpack.c.l.b16 %v39
  %v113 = vunpack.c.l.b16 %v40
  %v114 = vunpack.c.l.b16 %v41
  %v115 = vunpack.c.l.b16 %v42
  %v116 = vunpack.c.l.b16 %v43
  %v117 = vunpack.c.l.b16 %v44
  %v118 = vunpack.c.l.b16 %v45
  %v119 = vpack.c.b16 %v90, %v89
  %v120 = vpack.c.b16 %v92, %v91
  %v121 = vpack.c.b16 %v94, %v93
  %v122 = vpack.c.b16 %v96, %v95
  %v123 = vpack.c.b16 %v98, %v97
  %v124 = vpack.c.b16 %v100, %v99
  %v125 = vpack.c.b16 %v102, %v101
  %v126 = vpack.c.b16 %v104, %v103
  %v127 = vpack.c.b16 %v106, %v105
  %v128 = vpack.c.b16 %v108, %v107
  %v129 = vpack.c.b16 %v110, %v109
  %v130 = vpack.c.b16 %v112, %v111
  %v131 = vpack.c.b16 %v114, %v113
  %v132 = vpack.c.b16 %v116, %v115
  %v133 = vpack.c.b16 %v118, %v117
  %vm149 = vcmask 916480
  %v151 = vsel %vm149, %v57, 0
  %153 = vmatprep.subr.bf16.mxu0 0
  %154 = vmatpush1.bf16.msra.mxu0 %v126
  %155 = vmatprep.subr.bf16.mxu0 0
  %156 = vmatpush1.bf16.msra.mxu0 %v125
  %157 = vmatprep.subr.bf16.mxu0 0
  %158 = vmatpush1.bf16.msra.mxu0 %v124
  %159 = vmatprep.subr.bf16.mxu0 0
  %160 = vmatpush1.bf16.msra.mxu0 %v123
  %161 = vmatprep.subr.bf16.mxu0 0
  %162 = vmatpush1.bf16.msra.mxu0 %v122
  %163 = vmatprep.subr.bf16.mxu0 0
  %164 = vmatpush1.bf16.msra.mxu0 %v121
  %165 = vmatprep.subr.bf16.mxu0 0
  %166 = vmatpush1.bf16.msra.mxu0 %v120
  %167 = vmatprep.subr.bf16.mxu0 0
  %168 = vmatpush1.bf16.msra.mxu0 %v119
  %169 = vmatprep.subr.bf16.mxu0 0
  %170 = vmatpush2.bf16.msra.mxu0 0
  %171 = vmatprep.subr.bf16.mxu0 0
  %172 = vmatpush2.bf16.msra.mxu0 %v133
  %173 = vmatprep.subr.bf16.mxu0 0
  %174 = vmatpush2.bf16.msra.mxu0 %v132
  %175 = vmatprep.subr.bf16.mxu0 0
  %176 = vmatpush2.bf16.msra.mxu0 %v131
  %177 = vmatprep.subr.bf16.mxu0 0
  %178 = vmatpush2.bf16.msra.mxu0 %v130
  %179 = vmatprep.subr.bf16.mxu0 0
  %180 = vmatpush2.bf16.msra.mxu0 %v129
  %181 = vmatprep.subr.bf16.mxu0 0
  %182 = vmatpush2.bf16.msra.mxu0 %v128
  %183 = vmatprep.subr.bf16.mxu0 0
  %184 = vmatpush2.bf16.msra.mxu0 %v127
  %185 = vmatprep.mubr.bf16.mxu0 %v151
  %186 = vmatmul.mubr.bf16.gmra.mxu0 %v56
  %v187 = vpop.f32.mrf.mxu0
  %v188 = vadd.f32 %v51, %v187
  %v189 = vpop.f32.mrf.mxu0
  %v190 = vpop.f32.mrf.mxu0
  %v191 = vpop.f32.mrf.mxu0
  %192 = vdwg.mxu0
  %v193 = vpack.c.bf16 %v188, %v188
  %vm194 = vcmask 650240
  %195 = vst.msk [vmem:[%s3] sm:$0xf] %vm194, %v193
  // Predicated region
  $region14: #{_lambda_.40} parent=0 // pred_check
    _
  $region15: #{_lambda_.40} parent=0 // pred_check_branch
    %197 = sbr.rel (0) target = $region17
  $region16: #{_lambda_.40} parent=0 // pred_region
    _
  $region17: #{_lambda_.40} parent=0 // pred_fallthru
    _
  // Predicated region
  $region18: #{_lambda_.40} parent=0 // pred_check
    _
  $region19: #{_lambda_.40} parent=0 // pred_check_branch
    %199 = sbr.rel (0) target = $region21
  $region20: #{_lambda_.40} parent=0 // pred_region
    _
  $region21: #{_lambda_.40} parent=0 // pred_fallthru
    _

// kernel: _lambda_.41
$region0: #{_lambda_.41}
  #allocation0 [shape = 'u32[]', space=smem, size = 0x4, offset = 0x4, fixed_abs, tag = 'smem constant byte address 0x4 - core index']
  #allocation1 [shape = 'u32[144,128]{1,0:T(1,128)}', space=vmem, size = 0x12000, scoped, tag = 'internal scratch']
  %s0 = inlined_call_operand.vmem [shape: bf16[8,80], index: 0, kind: input, shape index: {}]
  %s1 = inlined_call_operand.vmem [shape: bf16[80,480], index: 1, kind: input, shape index: {}]
  %s2 = inlined_call_operand.vmem [shape: f32[1,480], index: 2, kind: input, shape index: {}]
  %s3 = inlined_call_operand.vmem [shape: bf16[8,480], index: 3, kind: output, shape index: {}]
  %s4 = sld [smem:[#allocation0]]
  $region22: #{_lambda_.41} parent=0
    _
  %s6 = ssub.s32 1, %s4
  %s7 = scalar_select 0, %s6, %s4
  // Predicated region
  $region2: #{_lambda_.41} parent=0 // pred_check
    _
  $region3: #{_lambda_.41} parent=0 // pred_check_branch
    %9 = sbr.rel (0) target = $region5
  $region4: #{_lambda_.41} parent=0 // pred_region
    _
  $region5: #{_lambda_.41} parent=0 // pred_fallthru
    _
  // Predicated region
  $region6: #{_lambda_.41} parent=0 // pred_check
    _
  $region7: #{_lambda_.41} parent=0 // pred_check_branch
    %11 = sbr.rel (0) target = $region9
  $region8: #{_lambda_.41} parent=0 // pred_region
    _
  $region9: #{_lambda_.41} parent=0 // pred_fallthru
    _
  // Predicated region
  $region10: #{_lambda_.41} parent=0 // pred_check
    _
  $region11: #{_lambda_.41} parent=0 // pred_check_branch
    %13 = sbr.rel (0) target = $region13
  $region12: #{_lambda_.41} parent=0 // pred_region
    _
  $region13: #{_lambda_.41} parent=0 // pred_fallthru
    _
  %v15 = vld [vmem:[%s0] sm:$0xf]
  %v16 = vld [vmem:[%s1] sm:$0xff]
  %v17 = vld [vmem:[%s1 + $0x8] sm:$0xff]
  %v18 = vld [vmem:[%s1 + $0x10] sm:$0xff]
  %v19 = vld [vmem:[%s1 + $0x18] sm:$0xff]
  %v20 = vld [vmem:[%s1 + $0x20] sm:$0xff]
  %v21 = vld [vmem:[%s1 + $0x28] sm:$0xff]
  %v22 = vld [vmem:[%s1 + $0x30] sm:$0xff]
  %v23 = vld [vmem:[%s1 + $0x38] sm:$0xff]
  %v24 = vld [vmem:[%s1 + $0x40] sm:$0xff]
  %v25 = vld [vmem:[%s1 + $0x48] sm:$0xff]
  %v26 = vld [vmem:[%s1 + $0x50] sm:$0xff]
  %v27 = vld [vmem:[%s1 + $0x58] sm:$0xff]
  %v28 = vld [vmem:[%s1 + $0x60] sm:$0xff]
  %v29 = vld [vmem:[%s1 + $0x68] sm:$0xff]
  %v30 = vld [vmem:[%s1 + $0x70] sm:$0xff]
  %v31 = vld [vmem:[%s1 + $0x78] sm:$0xff]
  %v32 = vld [vmem:[%s1 + $0x80] sm:$0xff]
  %v33 = vld [vmem:[%s1 + $0x88] sm:$0xff]
  %v34 = vld [vmem:[%s1 + $0x90] sm:$0xff]
  %v35 = vld [vmem:[%s1 + $0x98] sm:$0xff]
  %v36 = vld [vmem:[%s2] sm:$0xf]
  %v38 = vlaneseq
  %v39 = vshrl.u32 %v38, 7
  %v40 = vsub.s32 0, %v39
  %v41 = vrot.slane %v36, %v40
  %v42 = vlaneseq
  %v43 = vshrl.u32 %v42, 7
  %v44 = vsub.s32 1, %v43
  %v45 = vrot.slane %v36, %v44
  %v46 = vlaneseq
  %v47 = vshrl.u32 %v46, 7
  %v48 = vsub.s32 2, %v47
  %v49 = vrot.slane %v36, %v48
  %v50 = vlaneseq
  %v51 = vshrl.u32 %v50, 7
  %v52 = vsub.s32 3, %v51
  %v53 = vrot.slane %v36, %v52
  %v78 = vunpack.c.l.b16 %v16
  %v79 = vunpack.c.h.b16 %v16
  %v80 = vunpack.c.l.b16 %v17
  %v81 = vunpack.c.h.b16 %v17
  %v82 = vunpack.c.l.b16 %v18
  %v83 = vunpack.c.h.b16 %v18
  %v84 = vunpack.c.l.b16 %v19
  %v85 = vunpack.c.h.b16 %v19
  %v86 = vunpack.c.l.b16 %v20
  %v87 = vunpack.c.h.b16 %v20
  %v88 = vunpack.c.l.b16 %v21
  %v89 = vunpack.c.h.b16 %v21
  %v90 = vunpack.c.l.b16 %v22
  %v91 = vunpack.c.h.b16 %v22
  %v92 = vunpack.c.l.b16 %v23
  %v93 = vunpack.c.h.b16 %v23
  %v94 = vunpack.c.l.b16 %v24
  %v95 = vunpack.c.h.b16 %v24
  %v96 = vunpack.c.l.b16 %v25
  %v97 = vunpack.c.h.b16 %v25
  %v98 = vunpack.c.l.b16 %v26
  %v99 = vunpack.c.h.b16 %v26
  %v100 = vunpack.c.l.b16 %v27
  %v101 = vunpack.c.h.b16 %v27
  %v102 = vunpack.c.l.b16 %v28
  %v103 = vunpack.c.h.b16 %v28
  %v104 = vunpack.c.l.b16 %v29
  %v105 = vunpack.c.h.b16 %v29
  %v106 = vunpack.c.l.b16 %v30
  %v107 = vunpack.c.h.b16 %v30
  %v108 = vunpack.c.l.b16 %v31
  %v109 = vunpack.c.h.b16 %v31
  %v110 = vunpack.c.l.b16 %v32
  %v111 = vunpack.c.h.b16 %v32
  %v112 = vunpack.c.l.b16 %v33
  %v113 = vunpack.c.h.b16 %v33
  %v114 = vunpack.c.l.b16 %v34
  %v115 = vunpack.c.h.b16 %v34
  %v116 = vunpack.c.l.b16 %v35
  %v117 = vunpack.c.h.b16 %v35
  %v118 = vpack.c.b16 %v82, %v78
  %v119 = vpack.c.b16 %v83, %v79
  %v120 = vpack.c.b16 %v84, %v80
  %v121 = vpack.c.b16 %v85, %v81
  %v122 = vpack.c.b16 %v90, %v86
  %v123 = vpack.c.b16 %v91, %v87
  %v124 = vpack.c.b16 %v92, %v88
  %v125 = vpack.c.b16 %v93, %v89
  %v126 = vpack.c.b16 %v98, %v94
  %v127 = vpack.c.b16 %v99, %v95
  %v128 = vpack.c.b16 %v100, %v96
  %v129 = vpack.c.b16 %v101, %v97
  %v130 = vpack.c.b16 %v106, %v102
  %v131 = vpack.c.b16 %v107, %v103
  %v132 = vpack.c.b16 %v108, %v104
  %v133 = vpack.c.b16 %v109, %v105
  %v134 = vpack.c.b16 %v114, %v110
  %v135 = vpack.c.b16 %v115, %v111
  %v136 = vpack.c.b16 %v116, %v112
  %v137 = vpack.c.b16 %v117, %v113
  %vm158 = vcmask 654336
  %v160 = vsel %vm158, %v15, 0
  %162 = vmatprep.subr.bf16.mxu0 0
  %163 = vmatpush1.bf16.msra.mxu0 0
  %164 = vmatprep.subr.bf16.mxu0 0
  %165 = vmatpush1.bf16.msra.mxu0 0
  %166 = vmatprep.subr.bf16.mxu0 0
  %167 = vmatpush1.bf16.msra.mxu0 0
  %168 = vmatprep.subr.bf16.mxu0 %v135
  %169 = vmatpush1.bf16.msra.mxu0 %v134
  %170 = vmatprep.subr.bf16.mxu0 %v131
  %171 = vmatpush1.bf16.msra.mxu0 %v130
  %172 = vmatprep.subr.bf16.mxu0 %v127
  %173 = vmatpush1.bf16.msra.mxu0 %v126
  %174 = vmatprep.subr.bf16.mxu0 %v123
  %175 = vmatpush1.bf16.msra.mxu0 %v122
  %176 = vmatprep.subr.bf16.mxu0 %v119
  %177 = vmatpush1.bf16.msra.mxu0 %v118
  %178 = vmatprep.subr.bf16.mxu0 0
  %179 = vmatpush2.bf16.msra.mxu0 0
  %180 = vmatprep.subr.bf16.mxu0 0
  %181 = vmatpush2.bf16.msra.mxu0 0
  %182 = vmatprep.subr.bf16.mxu0 0
  %183 = vmatpush2.bf16.msra.mxu0 0
  %184 = vmatprep.subr.bf16.mxu0 0
  %185 = vmatpush2.bf16.msra.mxu0 0
  %186 = vmatprep.subr.bf16.mxu0 0
  %187 = vmatpush2.bf16.msra.mxu0 0
  %188 = vmatprep.subr.bf16.mxu0 0
  %189 = vmatpush2.bf16.msra.mxu0 0
  %190 = vmatprep.subr.bf16.mxu0 0
  %191 = vmatpush2.bf16.msra.mxu0 0
  %192 = vmatprep.subr.bf16.mxu0 0
  %193 = vmatpush2.bf16.msra.mxu0 0
  %194 = vmatprep.mubr.bf16.mxu0 0
  %195 = vmatmul.mubr.bf16.gmra.mxu0 %v160
  %v196 = vpop.f32.mrf.mxu0
  %v197 = vadd.f32 %v41, %v196
  %v198 = vpop.f32.mrf.mxu0
  %v199 = vadd.f32 %v45, %v198
  %v200 = vpop.f32.mrf.mxu0
  %v201 = vpop.f32.mrf.mxu0
  %202 = vdwg.mxu0
  %203 = vmatprep.subr.bf16.mxu0 0
  %204 = vmatpush1.bf16.msra.mxu0 0
  %205 = vmatprep.subr.bf16.mxu0 0
  %206 = vmatpush1.bf16.msra.mxu0 0
  %207 = vmatprep.subr.bf16.mxu0 0
  %208 = vmatpush1.bf16.msra.mxu0 0
  %209 = vmatprep.subr.bf16.mxu0 %v137
  %210 = vmatpush1.bf16.msra.mxu0 %v136
  %211 = vmatprep.subr.bf16.mxu0 %v133
  %212 = vmatpush1.bf16.msra.mxu0 %v132
  %213 = vmatprep.subr.bf16.mxu0 %v129
  %214 = vmatpush1.bf16.msra.mxu0 %v128
  %215 = vmatprep.subr.bf16.mxu0 %v125
  %216 = vmatpush1.bf16.msra.mxu0 %v124
  %217 = vmatprep.subr.bf16.mxu0 %v121
  %218 = vmatpush1.bf16.msra.mxu0 %v120
  %219 = vmatprep.subr.bf16.mxu0 0
  %220 = vmatpush2.bf16.msra.mxu0 0
  %221 = vmatprep.subr.bf16.mxu0 0
  %222 = vmatpush2.bf16.msra.mxu0 0
  %223 = vmatprep.subr.bf16.mxu0 0
  %224 = vmatpush2.bf16.msra.mxu0 0
  %225 = vmatprep.subr.bf16.mxu0 0
  %226 = vmatpush2.bf16.msra.mxu0 0
  %227 = vmatprep.subr.bf16.mxu0 0
  %228 = vmatpush2.bf16.msra.mxu0 0
  %229 = vmatprep.subr.bf16.mxu0 0
  %230 = vmatpush2.bf16.msra.mxu0 0
  %231 = vmatprep.subr.bf16.mxu0 0
  %232 = vmatpush2.bf16.msra.mxu0 0
  %233 = vmatprep.subr.bf16.mxu0 0
  %234 = vmatpush2.bf16.msra.mxu0 0
  %235 = vmatprep.mubr.bf16.mxu0 0
  %236 = vmatmul.mubr.bf16.gmra.mxu0 %v160
  %v237 = vpop.f32.mrf.mxu0
  %v238 = vadd.f32 %v49, %v237
  %v239 = vpop.f32.mrf.mxu0
  %v240 = vadd.f32 %v53, %v239
  %v241 = vpop.f32.mrf.mxu0
  %v242 = vpop.f32.mrf.mxu0
  %243 = vdwg.mxu0
  %v244 = vmax.f32 %v197, 0.0
  %v245 = vmax.f32 %v199, 0.0
  %v246 = vmax.f32 %v238, 0.0
  %v247 = vmax.f32 %v240, 0.0
  %v248 = vpack.c.bf16 %v244, %v244
  %v249 = vpack.c.bf16 %v245, %v245
  %v250 = vpack.c.bf16 %v246, %v246
  %v251 = vpack.c.bf16 %v247, %v247
  %v256 = vunpack.c.l.b16 %v248
  %v257 = vunpack.c.l.b16 %v249
  %v258 = vunpack.c.l.b16 %v250
  %v259 = vunpack.c.l.b16 %v251
  %v260 = vpack.c.b16 %v257, %v256
  %v261 = vpack.c.b16 %v259, %v258
  %264 = vst [vmem:[%s3] sm:$0xff] %v260
  %vm265 = vcmask 1043456
  %vm266 = vcmask 785412
  %vm267 = vmor %vm266, %vm265
  %268 = vst.msk [vmem:[%s3 + $0x8] sm:$0xff] %vm267, %v261
  // Predicated region
  $region14: #{_lambda_.41} parent=0 // pred_check
    _
  $region15: #{_lambda_.41} parent=0 // pred_check_branch
    %270 = sbr.rel (0) target = $region17
  $region16: #{_lambda_.41} parent=0 // pred_region
    _
  $region17: #{_lambda_.41} parent=0 // pred_fallthru
    _
  // Predicated region
  $region18: #{_lambda_.41} parent=0 // pred_check
    _
  $region19: #{_lambda_.41} parent=0 // pred_check_branch
    %272 = sbr.rel (0) target = $region21
  $region20: #{_lambda_.41} parent=0 // pred_region
    _
  $region21: #{_lambda_.41} parent=0 // pred_fallthru
    _

// kernel: _lambda_.42
$region0: #{_lambda_.42}
  #allocation0 [shape = 'u32[]', space=smem, size = 0x4, offset = 0x4, fixed_abs, tag = 'smem constant byte address 0x4 - core index']
  #allocation1 [shape = 'u32[144,128]{1,0:T(1,128)}', space=vmem, size = 0x12000, scoped, tag = 'internal scratch']
  %s0 = inlined_call_operand.vmem [shape: bf16[8,480], index: 0, kind: input, shape index: {}]
  %s1 = inlined_call_operand.vmem [shape: bf16[480,80], index: 1, kind: input, shape index: {}]
  %s2 = inlined_call_operand.vmem [shape: f32[1,80], index: 2, kind: input, shape index: {}]
  %s3 = inlined_call_operand.vmem [shape: bf16[8,80], index: 3, kind: output, shape index: {}]
  %s4 = sld [smem:[#allocation0]]
  $region22: #{_lambda_.42} parent=0
    _
  %s6 = ssub.s32 1, %s4
  %s7 = scalar_select 0, %s6, %s4
  // Predicated region
  $region2: #{_lambda_.42} parent=0 // pred_check
    _
  $region3: #{_lambda_.42} parent=0 // pred_check_branch
    %9 = sbr.rel (0) target = $region5
  $region4: #{_lambda_.42} parent=0 // pred_region
    _
  $region5: #{_lambda_.42} parent=0 // pred_fallthru
    _
  // Predicated region
  $region6: #{_lambda_.42} parent=0 // pred_check
    _
  $region7: #{_lambda_.42} parent=0 // pred_check_branch
    %11 = sbr.rel (0) target = $region9
  $region8: #{_lambda_.42} parent=0 // pred_region
    _
  $region9: #{_lambda_.42} parent=0 // pred_fallthru
    _
  // Predicated region
  $region10: #{_lambda_.42} parent=0 // pred_check
    _
  $region11: #{_lambda_.42} parent=0 // pred_check_branch
    %13 = sbr.rel (0) target = $region13
  $region12: #{_lambda_.42} parent=0 // pred_region
    _
  $region13: #{_lambda_.42} parent=0 // pred_fallthru
    _
  %v15 = vld [vmem:[%s0] sm:$0xff]
  %v16 = vld [vmem:[%s0 + $0x8] sm:$0xff]
  %v17 = vld [vmem:[%s1] sm:$0xf]
  %v18 = vld [vmem:[%s1 + $0x4] sm:$0xf]
  %v19 = vld [vmem:[%s1 + $0x8] sm:$0xf]
  %v20 = vld [vmem:[%s1 + $0xc] sm:$0xf]
  %v21 = vld [vmem:[%s1 + $0x10] sm:$0xf]
  %v22 = vld [vmem:[%s1 + $0x14] sm:$0xf]
  %v23 = vld [vmem:[%s1 + $0x18] sm:$0xf]
  %v24 = vld [vmem:[%s1 + $0x1c] sm:$0xf]
  %v25 = vld [vmem:[%s1 + $0x20] sm:$0xf]
  %v26 = vld [vmem:[%s1 + $0x24] sm:$0xf]
  %v27 = vld [vmem:[%s1 + $0x28] sm:$0xf]
  %v28 = vld [vmem:[%s1 + $0x2c] sm:$0xf]
  %v29 = vld [vmem:[%s1 + $0x30] sm:$0xf]
  %v30 = vld [vmem:[%s1 + $0x34] sm:$0xf]
  %v31 = vld [vmem:[%s1 + $0x38] sm:$0xf]
  %v32 = vld [vmem:[%s1 + $0x3c] sm:$0xf]
  %v33 = vld [vmem:[%s1 + $0x40] sm:$0xf]
  %v34 = vld [vmem:[%s1 + $0x44] sm:$0xf]
  %v35 = vld [vmem:[%s1 + $0x48] sm:$0xf]
  %v36 = vld [vmem:[%s1 + $0x4c] sm:$0xf]
  %v37 = vld [vmem:[%s1 + $0x50] sm:$0xf]
  %v38 = vld [vmem:[%s1 + $0x54] sm:$0xf]
  %v39 = vld [vmem:[%s1 + $0x58] sm:$0xf]
  %v40 = vld [vmem:[%s1 + $0x5c] sm:$0xf]
  %v41 = vld [vmem:[%s1 + $0x60] sm:$0xf]
  %v42 = vld [vmem:[%s1 + $0x64] sm:$0xf]
  %v43 = vld [vmem:[%s1 + $0x68] sm:$0xf]
  %v44 = vld [vmem:[%s1 + $0x6c] sm:$0xf]
  %v45 = vld [vmem:[%s1 + $0x70] sm:$0xf]
  %v46 = vld [vmem:[%s1 + $0x74] sm:$0xf]
  %v47 = vld [vmem:[%s1 + $0x78] sm:$0xf]
  %v48 = vld [vmem:[%s1 + $0x7c] sm:$0xf]
  %v49 = vld [vmem:[%s1 + $0x80] sm:$0xf]
  %v50 = vld [vmem:[%s1 + $0x84] sm:$0xf]
  %v51 = vld [vmem:[%s1 + $0x88] sm:$0xf]
  %v52 = vld [vmem:[%s1 + $0x8c] sm:$0xf]
  %v53 = vld [vmem:[%s1 + $0x90] sm:$0xf]
  %v54 = vld [vmem:[%s1 + $0x94] sm:$0xf]
  %v55 = vld [vmem:[%s1 + $0x98] sm:$0xf]
  %v56 = vld [vmem:[%s1 + $0x9c] sm:$0xf]
  %v57 = vld [vmem:[%s1 + $0xa0] sm:$0xf]
  %v58 = vld [vmem:[%s1 + $0xa4] sm:$0xf]
  %v59 = vld [vmem:[%s1 + $0xa8] sm:$0xf]
  %v60 = vld [vmem:[%s1 + $0xac] sm:$0xf]
  %v61 = vld [vmem:[%s1 + $0xb0] sm:$0xf]
  %v62 = vld [vmem:[%s1 + $0xb4] sm:$0xf]
  %v63 = vld [vmem:[%s1 + $0xb8] sm:$0xf]
  %v64 = vld [vmem:[%s1 + $0xbc] sm:$0xf]
  %v65 = vld [vmem:[%s1 + $0xc0] sm:$0xf]
  %v66 = vld [vmem:[%s1 + $0xc4] sm:$0xf]
  %v67 = vld [vmem:[%s1 + $0xc8] sm:$0xf]
  %v68 = vld [vmem:[%s1 + $0xcc] sm:$0xf]
  %v69 = vld [vmem:[%s1 + $0xd0] sm:$0xf]
  %v70 = vld [vmem:[%s1 + $0xd4] sm:$0xf]
  %v71 = vld [vmem:[%s1 + $0xd8] sm:$0xf]
  %v72 = vld [vmem:[%s1 + $0xdc] sm:$0xf]
  %v73 = vld [vmem:[%s1 + $0xe0] sm:$0xf]
  %v74 = vld [vmem:[%s1 + $0xe4] sm:$0xf]
  %v75 = vld [vmem:[%s1 + $0xe8] sm:$0xf]
  %v76 = vld [vmem:[%s1 + $0xec] sm:$0xf]
  %v77 = vld [vmem:[%s2] sm:$0x1]
  %v79 = vlaneseq
  %v80 = vshrl.u32 %v79, 7
  %v81 = vsub.s32 0, %v80
  %v82 = vrot.slane %v77, %v81
  %v86 = vunpack.c.l.b16 %v15
  %v87 = vunpack.c.h.b16 %v15
  %v88 = vunpack.c.l.b16 %v16
  %v89 = vunpack.c.h.b16 %v16
  %v90 = vpack.c.b16 %v86, %v86
  %v91 = vpack.c.b16 %v87, %v87
  %v92 = vpack.c.b16 %v88, %v88
  %v93 = vpack.c.b16 %v89, %v89
  %v157 = vunpack.c.l.b16 %v17
  %v158 = vunpack.c.l.b16 %v18
  %v159 = vunpack.c.l.b16 %v19
  %v160 = vunpack.c.l.b16 %v20
  %v161 = vunpack.c.l.b16 %v21
  %v162 = vunpack.c.l.b16 %v22
  %v163 = vunpack.c.l.b16 %v23
  %v164 = vunpack.c.l.b16 %v24
  %v165 = vunpack.c.l.b16 %v25
  %v166 = vunpack.c.l.b16 %v26
  %v167 = vunpack.c.l.b16 %v27
  %v168 = vunpack.c.l.b16 %v28
  %v169 = vunpack.c.l.b16 %v29
  %v170 = vunpack.c.l.b16 %v30
  %v171 = vunpack.c.l.b16 %v31
  %v172 = vunpack.c.l.b16 %v32
  %v173 = vunpack.c.l.b16 %v33
  %v174 = vunpack.c.l.b16 %v34
  %v175 = vunpack.c.l.b16 %v35
  %v176 = vunpack.c.l.b16 %v36
  %v177 = vunpack.c.l.b16 %v37
  %v178 = vunpack.c.l.b16 %v38
  %v179 = vunpack.c.l.b16 %v39
  %v180 = vunpack.c.l.b16 %v40
  %v181 = vunpack.c.l.b16 %v41
  %v182 = vunpack.c.l.b16 %v42
  %v183 = vunpack.c.l.b16 %v43
  %v184 = vunpack.c.l.b16 %v44
  %v185 = vunpack.c.l.b16 %v45
  %v186 = vunpack.c.l.b16 %v46
  %v187 = vunpack.c.l.b16 %v47
  %v188 = vunpack.c.l.b16 %v48
  %v189 = vunpack.c.l.b16 %v49
  %v190 = vunpack.c.l.b16 %v50
  %v191 = vunpack.c.l.b16 %v51
  %v192 = vunpack.c.l.b16 %v52
  %v193 = vunpack.c.l.b16 %v53
  %v194 = vunpack.c.l.b16 %v54
  %v195 = vunpack.c.l.b16 %v55
  %v196 = vunpack.c.l.b16 %v56
  %v197 = vunpack.c.l.b16 %v57
  %v198 = vunpack.c.l.b16 %v58
  %v199 = vunpack.c.l.b16 %v59
  %v200 = vunpack.c.l.b16 %v60
  %v201 = vunpack.c.l.b16 %v61
  %v202 = vunpack.c.l.b16 %v62
  %v203 = vunpack.c.l.b16 %v63
  %v204 = vunpack.c.l.b16 %v64
  %v205 = vunpack.c.l.b16 %v65
  %v206 = vunpack.c.l.b16 %v66
  %v207 = vunpack.c.l.b16 %v67
  %v208 = vunpack.c.l.b16 %v68
  %v209 = vunpack.c.l.b16 %v69
  %v210 = vunpack.c.l.b16 %v70
  %v211 = vunpack.c.l.b16 %v71
  %v212 = vunpack.c.l.b16 %v72
  %v213 = vunpack.c.l.b16 %v73
  %v214 = vunpack.c.l.b16 %v74
  %v215 = vunpack.c.l.b16 %v75
  %v216 = vunpack.c.l.b16 %v76
  %v217 = vpack.c.b16 %v158, %v157
  %v218 = vpack.c.b16 %v160, %v159
  %v219 = vpack.c.b16 %v162, %v161
  %v220 = vpack.c.b16 %v164, %v163
  %v221 = vpack.c.b16 %v166, %v165
  %v222 = vpack.c.b16 %v168, %v167
  %v223 = vpack.c.b16 %v170, %v169
  %v224 = vpack.c.b16 %v172, %v171
  %v225 = vpack.c.b16 %v174, %v173
  %v226 = vpack.c.b16 %v176, %v175
  %v227 = vpack.c.b16 %v178, %v177
  %v228 = vpack.c.b16 %v180, %v179
  %v229 = vpack.c.b16 %v182, %v181
  %v230 = vpack.c.b16 %v184, %v183
  %v231 = vpack.c.b16 %v186, %v185
  %v232 = vpack.c.b16 %v188, %v187
  %v233 = vpack.c.b16 %v190, %v189
  %v234 = vpack.c.b16 %v192, %v191
  %v235 = vpack.c.b16 %v194, %v193
  %v236 = vpack.c.b16 %v196, %v195
  %v237 = vpack.c.b16 %v198, %v197
  %v238 = vpack.c.b16 %v200, %v199
  %v239 = vpack.c.b16 %v202, %v201
  %v240 = vpack.c.b16 %v204, %v203
  %v241 = vpack.c.b16 %v206, %v205
  %v242 = vpack.c.b16 %v208, %v207
  %v243 = vpack.c.b16 %v210, %v209
  %v244 = vpack.c.b16 %v212, %v211
  %v245 = vpack.c.b16 %v214, %v213
  %v246 = vpack.c.b16 %v216, %v215
  %vm277 = vcmask 785408
  %v279 = vsel %vm277, %v93, 0
  %281 = vmatprep.subr.bf16.mxu0 0
  %282 = vmatpush1.bf16.msra.mxu0 %v224
  %283 = vmatprep.subr.bf16.mxu0 0
  %284 = vmatpush1.bf16.msra.mxu0 %v223
  %285 = vmatprep.subr.bf16.mxu0 0
  %286 = vmatpush1.bf16.msra.mxu0 %v222
  %287 = vmatprep.subr.bf16.mxu0 0
  %288 = vmatpush1.bf16.msra.mxu0 %v221
  %289 = vmatprep.subr.bf16.mxu0 0
  %290 = vmatpush1.bf16.msra.mxu0 %v220
  %291 = vmatprep.subr.bf16.mxu0 0
  %292 = vmatpush1.bf16.msra.mxu0 %v219
  %293 = vmatprep.subr.bf16.mxu0 0
  %294 = vmatpush1.bf16.msra.mxu0 %v218
  %295 = vmatprep.subr.bf16.mxu0 0
  %296 = vmatpush1.bf16.msra.mxu0 %v217
  %297 = vmatprep.subr.bf16.mxu0 0
  %298 = vmatpush2.bf16.msra.mxu0 %v232
  %299 = vmatprep.subr.bf16.mxu0 0
  %300 = vmatpush2.bf16.msra.mxu0 %v231
  %301 = vmatprep.subr.bf16.mxu0 0
  %302 = vmatpush2.bf16.msra.mxu0 %v230
  %303 = vmatprep.subr.bf16.mxu0 0
  %304 = vmatpush2.bf16.msra.mxu0 %v229
  %305 = vmatprep.subr.bf16.mxu0 0
  %306 = vmatpush2.bf16.msra.mxu0 %v228
  %307 = vmatprep.subr.bf16.mxu0 0
  %308 = vmatpush2.bf16.msra.mxu0 %v227
  %309 = vmatprep.subr.bf16.mxu0 0
  %310 = vmatpush2.bf16.msra.mxu0 %v226
  %311 = vmatprep.subr.bf16.mxu0 0
  %312 = vmatpush2.bf16.msra.mxu0 %v225
  %313 = vmatprep.mubr.bf16.mxu0 %v91
  %314 = vmatmul.mubr.bf16.gmra.mxu0 %v90
  %v315 = vpop.f32.mrf.mxu0
  %v316 = vadd.f32 %v82, %v315
  %v317 = vpop.f32.mrf.mxu0
  %v318 = vpop.f32.mrf.mxu0
  %v319 = vpop.f32.mrf.mxu0
  %320 = vdwg.mxu0
  %321 = vmatprep.subr.bf16.mxu0 0
  %322 = vmatpush1.bf16.msra.mxu0 %v240
  %323 = vmatprep.subr.bf16.mxu0 0
  %324 = vmatpush1.bf16.msra.mxu0 %v239
  %325 = vmatprep.subr.bf16.mxu0 0
  %326 = vmatpush1.bf16.msra.mxu0 %v238
  %327 = vmatprep.subr.bf16.mxu0 0
  %328 = vmatpush1.bf16.msra.mxu0 %v237
  %329 = vmatprep.subr.bf16.mxu0 0
  %330 = vmatpush1.bf16.msra.mxu0 %v236
  %331 = vmatprep.subr.bf16.mxu0 0
  %332 = vmatpush1.bf16.msra.mxu0 %v235
  %333 = vmatprep.subr.bf16.mxu0 0
  %334 = vmatpush1.bf16.msra.mxu0 %v234
  %335 = vmatprep.subr.bf16.mxu0 0
  %336 = vmatpush1.bf16.msra.mxu0 %v233
  %337 = vmatprep.subr.bf16.mxu0 0
  %338 = vmatpush2.bf16.msra.mxu0 0
  %339 = vmatprep.subr.bf16.mxu0 0
  %340 = vmatpush2.bf16.msra.mxu0 0
  %341 = vmatprep.subr.bf16.mxu0 0
  %342 = vmatpush2.bf16.msra.mxu0 %v246
  %343 = vmatprep.subr.bf16.mxu0 0
  %344 = vmatpush2.bf16.msra.mxu0 %v245
  %345 = vmatprep.subr.bf16.mxu0 0
  %346 = vmatpush2.bf16.msra.mxu0 %v244
  %347 = vmatprep.subr.bf16.mxu0 0
  %348 = vmatpush2.bf16.msra.mxu0 %v243
  %349 = vmatprep.subr.bf16.mxu0 0
  %350 = vmatpush2.bf16.msra.mxu0 %v242
  %351 = vmatprep.subr.bf16.mxu0 0
  %352 = vmatpush2.bf16.msra.mxu0 %v241
  %353 = vmatprep.mubr.bf16.mxu0 %v279
  %354 = vmatmul.mubr.bf16.gmra.mxu0 %v92
  %v355 = vpop.f32.mrf.mxu0
  %v356 = vadd.f32 %v316, %v355
  %v357 = vpop.f32.mrf.mxu0
  %v358 = vpop.f32.mrf.mxu0
  %v359 = vpop.f32.mrf.mxu0
  %360 = vdwg.mxu0
  %v361 = vpack.c.bf16 %v356, %v356
  %vm362 = vcmask 650240
  %363 = vst.msk [vmem:[%s3] sm:$0xf] %vm362, %v361
  // Predicated region
  $region14: #{_lambda_.42} parent=0 // pred_check
    _
  $region15: #{_lambda_.42} parent=0 // pred_check_branch
    %365 = sbr.rel (0) target = $region17
  $region16: #{_lambda_.42} parent=0 // pred_region
    _
  $region17: #{_lambda_.42} parent=0 // pred_fallthru
    _
  // Predicated region
  $region18: #{_lambda_.42} parent=0 // pred_check
    _
  $region19: #{_lambda_.42} parent=0 // pred_check_branch
    %367 = sbr.rel (0) target = $region21
  $region20: #{_lambda_.42} parent=0 // pred_region
    _
  $region21: #{_lambda_.42} parent=0 // pred_fallthru
    _

// kernel: _lambda_.45
$region0: #{_lambda_.45}
  #allocation0 [shape = 'u32[]', space=smem, size = 0x4, offset = 0x4, fixed_abs, tag = 'smem constant byte address 0x4 - core index']
  #allocation1 [shape = 'u32[144,128]{1,0:T(1,128)}', space=vmem, size = 0x12000, scoped, tag = 'internal scratch']
  %s0 = inlined_call_operand.vmem [shape: bf16[8,720], index: 0, kind: input, shape index: {}]
  %s1 = inlined_call_operand.vmem [shape: bf16[720,320], index: 1, kind: input, shape index: {}]
  %s2 = inlined_call_operand.vmem [shape: f32[1,320], index: 2, kind: input, shape index: {}]
  %s3 = inlined_call_operand.vmem [shape: bf16[320,160], index: 3, kind: input, shape index: {}]
  %s4 = inlined_call_operand.vmem [shape: f32[1,160], index: 4, kind: input, shape index: {}]
  %s5 = inlined_call_operand.vmem [shape: bf16[8,160], index: 5, kind: output, shape index: {}]
  %s6 = sld [smem:[#allocation0]]
  $region30: #{_lambda_.45} parent=0
    _
  %s8 = ssub.s32 1, %s6
  %s9 = scalar_select 0, %s8, %s6
  // Predicated region
  $region2: #{_lambda_.45} parent=0 // pred_check
    _
  $region3: #{_lambda_.45} parent=0 // pred_check_branch
    %11 = sbr.rel (0) target = $region5
  $region4: #{_lambda_.45} parent=0 // pred_region
    _
  $region5: #{_lambda_.45} parent=0 // pred_fallthru
    _
  // Predicated region
  $region6: #{_lambda_.45} parent=0 // pred_check
    _
  $region7: #{_lambda_.45} parent=0 // pred_check_branch
    %13 = sbr.rel (0) target = $region9
  $region8: #{_lambda_.45} parent=0 // pred_region
    _
  $region9: #{_lambda_.45} parent=0 // pred_fallthru
    _
  // Predicated region
  $region10: #{_lambda_.45} parent=0 // pred_check
    _
  $region11: #{_lambda_.45} parent=0 // pred_check_branch
    %15 = sbr.rel (0) target = $region13
  $region12: #{_lambda_.45} parent=0 // pred_region
    _
  $region13: #{_lambda_.45} parent=0 // pred_fallthru
    _
  // Predicated region
  $region14: #{_lambda_.45} parent=0 // pred_check
    _
  $region15: #{_lambda_.45} parent=0 // pred_check_branch
    %17 = sbr.rel (0) target = $region17
  $region16: #{_lambda_.45} parent=0 // pred_region
    _
  $region17: #{_lambda_.45} parent=0 // pred_fallthru
    _
  // Predicated region
  $region18: #{_lambda_.45} parent=0 // pred_check
    _
  $region19: #{_lambda_.45} parent=0 // pred_check_branch
    %19 = sbr.rel (0) target = $region21
  $region20: #{_lambda_.45} parent=0 // pred_region
    _
  $region21: #{_lambda_.45} parent=0 // pred_fallthru
    _
  %v21 = vld [vmem:[%s0] sm:$0xff]
  %v22 = vld [vmem:[%s0 + $0x8] sm:$0xff]
  %v23 = vld [vmem:[%s0 + $0x10] sm:$0xff]
  %v24 = vld [vmem:[%s1] sm:$0xff]
  %v25 = vld [vmem:[%s1 + $0x8] sm:$0xf]
  %v26 = vld [vmem:[%s1 + $0xc] sm:$0xff]
  %v27 = vld [vmem:[%s1 + $0x14] sm:$0xf]
  %v28 = vld [vmem:[%s1 + $0x18] sm:$0xff]
  %v29 = vld [vmem:[%s1 + $0x20] sm:$0xf]
  %v30 = vld [vmem:[%s1 + $0x24] sm:$0xff]
  %v31 = vld [vmem:[%s1 + $0x2c] sm:$0xf]
  %v32 = vld [vmem:[%s1 + $0x30] sm:$0xff]
  %v33 = vld [vmem:[%s1 + $0x38] sm:$0xf]
  %v34 = vld [vmem:[%s1 + $0x3c] sm:$0xff]
  %v35 = vld [vmem:[%s1 + $0x44] sm:$0xf]
  %v36 = vld [vmem:[%s1 + $0x48] sm:$0xff]
  %v37 = vld [vmem:[%s1 + $0x50] sm:$0xf]
  %v38 = vld [vmem:[%s1 + $0x54] sm:$0xff]
  %v39 = vld [vmem:[%s1 + $0x5c] sm:$0xf]
  %v40 = vld [vmem:[%s1 + $0x60] sm:$0xff]
  %v41 = vld [vmem:[%s1 + $0x68] sm:$0xf]
  %v42 = vld [vmem:[%s1 + $0x6c] sm:$0xff]
  %v43 = vld [vmem:[%s1 + $0x74] sm:$0xf]
  %v44 = vld [vmem:[%s1 + $0x78] sm:$0xff]
  %v45 = vld [vmem:[%s1 + $0x80] sm:$0xf]
  %v46 = vld [vmem:[%s1 + $0x84] sm:$0xff]
  %v47 = vld [vmem:[%s1 + $0x8c] sm:$0xf]
  %v48 = vld [vmem:[%s1 + $0x90] sm:$0xff]
  %v49 = vld [vmem:[%s1 + $0x98] sm:$0xf]
  %v50 = vld [vmem:[%s1 + $0x9c] sm:$0xff]
  %v51 = vld [vmem:[%s1 + $0xa4] sm:$0xf]
  %v52 = vld [vmem:[%s1 + $0xa8] sm:$0xff]
  %v53 = vld [vmem:[%s1 + $0xb0] sm:$0xf]
  %v54 = vld [vmem:[%s1 + $0xb4] sm:$0xff]
  %v55 = vld [vmem:[%s1 + $0xbc] sm:$0xf]
  %v56 = vld [vmem:[%s1 + $0xc0] sm:$0xff]
  %v57 = vld [vmem:[%s1 + $0xc8] sm:$0xf]
  %v58 = vld [vmem:[%s1 + $0xcc] sm:$0xff]
  %v59 = vld [vmem:[%s1 + $0xd4] sm:$0xf]
  %v60 = vld [vmem:[%s1 + $0xd8] sm:$0xff]
  %v61 = vld [vmem:[%s1 + $0xe0] sm:$0xf]
  %v62 = vld [vmem:[%s1 + $0xe4] sm:$0xff]
  %v63 = vld [vmem:[%s1 + $0xec] sm:$0xf]
  %v64 = vld [vmem:[%s1 + $0xf0] sm:$0xff]
  %v65 = vld [vmem:[%s1 + $0xf8] sm:$0xf]
  %v66 = vld [vmem:[%s1 + $0xfc] sm:$0xff]
  %v67 = vld [vmem:[%s1 + $0x104] sm:$0xf]
  %v68 = vld [vmem:[%s1 + $0x108] sm:$0xff]
  %v69 = vld [vmem:[%s1 + $0x110] sm:$0xf]
  %v70 = vld [vmem:[%s1 + $0x114] sm:$0xff]
  %v71 = vld [vmem:[%s1 + $0x11c] sm:$0xf]
  %v72 = vld [vmem:[%s1 + $0x120] sm:$0xff]
  %v73 = vld [vmem:[%s1 + $0x128] sm:$0xf]
  %v74 = vld [vmem:[%s1 + $0x12c] sm:$0xff]
  %v75 = vld [vmem:[%s1 + $0x134] sm:$0xf]
  %v76 = vld [vmem:[%s1 + $0x138] sm:$0xff]
  %v77 = vld [vmem:[%s1 + $0x140] sm:$0xf]
  %v78 = vld [vmem:[%s1 + $0x144] sm:$0xff]
  %v79 = vld [vmem:[%s1 + $0x14c] sm:$0xf]
  %v80 = vld [vmem:[%s1 + $0x150] sm:$0xff]
  %v81 = vld [vmem:[%s1 + $0x158] sm:$0xf]
  %v82 = vld [vmem:[%s1 + $0x15c] sm:$0xff]
  %v83 = vld [vmem:[%s1 + $0x164] sm:$0xf]
  %v84 = vld [vmem:[%s1 + $0x168] sm:$0xff]
  %v85 = vld [vmem:[%s1 + $0x170] sm:$0xf]
  %v86 = vld [vmem:[%s1 + $0x174] sm:$0xff]
  %v87 = vld [vmem:[%s1 + $0x17c] sm:$0xf]
  %v88 = vld [vmem:[%s1 + $0x180] sm:$0xff]
  %v89 = vld [vmem:[%s1 + $0x188] sm:$0xf]
  %v90 = vld [vmem:[%s1 + $0x18c] sm:$0xff]
  %v91 = vld [vmem:[%s1 + $0x194] sm:$0xf]
  %v92 = vld [vmem:[%s1 + $0x198] sm:$0xff]
  %v93 = vld [vmem:[%s1 + $0x1a0] sm:$0xf]
  %v94 = vld [vmem:[%s1 + $0x1a4] sm:$0xff]
  %v95 = vld [vmem:[%s1 + $0x1ac] sm:$0xf]
  %v96 = vld [vmem:[%s1 + $0x1b0] sm:$0xff]
  %v97 = vld [vmem:[%s1 + $0x1b8] sm:$0xf]
  %v98 = vld [vmem:[%s1 + $0x1bc] sm:$0xff]
  %v99 = vld [vmem:[%s1 + $0x1c4] sm:$0xf]
  %v100 = vld [vmem:[%s1 + $0x1c8] sm:$0xff]
  %v101 = vld [vmem:[%s1 + $0x1d0] sm:$0xf]
  %v102 = vld [vmem:[%s1 + $0x1d4] sm:$0xff]
  %v103 = vld [vmem:[%s1 + $0x1dc] sm:$0xf]
  %v104 = vld [vmem:[%s1 + $0x1e0] sm:$0xff]
  %v105 = vld [vmem:[%s1 + $0x1e8] sm:$0xf]
  %v106 = vld [vmem:[%s1 + $0x1ec] sm:$0xff]
  %v107 = vld [vmem:[%s1 + $0x1f4] sm:$0xf]
  %v108 = vld [vmem:[%s1 + $0x1f8] sm:$0xff]
  %v109 = vld [vmem:[%s1 + $0x200] sm:$0xf]
  %v110 = vld [vmem:[%s1 + $0x204] sm:$0xff]
  %v111 = vld [vmem:[%s1 + $0x20c] sm:$0xf]
  %v112 = vld [vmem:[%s1 + $0x210] sm:$0xff]
  %v113 = vld [vmem:[%s1 + $0x218] sm:$0xf]
  %v114 = vld [vmem:[%s1 + $0x21c] sm:$0xff]
  %v115 = vld [vmem:[%s1 + $0x224] sm:$0xf]
  %v116 = vld [vmem:[%s1 + $0x228] sm:$0xff]
  %v117 = vld [vmem:[%s1 + $0x230] sm:$0xf]
  %v118 = vld [vmem:[%s1 + $0x234] sm:$0xff]
  %v119 = vld [vmem:[%s1 + $0x23c] sm:$0xf]
  %v120 = vld [vmem:[%s1 + $0x240] sm:$0xff]
  %v121 = vld [vmem:[%s1 + $0x248] sm:$0xf]
  %v122 = vld [vmem:[%s1 + $0x24c] sm:$0xff]
  %v123 = vld [vmem:[%s1 + $0x254] sm:$0xf]
  %v124 = vld [vmem:[%s1 + $0x258] sm:$0xff]
  %v125 = vld [vmem:[%s1 + $0x260] sm:$0xf]
  %v126 = vld [vmem:[%s1 + $0x264] sm:$0xff]
  %v127 = vld [vmem:[%s1 + $0x26c] sm:$0xf]
  %v128 = vld [vmem:[%s1 + $0x270] sm:$0xff]
  %v129 = vld [vmem:[%s1 + $0x278] sm:$0xf]
  %v130 = vld [vmem:[%s1 + $0x27c] sm:$0xff]
  %v131 = vld [vmem:[%s1 + $0x284] sm:$0xf]
  %v132 = vld [vmem:[%s1 + $0x288] sm:$0xff]
  %v133 = vld [vmem:[%s1 + $0x290] sm:$0xf]
  %v134 = vld [vmem:[%s1 + $0x294] sm:$0xff]
  %v135 = vld [vmem:[%s1 + $0x29c] sm:$0xf]
  %v136 = vld [vmem:[%s1 + $0x2a0] sm:$0xff]
  %v137 = vld [vmem:[%s1 + $0x2a8] sm:$0xf]
  %v138 = vld [vmem:[%s1 + $0x2ac] sm:$0xff]
  %v139 = vld [vmem:[%s1 + $0x2b4] sm:$0xf]
  %v140 = vld [vmem:[%s1 + $0x2b8] sm:$0xff]
  %v141 = vld [vmem:[%s1 + $0x2c0] sm:$0xf]
  %v142 = vld [vmem:[%s1 + $0x2c4] sm:$0xff]
  %v143 = vld [vmem:[%s1 + $0x2cc] sm:$0xf]
  %v144 = vld [vmem:[%s1 + $0x2d0] sm:$0xff]
  %v145 = vld [vmem:[%s1 + $0x2d8] sm:$0xf]
  %v146 = vld [vmem:[%s1 + $0x2dc] sm:$0xff]
  %v147 = vld [vmem:[%s1 + $0x2e4] sm:$0xf]
  %v148 = vld [vmem:[%s1 + $0x2e8] sm:$0xff]
  %v149 = vld [vmem:[%s1 + $0x2f0] sm:$0xf]
  %v150 = vld [vmem:[%s1 + $0x2f4] sm:$0xff]
  %v151 = vld [vmem:[%s1 + $0x2fc] sm:$0xf]
  %v152 = vld [vmem:[%s1 + $0x300] sm:$0xff]
  %v153 = vld [vmem:[%s1 + $0x308] sm:$0xf]
  %v154 = vld [vmem:[%s1 + $0x30c] sm:$0xff]
  %v155 = vld [vmem:[%s1 + $0x314] sm:$0xf]
  %v156 = vld [vmem:[%s1 + $0x318] sm:$0xff]
  %v157 = vld [vmem:[%s1 + $0x320] sm:$0xf]
  %v158 = vld [vmem:[%s1 + $0x324] sm:$0xff]
  %v159 = vld [vmem:[%s1 + $0x32c] sm:$0xf]
  %v160 = vld [vmem:[%s1 + $0x330] sm:$0xff]
  %v161 = vld [vmem:[%s1 + $0x338] sm:$0xf]
  %v162 = vld [vmem:[%s1 + $0x33c] sm:$0xff]
  %v163 = vld [vmem:[%s1 + $0x344] sm:$0xf]
  %v164 = vld [vmem:[%s1 + $0x348] sm:$0xff]
  %v165 = vld [vmem:[%s1 + $0x350] sm:$0xf]
  %v166 = vld [vmem:[%s1 + $0x354] sm:$0xff]
  %v167 = vld [vmem:[%s1 + $0x35c] sm:$0xf]
  %v168 = vld [vmem:[%s1 + $0x360] sm:$0xff]
  %v169 = vld [vmem:[%s1 + $0x368] sm:$0xf]
  %v170 = vld [vmem:[%s1 + $0x36c] sm:$0xff]
  %v171 = vld [vmem:[%s1 + $0x374] sm:$0xf]
  %v172 = vld [vmem:[%s1 + $0x378] sm:$0xff]
  %v173 = vld [vmem:[%s1 + $0x380] sm:$0xf]
  %v174 = vld [vmem:[%s1 + $0x384] sm:$0xff]
  %v175 = vld [vmem:[%s1 + $0x38c] sm:$0xf]
  %v176 = vld [vmem:[%s1 + $0x390] sm:$0xff]
  %v177 = vld [vmem:[%s1 + $0x398] sm:$0xf]
  %v178 = vld [vmem:[%s1 + $0x39c] sm:$0xff]
  %v179 = vld [vmem:[%s1 + $0x3a4] sm:$0xf]
  %v180 = vld [vmem:[%s1 + $0x3a8] sm:$0xff]
  %v181 = vld [vmem:[%s1 + $0x3b0] sm:$0xf]
  %v182 = vld [vmem:[%s1 + $0x3b4] sm:$0xff]
  %v183 = vld [vmem:[%s1 + $0x3bc] sm:$0xf]
  %v184 = vld [vmem:[%s1 + $0x3c0] sm:$0xff]
  %v185 = vld [vmem:[%s1 + $0x3c8] sm:$0xf]
  %v186 = vld [vmem:[%s1 + $0x3cc] sm:$0xff]
  %v187 = vld [vmem:[%s1 + $0x3d4] sm:$0xf]
  %v188 = vld [vmem:[%s1 + $0x3d8] sm:$0xff]
  %v189 = vld [vmem:[%s1 + $0x3e0] sm:$0xf]
  %v190 = vld [vmem:[%s1 + $0x3e4] sm:$0xff]
  %v191 = vld [vmem:[%s1 + $0x3ec] sm:$0xf]
  %v192 = vld [vmem:[%s1 + $0x3f0] sm:$0xff]
  %v193 = vld [vmem:[%s1 + $0x3f8] sm:$0xf]
  %v194 = vld [vmem:[%s1 + $0x3fc] sm:$0xff]
  %v195 = vld [vmem:[%s1 + $0x404] sm:$0xf]
  %v196 = vld [vmem:[%s1 + $0x408] sm:$0xff]
  %v197 = vld [vmem:[%s1 + $0x410] sm:$0xf]
  %v198 = vld [vmem:[%s1 + $0x414] sm:$0xff]
  %v199 = vld [vmem:[%s1 + $0x41c] sm:$0xf]
  %v200 = vld [vmem:[%s1 + $0x420] sm:$0xff]
  %v201 = vld [vmem:[%s1 + $0x428] sm:$0xf]
  %v202 = vld [vmem:[%s1 + $0x42c] sm:$0xff]
  %v203 = vld [vmem:[%s1 + $0x434] sm:$0xf]
  %v204 = vld [vmem:[%s2] sm:$0x7]
  %v206 = vlaneseq
  %v207 = vshrl.u32 %v206, 7
  %v208 = vsub.s32 0, %v207
  %v209 = vrot.slane %v204, %v208
  %v210 = vlaneseq
  %v211 = vshrl.u32 %v210, 7
  %v212 = vsub.s32 1, %v211
  %v213 = vrot.slane %v204, %v212
  %v214 = vlaneseq
  %v215 = vshrl.u32 %v214, 7
  %v216 = vsub.s32 2, %v215
  %v217 = vrot.slane %v204, %v216
  %v224 = vunpack.c.l.b16 %v21
  %v225 = vunpack.c.h.b16 %v21
  %v226 = vunpack.c.l.b16 %v22
  %v227 = vunpack.c.h.b16 %v22
  %v228 = vunpack.c.l.b16 %v23
  %v229 = vunpack.c.h.b16 %v23
  %v230 = vpack.c.b16 %v224, %v224
  %v231 = vpack.c.b16 %v225, %v225
  %v232 = vpack.c.b16 %v226, %v226
  %v233 = vpack.c.b16 %v227, %v227
  %v234 = vpack.c.b16 %v228, %v228
  %v235 = vpack.c.b16 %v229, %v229
  %v421 = vunpack.c.l.b16 %v24
  %v422 = vunpack.c.h.b16 %v24
  %v423 = vunpack.c.l.b16 %v25
  %v424 = vunpack.c.l.b16 %v26
  %v425 = vunpack.c.h.b16 %v26
  %v426 = vunpack.c.l.b16 %v27
  %v427 = vunpack.c.l.b16 %v28
  %v428 = vunpack.c.h.b16 %v28
  %v429 = vunpack.c.l.b16 %v29
  %v430 = vunpack.c.l.b16 %v30
  %v431 = vunpack.c.h.b16 %v30
  %v432 = vunpack.c.l.b16 %v31
  %v433 = vunpack.c.l.b16 %v32
  %v434 = vunpack.c.h.b16 %v32
  %v435 = vunpack.c.l.b16 %v33
  %v436 = vunpack.c.l.b16 %v34
  %v437 = vunpack.c.h.b16 %v34
  %v438 = vunpack.c.l.b16 %v35
  %v439 = vunpack.c.l.b16 %v36
  %v440 = vunpack.c.h.b16 %v36
  %v441 = vunpack.c.l.b16 %v37
  %v442 = vunpack.c.l.b16 %v38
  %v443 = vunpack.c.h.b16 %v38
  %v444 = vunpack.c.l.b16 %v39
  %v445 = vunpack.c.l.b16 %v40
  %v446 = vunpack.c.h.b16 %v40
  %v447 = vunpack.c.l.b16 %v41
  %v448 = vunpack.c.l.b16 %v42
  %v449 = vunpack.c.h.b16 %v42
  %v450 = vunpack.c.l.b16 %v43
  %v451 = vunpack.c.l.b16 %v44
  %v452 = vunpack.c.h.b16 %v44
  %v453 = vunpack.c.l.b16 %v45
  %v454 = vunpack.c.l.b16 %v46
  %v455 = vunpack.c.h.b16 %v46
  %v456 = vunpack.c.l.b16 %v47
  %v457 = vunpack.c.l.b16 %v48
  %v458 = vunpack.c.h.b16 %v48
  %v459 = vunpack.c.l.b16 %v49
  %v460 = vunpack.c.l.b16 %v50
  %v461 = vunpack.c.h.b16 %v50
  %v462 = vunpack.c.l.b16 %v51
  %v463 = vunpack.c.l.b16 %v52
  %v464 = vunpack.c.h.b16 %v52
  %v465 = vunpack.c.l.b16 %v53
  %v466 = vunpack.c.l.b16 %v54
  %v467 = vunpack.c.h.b16 %v54
  %v468 = vunpack.c.l.b16 %v55
  %v469 = vunpack.c.l.b16 %v56
  %v470 = vunpack.c.h.b16 %v56
  %v471 = vunpack.c.l.b16 %v57
  %v472 = vunpack.c.l.b16 %v58
  %v473 = vunpack.c.h.b16 %v58
  %v474 = vunpack.c.l.b16 %v59
  %v475 = vunpack.c.l.b16 %v60
  %v476 = vunpack.c.h.b16 %v60
  %v477 = vunpack.c.l.b16 %v61
  %v478 = vunpack.c.l.b16 %v62
  %v479 = vunpack.c.h.b16 %v62
  %v480 = vunpack.c.l.b16 %v63
  %v481 = vunpack.c.l.b16 %v64
  %v482 = vunpack.c.h.b16 %v64
  %v483 = vunpack.c.l.b16 %v65
  %v484 = vunpack.c.l.b16 %v66
  %v485 = vunpack.c.h.b16 %v66
  %v486 = vunpack.c.l.b16 %v67
  %v487 = vunpack.c.l.b16 %v68
  %v488 = vunpack.c.h.b16 %v68
  %v489 = vunpack.c.l.b16 %v69
  %v490 = vunpack.c.l.b16 %v70
  %v491 = vunpack.c.h.b16 %v70
  %v492 = vunpack.c.l.b16 %v71
  %v493 = vunpack.c.l.b16 %v72
  %v494 = vunpack.c.h.b16 %v72
  %v495 = vunpack.c.l.b16 %v73
  %v496 = vunpack.c.l.b16 %v74
  %v497 = vunpack.c.h.b16 %v74
  %v498 = vunpack.c.l.b16 %v75
  %v499 = vunpack.c.l.b16 %v76
  %v500 = vunpack.c.h.b16 %v76
  %v501 = vunpack.c.l.b16 %v77
  %v502 = vunpack.c.l.b16 %v78
  %v503 = vunpack.c.h.b16 %v78
  %v504 = vunpack.c.l.b16 %v79
  %v505 = vunpack.c.l.b16 %v80
  %v506 = vunpack.c.h.b16 %v80
  %v507 = vunpack.c.l.b16 %v81
  %v508 = vunpack.c.l.b16 %v82
  %v509 = vunpack.c.h.b16 %v82
  %v510 = vunpack.c.l.b16 %v83
  %v511 = vunpack.c.l.b16 %v84
  %v512 = vunpack.c.h.b16 %v84
  %v513 = vunpack.c.l.b16 %v85
  %v514 = vunpack.c.l.b16 %v86
  %v515 = vunpack.c.h.b16 %v86
  %v516 = vunpack.c.l.b16 %v87
  %v517 = vunpack.c.l.b16 %v88
  %v518 = vunpack.c.h.b16 %v88
  %v519 = vunpack.c.l.b16 %v89
  %v520 = vunpack.c.l.b16 %v90
  %v521 = vunpack.c.h.b16 %v90
  %v522 = vunpack.c.l.b16 %v91
  %v523 = vunpack.c.l.b16 %v92
  %v524 = vunpack.c.h.b16 %v92
  %v525 = vunpack.c.l.b16 %v93
  %v526 = vunpack.c.l.b16 %v94
  %v527 = vunpack.c.h.b16 %v94
  %v528 = vunpack.c.l.b16 %v95
  %v529 = vunpack.c.l.b16 %v96
  %v530 = vunpack.c.h.b16 %v96
  %v531 = vunpack.c.l.b16 %v97
  %v532 = vunpack.c.l.b16 %v98
  %v533 = vunpack.c.h.b16 %v98
  %v534 = vunpack.c.l.b16 %v99
  %v535 = vunpack.c.l.b16 %v100
  %v536 = vunpack.c.h.b16 %v100
  %v537 = vunpack.c.l.b16 %v101
  %v538 = vunpack.c.l.b16 %v102
  %v539 = vunpack.c.h.b16 %v102
  %v540 = vunpack.c.l.b16 %v103
  %v541 = vunpack.c.l.b16 %v104
  %v542 = vunpack.c.h.b16 %v104
  %v543 = vunpack.c.l.b16 %v105
  %v544 = vunpack.c.l.b16 %v106
  %v545 = vunpack.c.h.b16 %v106
  %v546 = vunpack.c.l.b16 %v107
  %v547 = vunpack.c.l.b16 %v108
  %v548 = vunpack.c.h.b16 %v108
  %v549 = vunpack.c.l.b16 %v109
  %v550 = vunpack.c.l.b16 %v110
  %v551 = vunpack.c.h.b16 %v110
  %v552 = vunpack.c.l.b16 %v111
  %v553 = vunpack.c.l.b16 %v112
  %v554 = vunpack.c.h.b16 %v112
  %v555 = vunpack.c.l.b16 %v113
  %v556 = vunpack.c.l.b16 %v114
  %v557 = vunpack.c.h.b16 %v114
  %v558 = vunpack.c.l.b16 %v115
  %v559 = vunpack.c.l.b16 %v116
  %v560 = vunpack.c.h.b16 %v116
  %v561 = vunpack.c.l.b16 %v117
  %v562 = vunpack.c.l.b16 %v118
  %v563 = vunpack.c.h.b16 %v118
  %v564 = vunpack.c.l.b16 %v119
  %v565 = vunpack.c.l.b16 %v120
  %v566 = vunpack.c.h.b16 %v120
  %v567 = vunpack.c.l.b16 %v121
  %v568 = vunpack.c.l.b16 %v122
  %v569 = vunpack.c.h.b16 %v122
  %v570 = vunpack.c.l.b16 %v123
  %v571 = vunpack.c.l.b16 %v124
  %v572 = vunpack.c.h.b16 %v124
  %v573 = vunpack.c.l.b16 %v125
  %v574 = vunpack.c.l.b16 %v126
  %v575 = vunpack.c.h.b16 %v126
  %v576 = vunpack.c.l.b16 %v127
  %v577 = vunpack.c.l.b16 %v128
  %v578 = vunpack.c.h.b16 %v128
  %v579 = vunpack.c.l.b16 %v129
  %v580 = vunpack.c.l.b16 %v130
  %v581 = vunpack.c.h.b16 %v130
  %v582 = vunpack.c.l.b16 %v131
  %v583 = vunpack.c.l.b16 %v132
  %v584 = vunpack.c.h.b16 %v132
  %v585 = vunpack.c.l.b16 %v133
  %v586 = vunpack.c.l.b16 %v134
  %v587 = vunpack.c.h.b16 %v134
  %v588 = vunpack.c.l.b16 %v135
  %v589 = vunpack.c.l.b16 %v136
  %v590 = vunpack.c.h.b16 %v136
  %v591 = vunpack.c.l.b16 %v137
  %v592 = vunpack.c.l.b16 %v138
  %v593 = vunpack.c.h.b16 %v138
  %v594 = vunpack.c.l.b16 %v139
  %v595 = vunpack.c.l.b16 %v140
  %v596 = vunpack.c.h.b16 %v140
  %v597 = vunpack.c.l.b16 %v141
  %v598 = vunpack.c.l.b16 %v142
  %v599 = vunpack.c.h.b16 %v142
  %v600 = vunpack.c.l.b16 %v143
  %v601 = vunpack.c.l.b16 %v144
  %v602 = vunpack.c.h.b16 %v144
  %v603 = vunpack.c.l.b16 %v145
  %v604 = vunpack.c.l.b16 %v146
  %v605 = vunpack.c.h.b16 %v146
  %v606 = vunpack.c.l.b16 %v147
  %v607 = vunpack.c.l.b16 %v148
  %v608 = vunpack.c.h.b16 %v148
  %v609 = vunpack.c.l.b16 %v149
  %v610 = vunpack.c.l.b16 %v150
  %v611 = vunpack.c.h.b16 %v150
  %v612 = vunpack.c.l.b16 %v151
  %v613 = vunpack.c.l.b16 %v152
  %v614 = vunpack.c.h.b16 %v152
  %v615 = vunpack.c.l.b16 %v153
  %v616 = vunpack.c.l.b16 %v154
  %v617 = vunpack.c.h.b16 %v154
  %v618 = vunpack.c.l.b16 %v155
  %v619 = vunpack.c.l.b16 %v156
  %v620 = vunpack.c.h.b16 %v156
  %v621 = vunpack.c.l.b16 %v157
  %v622 = vunpack.c.l.b16 %v158
  %v623 = vunpack.c.h.b16 %v158
  %v624 = vunpack.c.l.b16 %v159
  %v625 = vunpack.c.l.b16 %v160
  %v626 = vunpack.c.h.b16 %v160
  %v627 = vunpack.c.l.b16 %v161
  %v628 = vunpack.c.l.b16 %v162
  %v629 = vunpack.c.h.b16 %v162
  %v630 = vunpack.c.l.b16 %v163
  %v631 = vunpack.c.l.b16 %v164
  %v632 = vunpack.c.h.b16 %v164
  %v633 = vunpack.c.l.b16 %v165
  %v634 = vunpack.c.l.b16 %v166
  %v635 = vunpack.c.h.b16 %v166
  %v636 = vunpack.c.l.b16 %v167
  %v637 = vunpack.c.l.b16 %v168
  %v638 = vunpack.c.h.b16 %v168
  %v639 = vunpack.c.l.b16 %v169
  %v640 = vunpack.c.l.b16 %v170
  %v641 = vunpack.c.h.b16 %v170
  %v642 = vunpack.c.l.b16 %v171
  %v643 = vunpack.c.l.b16 %v172
  %v644 = vunpack.c.h.b16 %v172
  %v645 = vunpack.c.l.b16 %v173
  %v646 = vunpack.c.l.b16 %v174
  %v647 = vunpack.c.h.b16 %v174
  %v648 = vunpack.c.l.b16 %v175
  %v649 = vunpack.c.l.b16 %v176
  %v650 = vunpack.c.h.b16 %v176
  %v651 = vunpack.c.l.b16 %v177
  %v652 = vunpack.c.l.b16 %v178
  %v653 = vunpack.c.h.b16 %v178
  %v654 = vunpack.c.l.b16 %v179
  %v655 = vunpack.c.l.b16 %v180
  %v656 = vunpack.c.h.b16 %v180
  %v657 = vunpack.c.l.b16 %v181
  %v658 = vunpack.c.l.b16 %v182
  %v659 = vunpack.c.h.b16 %v182
  %v660 = vunpack.c.l.b16 %v183
  %v661 = vunpack.c.l.b16 %v184
  %v662 = vunpack.c.h.b16 %v184
  %v663 = vunpack.c.l.b16 %v185
  %v664 = vunpack.c.l.b16 %v186
  %v665 = vunpack.c.h.b16 %v186
  %v666 = vunpack.c.l.b16 %v187
  %v667 = vunpack.c.l.b16 %v188
  %v668 = vunpack.c.h.b16 %v188
  %v669 = vunpack.c.l.b16 %v189
  %v670 = vunpack.c.l.b16 %v190
  %v671 = vunpack.c.h.b16 %v190
  %v672 = vunpack.c.l.b16 %v191
  %v673 = vunpack.c.l.b16 %v192
  %v674 = vunpack.c.h.b16 %v192
  %v675 = vunpack.c.l.b16 %v193
  %v676 = vunpack.c.l.b16 %v194
  %v677 = vunpack.c.h.b16 %v194
  %v678 = vunpack.c.l.b16 %v195
  %v679 = vunpack.c.l.b16 %v196
  %v680 = vunpack.c.h.b16 %v196
  %v681 = vunpack.c.l.b16 %v197
  %v682 = vunpack.c.l.b16 %v198
  %v683 = vunpack.c.h.b16 %v198
  %v684 = vunpack.c.l.b16 %v199
  %v685 = vunpack.c.l.b16 %v200
  %v686 = vunpack.c.h.b16 %v200
  %v687 = vunpack.c.l.b16 %v201
  %v688 = vunpack.c.l.b16 %v202
  %v689 = vunpack.c.h.b16 %v202
  %v690 = vunpack.c.l.b16 %v203
  %v691 = vpack.c.b16 %v424, %v421
  %v692 = vpack.c.b16 %v425, %v422
  %v693 = vpack.c.b16 %v426, %v423
  %v694 = vpack.c.b16 %v430, %v427
  %v695 = vpack.c.b16 %v431, %v428
  %v696 = vpack.c.b16 %v432, %v429
  %v697 = vpack.c.b16 %v436, %v433
  %v698 = vpack.c.b16 %v437, %v434
  %v699 = vpack.c.b16 %v438, %v435
  %v700 = vpack.c.b16 %v442, %v439
  %v701 = vpack.c.b16 %v443, %v440
  %v702 = vpack.c.b16 %v444, %v441
  %v703 = vpack.c.b16 %v448, %v445
  %v704 = vpack.c.b16 %v449, %v446
  %v705 = vpack.c.b16 %v450, %v447
  %v706 = vpack.c.b16 %v454, %v451
  %v707 = vpack.c.b16 %v455, %v452
  %v708 = vpack.c.b16 %v456, %v453
  %v709 = vpack.c.b16 %v460, %v457
  %v710 = vpack.c.b16 %v461, %v458
  %v711 = vpack.c.b16 %v462, %v459
  %v712 = vpack.c.b16 %v466, %v463
  %v713 = vpack.c.b16 %v467, %v464
  %v714 = vpack.c.b16 %v468, %v465
  %v715 = vpack.c.b16 %v472, %v469
  %v716 = vpack.c.b16 %v473, %v470
  %v717 = vpack.c.b16 %v474, %v471
  %v718 = vpack.c.b16 %v478, %v475
  %v719 = vpack.c.b16 %v479, %v476
  %v720 = vpack.c.b16 %v480, %v477
  %v721 = vpack.c.b16 %v484, %v481
  %v722 = vpack.c.b16 %v485, %v482
  %v723 = vpack.c.b16 %v486, %v483
  %v724 = vpack.c.b16 %v490, %v487
  %v725 = vpack.c.b16 %v491, %v488
  %v726 = vpack.c.b16 %v492, %v489
  %v727 = vpack.c.b16 %v496, %v493
  %v728 = vpack.c.b16 %v497, %v494
  %v729 = vpack.c.b16 %v498, %v495
  %v730 = vpack.c.b16 %v502, %v499
  %v731 = vpack.c.b16 %v503, %v500
  %v732 = vpack.c.b16 %v504, %v501
  %v733 = vpack.c.b16 %v508, %v505
  %v734 = vpack.c.b16 %v509, %v506
  %v735 = vpack.c.b16 %v510, %v507
  %v736 = vpack.c.b16 %v514, %v511
  %v737 = vpack.c.b16 %v515, %v512
  %v738 = vpack.c.b16 %v516, %v513
  %v739 = vpack.c.b16 %v520, %v517
  %v740 = vpack.c.b16 %v521, %v518
  %v741 = vpack.c.b16 %v522, %v519
  %v742 = vpack.c.b16 %v526, %v523
  %v743 = vpack.c.b16 %v527, %v524
  %v744 = vpack.c.b16 %v528, %v525
  %v745 = vpack.c.b16 %v532, %v529
  %v746 = vpack.c.b16 %v533, %v530
  %v747 = vpack.c.b16 %v534, %v531
  %v748 = vpack.c.b16 %v538, %v535
  %v749 = vpack.c.b16 %v539, %v536
  %v750 = vpack.c.b16 %v540, %v537
  %v751 = vpack.c.b16 %v544, %v541
  %v752 = vpack.c.b16 %v545, %v542
  %v753 = vpack.c.b16 %v546, %v543
  %v754 = vpack.c.b16 %v550, %v547
  %v755 = vpack.c.b16 %v551, %v548
  %v756 = vpack.c.b16 %v552, %v549
  %v757 = vpack.c.b16 %v556, %v553
  %v758 = vpack.c.b16 %v557, %v554
  %v759 = vpack.c.b16 %v558, %v555
  %v760 = vpack.c.b16 %v562, %v559
  %v761 = vpack.c.b16 %v563, %v560
  %v762 = vpack.c.b16 %v564, %v561
  %v763 = vpack.c.b16 %v568, %v565
  %v764 = vpack.c.b16 %v569, %v566
  %v765 = vpack.c.b16 %v570, %v567
  %v766 = vpack.c.b16 %v574, %v571
  %v767 = vpack.c.b16 %v575, %v572
  %v768 = vpack.c.b16 %v576, %v573
  %v769 = vpack.c.b16 %v580, %v577
  %v770 = vpack.c.b16 %v581, %v578
  %v771 = vpack.c.b16 %v582, %v579
  %v772 = vpack.c.b16 %v586, %v583
  %v773 = vpack.c.b16 %v587, %v584
  %v774 = vpack.c.b16 %v588, %v585
  %v775 = vpack.c.b16 %v592, %v589
  %v776 = vpack.c.b16 %v593, %v590
  %v777 = vpack.c.b16 %v594, %v591
  %v778 = vpack.c.b16 %v598, %v595
  %v779 = vpack.c.b16 %v599, %v596
  %v780 = vpack.c.b16 %v600, %v597
  %v781 = vpack.c.b16 %v604, %v601
  %v782 = vpack.c.b16 %v605, %v602
  %v783 = vpack.c.b16 %v606, %v603
  %v784 = vpack.c.b16 %v610, %v607
  %v785 = vpack.c.b16 %v611, %v608
  %v786 = vpack.c.b16 %v612, %v609
  %v787 = vpack.c.b16 %v616, %v613
  %v788 = vpack.c.b16 %v617, %v614
  %v789 = vpack.c.b16 %v618, %v615
  %v790 = vpack.c.b16 %v622, %v619
  %v791 = vpack.c.b16 %v623, %v620
  %v792 = vpack.c.b16 %v624, %v621
  %v793 = vpack.c.b16 %v628, %v625
  %v794 = vpack.c.b16 %v629, %v626
  %v795 = vpack.c.b16 %v630, %v627
  %v796 = vpack.c.b16 %v634, %v631
  %v797 = vpack.c.b16 %v635, %v632
  %v798 = vpack.c.b16 %v636, %v633
  %v799 = vpack.c.b16 %v640, %v637
  %v800 = vpack.c.b16 %v641, %v638
  %v801 = vpack.c.b16 %v642, %v639
  %v802 = vpack.c.b16 %v646, %v643
  %v803 = vpack.c.b16 %v647, %v644
  %v804 = vpack.c.b16 %v648, %v645
  %v805 = vpack.c.b16 %v652, %v649
  %v806 = vpack.c.b16 %v653, %v650
  %v807 = vpack.c.b16 %v654, %v651
  %v808 = vpack.c.b16 %v658, %v655
  %v809 = vpack.c.b16 %v659, %v656
  %v810 = vpack.c.b16 %v660, %v657
  %v811 = vpack.c.b16 %v664, %v661
  %v812 = vpack.c.b16 %v665, %v662
  %v813 = vpack.c.b16 %v666, %v663
  %v814 = vpack.c.b16 %v670, %v667
  %v815 = vpack.c.b16 %v671, %v668
  %v816 = vpack.c.b16 %v672, %v669
  %v817 = vpack.c.b16 %v676, %v673
  %v818 = vpack.c.b16 %v677, %v674
  %v819 = vpack.c.b16 %v678, %v675
  %v820 = vpack.c.b16 %v682, %v679
  %v821 = vpack.c.b16 %v683, %v680
  %v822 = vpack.c.b16 %v684, %v681
  %v823 = vpack.c.b16 %v688, %v685
  %v824 = vpack.c.b16 %v689, %v686
  %v825 = vpack.c.b16 %v690, %v687
  %vm961 = vcmask 654336
  %v963 = vsel %vm961, %v235, 0
  %965 = vmatprep.subr.bf16.mxu0 %v713
  %966 = vmatpush1.bf16.msra.mxu0 %v712
  %967 = vmatprep.subr.bf16.mxu0 %v710
  %968 = vmatpush1.bf16.msra.mxu0 %v709
  %969 = vmatprep.subr.bf16.mxu0 %v707
  %970 = vmatpush1.bf16.msra.mxu0 %v706
  %971 = vmatprep.subr.bf16.mxu0 %v704
  %972 = vmatpush1.bf16.msra.mxu0 %v703
  %973 = vmatprep.subr.bf16.mxu0 %v701
  %974 = vmatpush1.bf16.msra.mxu0 %v700
  %975 = vmatprep.subr.bf16.mxu0 %v698
  %976 = vmatpush1.bf16.msra.mxu0 %v697
  %977 = vmatprep.subr.bf16.mxu0 %v695
  %978 = vmatpush1.bf16.msra.mxu0 %v694
  %979 = vmatprep.subr.bf16.mxu0 %v692
  %980 = vmatpush1.bf16.msra.mxu0 %v691
  %981 = vmatprep.subr.bf16.mxu0 %v737
  %982 = vmatpush2.bf16.msra.mxu0 %v736
  %983 = vmatprep.subr.bf16.mxu0 %v734
  %984 = vmatpush2.bf16.msra.mxu0 %v733
  %985 = vmatprep.subr.bf16.mxu0 %v731
  %986 = vmatpush2.bf16.msra.mxu0 %v730
  %987 = vmatprep.subr.bf16.mxu0 %v728
  %988 = vmatpush2.bf16.msra.mxu0 %v727
  %989 = vmatprep.subr.bf16.mxu0 %v725
  %990 = vmatpush2.bf16.msra.mxu0 %v724
  %991 = vmatprep.subr.bf16.mxu0 %v722
  %992 = vmatpush2.bf16.msra.mxu0 %v721
  %993 = vmatprep.subr.bf16.mxu0 %v719
  %994 = vmatpush2.bf16.msra.mxu0 %v718
  %995 = vmatprep.subr.bf16.mxu0 %v716
  %996 = vmatpush2.bf16.msra.mxu0 %v715
  %997 = vmatprep.mubr.bf16.mxu0 %v231
  %998 = vmatmul.mubr.bf16.gmra.mxu0 %v230
  %v999 = vpop.f32.mrf.mxu0
  %v1000 = vadd.f32 %v209, %v999
  %v1001 = vpop.f32.mrf.mxu0
  %v1002 = vadd.f32 %v213, %v1001
  %v1003 = vpop.f32.mrf.mxu0
  %v1004 = vpop.f32.mrf.mxu0
  %1005 = vdwg.mxu0
  %1006 = vmatprep.subr.bf16.mxu0 %v761
  %1007 = vmatpush1.bf16.msra.mxu0 %v760
  %1008 = vmatprep.subr.bf16.mxu0 %v758
  %1009 = vmatpush1.bf16.msra.mxu0 %v757
  %1010 = vmatprep.subr.bf16.mxu0 %v755
  %1011 = vmatpush1.bf16.msra.mxu0 %v754
  %1012 = vmatprep.subr.bf16.mxu0 %v752
  %1013 = vmatpush1.bf16.msra.mxu0 %v751
  %1014 = vmatprep.subr.bf16.mxu0 %v749
  %1015 = vmatpush1.bf16.msra.mxu0 %v748
  %1016 = vmatprep.subr.bf16.mxu0 %v746
  %1017 = vmatpush1.bf16.msra.mxu0 %v745
  %1018 = vmatprep.subr.bf16.mxu0 %v743
  %1019 = vmatpush1.bf16.msra.mxu0 %v742
  %1020 = vmatprep.subr.bf16.mxu0 %v740
  %1021 = vmatpush1.bf16.msra.mxu0 %v739
  %1022 = vmatprep.subr.bf16.mxu0 %v785
  %1023 = vmatpush2.bf16.msra.mxu0 %v784
  %1024 = vmatprep.subr.bf16.mxu0 %v782
  %1025 = vmatpush2.bf16.msra.mxu0 %v781
  %1026 = vmatprep.subr.bf16.mxu0 %v779
  %1027 = vmatpush2.bf16.msra.mxu0 %v778
  %1028 = vmatprep.subr.bf16.mxu0 %v776
  %1029 = vmatpush2.bf16.msra.mxu0 %v775
  %1030 = vmatprep.subr.bf16.mxu0 %v773
  %1031 = vmatpush2.bf16.msra.mxu0 %v772
  %1032 = vmatprep.subr.bf16.mxu0 %v770
  %1033 = vmatpush2.bf16.msra.mxu0 %v769
  %1034 = vmatprep.subr.bf16.mxu0 %v767
  %1035 = vmatpush2.bf16.msra.mxu0 %v766
  %1036 = vmatprep.subr.bf16.mxu0 %v764
  %1037 = vmatpush2.bf16.msra.mxu0 %v763
  %1038 = vmatprep.mubr.bf16.mxu0 %v233
  %1039 = vmatmul.mubr.bf16.gmra.mxu0 %v232
  %v1040 = vpop.f32.mrf.mxu0
  %v1041 = vadd.f32 %v1000, %v1040
  %v1042 = vpop.f32.mrf.mxu0
  %v1043 = vadd.f32 %v1002, %v1042
  %v1044 = vpop.f32.mrf.mxu0
  %v1045 = vpop.f32.mrf.mxu0
  %1046 = vdwg.mxu0
  %1047 = vmatprep.subr.bf16.mxu0 %v809
  %1048 = vmatpush1.bf16.msra.mxu0 %v808
  %1049 = vmatprep.subr.bf16.mxu0 %v806
  %1050 = vmatpush1.bf16.msra.mxu0 %v805
  %1051 = vmatprep.subr.bf16.mxu0 %v803
  %1052 = vmatpush1.bf16.msra.mxu0 %v802
  %1053 = vmatprep.subr.bf16.mxu0 %v800
  %1054 = vmatpush1.bf16.msra.mxu0 %v799
  %1055 = vmatprep.subr.bf16.mxu0 %v797
  %1056 = vmatpush1.bf16.msra.mxu0 %v796
  %1057 = vmatprep.subr.bf16.mxu0 %v794
  %1058 = vmatpush1.bf16.msra.mxu0 %v793
  %1059 = vmatprep.subr.bf16.mxu0 %v791
  %1060 = vmatpush1.bf16.msra.mxu0 %v790
  %1061 = vmatprep.subr.bf16.mxu0 %v788
  %1062 = vmatpush1.bf16.msra.mxu0 %v787
  %1063 = vmatprep.subr.bf16.mxu0 0
  %1064 = vmatpush2.bf16.msra.mxu0 0
  %1065 = vmatprep.subr.bf16.mxu0 0
  %1066 = vmatpush2.bf16.msra.mxu0 0
  %1067 = vmatprep.subr.bf16.mxu0 0
  %1068 = vmatpush2.bf16.msra.mxu0 0
  %1069 = vmatprep.subr.bf16.mxu0 %v824
  %1070 = vmatpush2.bf16.msra.mxu0 %v823
  %1071 = vmatprep.subr.bf16.mxu0 %v821
  %1072 = vmatpush2.bf16.msra.mxu0 %v820
  %1073 = vmatprep.subr.bf16.mxu0 %v818
  %1074 = vmatpush2.bf16.msra.mxu0 %v817
  %1075 = vmatprep.subr.bf16.mxu0 %v815
  %1076 = vmatpush2.bf16.msra.mxu0 %v814
  %1077 = vmatprep.subr.bf16.mxu0 %v812
  %1078 = vmatpush2.bf16.msra.mxu0 %v811
  %1079 = vmatprep.mubr.bf16.mxu0 %v963
  %1080 = vmatmul.mubr.bf16.gmra.mxu0 %v234
  %v1081 = vpop.f32.mrf.mxu0
  %v1082 = vadd.f32 %v1041, %v1081
  %v1083 = vpop.f32.mrf.mxu0
  %v1084 = vadd.f32 %v1043, %v1083
  %v1085 = vpop.f32.mrf.mxu0
  %v1086 = vpop.f32.mrf.mxu0
  %1087 = vdwg.mxu0
  %1088 = vmatprep.subr.bf16.mxu0 0
  %1089 = vmatpush1.bf16.msra.mxu0 %v714
  %1090 = vmatprep.subr.bf16.mxu0 0
  %1091 = vmatpush1.bf16.msra.mxu0 %v711
  %1092 = vmatprep.subr.bf16.mxu0 0
  %1093 = vmatpush1.bf16.msra.mxu0 %v708
  %1094 = vmatprep.subr.bf16.mxu0 0
  %1095 = vmatpush1.bf16.msra.mxu0 %v705
  %1096 = vmatprep.subr.bf16.mxu0 0
  %1097 = vmatpush1.bf16.msra.mxu0 %v702
  %1098 = vmatprep.subr.bf16.mxu0 0
  %1099 = vmatpush1.bf16.msra.mxu0 %v699
  %1100 = vmatprep.subr.bf16.mxu0 0
  %1101 = vmatpush1.bf16.msra.mxu0 %v696
  %1102 = vmatprep.subr.bf16.mxu0 0
  %1103 = vmatpush1.bf16.msra.mxu0 %v693
  %1104 = vmatprep.subr.bf16.mxu0 0
  %1105 = vmatpush2.bf16.msra.mxu0 %v738
  %1106 = vmatprep.subr.bf16.mxu0 0
  %1107 = vmatpush2.bf16.msra.mxu0 %v735
  %1108 = vmatprep.subr.bf16.mxu0 0
  %1109 = vmatpush2.bf16.msra.mxu0 %v732
  %1110 = vmatprep.subr.bf16.mxu0 0
  %1111 = vmatpush2.bf16.msra.mxu0 %v729
  %1112 = vmatprep.subr.bf16.mxu0 0
  %1113 = vmatpush2.bf16.msra.mxu0 %v726
  %1114 = vmatprep.subr.bf16.mxu0 0
  %1115 = vmatpush2.bf16.msra.mxu0 %v723
  %1116 = vmatprep.subr.bf16.mxu0 0
  %1117 = vmatpush2.bf16.msra.mxu0 %v720
  %1118 = vmatprep.subr.bf16.mxu0 0
  %1119 = vmatpush2.bf16.msra.mxu0 %v717
  %1120 = vmatprep.mubr.bf16.mxu0 %v231
  %1121 = vmatmul.mubr.bf16.gmra.mxu0 %v230
  %v1122 = vpop.f32.mrf.mxu0
  %v1123 = vadd.f32 %v217, %v1122
  %v1124 = vpop.f32.mrf.mxu0
  %v1125 = vpop.f32.mrf.mxu0
  %v1126 = vpop.f32.mrf.mxu0
  %1127 = vdwg.mxu0
  %1128 = vmatprep.subr.bf16.mxu0 0
  %1129 = vmatpush1.bf16.msra.mxu0 %v762
  %1130 = vmatprep.subr.bf16.mxu0 0
  %1131 = vmatpush1.bf16.msra.mxu0 %v759
  %1132 = vmatprep.subr.bf16.mxu0 0
  %1133 = vmatpush1.bf16.msra.mxu0 %v756
  %1134 = vmatprep.subr.bf16.mxu0 0
  %1135 = vmatpush1.bf16.msra.mxu0 %v753
  %1136 = vmatprep.subr.bf16.mxu0 0
  %1137 = vmatpush1.bf16.msra.mxu0 %v750
  %1138 = vmatprep.subr.bf16.mxu0 0
  %1139 = vmatpush1.bf16.msra.mxu0 %v747
  %1140 = vmatprep.subr.bf16.mxu0 0
  %1141 = vmatpush1.bf16.msra.mxu0 %v744
  %1142 = vmatprep.subr.bf16.mxu0 0
  %1143 = vmatpush1.bf16.msra.mxu0 %v741
  %1144 = vmatprep.subr.bf16.mxu0 0
  %1145 = vmatpush2.bf16.msra.mxu0 %v786
  %1146 = vmatprep.subr.bf16.mxu0 0
  %1147 = vmatpush2.bf16.msra.mxu0 %v783
  %1148 = vmatprep.subr.bf16.mxu0 0
  %1149 = vmatpush2.bf16.msra.mxu0 %v780
  %1150 = vmatprep.subr.bf16.mxu0 0
  %1151 = vmatpush2.bf16.msra.mxu0 %v777
  %1152 = vmatprep.subr.bf16.mxu0 0
  %1153 = vmatpush2.bf16.msra.mxu0 %v774
  %1154 = vmatprep.subr.bf16.mxu0 0
  %1155 = vmatpush2.bf16.msra.mxu0 %v771
  %1156 = vmatprep.subr.bf16.mxu0 0
  %1157 = vmatpush2.bf16.msra.mxu0 %v768
  %1158 = vmatprep.subr.bf16.mxu0 0
  %1159 = vmatpush2.bf16.msra.mxu0 %v765
  %1160 = vmatprep.mubr.bf16.mxu0 %v233
  %1161 = vmatmul.mubr.bf16.gmra.mxu0 %v232
  %v1162 = vpop.f32.mrf.mxu0
  %v1163 = vadd.f32 %v1123, %v1162
  %v1164 = vpop.f32.mrf.mxu0
  %v1165 = vpop.f32.mrf.mxu0
  %v1166 = vpop.f32.mrf.mxu0
  %1167 = vdwg.mxu0
  %1168 = vmatprep.subr.bf16.mxu0 0
  %1169 = vmatpush1.bf16.msra.mxu0 %v810
  %1170 = vmatprep.subr.bf16.mxu0 0
  %1171 = vmatpush1.bf16.msra.mxu0 %v807
  %1172 = vmatprep.subr.bf16.mxu0 0
  %1173 = vmatpush1.bf16.msra.mxu0 %v804
  %1174 = vmatprep.subr.bf16.mxu0 0
  %1175 = vmatpush1.bf16.msra.mxu0 %v801
  %1176 = vmatprep.subr.bf16.mxu0 0
  %1177 = vmatpush1.bf16.msra.mxu0 %v798
  %1178 = vmatprep.subr.bf16.mxu0 0
  %1179 = vmatpush1.bf16.msra.mxu0 %v795
  %1180 = vmatprep.subr.bf16.mxu0 0
  %1181 = vmatpush1.bf16.msra.mxu0 %v792
  %1182 = vmatprep.subr.bf16.mxu0 0
  %1183 = vmatpush1.bf16.msra.mxu0 %v789
  %1184 = vmatprep.subr.bf16.mxu0 0
  %1185 = vmatpush2.bf16.msra.mxu0 0
  %1186 = vmatprep.subr.bf16.mxu0 0
  %1187 = vmatpush2.bf16.msra.mxu0 0
  %1188 = vmatprep.subr.bf16.mxu0 0
  %1189 = vmatpush2.bf16.msra.mxu0 0
  %1190 = vmatprep.subr.bf16.mxu0 0
  %1191 = vmatpush2.bf16.msra.mxu0 %v825
  %1192 = vmatprep.subr.bf16.mxu0 0
  %1193 = vmatpush2.bf16.msra.mxu0 %v822
  %1194 = vmatprep.subr.bf16.mxu0 0
  %1195 = vmatpush2.bf16.msra.mxu0 %v819
  %1196 = vmatprep.subr.bf16.mxu0 0
  %1197 = vmatpush2.bf16.msra.mxu0 %v816
  %1198 = vmatprep.subr.bf16.mxu0 0
  %1199 = vmatpush2.bf16.msra.mxu0 %v813
  %1200 = vmatprep.mubr.bf16.mxu0 %v963
  %1201 = vmatmul.mubr.bf16.gmra.mxu0 %v234
  %v1202 = vpop.f32.mrf.mxu0
  %v1203 = vadd.f32 %v1163, %v1202
  %v1204 = vpop.f32.mrf.mxu0
  %v1205 = vpop.f32.mrf.mxu0
  %v1206 = vpop.f32.mrf.mxu0
  %1207 = vdwg.mxu0
  %v1208 = vmax.f32 %v1082, 0.0
  %v1209 = vmax.f32 %v1084, 0.0
  %v1210 = vmax.f32 %v1203, 0.0
  %v1211 = vpack.c.bf16 %v1208, %v1208
  %v1212 = vpack.c.bf16 %v1209, %v1209
  %v1213 = vpack.c.bf16 %v1210, %v1210
  %v1214 = vld [vmem:[%s3] sm:$0xff]
  %v1215 = vld [vmem:[%s3 + $0x8] sm:$0xff]
  %v1216 = vld [vmem:[%s3 + $0x10] sm:$0xff]
  %v1217 = vld [vmem:[%s3 + $0x18] sm:$0xff]
  %v1218 = vld [vmem:[%s3 + $0x20] sm:$0xff]
  %v1219 = vld [vmem:[%s3 + $0x28] sm:$0xff]
  %v1220 = vld [vmem:[%s3 + $0x30] sm:$0xff]
  %v1221 = vld [vmem:[%s3 + $0x38] sm:$0xff]
  %v1222 = vld [vmem:[%s3 + $0x40] sm:$0xff]
  %v1223 = vld [vmem:[%s3 + $0x48] sm:$0xff]
  %v1224 = vld [vmem:[%s3 + $0x50] sm:$0xff]
  %v1225 = vld [vmem:[%s3 + $0x58] sm:$0xff]
  %v1226 = vld [vmem:[%s3 + $0x60] sm:$0xff]
  %v1227 = vld [vmem:[%s3 + $0x68] sm:$0xff]
  %v1228 = vld [vmem:[%s3 + $0x70] sm:$0xff]
  %v1229 = vld [vmem:[%s3 + $0x78] sm:$0xff]
  %v1230 = vld [vmem:[%s3 + $0x80] sm:$0xff]
  %v1231 = vld [vmem:[%s3 + $0x88] sm:$0xff]
  %v1232 = vld [vmem:[%s3 + $0x90] sm:$0xff]
  %v1233 = vld [vmem:[%s3 + $0x98] sm:$0xff]
  %v1234 = vld [vmem:[%s3 + $0xa0] sm:$0xff]
  %v1235 = vld [vmem:[%s3 + $0xa8] sm:$0xff]
  %v1236 = vld [vmem:[%s3 + $0xb0] sm:$0xff]
  %v1237 = vld [vmem:[%s3 + $0xb8] sm:$0xff]
  %v1238 = vld [vmem:[%s3 + $0xc0] sm:$0xff]
  %v1239 = vld [vmem:[%s3 + $0xc8] sm:$0xff]
  %v1240 = vld [vmem:[%s3 + $0xd0] sm:$0xff]
  %v1241 = vld [vmem:[%s3 + $0xd8] sm:$0xff]
  %v1242 = vld [vmem:[%s3 + $0xe0] sm:$0xff]
  %v1243 = vld [vmem:[%s3 + $0xe8] sm:$0xff]
  %v1244 = vld [vmem:[%s3 + $0xf0] sm:$0xff]
  %v1245 = vld [vmem:[%s3 + $0xf8] sm:$0xff]
  %v1246 = vld [vmem:[%s3 + $0x100] sm:$0xff]
  %v1247 = vld [vmem:[%s3 + $0x108] sm:$0xff]
  %v1248 = vld [vmem:[%s3 + $0x110] sm:$0xff]
  %v1249 = vld [vmem:[%s3 + $0x118] sm:$0xff]
  %v1250 = vld [vmem:[%s3 + $0x120] sm:$0xff]
  %v1251 = vld [vmem:[%s3 + $0x128] sm:$0xff]
  %v1252 = vld [vmem:[%s3 + $0x130] sm:$0xff]
  %v1253 = vld [vmem:[%s3 + $0x138] sm:$0xff]
  %v1254 = vld [vmem:[%s4] sm:$0x3]
  %v1256 = vlaneseq
  %v1257 = vshrl.u32 %v1256, 7
  %v1258 = vsub.s32 0, %v1257
  %v1259 = vrot.slane %v1254, %v1258
  %v1260 = vlaneseq
  %v1261 = vshrl.u32 %v1260, 7
  %v1262 = vsub.s32 1, %v1261
  %v1263 = vrot.slane %v1254, %v1262
  %v1306 = vunpack.c.l.b16 %v1214
  %v1307 = vunpack.c.h.b16 %v1214
  %v1308 = vunpack.c.l.b16 %v1215
  %v1309 = vunpack.c.h.b16 %v1215
  %v1310 = vunpack.c.l.b16 %v1216
  %v1311 = vunpack.c.h.b16 %v1216
  %v1312 = vunpack.c.l.b16 %v1217
  %v1313 = vunpack.c.h.b16 %v1217
  %v1314 = vunpack.c.l.b16 %v1218
  %v1315 = vunpack.c.h.b16 %v1218
  %v1316 = vunpack.c.l.b16 %v1219
  %v1317 = vunpack.c.h.b16 %v1219
  %v1318 = vunpack.c.l.b16 %v1220
  %v1319 = vunpack.c.h.b16 %v1220
  %v1320 = vunpack.c.l.b16 %v1221
  %v1321 = vunpack.c.h.b16 %v1221
  %v1322 = vunpack.c.l.b16 %v1222
  %v1323 = vunpack.c.h.b16 %v1222
  %v1324 = vunpack.c.l.b16 %v1223
  %v1325 = vunpack.c.h.b16 %v1223
  %v1326 = vunpack.c.l.b16 %v1224
  %v1327 = vunpack.c.h.b16 %v1224
  %v1328 = vunpack.c.l.b16 %v1225
  %v1329 = vunpack.c.h.b16 %v1225
  %v1330 = vunpack.c.l.b16 %v1226
  %v1331 = vunpack.c.h.b16 %v1226
  %v1332 = vunpack.c.l.b16 %v1227
  %v1333 = vunpack.c.h.b16 %v1227
  %v1334 = vunpack.c.l.b16 %v1228
  %v1335 = vunpack.c.h.b16 %v1228
  %v1336 = vunpack.c.l.b16 %v1229
  %v1337 = vunpack.c.h.b16 %v1229
  %v1338 = vunpack.c.l.b16 %v1230
  %v1339 = vunpack.c.h.b16 %v1230
  %v1340 = vunpack.c.l.b16 %v1231
  %v1341 = vunpack.c.h.b16 %v1231
  %v1342 = vunpack.c.l.b16 %v1232
  %v1343 = vunpack.c.h.b16 %v1232
  %v1344 = vunpack.c.l.b16 %v1233
  %v1345 = vunpack.c.h.b16 %v1233
  %v1346 = vunpack.c.l.b16 %v1234
  %v1347 = vunpack.c.h.b16 %v1234
  %v1348 = vunpack.c.l.b16 %v1235
  %v1349 = vunpack.c.h.b16 %v1235
  %v1350 = vunpack.c.l.b16 %v1236
  %v1351 = vunpack.c.h.b16 %v1236
  %v1352 = vunpack.c.l.b16 %v1237
  %v1353 = vunpack.c.h.b16 %v1237
  %v1354 = vunpack.c.l.b16 %v1238
  %v1355 = vunpack.c.h.b16 %v1238
  %v1356 = vunpack.c.l.b16 %v1239
  %v1357 = vunpack.c.h.b16 %v1239
  %v1358 = vunpack.c.l.b16 %v1240
  %v1359 = vunpack.c.h.b16 %v1240
  %v1360 = vunpack.c.l.b16 %v1241
  %v1361 = vunpack.c.h.b16 %v1241
  %v1362 = vunpack.c.l.b16 %v1242
  %v1363 = vunpack.c.h.b16 %v1242
  %v1364 = vunpack.c.l.b16 %v1243
  %v1365 = vunpack.c.h.b16 %v1243
  %v1366 = vunpack.c.l.b16 %v1244
  %v1367 = vunpack.c.h.b16 %v1244
  %v1368 = vunpack.c.l.b16 %v1245
  %v1369 = vunpack.c.h.b16 %v1245
  %v1370 = vunpack.c.l.b16 %v1246
  %v1371 = vunpack.c.h.b16 %v1246
  %v1372 = vunpack.c.l.b16 %v1247
  %v1373 = vunpack.c.h.b16 %v1247
  %v1374 = vunpack.c.l.b16 %v1248
  %v1375 = vunpack.c.h.b16 %v1248
  %v1376 = vunpack.c.l.b16 %v1249
  %v1377 = vunpack.c.h.b16 %v1249
  %v1378 = vunpack.c.l.b16 %v1250
  %v1379 = vunpack.c.h.b16 %v1250
  %v1380 = vunpack.c.l.b16 %v1251
  %v1381 = vunpack.c.h.b16 %v1251
  %v1382 = vunpack.c.l.b16 %v1252
  %v1383 = vunpack.c.h.b16 %v1252
  %v1384 = vunpack.c.l.b16 %v1253
  %v1385 = vunpack.c.h.b16 %v1253
  %v1386 = vpack.c.b16 %v1308, %v1306
  %v1387 = vpack.c.b16 %v1309, %v1307
  %v1388 = vpack.c.b16 %v1312, %v1310
  %v1389 = vpack.c.b16 %v1313, %v1311
  %v1390 = vpack.c.b16 %v1316, %v1314
  %v1391 = vpack.c.b16 %v1317, %v1315
  %v1392 = vpack.c.b16 %v1320, %v1318
  %v1393 = vpack.c.b16 %v1321, %v1319
  %v1394 = vpack.c.b16 %v1324, %v1322
  %v1395 = vpack.c.b16 %v1325, %v1323
  %v1396 = vpack.c.b16 %v1328, %v1326
  %v1397 = vpack.c.b16 %v1329, %v1327
  %v1398 = vpack.c.b16 %v1332, %v1330
  %v1399 = vpack.c.b16 %v1333, %v1331
  %v1400 = vpack.c.b16 %v1336, %v1334
  %v1401 = vpack.c.b16 %v1337, %v1335
  %v1402 = vpack.c.b16 %v1340, %v1338
  %v1403 = vpack.c.b16 %v1341, %v1339
  %v1404 = vpack.c.b16 %v1344, %v1342
  %v1405 = vpack.c.b16 %v1345, %v1343
  %v1406 = vpack.c.b16 %v1348, %v1346
  %v1407 = vpack.c.b16 %v1349, %v1347
  %v1408 = vpack.c.b16 %v1352, %v1350
  %v1409 = vpack.c.b16 %v1353, %v1351
  %v1410 = vpack.c.b16 %v1356, %v1354
  %v1411 = vpack.c.b16 %v1357, %v1355
  %v1412 = vpack.c.b16 %v1360, %v1358
  %v1413 = vpack.c.b16 %v1361, %v1359
  %v1414 = vpack.c.b16 %v1364, %v1362
  %v1415 = vpack.c.b16 %v1365, %v1363
  %v1416 = vpack.c.b16 %v1368, %v1366
  %v1417 = vpack.c.b16 %v1369, %v1367
  %v1418 = vpack.c.b16 %v1372, %v1370
  %v1419 = vpack.c.b16 %v1373, %v1371
  %v1420 = vpack.c.b16 %v1376, %v1374
  %v1421 = vpack.c.b16 %v1377, %v1375
  %v1422 = vpack.c.b16 %v1380, %v1378
  %v1423 = vpack.c.b16 %v1381, %v1379
  %v1424 = vpack.c.b16 %v1384, %v1382
  %v1425 = vpack.c.b16 %v1385, %v1383
  %vm1466 = vcmask 523264
  %v1468 = vsel %vm1466, %v1213, 0
  %1470 = vmatprep.subr.bf16.mxu0 %v1401
  %1471 = vmatpush1.bf16.msra.mxu0 %v1400
  %1472 = vmatprep.subr.bf16.mxu0 %v1399
  %1473 = vmatpush1.bf16.msra.mxu0 %v1398
  %1474 = vmatprep.subr.bf16.mxu0 %v1397
  %1475 = vmatpush1.bf16.msra.mxu0 %v1396
  %1476 = vmatprep.subr.bf16.mxu0 %v1395
  %1477 = vmatpush1.bf16.msra.mxu0 %v1394
  %1478 = vmatprep.subr.bf16.mxu0 %v1393
  %1479 = vmatpush1.bf16.msra.mxu0 %v1392
  %1480 = vmatprep.subr.bf16.mxu0 %v1391
  %1481 = vmatpush1.bf16.msra.mxu0 %v1390
  %1482 = vmatprep.subr.bf16.mxu0 %v1389
  %1483 = vmatpush1.bf16.msra.mxu0 %v1388
  %1484 = vmatprep.subr.bf16.mxu0 %v1387
  %1485 = vmatpush1.bf16.msra.mxu0 %v1386
  %1486 = vmatprep.subr.bf16.mxu0 %v1417
  %1487 = vmatpush2.bf16.msra.mxu0 %v1416
  %1488 = vmatprep.subr.bf16.mxu0 %v1415
  %1489 = vmatpush2.bf16.msra.mxu0 %v1414
  %1490 = vmatprep.subr.bf16.mxu0 %v1413
  %1491 = vmatpush2.bf16.msra.mxu0 %v1412
  %1492 = vmatprep.subr.bf16.mxu0 %v1411
  %1493 = vmatpush2.bf16.msra.mxu0 %v1410
  %1494 = vmatprep.subr.bf16.mxu0 %v1409
  %1495 = vmatpush2.bf16.msra.mxu0 %v1408
  %1496 = vmatprep.subr.bf16.mxu0 %v1407
  %1497 = vmatpush2.bf16.msra.mxu0 %v1406
  %1498 = vmatprep.subr.bf16.mxu0 %v1405
  %1499 = vmatpush2.bf16.msra.mxu0 %v1404
  %1500 = vmatprep.subr.bf16.mxu0 %v1403
  %1501 = vmatpush2.bf16.msra.mxu0 %v1402
  %1502 = vmatprep.mubr.bf16.mxu0 %v1212
  %1503 = vmatmul.mubr.bf16.gmra.mxu0 %v1211
  %v1504 = vpop.f32.mrf.mxu0
  %v1505 = vadd.f32 %v1259, %v1504
  %v1506 = vpop.f32.mrf.mxu0
  %v1507 = vadd.f32 %v1263, %v1506
  %v1508 = vpop.f32.mrf.mxu0
  %v1509 = vpop.f32.mrf.mxu0
  %1510 = vdwg.mxu0
  %1511 = vmatprep.subr.bf16.mxu0 0
  %1512 = vmatpush1.bf16.msra.mxu0 0
  %1513 = vmatprep.subr.bf16.mxu0 0
  %1514 = vmatpush1.bf16.msra.mxu0 0
  %1515 = vmatprep.subr.bf16.mxu0 0
  %1516 = vmatpush1.bf16.msra.mxu0 0
  %1517 = vmatprep.subr.bf16.mxu0 0
  %1518 = vmatpush1.bf16.msra.mxu0 0
  %1519 = vmatprep.subr.bf16.mxu0 %v1425
  %1520 = vmatpush1.bf16.msra.mxu0 %v1424
  %1521 = vmatprep.subr.bf16.mxu0 %v1423
  %1522 = vmatpush1.bf16.msra.mxu0 %v1422
  %1523 = vmatprep.subr.bf16.mxu0 %v1421
  %1524 = vmatpush1.bf16.msra.mxu0 %v1420
  %1525 = vmatprep.subr.bf16.mxu0 %v1419
  %1526 = vmatpush1.bf16.msra.mxu0 %v1418
  %1527 = vmatprep.subr.bf16.mxu0 0
  %1528 = vmatpush2.bf16.msra.mxu0 0
  %1529 = vmatprep.subr.bf16.mxu0 0
  %1530 = vmatpush2.bf16.msra.mxu0 0
  %1531 = vmatprep.subr.bf16.mxu0 0
  %1532 = vmatpush2.bf16.msra.mxu0 0
  %1533 = vmatprep.subr.bf16.mxu0 0
  %1534 = vmatpush2.bf16.msra.mxu0 0
  %1535 = vmatprep.subr.bf16.mxu0 0
  %1536 = vmatpush2.bf16.msra.mxu0 0
  %1537 = vmatprep.subr.bf16.mxu0 0
  %1538 = vmatpush2.bf16.msra.mxu0 0
  %1539 = vmatprep.subr.bf16.mxu0 0
  %1540 = vmatpush2.bf16.msra.mxu0 0
  %1541 = vmatprep.subr.bf16.mxu0 0
  %1542 = vmatpush2.bf16.msra.mxu0 0
  %1543 = vmatprep.mubr.bf16.mxu0 0
  %1544 = vmatmul.mubr.bf16.gmra.mxu0 %v1468
  %v1545 = vpop.f32.mrf.mxu0
  %v1546 = vadd.f32 %v1505, %v1545
  %v1547 = vpop.f32.mrf.mxu0
  %v1548 = vadd.f32 %v1507, %v1547
  %v1549 = vpop.f32.mrf.mxu0
  %v1550 = vpop.f32.mrf.mxu0
  %1551 = vdwg.mxu0
  %v1552 = vmax.f32 %v1546, 0.0
  %v1553 = vmax.f32 %v1548, 0.0
  %v1554 = vpack.c.bf16 %v1552, %v1552
  %v1555 = vpack.c.bf16 %v1553, %v1553
  %v1558 = vunpack.c.l.b16 %v1554
  %v1559 = vunpack.c.l.b16 %v1555
  %v1560 = vpack.c.b16 %v1559, %v1558
  %vm1562 = vcmask 1043456
  %vm1563 = vcmask 261124
  %vm1564 = vmor %vm1563, %vm1562
  %1565 = vst.msk [vmem:[%s5] sm:$0xff] %vm1564, %v1560
  // Predicated region
  $region22: #{_lambda_.45} parent=0 // pred_check
    _
  $region23: #{_lambda_.45} parent=0 // pred_check_branch
    %1567 = sbr.rel (0) target = $region25
  $region24: #{_lambda_.45} parent=0 // pred_region
    _
  $region25: #{_lambda_.45} parent=0 // pred_fallthru
    _
  // Predicated region
  $region26: #{_lambda_.45} parent=0 // pred_check
    _
  $region27: #{_lambda_.45} parent=0 // pred_check_branch
    %1569 = sbr.rel (0) target = $region29
  $region28: #{_lambda_.45} parent=0 // pred_region
    _
  $region29: #{_lambda_.45} parent=0 // pred_fallthru
    _

// kernel: _lambda_.46
$region0: #{_lambda_.46}
  #allocation0 [shape = 'u32[]', space=smem, size = 0x4, offset = 0x4, fixed_abs, tag = 'smem constant byte address 0x4 - core index']
  #allocation1 [shape = 'u32[144,128]{1,0:T(1,128)}', space=vmem, size = 0x12000, scoped, tag = 'internal scratch']
  %s0 = inlined_call_operand.vmem [shape: bf16[32,360], index: 0, kind: input, shape index: {}]
  %s1 = inlined_call_operand.vmem [shape: bf16[360,160], index: 1, kind: input, shape index: {}]
  %s2 = inlined_call_operand.vmem [shape: f32[1,160], index: 2, kind: input, shape index: {}]
  %s3 = inlined_call_operand.vmem [shape: bf16[160,80], index: 3, kind: input, shape index: {}]
  %s4 = inlined_call_operand.vmem [shape: f32[1,80], index: 4, kind: input, shape index: {}]
  %s5 = inlined_call_operand.vmem [shape: bf16[32,80], index: 5, kind: output, shape index: {}]
  %s6 = sld [smem:[#allocation0]]
  $region53: #{_lambda_.46} parent=0
    _
  %s8 = ssub.s32 1, %s6
  %s9 = scalar_select 0, %s8, %s6
  loop: start=0, step=1, limit=4
  $region2: #{_lambda_.46} parent=0 // loop_pre_header
    _
  $region3: #{_lambda_.46} parent=0 // loop_header
    %s11 = sphi 0, %s15
    %p12 = scmp.ge.s32.totalorder %s11, 4
    %s21 = sphi 0, %s23
    %s24 = sphi 0, %s21
    %s25 = sphi 0, %s24
    %s41 = sphi 0, %s25
    %s45 = sphi 0, %s45
    %s47 = sphi 0, %s45
    %s48 = sphi 0, %s47
    %s62 = sphi 0, %s48
    %s66 = sphi 0, %s66
    %s68 = sphi 0, %s66
    %s69 = sphi 0, %s68
    %s83 = sphi 0, %s69
    %s87 = sphi 0, %s87
    %s89 = sphi 0, %s87
    %s90 = sphi 0, %s89
    %s104 = sphi 0, %s90
    %s108 = sphi 0, %s108
    %s110 = sphi 0, %s108
    %s111 = sphi 0, %s110
    %s125 = sphi 0, %s111
    %s131 = sphi 0, %s133
    %s134 = sphi 0, %s131
    %s135 = sphi 0, %s134
    %s151 = sphi 0, %s135
  $region4: #{_lambda_.46} parent=0 // loop_header_branch
    %14 = sbr.rel (%p12) target = $region8
  $region5: #{_lambda_.46} parent=0 // loop_body
    %s16 = ssub.s32 %s11, 1
    %s17 = ssub.s32 %s11, 2
    %s18 = sadd.s32 %s11, 1
    %s19 = ssub.s32 %s11, %s18
    %p20 = scmp.eq.s32.totalorder %s19, 0
    %s22 = sadd.s32 %s21, 1
    %s23 = scalar_select %p20, %s21, %s22
    %p26 = pneg %p20
    %p27 = scmp.eq.s32.totalorder %s11, 1
    %p28 = por %p26, %p27
    %p29 = scmp.ne.s32.totalorder %s21, %s24
    %p30 = scmp.eq.s32.totalorder %s11, 0
    %p31 = por %p29, %p30
    %p32 = scmp.ne.s32.totalorder %s21, %s24
    %p33 = scmp.eq.s32.totalorder %s16, 1
    %p34 = por %p32, %p33
    %p35 = scmp.ne.s32.totalorder %s24, %s25
    %p36 = scmp.eq.s32.totalorder %s16, 0
    %p37 = por %p35, %p36
    %p38 = scmp.ne.s32.totalorder %s24, %s25
    %p39 = scmp.eq.s32.totalorder %s17, 1
    %p40 = por %p38, %p39
    %p42 = scmp.ne.s32.totalorder %s25, %s41
    %p43 = scmp.eq.s32.totalorder %s17, 0
    %p44 = por %p42, %p43
    %s46 = sadd.s32 %s45, 1
    %p49 = scmp.eq.s32.totalorder %s11, 1
    %p50 = scmp.ne.s32.totalorder %s45, %s47
    %p51 = scmp.eq.s32.totalorder %s11, 0
    %p52 = por %p50, %p51
    %p53 = scmp.ne.s32.totalorder %s45, %s47
    %p54 = scmp.eq.s32.totalorder %s16, 1
    %p55 = por %p53, %p54
    %p56 = scmp.ne.s32.totalorder %s47, %s48
    %p57 = scmp.eq.s32.totalorder %s16, 0
    %p58 = por %p56, %p57
    %p59 = scmp.ne.s32.totalorder %s47, %s48
    %p60 = scmp.eq.s32.totalorder %s17, 1
    %p61 = por %p59, %p60
    %p63 = scmp.ne.s32.totalorder %s48, %s62
    %p64 = scmp.eq.s32.totalorder %s17, 0
    %p65 = por %p63, %p64
    %s67 = sadd.s32 %s66, 1
    %p70 = scmp.eq.s32.totalorder %s11, 1
    %p71 = scmp.ne.s32.totalorder %s66, %s68
    %p72 = scmp.eq.s32.totalorder %s11, 0
    %p73 = por %p71, %p72
    %p74 = scmp.ne.s32.totalorder %s66, %s68
    %p75 = scmp.eq.s32.totalorder %s16, 1
    %p76 = por %p74, %p75
    %p77 = scmp.ne.s32.totalorder %s68, %s69
    %p78 = scmp.eq.s32.totalorder %s16, 0
    %p79 = por %p77, %p78
    %p80 = scmp.ne.s32.totalorder %s68, %s69
    %p81 = scmp.eq.s32.totalorder %s17, 1
    %p82 = por %p80, %p81
    %p84 = scmp.ne.s32.totalorder %s69, %s83
    %p85 = scmp.eq.s32.totalorder %s17, 0
    %p86 = por %p84, %p85
    %s88 = sadd.s32 %s87, 1
    %p91 = scmp.eq.s32.totalorder %s11, 1
    %p92 = scmp.ne.s32.totalorder %s87, %s89
    %p93 = scmp.eq.s32.totalorder %s11, 0
    %p94 = por %p92, %p93
    %p95 = scmp.ne.s32.totalorder %s87, %s89
    %p96 = scmp.eq.s32.totalorder %s16, 1
    %p97 = por %p95, %p96
    %p98 = scmp.ne.s32.totalorder %s89, %s90
    %p99 = scmp.eq.s32.totalorder %s16, 0
    %p100 = por %p98, %p99
    %p101 = scmp.ne.s32.totalorder %s89, %s90
    %p102 = scmp.eq.s32.totalorder %s17, 1
    %p103 = por %p101, %p102
    %p105 = scmp.ne.s32.totalorder %s90, %s104
    %p106 = scmp.eq.s32.totalorder %s17, 0
    %p107 = por %p105, %p106
    %s109 = sadd.s32 %s108, 1
    %p112 = scmp.eq.s32.totalorder %s11, 1
    %p113 = scmp.ne.s32.totalorder %s108, %s110
    %p114 = scmp.eq.s32.totalorder %s11, 0
    %p115 = por %p113, %p114
    %p116 = scmp.ne.s32.totalorder %s108, %s110
    %p117 = scmp.eq.s32.totalorder %s16, 1
    %p118 = por %p116, %p117
    %p119 = scmp.ne.s32.totalorder %s110, %s111
    %p120 = scmp.eq.s32.totalorder %s16, 0
    %p121 = por %p119, %p120
    %p122 = scmp.ne.s32.totalorder %s110, %s111
    %p123 = scmp.eq.s32.totalorder %s17, 1
    %p124 = por %p122, %p123
    %p126 = scmp.ne.s32.totalorder %s111, %s125
    %p127 = scmp.eq.s32.totalorder %s17, 0
    %p128 = por %p126, %p127
    %s129 = ssub.s32 %s11, %s18
    %p130 = scmp.eq.s32.totalorder %s129, 0
    %s132 = sadd.s32 %s131, 1
    %s133 = scalar_select %p130, %s131, %s132
    %p136 = pneg %p130
    %p137 = scmp.eq.s32.totalorder %s11, 1
    %p138 = por %p136, %p137
    %p139 = scmp.ne.s32.totalorder %s131, %s134
    %p140 = scmp.eq.s32.totalorder %s11, 0
    %p141 = por %p139, %p140
    %p142 = scmp.ne.s32.totalorder %s131, %s134
    %p143 = scmp.eq.s32.totalorder %s16, 1
    %p144 = por %p142, %p143
    %p145 = scmp.ne.s32.totalorder %s134, %s135
    %p146 = scmp.eq.s32.totalorder %s16, 0
    %p147 = por %p145, %p146
    %p148 = scmp.ne.s32.totalorder %s134, %s135
    %p149 = scmp.eq.s32.totalorder %s17, 1
    %p150 = por %p148, %p149
    %p152 = scmp.ne.s32.totalorder %s135, %s151
    %p153 = scmp.eq.s32.totalorder %s17, 0
    %p154 = por %p152, %p153
    %p155 = scmp.le.s32.totalorder 1, %s11
    %p156 = scmp.lt.s32.totalorder %s11, 3
    %p157 = pnand %p155, %p156
    %p158 = pneg %p157
    // Predicated region
    $region9: #{_lambda_.46} parent=5 // pred_check
      _
    $region10: #{_lambda_.46} parent=5 // pred_check_branch
      %160 = sbr.rel (%p157) target = $region12
    $region11: #{_lambda_.46} parent=5 // pred_region
      %s161 = ssub.s32 %s11, 1
      // Predicated region
      $region13: #{_lambda_.46} parent=11 // pred_check
        %p162 = pneg %p58
      $region14: #{_lambda_.46} parent=11 // pred_check_branch
        %164 = sbr.rel (%p162) target = $region16
      $region15: #{_lambda_.46} parent=11 // pred_region
        _
      $region16: #{_lambda_.46} parent=11 // pred_fallthru
        _
      // Predicated region
      $region17: #{_lambda_.46} parent=11 // pred_check
        %p165 = pneg %p79
      $region18: #{_lambda_.46} parent=11 // pred_check_branch
        %167 = sbr.rel (%p165) target = $region20
      $region19: #{_lambda_.46} parent=11 // pred_region
        _
      $region20: #{_lambda_.46} parent=11 // pred_fallthru
        _
      // Predicated region
      $region21: #{_lambda_.46} parent=11 // pred_check
        %p168 = pneg %p100
      $region22: #{_lambda_.46} parent=11 // pred_check_branch
        %170 = sbr.rel (%p168) target = $region24
      $region23: #{_lambda_.46} parent=11 // pred_region
        _
      $region24: #{_lambda_.46} parent=11 // pred_fallthru
        _
      // Predicated region
      $region25: #{_lambda_.46} parent=11 // pred_check
        %p171 = pneg %p121
      $region26: #{_lambda_.46} parent=11 // pred_check_branch
        %173 = sbr.rel (%p171) target = $region28
      $region27: #{_lambda_.46} parent=11 // pred_region
        _
      $region28: #{_lambda_.46} parent=11 // pred_fallthru
        _
    $region12: #{_lambda_.46} parent=5 // pred_fallthru
      _
    %p174 = scmp.lt.s32.totalorder %s11, 2
    // Predicated region
    $region29: #{_lambda_.46} parent=5 // pred_check
      %p175 = pneg %p174
    $region30: #{_lambda_.46} parent=5 // pred_check_branch
      %177 = sbr.rel (%p175) target = $region32
    $region31: #{_lambda_.46} parent=5 // pred_region
      // Predicated region
      $region33: #{_lambda_.46} parent=31 // pred_check
        %p178 = pneg %p31
      $region34: #{_lambda_.46} parent=31 // pred_check_branch
        %180 = sbr.rel (%p178) target = $region36
      $region35: #{_lambda_.46} parent=31 // pred_region
        %s181 = smul.u32 2, %s11
        %p182 = scmp.lt.s32.totalorder %s181, 3
        %s183 = scalar_select %p182, %s181, 3
        %s184 = smul.addr %s183, 3
        %s185 = smul.addr %s184, 4
        %s186 = scalar_lea.vmem %s0, %s185
        %s187 = smul.u32 2, %s11
      $region36: #{_lambda_.46} parent=31 // pred_fallthru
        _
    $region32: #{_lambda_.46} parent=5 // pred_fallthru
      _
    %p188 = scmp.le.s32.totalorder 1, %s11
    %p189 = scmp.lt.s32.totalorder %s11, 3
    %p190 = pnand %p188, %p189
    %p191 = pneg %p190
    // Predicated region
    $region37: #{_lambda_.46} parent=5 // pred_check
      _
    $region38: #{_lambda_.46} parent=5 // pred_check_branch
      %193 = sbr.rel (%p190) target = $region40
    $region39: #{_lambda_.46} parent=5 // pred_region
      %s194 = ssub.s32 %s11, 1
      %s195 = smul.u32 2, %s16
      %p196 = scmp.lt.s32.totalorder %s195, 3
      %s197 = scalar_select %p196, %s195, 3
      %s198 = smul.addr %s197, 3
      %s199 = smul.addr %s198, 4
      %s200 = scalar_lea.vmem %s0, %s199
      %p201 = pneg %p37
      %p202 = pneg %p34
      %p203 = pneg %p58
      %p204 = pneg %p55
      %p205 = pneg %p79
      %p206 = pneg %p76
      %p207 = pneg %p100
      %p208 = pneg %p97
      %p209 = pneg %p121
      %p210 = pneg %p118
      %p211 = pneg %p147
      %p212 = pneg %p144
      %s213 = smul.u32 2, %s16
      %p214 = scmp.lt.s32.totalorder %s213, 3
      %s215 = scalar_select %p214, %s213, 3
      %s216 = smul.addr %s215, 4
      %s217 = scalar_lea.vmem %s5, %s216
      %s218 = smul.u32 2, %s16
      %p219 = scmp.lt.s32.totalorder %s218, 3
      %s220 = scalar_select %p219, %s218, 3
      %s221 = smul.addr %s220, 3
      %s222 = smul.addr %s221, 4
      %s223 = scalar_lea.vmem %s0, %s222
      %s224 = smul.u32 2, %s16
      %s225 = smul.u32 2, %s16
      %p226 = scmp.lt.s32.totalorder %s225, 3
      %s227 = scalar_select %p226, %s225, 3
      %s228 = smul.addr %s227, 4
      %s229 = scalar_lea.vmem %s5, %s228
      %s230 = smul.u32 2, %s16
      %v232 = vld [vmem:[%s223] sm:$0xff]
      %v233 = vld [vmem:[%s223 + $0x8] sm:$0xf]
      %v234 = vld [vmem:[%s223 + $0xc] sm:$0xff]
      %v235 = vld [vmem:[%s223 + $0x14] sm:$0xf]
      %v236 = vld [vmem:[%s1] sm:$0xff]
      %v237 = vld [vmem:[%s1 + $0x8] sm:$0xff]
      %v238 = vld [vmem:[%s1 + $0x10] sm:$0xff]
      %v239 = vld [vmem:[%s1 + $0x18] sm:$0xff]
      %v240 = vld [vmem:[%s1 + $0x20] sm:$0xff]
      %v241 = vld [vmem:[%s1 + $0x28] sm:$0xff]
      %v242 = vld [vmem:[%s1 + $0x30] sm:$0xff]
      %v243 = vld [vmem:[%s1 + $0x38] sm:$0xff]
      %v244 = vld [vmem:[%s1 + $0x40] sm:$0xff]
      %v245 = vld [vmem:[%s1 + $0x48] sm:$0xff]
      %v246 = vld [vmem:[%s1 + $0x50] sm:$0xff]
      %v247 = vld [vmem:[%s1 + $0x58] sm:$0xff]
      %v248 = vld [vmem:[%s1 + $0x60] sm:$0xff]
      %v249 = vld [vmem:[%s1 + $0x68] sm:$0xff]
      %v250 = vld [vmem:[%s1 + $0x70] sm:$0xff]
      %v251 = vld [vmem:[%s1 + $0x78] sm:$0xff]
      %v252 = vld [vmem:[%s1 + $0x80] sm:$0xff]
      %v253 = vld [vmem:[%s1 + $0x88] sm:$0xff]
      %v254 = vld [vmem:[%s1 + $0x90] sm:$0xff]
      %v255 = vld [vmem:[%s1 + $0x98] sm:$0xff]
      %v256 = vld [vmem:[%s1 + $0xa0] sm:$0xff]
      %v257 = vld [vmem:[%s1 + $0xa8] sm:$0xff]
      %v258 = vld [vmem:[%s1 + $0xb0] sm:$0xff]
      %v259 = vld [vmem:[%s1 + $0xb8] sm:$0xff]
      %v260 = vld [vmem:[%s1 + $0xc0] sm:$0xff]
      %v261 = vld [vmem:[%s1 + $0xc8] sm:$0xff]
      %v262 = vld [vmem:[%s1 + $0xd0] sm:$0xff]
      %v263 = vld [vmem:[%s1 + $0xd8] sm:$0xff]
      %v264 = vld [vmem:[%s1 + $0xe0] sm:$0xff]
      %v265 = vld [vmem:[%s1 + $0xe8] sm:$0xff]
      %v266 = vld [vmem:[%s1 + $0xf0] sm:$0xff]
      %v267 = vld [vmem:[%s1 + $0xf8] sm:$0xff]
      %v268 = vld [vmem:[%s1 + $0x100] sm:$0xff]
      %v269 = vld [vmem:[%s1 + $0x108] sm:$0xff]
      %v270 = vld [vmem:[%s1 + $0x110] sm:$0xff]
      %v271 = vld [vmem:[%s1 + $0x118] sm:$0xff]
      %v272 = vld [vmem:[%s1 + $0x120] sm:$0xff]
      %v273 = vld [vmem:[%s1 + $0x128] sm:$0xff]
      %v274 = vld [vmem:[%s1 + $0x130] sm:$0xff]
      %v275 = vld [vmem:[%s1 + $0x138] sm:$0xff]
      %v276 = vld [vmem:[%s1 + $0x140] sm:$0xff]
      %v277 = vld [vmem:[%s1 + $0x148] sm:$0xff]
      %v278 = vld [vmem:[%s1 + $0x150] sm:$0xff]
      %v279 = vld [vmem:[%s1 + $0x158] sm:$0xff]
      %v280 = vld [vmem:[%s1 + $0x160] sm:$0xff]
      %v281 = vld [vmem:[%s2] sm:$0x3]
      %v283 = vlaneseq
      %v284 = vshrl.u32 %v283, 7
      %v285 = vsub.s32 0, %v284
      %v286 = vrot.slane %v281, %v285
      %v287 = vlaneseq
      %v288 = vshrl.u32 %v287, 7
      %v289 = vsub.s32 1, %v288
      %v290 = vrot.slane %v281, %v289
      %v297 = vunpack.c.l.b16 %v232
      %v298 = vunpack.c.h.b16 %v232
      %v299 = vunpack.c.l.b16 %v233
      %v300 = vunpack.c.l.b16 %v234
      %v301 = vunpack.c.h.b16 %v234
      %v302 = vunpack.c.l.b16 %v235
      %v303 = vpack.c.b16 %v300, %v297
      %v304 = vpack.c.b16 %v301, %v298
      %v305 = vpack.c.b16 %v302, %v299
      %v353 = vunpack.c.l.b16 %v236
      %v354 = vunpack.c.h.b16 %v236
      %v355 = vunpack.c.l.b16 %v237
      %v356 = vunpack.c.h.b16 %v237
      %v357 = vunpack.c.l.b16 %v238
      %v358 = vunpack.c.h.b16 %v238
      %v359 = vunpack.c.l.b16 %v239
      %v360 = vunpack.c.h.b16 %v239
      %v361 = vunpack.c.l.b16 %v240
      %v362 = vunpack.c.h.b16 %v240
      %v363 = vunpack.c.l.b16 %v241
      %v364 = vunpack.c.h.b16 %v241
      %v365 = vunpack.c.l.b16 %v242
      %v366 = vunpack.c.h.b16 %v242
      %v367 = vunpack.c.l.b16 %v243
      %v368 = vunpack.c.h.b16 %v243
      %v369 = vunpack.c.l.b16 %v244
      %v370 = vunpack.c.h.b16 %v244
      %v371 = vunpack.c.l.b16 %v245
      %v372 = vunpack.c.h.b16 %v245
      %v373 = vunpack.c.l.b16 %v246
      %v374 = vunpack.c.h.b16 %v246
      %v375 = vunpack.c.l.b16 %v247
      %v376 = vunpack.c.h.b16 %v247
      %v377 = vunpack.c.l.b16 %v248
      %v378 = vunpack.c.h.b16 %v248
      %v379 = vunpack.c.l.b16 %v249
      %v380 = vunpack.c.h.b16 %v249
      %v381 = vunpack.c.l.b16 %v250
      %v382 = vunpack.c.h.b16 %v250
      %v383 = vunpack.c.l.b16 %v251
      %v384 = vunpack.c.h.b16 %v251
      %v385 = vunpack.c.l.b16 %v252
      %v386 = vunpack.c.h.b16 %v252
      %v387 = vunpack.c.l.b16 %v253
      %v388 = vunpack.c.h.b16 %v253
      %v389 = vunpack.c.l.b16 %v254
      %v390 = vunpack.c.h.b16 %v254
      %v391 = vunpack.c.l.b16 %v255
      %v392 = vunpack.c.h.b16 %v255
      %v393 = vunpack.c.l.b16 %v256
      %v394 = vunpack.c.h.b16 %v256
      %v395 = vunpack.c.l.b16 %v257
      %v396 = vunpack.c.h.b16 %v257
      %v397 = vunpack.c.l.b16 %v258
      %v398 = vunpack.c.h.b16 %v258
      %v399 = vunpack.c.l.b16 %v259
      %v400 = vunpack.c.h.b16 %v259
      %v401 = vunpack.c.l.b16 %v260
      %v402 = vunpack.c.h.b16 %v260
      %v403 = vunpack.c.l.b16 %v261
      %v404 = vunpack.c.h.b16 %v261
      %v405 = vunpack.c.l.b16 %v262
      %v406 = vunpack.c.h.b16 %v262
      %v407 = vunpack.c.l.b16 %v263
      %v408 = vunpack.c.h.b16 %v263
      %v409 = vunpack.c.l.b16 %v264
      %v410 = vunpack.c.h.b16 %v264
      %v411 = vunpack.c.l.b16 %v265
      %v412 = vunpack.c.h.b16 %v265
      %v413 = vunpack.c.l.b16 %v266
      %v414 = vunpack.c.h.b16 %v266
      %v415 = vunpack.c.l.b16 %v267
      %v416 = vunpack.c.h.b16 %v267
      %v417 = vunpack.c.l.b16 %v268
      %v418 = vunpack.c.h.b16 %v268
      %v419 = vunpack.c.l.b16 %v269
      %v420 = vunpack.c.h.b16 %v269
      %v421 = vunpack.c.l.b16 %v270
      %v422 = vunpack.c.h.b16 %v270
      %v423 = vunpack.c.l.b16 %v271
      %v424 = vunpack.c.h.b16 %v271
      %v425 = vunpack.c.l.b16 %v272
      %v426 = vunpack.c.h.b16 %v272
      %v427 = vunpack.c.l.b16 %v273
      %v428 = vunpack.c.h.b16 %v273
      %v429 = vunpack.c.l.b16 %v274
      %v430 = vunpack.c.h.b16 %v274
      %v431 = vunpack.c.l.b16 %v275
      %v432 = vunpack.c.h.b16 %v275
      %v433 = vunpack.c.l.b16 %v276
      %v434 = vunpack.c.h.b16 %v276
      %v435 = vunpack.c.l.b16 %v277
      %v436 = vunpack.c.h.b16 %v277
      %v437 = vunpack.c.l.b16 %v278
      %v438 = vunpack.c.h.b16 %v278
      %v439 = vunpack.c.l.b16 %v279
      %v440 = vunpack.c.h.b16 %v279
      %v441 = vunpack.c.l.b16 %v280
      %v442 = vunpack.c.h.b16 %v280
      %v443 = vpack.c.b16 %v355, %v353
      %v444 = vpack.c.b16 %v356, %v354
      %v445 = vpack.c.b16 %v359, %v357
      %v446 = vpack.c.b16 %v360, %v358
      %v447 = vpack.c.b16 %v363, %v361
      %v448 = vpack.c.b16 %v364, %v362
      %v449 = vpack.c.b16 %v367, %v365
      %v450 = vpack.c.b16 %v368, %v366
      %v451 = vpack.c.b16 %v371, %v369
      %v452 = vpack.c.b16 %v372, %v370
      %v453 = vpack.c.b16 %v375, %v373
      %v454 = vpack.c.b16 %v376, %v374
      %v455 = vpack.c.b16 %v379, %v377
      %v456 = vpack.c.b16 %v380, %v378
      %v457 = vpack.c.b16 %v383, %v381
      %v458 = vpack.c.b16 %v384, %v382
      %v459 = vpack.c.b16 %v387, %v385
      %v460 = vpack.c.b16 %v388, %v386
      %v461 = vpack.c.b16 %v391, %v389
      %v462 = vpack.c.b16 %v392, %v390
      %v463 = vpack.c.b16 %v395, %v393
      %v464 = vpack.c.b16 %v396, %v394
      %v465 = vpack.c.b16 %v399, %v397
      %v466 = vpack.c.b16 %v400, %v398
      %v467 = vpack.c.b16 %v403, %v401
      %v468 = vpack.c.b16 %v404, %v402
      %v469 = vpack.c.b16 %v407, %v405
      %v470 = vpack.c.b16 %v408, %v406
      %v471 = vpack.c.b16 %v411, %v409
      %v472 = vpack.c.b16 %v412, %v410
      %v473 = vpack.c.b16 %v415, %v413
      %v474 = vpack.c.b16 %v416, %v414
      %v475 = vpack.c.b16 %v419, %v417
      %v476 = vpack.c.b16 %v420, %v418
      %v477 = vpack.c.b16 %v423, %v421
      %v478 = vpack.c.b16 %v424, %v422
      %v479 = vpack.c.b16 %v427, %v425
      %v480 = vpack.c.b16 %v428, %v426
      %v481 = vpack.c.b16 %v431, %v429
      %v482 = vpack.c.b16 %v432, %v430
      %v483 = vpack.c.b16 %v435, %v433
      %v484 = vpack.c.b16 %v436, %v434
      %v485 = vpack.c.b16 %v439, %v437
      %v486 = vpack.c.b16 %v440, %v438
      %v487 = vpack.c.b16 %v441, %v441
      %v488 = vpack.c.b16 %v442, %v442
      %vm533 = vcmask 850944
      %v535 = vsel %vm533, %v305, 0
      %vm537 = vcmask 1043456
      %v539 = vsel %vm537, %v487, 0
      %v542 = vsel %vm537, %v488, 0
      %544 = vmatprep.subr.bf16.mxu0 %v458
      %545 = vmatpush1.bf16.msra.mxu0 %v457
      %546 = vmatprep.subr.bf16.mxu0 %v456
      %547 = vmatpush1.bf16.msra.mxu0 %v455
      %548 = vmatprep.subr.bf16.mxu0 %v454
      %549 = vmatpush1.bf16.msra.mxu0 %v453
      %550 = vmatprep.subr.bf16.mxu0 %v452
      %551 = vmatpush1.bf16.msra.mxu0 %v451
      %552 = vmatprep.subr.bf16.mxu0 %v450
      %553 = vmatpush1.bf16.msra.mxu0 %v449
      %554 = vmatprep.subr.bf16.mxu0 %v448
      %555 = vmatpush1.bf16.msra.mxu0 %v447
      %556 = vmatprep.subr.bf16.mxu0 %v446
      %557 = vmatpush1.bf16.msra.mxu0 %v445
      %558 = vmatprep.subr.bf16.mxu0 %v444
      %559 = vmatpush1.bf16.msra.mxu0 %v443
      %560 = vmatprep.subr.bf16.mxu0 %v474
      %561 = vmatpush2.bf16.msra.mxu0 %v473
      %562 = vmatprep.subr.bf16.mxu0 %v472
      %563 = vmatpush2.bf16.msra.mxu0 %v471
      %564 = vmatprep.subr.bf16.mxu0 %v470
      %565 = vmatpush2.bf16.msra.mxu0 %v469
      %566 = vmatprep.subr.bf16.mxu0 %v468
      %567 = vmatpush2.bf16.msra.mxu0 %v467
      %568 = vmatprep.subr.bf16.mxu0 %v466
      %569 = vmatpush2.bf16.msra.mxu0 %v465
      %570 = vmatprep.subr.bf16.mxu0 %v464
      %571 = vmatpush2.bf16.msra.mxu0 %v463
      %572 = vmatprep.subr.bf16.mxu0 %v462
      %573 = vmatpush2.bf16.msra.mxu0 %v461
      %574 = vmatprep.subr.bf16.mxu0 %v460
      %575 = vmatpush2.bf16.msra.mxu0 %v459
      %576 = vmatprep.mubr.bf16.mxu0 %v304
      %577 = vmatmul.mubr.bf16.gmra.mxu0 %v303
      %v578 = vpop.f32.mrf.mxu0
      %v579 = vadd.f32 %v286, %v578
      %v580 = vpop.f32.mrf.mxu0
      %v581 = vadd.f32 %v290, %v580
      %v582 = vpop.f32.mrf.mxu0
      %v583 = vadd.f32 %v286, %v582
      %v584 = vpop.f32.mrf.mxu0
      %v585 = vadd.f32 %v290, %v584
      %586 = vdwg.mxu0
      %587 = vmatprep.subr.bf16.mxu0 0
      %588 = vmatpush1.bf16.msra.mxu0 0
      %589 = vmatprep.subr.bf16.mxu0 %v542
      %590 = vmatpush1.bf16.msra.mxu0 %v539
      %591 = vmatprep.subr.bf16.mxu0 %v486
      %592 = vmatpush1.bf16.msra.mxu0 %v485
      %593 = vmatprep.subr.bf16.mxu0 %v484
      %594 = vmatpush1.bf16.msra.mxu0 %v483
      %595 = vmatprep.subr.bf16.mxu0 %v482
      %596 = vmatpush1.bf16.msra.mxu0 %v481
      %597 = vmatprep.subr.bf16.mxu0 %v480
      %598 = vmatpush1.bf16.msra.mxu0 %v479
      %599 = vmatprep.subr.bf16.mxu0 %v478
      %600 = vmatpush1.bf16.msra.mxu0 %v477
      %601 = vmatprep.subr.bf16.mxu0 %v476
      %602 = vmatpush1.bf16.msra.mxu0 %v475
      %603 = vmatprep.subr.bf16.mxu0 0
      %604 = vmatpush2.bf16.msra.mxu0 0
      %605 = vmatprep.subr.bf16.mxu0 0
      %606 = vmatpush2.bf16.msra.mxu0 0
      %607 = vmatprep.subr.bf16.mxu0 0
      %608 = vmatpush2.bf16.msra.mxu0 0
      %609 = vmatprep.subr.bf16.mxu0 0
      %610 = vmatpush2.bf16.msra.mxu0 0
      %611 = vmatprep.subr.bf16.mxu0 0
      %612 = vmatpush2.bf16.msra.mxu0 0
      %613 = vmatprep.subr.bf16.mxu0 0
      %614 = vmatpush2.bf16.msra.mxu0 0
      %615 = vmatprep.subr.bf16.mxu0 0
      %616 = vmatpush2.bf16.msra.mxu0 0
      %617 = vmatprep.subr.bf16.mxu0 0
      %618 = vmatpush2.bf16.msra.mxu0 0
      %619 = vmatprep.mubr.bf16.mxu0 0
      %620 = vmatmul.mubr.bf16.gmra.mxu0 %v535
      %v621 = vpop.f32.mrf.mxu0
      %v622 = vadd.f32 %v579, %v621
      %v623 = vpop.f32.mrf.mxu0
      %v624 = vadd.f32 %v581, %v623
      %v625 = vpop.f32.mrf.mxu0
      %v626 = vadd.f32 %v583, %v625
      %v627 = vpop.f32.mrf.mxu0
      %v628 = vadd.f32 %v585, %v627
      %629 = vdwg.mxu0
      %v630 = vmax.f32 %v622, 0.0
      %v631 = vmax.f32 %v624, 0.0
      %v632 = vmax.f32 %v626, 0.0
      %v633 = vmax.f32 %v628, 0.0
      %v634 = vpack.c.bf16 %v632, %v630
      %v635 = vpack.c.bf16 %v633, %v631
      %v636 = vld [vmem:[%s3] sm:$0xf]
      %v637 = vld [vmem:[%s3 + $0x4] sm:$0xf]
      %v638 = vld [vmem:[%s3 + $0x8] sm:$0xf]
      %v639 = vld [vmem:[%s3 + $0xc] sm:$0xf]
      %v640 = vld [vmem:[%s3 + $0x10] sm:$0xf]
      %v641 = vld [vmem:[%s3 + $0x14] sm:$0xf]
      %v642 = vld [vmem:[%s3 + $0x18] sm:$0xf]
      %v643 = vld [vmem:[%s3 + $0x1c] sm:$0xf]
      %v644 = vld [vmem:[%s3 + $0x20] sm:$0xf]
      %v645 = vld [vmem:[%s3 + $0x24] sm:$0xf]
      %v646 = vld [vmem:[%s3 + $0x28] sm:$0xf]
      %v647 = vld [vmem:[%s3 + $0x2c] sm:$0xf]
      %v648 = vld [vmem:[%s3 + $0x30] sm:$0xf]
      %v649 = vld [vmem:[%s3 + $0x34] sm:$0xf]
      %v650 = vld [vmem:[%s3 + $0x38] sm:$0xf]
      %v651 = vld [vmem:[%s3 + $0x3c] sm:$0xf]
      %v652 = vld [vmem:[%s3 + $0x40] sm:$0xf]
      %v653 = vld [vmem:[%s3 + $0x44] sm:$0xf]
      %v654 = vld [vmem:[%s3 + $0x48] sm:$0xf]
      %v655 = vld [vmem:[%s3 + $0x4c] sm:$0xf]
      %v656 = vld [vmem:[%s4] sm:$0x1]
      %v658 = vlaneseq
      %v659 = vshrl.u32 %v658, 7
      %v660 = vsub.s32 0, %v659
      %v661 = vrot.slane %v656, %v660
      %v683 = vunpack.c.l.b16 %v636
      %v684 = vunpack.c.l.b16 %v637
      %v685 = vunpack.c.l.b16 %v638
      %v686 = vunpack.c.l.b16 %v639
      %v687 = vunpack.c.l.b16 %v640
      %v688 = vunpack.c.l.b16 %v641
      %v689 = vunpack.c.l.b16 %v642
      %v690 = vunpack.c.l.b16 %v643
      %v691 = vunpack.c.l.b16 %v644
      %v692 = vunpack.c.l.b16 %v645
      %v693 = vunpack.c.l.b16 %v646
      %v694 = vunpack.c.l.b16 %v647
      %v695 = vunpack.c.l.b16 %v648
      %v696 = vunpack.c.l.b16 %v649
      %v697 = vunpack.c.l.b16 %v650
      %v698 = vunpack.c.l.b16 %v651
      %v699 = vunpack.c.l.b16 %v652
      %v700 = vunpack.c.l.b16 %v653
      %v701 = vunpack.c.l.b16 %v654
      %v702 = vunpack.c.l.b16 %v655
      %v703 = vpack.c.b16 %v684, %v683
      %v704 = vpack.c.b16 %v686, %v685
      %v705 = vpack.c.b16 %v688, %v687
      %v706 = vpack.c.b16 %v690, %v689
      %v707 = vpack.c.b16 %v692, %v691
      %v708 = vpack.c.b16 %v694, %v693
      %v709 = vpack.c.b16 %v696, %v695
      %v710 = vpack.c.b16 %v698, %v697
      %v711 = vpack.c.b16 %v700, %v699
      %v712 = vpack.c.b16 %v702, %v701
      %vm723 = vcmask 261120
      %v725 = vsel %vm723, %v635, 0
      %727 = vmatprep.subr.bf16.mxu0 0
      %728 = vmatpush1.bf16.msra.mxu0 %v710
      %729 = vmatprep.subr.bf16.mxu0 0
      %730 = vmatpush1.bf16.msra.mxu0 %v709
      %731 = vmatprep.subr.bf16.mxu0 0
      %732 = vmatpush1.bf16.msra.mxu0 %v708
      %733 = vmatprep.subr.bf16.mxu0 0
      %734 = vmatpush1.bf16.msra.mxu0 %v707
      %735 = vmatprep.subr.bf16.mxu0 0
      %736 = vmatpush1.bf16.msra.mxu0 %v706
      %737 = vmatprep.subr.bf16.mxu0 0
      %738 = vmatpush1.bf16.msra.mxu0 %v705
      %739 = vmatprep.subr.bf16.mxu0 0
      %740 = vmatpush1.bf16.msra.mxu0 %v704
      %741 = vmatprep.subr.bf16.mxu0 0
      %742 = vmatpush1.bf16.msra.mxu0 %v703
      %743 = vmatprep.subr.bf16.mxu0 0
      %744 = vmatpush2.bf16.msra.mxu0 0
      %745 = vmatprep.subr.bf16.mxu0 0
      %746 = vmatpush2.bf16.msra.mxu0 0
      %747 = vmatprep.subr.bf16.mxu0 0
      %748 = vmatpush2.bf16.msra.mxu0 0
      %749 = vmatprep.subr.bf16.mxu0 0
      %750 = vmatpush2.bf16.msra.mxu0 0
      %751 = vmatprep.subr.bf16.mxu0 0
      %752 = vmatpush2.bf16.msra.mxu0 0
      %753 = vmatprep.subr.bf16.mxu0 0
      %754 = vmatpush2.bf16.msra.mxu0 0
      %755 = vmatprep.subr.bf16.mxu0 0
      %756 = vmatpush2.bf16.msra.mxu0 %v712
      %757 = vmatprep.subr.bf16.mxu0 0
      %758 = vmatpush2.bf16.msra.mxu0 %v711
      %759 = vmatprep.mubr.bf16.mxu0 %v725
      %760 = vmatmul.mubr.bf16.gmra.mxu0 %v634
      %v761 = vpop.f32.mrf.mxu0
      %v762 = vadd.f32 %v661, %v761
      %v763 = vpop.f32.mrf.mxu0
      %v764 = vpop.f32.mrf.mxu0
      %v765 = vadd.f32 %v661, %v764
      %v766 = vpop.f32.mrf.mxu0
      %767 = vdwg.mxu0
      %v768 = vmax.f32 %v762, 0.0
      %v769 = vmax.f32 %v765, 0.0
      %v770 = vpack.c.bf16 %v769, %v768
      %v772 = vunpack.c.l.b16 %v770
      %v773 = vunpack.c.h.b16 %v770
      %v774 = vpack.c.b16 %v772, %v772
      %v775 = vpack.c.b16 %v773, %v773
      %vm778 = vcmask 650240
      %779 = vst.msk [vmem:[%s229] sm:$0xf] %vm778, %v774
      %780 = vst.msk [vmem:[%s229 + $0x4] sm:$0xf] %vm778, %v775
      %s781 = smul.u32 2, %s16
      %p782 = scmp.lt.s32.totalorder %s781, 3
      %s783 = scalar_select %p782, %s781, 3
      %s784 = smul.addr %s783, 4
      %s785 = scalar_lea.vmem %s5, %s784
      // Predicated region
      $region41: #{_lambda_.46} parent=39 // pred_check
        %p786 = pneg %p144
      $region42: #{_lambda_.46} parent=39 // pred_check_branch
        %788 = sbr.rel (%p786) target = $region44
      $region43: #{_lambda_.46} parent=39 // pred_region
        %s789 = smul.u32 2, %s16
      $region44: #{_lambda_.46} parent=39 // pred_fallthru
        _
    $region40: #{_lambda_.46} parent=5 // pred_fallthru
      _
    %p790 = scmp.le.s32.totalorder 2, %s11
    // Predicated region
    $region45: #{_lambda_.46} parent=5 // pred_check
      %p791 = pneg %p790
    $region46: #{_lambda_.46} parent=5 // pred_check_branch
      %793 = sbr.rel (%p791) target = $region48
    $region47: #{_lambda_.46} parent=5 // pred_region
      %s794 = ssub.s32 %s11, 2
      // Predicated region
      $region49: #{_lambda_.46} parent=47 // pred_check
        %p795 = pneg %p150
      $region50: #{_lambda_.46} parent=47 // pred_check_branch
        %797 = sbr.rel (%p795) target = $region52
      $region51: #{_lambda_.46} parent=47 // pred_region
        %s798 = smul.u32 2, %s17
        %p799 = scmp.lt.s32.totalorder %s798, 3
        %s800 = scalar_select %p799, %s798, 3
        %s801 = smul.addr %s800, 4
        %s802 = scalar_lea.vmem %s5, %s801
      $region52: #{_lambda_.46} parent=47 // pred_fallthru
        _
    $region48: #{_lambda_.46} parent=5 // pred_fallthru
      _
  $region6: #{_lambda_.46} parent=0 // loop_footer
    %s15 = sadd.s32 1, %s11
  $region7: #{_lambda_.46} parent=0 // loop_footer_branch
    %10 = sbr.rel target = $region3
  $region8: #{_lambda_.46} parent=0 // loop_exit
    _

// kernel: _lambda_.47
$region0: #{_lambda_.47}
  #allocation0 [shape = 'u32[]', space=smem, size = 0x4, offset = 0x4, fixed_abs, tag = 'smem constant byte address 0x4 - core index']
  #allocation1 [shape = 'u32[144,128]{1,0:T(1,128)}', space=vmem, size = 0x12000, scoped, tag = 'internal scratch']
  %s0 = inlined_call_operand.vmem [shape: bf16[128,180], index: 0, kind: input, shape index: {}]
  %s1 = inlined_call_operand.vmem [shape: bf16[180,80], index: 1, kind: input, shape index: {}]
  %s2 = inlined_call_operand.vmem [shape: f32[1,80], index: 2, kind: input, shape index: {}]
  %s3 = inlined_call_operand.vmem [shape: bf16[80,40], index: 3, kind: input, shape index: {}]
  %s4 = inlined_call_operand.vmem [shape: f32[1,40], index: 4, kind: input, shape index: {}]
  %s5 = inlined_call_operand.vmem [shape: bf16[128,40], index: 5, kind: output, shape index: {}]
  %s6 = sld [smem:[#allocation0]]
  $region53: #{_lambda_.47} parent=0
    _
  %s8 = ssub.s32 1, %s6
  %s9 = scalar_select 0, %s8, %s6
  loop: start=0, step=1, limit=4
  $region2: #{_lambda_.47} parent=0 // loop_pre_header
    _
  $region3: #{_lambda_.47} parent=0 // loop_header
    %s11 = sphi 0, %s15
    %p12 = scmp.ge.s32.totalorder %s11, 4
    %s21 = sphi 0, %s23
    %s24 = sphi 0, %s21
    %s25 = sphi 0, %s24
    %s41 = sphi 0, %s25
    %s45 = sphi 0, %s45
    %s47 = sphi 0, %s45
    %s48 = sphi 0, %s47
    %s62 = sphi 0, %s48
    %s66 = sphi 0, %s66
    %s68 = sphi 0, %s66
    %s69 = sphi 0, %s68
    %s83 = sphi 0, %s69
    %s87 = sphi 0, %s87
    %s89 = sphi 0, %s87
    %s90 = sphi 0, %s89
    %s104 = sphi 0, %s90
    %s108 = sphi 0, %s108
    %s110 = sphi 0, %s108
    %s111 = sphi 0, %s110
    %s125 = sphi 0, %s111
    %s131 = sphi 0, %s133
    %s134 = sphi 0, %s131
    %s135 = sphi 0, %s134
    %s151 = sphi 0, %s135
  $region4: #{_lambda_.47} parent=0 // loop_header_branch
    %14 = sbr.rel (%p12) target = $region8
  $region5: #{_lambda_.47} parent=0 // loop_body
    %s16 = ssub.s32 %s11, 1
    %s17 = ssub.s32 %s11, 2
    %s18 = sadd.s32 %s11, 1
    %s19 = ssub.s32 %s11, %s18
    %p20 = scmp.eq.s32.totalorder %s19, 0
    %s22 = sadd.s32 %s21, 1
    %s23 = scalar_select %p20, %s21, %s22
    %p26 = pneg %p20
    %p27 = scmp.eq.s32.totalorder %s11, 1
    %p28 = por %p26, %p27
    %p29 = scmp.ne.s32.totalorder %s21, %s24
    %p30 = scmp.eq.s32.totalorder %s11, 0
    %p31 = por %p29, %p30
    %p32 = scmp.ne.s32.totalorder %s21, %s24
    %p33 = scmp.eq.s32.totalorder %s16, 1
    %p34 = por %p32, %p33
    %p35 = scmp.ne.s32.totalorder %s24, %s25
    %p36 = scmp.eq.s32.totalorder %s16, 0
    %p37 = por %p35, %p36
    %p38 = scmp.ne.s32.totalorder %s24, %s25
    %p39 = scmp.eq.s32.totalorder %s17, 1
    %p40 = por %p38, %p39
    %p42 = scmp.ne.s32.totalorder %s25, %s41
    %p43 = scmp.eq.s32.totalorder %s17, 0
    %p44 = por %p42, %p43
    %s46 = sadd.s32 %s45, 1
    %p49 = scmp.eq.s32.totalorder %s11, 1
    %p50 = scmp.ne.s32.totalorder %s45, %s47
    %p51 = scmp.eq.s32.totalorder %s11, 0
    %p52 = por %p50, %p51
    %p53 = scmp.ne.s32.totalorder %s45, %s47
    %p54 = scmp.eq.s32.totalorder %s16, 1
    %p55 = por %p53, %p54
    %p56 = scmp.ne.s32.totalorder %s47, %s48
    %p57 = scmp.eq.s32.totalorder %s16, 0
    %p58 = por %p56, %p57
    %p59 = scmp.ne.s32.totalorder %s47, %s48
    %p60 = scmp.eq.s32.totalorder %s17, 1
    %p61 = por %p59, %p60
    %p63 = scmp.ne.s32.totalorder %s48, %s62
    %p64 = scmp.eq.s32.totalorder %s17, 0
    %p65 = por %p63, %p64
    %s67 = sadd.s32 %s66, 1
    %p70 = scmp.eq.s32.totalorder %s11, 1
    %p71 = scmp.ne.s32.totalorder %s66, %s68
    %p72 = scmp.eq.s32.totalorder %s11, 0
    %p73 = por %p71, %p72
    %p74 = scmp.ne.s32.totalorder %s66, %s68
    %p75 = scmp.eq.s32.totalorder %s16, 1
    %p76 = por %p74, %p75
    %p77 = scmp.ne.s32.totalorder %s68, %s69
    %p78 = scmp.eq.s32.totalorder %s16, 0
    %p79 = por %p77, %p78
    %p80 = scmp.ne.s32.totalorder %s68, %s69
    %p81 = scmp.eq.s32.totalorder %s17, 1
    %p82 = por %p80, %p81
    %p84 = scmp.ne.s32.totalorder %s69, %s83
    %p85 = scmp.eq.s32.totalorder %s17, 0
    %p86 = por %p84, %p85
    %s88 = sadd.s32 %s87, 1
    %p91 = scmp.eq.s32.totalorder %s11, 1
    %p92 = scmp.ne.s32.totalorder %s87, %s89
    %p93 = scmp.eq.s32.totalorder %s11, 0
    %p94 = por %p92, %p93
    %p95 = scmp.ne.s32.totalorder %s87, %s89
    %p96 = scmp.eq.s32.totalorder %s16, 1
    %p97 = por %p95, %p96
    %p98 = scmp.ne.s32.totalorder %s89, %s90
    %p99 = scmp.eq.s32.totalorder %s16, 0
    %p100 = por %p98, %p99
    %p101 = scmp.ne.s32.totalorder %s89, %s90
    %p102 = scmp.eq.s32.totalorder %s17, 1
    %p103 = por %p101, %p102
    %p105 = scmp.ne.s32.totalorder %s90, %s104
    %p106 = scmp.eq.s32.totalorder %s17, 0
    %p107 = por %p105, %p106
    %s109 = sadd.s32 %s108, 1
    %p112 = scmp.eq.s32.totalorder %s11, 1
    %p113 = scmp.ne.s32.totalorder %s108, %s110
    %p114 = scmp.eq.s32.totalorder %s11, 0
    %p115 = por %p113, %p114
    %p116 = scmp.ne.s32.totalorder %s108, %s110
    %p117 = scmp.eq.s32.totalorder %s16, 1
    %p118 = por %p116, %p117
    %p119 = scmp.ne.s32.totalorder %s110, %s111
    %p120 = scmp.eq.s32.totalorder %s16, 0
    %p121 = por %p119, %p120
    %p122 = scmp.ne.s32.totalorder %s110, %s111
    %p123 = scmp.eq.s32.totalorder %s17, 1
    %p124 = por %p122, %p123
    %p126 = scmp.ne.s32.totalorder %s111, %s125
    %p127 = scmp.eq.s32.totalorder %s17, 0
    %p128 = por %p126, %p127
    %s129 = ssub.s32 %s11, %s18
    %p130 = scmp.eq.s32.totalorder %s129, 0
    %s132 = sadd.s32 %s131, 1
    %s133 = scalar_select %p130, %s131, %s132
    %p136 = pneg %p130
    %p137 = scmp.eq.s32.totalorder %s11, 1
    %p138 = por %p136, %p137
    %p139 = scmp.ne.s32.totalorder %s131, %s134
    %p140 = scmp.eq.s32.totalorder %s11, 0
    %p141 = por %p139, %p140
    %p142 = scmp.ne.s32.totalorder %s131, %s134
    %p143 = scmp.eq.s32.totalorder %s16, 1
    %p144 = por %p142, %p143
    %p145 = scmp.ne.s32.totalorder %s134, %s135
    %p146 = scmp.eq.s32.totalorder %s16, 0
    %p147 = por %p145, %p146
    %p148 = scmp.ne.s32.totalorder %s134, %s135
    %p149 = scmp.eq.s32.totalorder %s17, 1
    %p150 = por %p148, %p149
    %p152 = scmp.ne.s32.totalorder %s135, %s151
    %p153 = scmp.eq.s32.totalorder %s17, 0
    %p154 = por %p152, %p153
    %p155 = scmp.le.s32.totalorder 1, %s11
    %p156 = scmp.lt.s32.totalorder %s11, 3
    %p157 = pnand %p155, %p156
    %p158 = pneg %p157
    // Predicated region
    $region9: #{_lambda_.47} parent=5 // pred_check
      _
    $region10: #{_lambda_.47} parent=5 // pred_check_branch
      %160 = sbr.rel (%p157) target = $region12
    $region11: #{_lambda_.47} parent=5 // pred_region
      %s161 = ssub.s32 %s11, 1
      // Predicated region
      $region13: #{_lambda_.47} parent=11 // pred_check
        %p162 = pneg %p58
      $region14: #{_lambda_.47} parent=11 // pred_check_branch
        %164 = sbr.rel (%p162) target = $region16
      $region15: #{_lambda_.47} parent=11 // pred_region
        _
      $region16: #{_lambda_.47} parent=11 // pred_fallthru
        _
      // Predicated region
      $region17: #{_lambda_.47} parent=11 // pred_check
        %p165 = pneg %p79
      $region18: #{_lambda_.47} parent=11 // pred_check_branch
        %167 = sbr.rel (%p165) target = $region20
      $region19: #{_lambda_.47} parent=11 // pred_region
        _
      $region20: #{_lambda_.47} parent=11 // pred_fallthru
        _
      // Predicated region
      $region21: #{_lambda_.47} parent=11 // pred_check
        %p168 = pneg %p100
      $region22: #{_lambda_.47} parent=11 // pred_check_branch
        %170 = sbr.rel (%p168) target = $region24
      $region23: #{_lambda_.47} parent=11 // pred_region
        _
      $region24: #{_lambda_.47} parent=11 // pred_fallthru
        _
      // Predicated region
      $region25: #{_lambda_.47} parent=11 // pred_check
        %p171 = pneg %p121
      $region26: #{_lambda_.47} parent=11 // pred_check_branch
        %173 = sbr.rel (%p171) target = $region28
      $region27: #{_lambda_.47} parent=11 // pred_region
        _
      $region28: #{_lambda_.47} parent=11 // pred_fallthru
        _
    $region12: #{_lambda_.47} parent=5 // pred_fallthru
      _
    %p174 = scmp.lt.s32.totalorder %s11, 2
    // Predicated region
    $region29: #{_lambda_.47} parent=5 // pred_check
      %p175 = pneg %p174
    $region30: #{_lambda_.47} parent=5 // pred_check_branch
      %177 = sbr.rel (%p175) target = $region32
    $region31: #{_lambda_.47} parent=5 // pred_region
      // Predicated region
      $region33: #{_lambda_.47} parent=31 // pred_check
        %p178 = pneg %p31
      $region34: #{_lambda_.47} parent=31 // pred_check_branch
        %180 = sbr.rel (%p178) target = $region36
      $region35: #{_lambda_.47} parent=31 // pred_region
        %s181 = smul.u32 8, %s11
        %p182 = scmp.lt.s32.totalorder %s181, 15
        %s183 = scalar_select %p182, %s181, 15
        %s184 = smul.addr %s183, 2
        %s185 = smul.addr %s184, 4
        %s186 = scalar_lea.vmem %s0, %s185
        %s187 = smul.u32 8, %s11
      $region36: #{_lambda_.47} parent=31 // pred_fallthru
        _
    $region32: #{_lambda_.47} parent=5 // pred_fallthru
      _
    %p188 = scmp.le.s32.totalorder 1, %s11
    %p189 = scmp.lt.s32.totalorder %s11, 3
    %p190 = pnand %p188, %p189
    %p191 = pneg %p190
    // Predicated region
    $region37: #{_lambda_.47} parent=5 // pred_check
      _
    $region38: #{_lambda_.47} parent=5 // pred_check_branch
      %193 = sbr.rel (%p190) target = $region40
    $region39: #{_lambda_.47} parent=5 // pred_region
      %s194 = ssub.s32 %s11, 1
      %s195 = smul.u32 8, %s16
      %p196 = scmp.lt.s32.totalorder %s195, 15
      %s197 = scalar_select %p196, %s195, 15
      %s198 = smul.addr %s197, 2
      %s199 = smul.addr %s198, 4
      %s200 = scalar_lea.vmem %s0, %s199
      %p201 = pneg %p37
      %p202 = pneg %p34
      %p203 = pneg %p58
      %p204 = pneg %p55
      %p205 = pneg %p79
      %p206 = pneg %p76
      %p207 = pneg %p100
      %p208 = pneg %p97
      %p209 = pneg %p121
      %p210 = pneg %p118
      %p211 = pneg %p147
      %p212 = pneg %p144
      %s213 = smul.u32 8, %s16
      %p214 = scmp.lt.s32.totalorder %s213, 15
      %s215 = scalar_select %p214, %s213, 15
      %s216 = smul.addr %s215, 4
      %s217 = scalar_lea.vmem %s5, %s216
      %s218 = smul.u32 8, %s16
      %p219 = scmp.lt.s32.totalorder %s218, 15
      %s220 = scalar_select %p219, %s218, 15
      %s221 = smul.addr %s220, 2
      %s222 = smul.addr %s221, 4
      %s223 = scalar_lea.vmem %s0, %s222
      %s224 = smul.u32 8, %s16
      %s225 = smul.u32 8, %s16
      %p226 = scmp.lt.s32.totalorder %s225, 15
      %s227 = scalar_select %p226, %s225, 15
      %s228 = smul.addr %s227, 4
      %s229 = scalar_lea.vmem %s5, %s228
      %s230 = smul.u32 8, %s16
      %v232 = vld [vmem:[%s223] sm:$0xff]
      %v233 = vld [vmem:[%s223 + $0x8] sm:$0xff]
      %v234 = vld [vmem:[%s223 + $0x10] sm:$0xff]
      %v235 = vld [vmem:[%s223 + $0x18] sm:$0xff]
      %v236 = vld [vmem:[%s223 + $0x20] sm:$0xff]
      %v237 = vld [vmem:[%s223 + $0x28] sm:$0xff]
      %v238 = vld [vmem:[%s223 + $0x30] sm:$0xff]
      %v239 = vld [vmem:[%s223 + $0x38] sm:$0xff]
      %v240 = vld [vmem:[%s1] sm:$0xf]
      %v241 = vld [vmem:[%s1 + $0x4] sm:$0xf]
      %v242 = vld [vmem:[%s1 + $0x8] sm:$0xf]
      %v243 = vld [vmem:[%s1 + $0xc] sm:$0xf]
      %v244 = vld [vmem:[%s1 + $0x10] sm:$0xf]
      %v245 = vld [vmem:[%s1 + $0x14] sm:$0xf]
      %v246 = vld [vmem:[%s1 + $0x18] sm:$0xf]
      %v247 = vld [vmem:[%s1 + $0x1c] sm:$0xf]
      %v248 = vld [vmem:[%s1 + $0x20] sm:$0xf]
      %v249 = vld [vmem:[%s1 + $0x24] sm:$0xf]
      %v250 = vld [vmem:[%s1 + $0x28] sm:$0xf]
      %v251 = vld [vmem:[%s1 + $0x2c] sm:$0xf]
      %v252 = vld [vmem:[%s1 + $0x30] sm:$0xf]
      %v253 = vld [vmem:[%s1 + $0x34] sm:$0xf]
      %v254 = vld [vmem:[%s1 + $0x38] sm:$0xf]
      %v255 = vld [vmem:[%s1 + $0x3c] sm:$0xf]
      %v256 = vld [vmem:[%s1 + $0x40] sm:$0xf]
      %v257 = vld [vmem:[%s1 + $0x44] sm:$0xf]
      %v258 = vld [vmem:[%s1 + $0x48] sm:$0xf]
      %v259 = vld [vmem:[%s1 + $0x4c] sm:$0xf]
      %v260 = vld [vmem:[%s1 + $0x50] sm:$0xf]
      %v261 = vld [vmem:[%s1 + $0x54] sm:$0xf]
      %v262 = vld [vmem:[%s1 + $0x58] sm:$0x3]
      %v263 = vld [vmem:[%s2] sm:$0x1]
      %v265 = vlaneseq
      %v266 = vshrl.u32 %v265, 7
      %v267 = vsub.s32 0, %v266
      %v268 = vrot.slane %v263, %v267
      %v278 = vunpack.c.l.b16 %v232
      %v279 = vunpack.c.h.b16 %v232
      %v280 = vunpack.c.l.b16 %v233
      %v281 = vunpack.c.h.b16 %v233
      %v282 = vunpack.c.l.b16 %v234
      %v283 = vunpack.c.h.b16 %v234
      %v284 = vunpack.c.l.b16 %v235
      %v285 = vunpack.c.h.b16 %v235
      %v286 = vunpack.c.l.b16 %v236
      %v287 = vunpack.c.h.b16 %v236
      %v288 = vunpack.c.l.b16 %v237
      %v289 = vunpack.c.h.b16 %v237
      %v290 = vunpack.c.l.b16 %v238
      %v291 = vunpack.c.h.b16 %v238
      %v292 = vunpack.c.l.b16 %v239
      %v293 = vunpack.c.h.b16 %v239
      %v294 = vpack.c.b16 %v280, %v278
      %v295 = vpack.c.b16 %v281, %v279
      %v296 = vpack.c.b16 %v284, %v282
      %v297 = vpack.c.b16 %v285, %v283
      %v298 = vpack.c.b16 %v288, %v286
      %v299 = vpack.c.b16 %v289, %v287
      %v300 = vpack.c.b16 %v292, %v290
      %v301 = vpack.c.b16 %v293, %v291
      %v329 = vunpack.c.l.b16 %v240
      %v330 = vunpack.c.l.b16 %v241
      %v331 = vunpack.c.l.b16 %v242
      %v332 = vunpack.c.l.b16 %v243
      %v333 = vunpack.c.l.b16 %v244
      %v334 = vunpack.c.l.b16 %v245
      %v335 = vunpack.c.l.b16 %v246
      %v336 = vunpack.c.l.b16 %v247
      %v337 = vunpack.c.l.b16 %v248
      %v338 = vunpack.c.l.b16 %v249
      %v339 = vunpack.c.l.b16 %v250
      %v340 = vunpack.c.l.b16 %v251
      %v341 = vunpack.c.l.b16 %v252
      %v342 = vunpack.c.l.b16 %v253
      %v343 = vunpack.c.l.b16 %v254
      %v344 = vunpack.c.l.b16 %v255
      %v345 = vunpack.c.l.b16 %v256
      %v346 = vunpack.c.l.b16 %v257
      %v347 = vunpack.c.l.b16 %v258
      %v348 = vunpack.c.l.b16 %v259
      %v349 = vunpack.c.l.b16 %v260
      %v350 = vunpack.c.l.b16 %v261
      %v351 = vunpack.c.l.b16 %v262
      %v352 = vpack.c.b16 %v330, %v329
      %v353 = vpack.c.b16 %v332, %v331
      %v354 = vpack.c.b16 %v334, %v333
      %v355 = vpack.c.b16 %v336, %v335
      %v356 = vpack.c.b16 %v338, %v337
      %v357 = vpack.c.b16 %v340, %v339
      %v358 = vpack.c.b16 %v342, %v341
      %v359 = vpack.c.b16 %v344, %v343
      %v360 = vpack.c.b16 %v346, %v345
      %v361 = vpack.c.b16 %v348, %v347
      %v362 = vpack.c.b16 %v350, %v349
      %v363 = vpack.c.b16 %v351, %v351
      %vm375 = vcmask 424960
      %v377 = vsel %vm375, %v295, 0
      %v380 = vsel %vm375, %v297, 0
      %v383 = vsel %vm375, %v299, 0
      %v386 = vsel %vm375, %v301, 0
      %vm388 = vcmask 1041408
      %v390 = vsel %vm388, %v363, 0
      %392 = vmatprep.subr.bf16.mxu0 0
      %393 = vmatpush1.bf16.msra.mxu0 %v359
      %394 = vmatprep.subr.bf16.mxu0 0
      %395 = vmatpush1.bf16.msra.mxu0 %v358
      %396 = vmatprep.subr.bf16.mxu0 0
      %397 = vmatpush1.bf16.msra.mxu0 %v357
      %398 = vmatprep.subr.bf16.mxu0 0
      %399 = vmatpush1.bf16.msra.mxu0 %v356
      %400 = vmatprep.subr.bf16.mxu0 0
      %401 = vmatpush1.bf16.msra.mxu0 %v355
      %402 = vmatprep.subr.bf16.mxu0 0
      %403 = vmatpush1.bf16.msra.mxu0 %v354
      %404 = vmatprep.subr.bf16.mxu0 0
      %405 = vmatpush1.bf16.msra.mxu0 %v353
      %406 = vmatprep.subr.bf16.mxu0 0
      %407 = vmatpush1.bf16.msra.mxu0 %v352
      %408 = vmatprep.subr.bf16.mxu0 0
      %409 = vmatpush2.bf16.msra.mxu0 0
      %410 = vmatprep.subr.bf16.mxu0 0
      %411 = vmatpush2.bf16.msra.mxu0 0
      %412 = vmatprep.subr.bf16.mxu0 0
      %413 = vmatpush2.bf16.msra.mxu0 0
      %414 = vmatprep.subr.bf16.mxu0 0
      %415 = vmatpush2.bf16.msra.mxu0 0
      %416 = vmatprep.subr.bf16.mxu0 0
      %417 = vmatpush2.bf16.msra.mxu0 %v390
      %418 = vmatprep.subr.bf16.mxu0 0
      %419 = vmatpush2.bf16.msra.mxu0 %v362
      %420 = vmatprep.subr.bf16.mxu0 0
      %421 = vmatpush2.bf16.msra.mxu0 %v361
      %422 = vmatprep.subr.bf16.mxu0 0
      %423 = vmatpush2.bf16.msra.mxu0 %v360
      %424 = vmatprep.mubr.bf16.mxu0 %v377
      %425 = vmatmul.mubr.bf16.gmra.mxu0 %v294
      %v426 = vpop.f32.mrf.mxu0
      %v427 = vadd.f32 %v268, %v426
      %v428 = vpop.f32.mrf.mxu0
      %v429 = vpop.f32.mrf.mxu0
      %v430 = vadd.f32 %v268, %v429
      %v431 = vpop.f32.mrf.mxu0
      %432 = vmatprep.mubr.bf16.mxu0 %v380
      %433 = vmatmul.mubr.bf16.gmra.mxu0 %v296
      %v434 = vpop.f32.mrf.mxu0
      %v435 = vadd.f32 %v268, %v434
      %v436 = vpop.f32.mrf.mxu0
      %v437 = vpop.f32.mrf.mxu0
      %v438 = vadd.f32 %v268, %v437
      %v439 = vpop.f32.mrf.mxu0
      %440 = vmatprep.mubr.bf16.mxu0 %v383
      %441 = vmatmul.mubr.bf16.gmra.mxu0 %v298
      %v442 = vpop.f32.mrf.mxu0
      %v443 = vadd.f32 %v268, %v442
      %v444 = vpop.f32.mrf.mxu0
      %v445 = vpop.f32.mrf.mxu0
      %v446 = vadd.f32 %v268, %v445
      %v447 = vpop.f32.mrf.mxu0
      %448 = vmatprep.mubr.bf16.mxu0 %v386
      %449 = vmatmul.mubr.bf16.gmra.mxu0 %v300
      %v450 = vpop.f32.mrf.mxu0
      %v451 = vadd.f32 %v268, %v450
      %v452 = vpop.f32.mrf.mxu0
      %v453 = vpop.f32.mrf.mxu0
      %v454 = vadd.f32 %v268, %v453
      %v455 = vpop.f32.mrf.mxu0
      %456 = vdwg.mxu0
      %v457 = vmax.f32 %v427, 0.0
      %v458 = vmax.f32 %v430, 0.0
      %v459 = vmax.f32 %v435, 0.0
      %v460 = vmax.f32 %v438, 0.0
      %v461 = vmax.f32 %v443, 0.0
      %v462 = vmax.f32 %v446, 0.0
      %v463 = vmax.f32 %v451, 0.0
      %v464 = vmax.f32 %v454, 0.0
      %v465 = vpack.c.bf16 %v458, %v457
      %v466 = vpack.c.bf16 %v460, %v459
      %v467 = vpack.c.bf16 %v462, %v461
      %v468 = vpack.c.bf16 %v464, %v463
      %v469 = vld [vmem:[%s3] sm:$0xf]
      %v470 = vld [vmem:[%s3 + $0x4] sm:$0xf]
      %v471 = vld [vmem:[%s3 + $0x8] sm:$0xf]
      %v472 = vld [vmem:[%s3 + $0xc] sm:$0xf]
      %v473 = vld [vmem:[%s3 + $0x10] sm:$0xf]
      %v474 = vld [vmem:[%s3 + $0x14] sm:$0xf]
      %v475 = vld [vmem:[%s3 + $0x18] sm:$0xf]
      %v476 = vld [vmem:[%s3 + $0x1c] sm:$0xf]
      %v477 = vld [vmem:[%s3 + $0x20] sm:$0xf]
      %v478 = vld [vmem:[%s3 + $0x24] sm:$0xf]
      %v479 = vld [vmem:[%s4] sm:$0x1]
      %v481 = vlaneseq
      %v482 = vshrl.u32 %v481, 7
      %v483 = vsub.s32 0, %v482
      %v484 = vrot.slane %v479, %v483
      %v496 = vunpack.c.l.b16 %v469
      %v497 = vunpack.c.l.b16 %v470
      %v498 = vunpack.c.l.b16 %v471
      %v499 = vunpack.c.l.b16 %v472
      %v500 = vunpack.c.l.b16 %v473
      %v501 = vunpack.c.l.b16 %v474
      %v502 = vunpack.c.l.b16 %v475
      %v503 = vunpack.c.l.b16 %v476
      %v504 = vunpack.c.l.b16 %v477
      %v505 = vunpack.c.l.b16 %v478
      %v506 = vpack.c.b16 %v497, %v496
      %v507 = vpack.c.b16 %v499, %v498
      %v508 = vpack.c.b16 %v501, %v500
      %v509 = vpack.c.b16 %v503, %v502
      %v510 = vpack.c.b16 %v505, %v504
      %vm516 = vcmask 654336
      %v518 = vsel %vm516, %v465, 0
      %v521 = vsel %vm516, %v466, 0
      %v524 = vsel %vm516, %v467, 0
      %v527 = vsel %vm516, %v468, 0
      %529 = vmatprep.subr.bf16.mxu0 0
      %530 = vmatpush1.bf16.msra.mxu0 0
      %531 = vmatprep.subr.bf16.mxu0 0
      %532 = vmatpush1.bf16.msra.mxu0 0
      %533 = vmatprep.subr.bf16.mxu0 0
      %534 = vmatpush1.bf16.msra.mxu0 0
      %535 = vmatprep.subr.bf16.mxu0 0
      %536 = vmatpush1.bf16.msra.mxu0 %v510
      %537 = vmatprep.subr.bf16.mxu0 0
      %538 = vmatpush1.bf16.msra.mxu0 %v509
      %539 = vmatprep.subr.bf16.mxu0 0
      %540 = vmatpush1.bf16.msra.mxu0 %v508
      %541 = vmatprep.subr.bf16.mxu0 0
      %542 = vmatpush1.bf16.msra.mxu0 %v507
      %543 = vmatprep.subr.bf16.mxu0 0
      %544 = vmatpush1.bf16.msra.mxu0 %v506
      %545 = vmatprep.subr.bf16.mxu0 0
      %546 = vmatpush2.bf16.msra.mxu0 0
      %547 = vmatprep.subr.bf16.mxu0 0
      %548 = vmatpush2.bf16.msra.mxu0 0
      %549 = vmatprep.subr.bf16.mxu0 0
      %550 = vmatpush2.bf16.msra.mxu0 0
      %551 = vmatprep.subr.bf16.mxu0 0
      %552 = vmatpush2.bf16.msra.mxu0 0
      %553 = vmatprep.subr.bf16.mxu0 0
      %554 = vmatpush2.bf16.msra.mxu0 0
      %555 = vmatprep.subr.bf16.mxu0 0
      %556 = vmatpush2.bf16.msra.mxu0 0
      %557 = vmatprep.subr.bf16.mxu0 0
      %558 = vmatpush2.bf16.msra.mxu0 0
      %559 = vmatprep.subr.bf16.mxu0 0
      %560 = vmatpush2.bf16.msra.mxu0 0
      %561 = vmatprep.mubr.bf16.mxu0 0
      %562 = vmatmul.mubr.bf16.gmra.mxu0 %v518
      %v563 = vpop.f32.mrf.mxu0
      %v564 = vadd.f32 %v484, %v563
      %v565 = vpop.f32.mrf.mxu0
      %v566 = vpop.f32.mrf.mxu0
      %v567 = vadd.f32 %v484, %v566
      %v568 = vpop.f32.mrf.mxu0
      %569 = vmatprep.mubr.bf16.mxu0 0
      %570 = vmatmul.mubr.bf16.gmra.mxu0 %v521
      %v571 = vpop.f32.mrf.mxu0
      %v572 = vadd.f32 %v484, %v571
      %v573 = vpop.f32.mrf.mxu0
      %v574 = vpop.f32.mrf.mxu0
      %v575 = vadd.f32 %v484, %v574
      %v576 = vpop.f32.mrf.mxu0
      %577 = vmatprep.mubr.bf16.mxu0 0
      %578 = vmatmul.mubr.bf16.gmra.mxu0 %v524
      %v579 = vpop.f32.mrf.mxu0
      %v580 = vadd.f32 %v484, %v579
      %v581 = vpop.f32.mrf.mxu0
      %v582 = vpop.f32.mrf.mxu0
      %v583 = vadd.f32 %v484, %v582
      %v584 = vpop.f32.mrf.mxu0
      %585 = vmatprep.mubr.bf16.mxu0 0
      %586 = vmatmul.mubr.bf16.gmra.mxu0 %v527
      %v587 = vpop.f32.mrf.mxu0
      %v588 = vadd.f32 %v484, %v587
      %v589 = vpop.f32.mrf.mxu0
      %v590 = vpop.f32.mrf.mxu0
      %v591 = vadd.f32 %v484, %v590
      %v592 = vpop.f32.mrf.mxu0
      %593 = vdwg.mxu0
      %v594 = vmax.f32 %v564, 0.0
      %v595 = vmax.f32 %v567, 0.0
      %v596 = vmax.f32 %v572, 0.0
      %v597 = vmax.f32 %v575, 0.0
      %v598 = vmax.f32 %v580, 0.0
      %v599 = vmax.f32 %v583, 0.0
      %v600 = vmax.f32 %v588, 0.0
      %v601 = vmax.f32 %v591, 0.0
      %v602 = vpack.c.bf16 %v595, %v594
      %v603 = vpack.c.bf16 %v597, %v596
      %v604 = vpack.c.bf16 %v599, %v598
      %v605 = vpack.c.bf16 %v601, %v600
      %v610 = vunpack.c.l.b16 %v602
      %v611 = vunpack.c.h.b16 %v602
      %v612 = vunpack.c.l.b16 %v603
      %v613 = vunpack.c.h.b16 %v603
      %v614 = vunpack.c.l.b16 %v604
      %v615 = vunpack.c.h.b16 %v604
      %v616 = vunpack.c.l.b16 %v605
      %v617 = vunpack.c.h.b16 %v605
      %v618 = vpack.c.b16 %v610, %v610
      %v619 = vpack.c.b16 %v611, %v611
      %v620 = vpack.c.b16 %v612, %v612
      %v621 = vpack.c.b16 %v613, %v613
      %v622 = vpack.c.b16 %v614, %v614
      %v623 = vpack.c.b16 %v615, %v615
      %v624 = vpack.c.b16 %v616, %v616
      %v625 = vpack.c.b16 %v617, %v617
      %vm634 = vcmask 322560
      %635 = vst.msk [vmem:[%s229] sm:$0xf] %vm634, %v618
      %636 = vst.msk [vmem:[%s229 + $0x4] sm:$0xf] %vm634, %v619
      %637 = vst.msk [vmem:[%s229 + $0x8] sm:$0xf] %vm634, %v620
      %638 = vst.msk [vmem:[%s229 + $0xc] sm:$0xf] %vm634, %v621
      %639 = vst.msk [vmem:[%s229 + $0x10] sm:$0xf] %vm634, %v622
      %640 = vst.msk [vmem:[%s229 + $0x14] sm:$0xf] %vm634, %v623
      %641 = vst.msk [vmem:[%s229 + $0x18] sm:$0xf] %vm634, %v624
      %642 = vst.msk [vmem:[%s229 + $0x1c] sm:$0xf] %vm634, %v625
      %s643 = smul.u32 8, %s16
      %p644 = scmp.lt.s32.totalorder %s643, 15
      %s645 = scalar_select %p644, %s643, 15
      %s646 = smul.addr %s645, 4
      %s647 = scalar_lea.vmem %s5, %s646
      // Predicated region
      $region41: #{_lambda_.47} parent=39 // pred_check
        %p648 = pneg %p144
      $region42: #{_lambda_.47} parent=39 // pred_check_branch
        %650 = sbr.rel (%p648) target = $region44
      $region43: #{_lambda_.47} parent=39 // pred_region
        %s651 = smul.u32 8, %s16
      $region44: #{_lambda_.47} parent=39 // pred_fallthru
        _
    $region40: #{_lambda_.47} parent=5 // pred_fallthru
      _
    %p652 = scmp.le.s32.totalorder 2, %s11
    // Predicated region
    $region45: #{_lambda_.47} parent=5 // pred_check
      %p653 = pneg %p652
    $region46: #{_lambda_.47} parent=5 // pred_check_branch
      %655 = sbr.rel (%p653) target = $region48
    $region47: #{_lambda_.47} parent=5 // pred_region
      %s656 = ssub.s32 %s11, 2
      // Predicated region
      $region49: #{_lambda_.47} parent=47 // pred_check
        %p657 = pneg %p150
      $region50: #{_lambda_.47} parent=47 // pred_check_branch
        %659 = sbr.rel (%p657) target = $region52
      $region51: #{_lambda_.47} parent=47 // pred_region
        %s660 = smul.u32 8, %s17
        %p661 = scmp.lt.s32.totalorder %s660, 15
        %s662 = scalar_select %p661, %s660, 15
        %s663 = smul.addr %s662, 4
        %s664 = scalar_lea.vmem %s5, %s663
      $region52: #{_lambda_.47} parent=47 // pred_fallthru
        _
    $region48: #{_lambda_.47} parent=5 // pred_fallthru
      _
  $region6: #{_lambda_.47} parent=0 // loop_footer
    %s15 = sadd.s32 1, %s11
  $region7: #{_lambda_.47} parent=0 // loop_footer_branch
    %10 = sbr.rel target = $region3
  $region8: #{_lambda_.47} parent=0 // loop_exit
    _

// kernel: _lambda_.48
$region0: #{_lambda_.48}
  #allocation0 [shape = 'u32[]', space=smem, size = 0x4, offset = 0x4, fixed_abs, tag = 'smem constant byte address 0x4 - core index']
  #allocation1 [shape = 'u32[144,128]{1,0:T(1,128)}', space=vmem, size = 0x12000, scoped, tag = 'internal scratch']
  %s0 = inlined_call_operand.vmem [shape: bf16[512,90], index: 0, kind: input, shape index: {}]
  %s1 = inlined_call_operand.vmem [shape: bf16[90,40], index: 1, kind: input, shape index: {}]
  %s2 = inlined_call_operand.vmem [shape: f32[1,40], index: 2, kind: input, shape index: {}]
  %s3 = inlined_call_operand.vmem [shape: bf16[40,12], index: 3, kind: input, shape index: {}]
  %s4 = inlined_call_operand.vmem [shape: f32[1,12], index: 4, kind: input, shape index: {}]
  %s5 = inlined_call_operand.vmem [shape: bf16[512,12], index: 5, kind: output, shape index: {}]
  %s6 = sld [smem:[#allocation0]]
  $region53: #{_lambda_.48} parent=0
    _
  %s8 = ssub.s32 1, %s6
  %s9 = scalar_select 0, %s8, %s6
  loop: start=0, step=1, limit=4
  $region2: #{_lambda_.48} parent=0 // loop_pre_header
    _
  $region3: #{_lambda_.48} parent=0 // loop_header
    %s11 = sphi 0, %s15
    %p12 = scmp.ge.s32.totalorder %s11, 4
    %s21 = sphi 0, %s23
    %s24 = sphi 0, %s21
    %s25 = sphi 0, %s24
    %s41 = sphi 0, %s25
    %s45 = sphi 0, %s45
    %s47 = sphi 0, %s45
    %s48 = sphi 0, %s47
    %s62 = sphi 0, %s48
    %s66 = sphi 0, %s66
    %s68 = sphi 0, %s66
    %s69 = sphi 0, %s68
    %s83 = sphi 0, %s69
    %s87 = sphi 0, %s87
    %s89 = sphi 0, %s87
    %s90 = sphi 0, %s89
    %s104 = sphi 0, %s90
    %s108 = sphi 0, %s108
    %s110 = sphi 0, %s108
    %s111 = sphi 0, %s110
    %s125 = sphi 0, %s111
    %s131 = sphi 0, %s133
    %s134 = sphi 0, %s131
    %s135 = sphi 0, %s134
    %s151 = sphi 0, %s135
  $region4: #{_lambda_.48} parent=0 // loop_header_branch
    %14 = sbr.rel (%p12) target = $region8
  $region5: #{_lambda_.48} parent=0 // loop_body
    %s16 = ssub.s32 %s11, 1
    %s17 = ssub.s32 %s11, 2
    %s18 = sadd.s32 %s11, 1
    %s19 = ssub.s32 %s11, %s18
    %p20 = scmp.eq.s32.totalorder %s19, 0
    %s22 = sadd.s32 %s21, 1
    %s23 = scalar_select %p20, %s21, %s22
    %p26 = pneg %p20
    %p27 = scmp.eq.s32.totalorder %s11, 1
    %p28 = por %p26, %p27
    %p29 = scmp.ne.s32.totalorder %s21, %s24
    %p30 = scmp.eq.s32.totalorder %s11, 0
    %p31 = por %p29, %p30
    %p32 = scmp.ne.s32.totalorder %s21, %s24
    %p33 = scmp.eq.s32.totalorder %s16, 1
    %p34 = por %p32, %p33
    %p35 = scmp.ne.s32.totalorder %s24, %s25
    %p36 = scmp.eq.s32.totalorder %s16, 0
    %p37 = por %p35, %p36
    %p38 = scmp.ne.s32.totalorder %s24, %s25
    %p39 = scmp.eq.s32.totalorder %s17, 1
    %p40 = por %p38, %p39
    %p42 = scmp.ne.s32.totalorder %s25, %s41
    %p43 = scmp.eq.s32.totalorder %s17, 0
    %p44 = por %p42, %p43
    %s46 = sadd.s32 %s45, 1
    %p49 = scmp.eq.s32.totalorder %s11, 1
    %p50 = scmp.ne.s32.totalorder %s45, %s47
    %p51 = scmp.eq.s32.totalorder %s11, 0
    %p52 = por %p50, %p51
    %p53 = scmp.ne.s32.totalorder %s45, %s47
    %p54 = scmp.eq.s32.totalorder %s16, 1
    %p55 = por %p53, %p54
    %p56 = scmp.ne.s32.totalorder %s47, %s48
    %p57 = scmp.eq.s32.totalorder %s16, 0
    %p58 = por %p56, %p57
    %p59 = scmp.ne.s32.totalorder %s47, %s48
    %p60 = scmp.eq.s32.totalorder %s17, 1
    %p61 = por %p59, %p60
    %p63 = scmp.ne.s32.totalorder %s48, %s62
    %p64 = scmp.eq.s32.totalorder %s17, 0
    %p65 = por %p63, %p64
    %s67 = sadd.s32 %s66, 1
    %p70 = scmp.eq.s32.totalorder %s11, 1
    %p71 = scmp.ne.s32.totalorder %s66, %s68
    %p72 = scmp.eq.s32.totalorder %s11, 0
    %p73 = por %p71, %p72
    %p74 = scmp.ne.s32.totalorder %s66, %s68
    %p75 = scmp.eq.s32.totalorder %s16, 1
    %p76 = por %p74, %p75
    %p77 = scmp.ne.s32.totalorder %s68, %s69
    %p78 = scmp.eq.s32.totalorder %s16, 0
    %p79 = por %p77, %p78
    %p80 = scmp.ne.s32.totalorder %s68, %s69
    %p81 = scmp.eq.s32.totalorder %s17, 1
    %p82 = por %p80, %p81
    %p84 = scmp.ne.s32.totalorder %s69, %s83
    %p85 = scmp.eq.s32.totalorder %s17, 0
    %p86 = por %p84, %p85
    %s88 = sadd.s32 %s87, 1
    %p91 = scmp.eq.s32.totalorder %s11, 1
    %p92 = scmp.ne.s32.totalorder %s87, %s89
    %p93 = scmp.eq.s32.totalorder %s11, 0
    %p94 = por %p92, %p93
    %p95 = scmp.ne.s32.totalorder %s87, %s89
    %p96 = scmp.eq.s32.totalorder %s16, 1
    %p97 = por %p95, %p96
    %p98 = scmp.ne.s32.totalorder %s89, %s90
    %p99 = scmp.eq.s32.totalorder %s16, 0
    %p100 = por %p98, %p99
    %p101 = scmp.ne.s32.totalorder %s89, %s90
    %p102 = scmp.eq.s32.totalorder %s17, 1
    %p103 = por %p101, %p102
    %p105 = scmp.ne.s32.totalorder %s90, %s104
    %p106 = scmp.eq.s32.totalorder %s17, 0
    %p107 = por %p105, %p106
    %s109 = sadd.s32 %s108, 1
    %p112 = scmp.eq.s32.totalorder %s11, 1
    %p113 = scmp.ne.s32.totalorder %s108, %s110
    %p114 = scmp.eq.s32.totalorder %s11, 0
    %p115 = por %p113, %p114
    %p116 = scmp.ne.s32.totalorder %s108, %s110
    %p117 = scmp.eq.s32.totalorder %s16, 1
    %p118 = por %p116, %p117
    %p119 = scmp.ne.s32.totalorder %s110, %s111
    %p120 = scmp.eq.s32.totalorder %s16, 0
    %p121 = por %p119, %p120
    %p122 = scmp.ne.s32.totalorder %s110, %s111
    %p123 = scmp.eq.s32.totalorder %s17, 1
    %p124 = por %p122, %p123
    %p126 = scmp.ne.s32.totalorder %s111, %s125
    %p127 = scmp.eq.s32.totalorder %s17, 0
    %p128 = por %p126, %p127
    %s129 = ssub.s32 %s11, %s18
    %p130 = scmp.eq.s32.totalorder %s129, 0
    %s132 = sadd.s32 %s131, 1
    %s133 = scalar_select %p130, %s131, %s132
    %p136 = pneg %p130
    %p137 = scmp.eq.s32.totalorder %s11, 1
    %p138 = por %p136, %p137
    %p139 = scmp.ne.s32.totalorder %s131, %s134
    %p140 = scmp.eq.s32.totalorder %s11, 0
    %p141 = por %p139, %p140
    %p142 = scmp.ne.s32.totalorder %s131, %s134
    %p143 = scmp.eq.s32.totalorder %s16, 1
    %p144 = por %p142, %p143
    %p145 = scmp.ne.s32.totalorder %s134, %s135
    %p146 = scmp.eq.s32.totalorder %s16, 0
    %p147 = por %p145, %p146
    %p148 = scmp.ne.s32.totalorder %s134, %s135
    %p149 = scmp.eq.s32.totalorder %s17, 1
    %p150 = por %p148, %p149
    %p152 = scmp.ne.s32.totalorder %s135, %s151
    %p153 = scmp.eq.s32.totalorder %s17, 0
    %p154 = por %p152, %p153
    %p155 = scmp.le.s32.totalorder 1, %s11
    %p156 = scmp.lt.s32.totalorder %s11, 3
    %p157 = pnand %p155, %p156
    %p158 = pneg %p157
    // Predicated region
    $region9: #{_lambda_.48} parent=5 // pred_check
      _
    $region10: #{_lambda_.48} parent=5 // pred_check_branch
      %160 = sbr.rel (%p157) target = $region12
    $region11: #{_lambda_.48} parent=5 // pred_region
      %s161 = ssub.s32 %s11, 1
      // Predicated region
      $region13: #{_lambda_.48} parent=11 // pred_check
        %p162 = pneg %p58
      $region14: #{_lambda_.48} parent=11 // pred_check_branch
        %164 = sbr.rel (%p162) target = $region16
      $region15: #{_lambda_.48} parent=11 // pred_region
        _
      $region16: #{_lambda_.48} parent=11 // pred_fallthru
        _
      // Predicated region
      $region17: #{_lambda_.48} parent=11 // pred_check
        %p165 = pneg %p79
      $region18: #{_lambda_.48} parent=11 // pred_check_branch
        %167 = sbr.rel (%p165) target = $region20
      $region19: #{_lambda_.48} parent=11 // pred_region
        _
      $region20: #{_lambda_.48} parent=11 // pred_fallthru
        _
      // Predicated region
      $region21: #{_lambda_.48} parent=11 // pred_check
        %p168 = pneg %p100
      $region22: #{_lambda_.48} parent=11 // pred_check_branch
        %170 = sbr.rel (%p168) target = $region24
      $region23: #{_lambda_.48} parent=11 // pred_region
        _
      $region24: #{_lambda_.48} parent=11 // pred_fallthru
        _
      // Predicated region
      $region25: #{_lambda_.48} parent=11 // pred_check
        %p171 = pneg %p121
      $region26: #{_lambda_.48} parent=11 // pred_check_branch
        %173 = sbr.rel (%p171) target = $region28
      $region27: #{_lambda_.48} parent=11 // pred_region
        _
      $region28: #{_lambda_.48} parent=11 // pred_fallthru
        _
    $region12: #{_lambda_.48} parent=5 // pred_fallthru
      _
    %p174 = scmp.lt.s32.totalorder %s11, 2
    // Predicated region
    $region29: #{_lambda_.48} parent=5 // pred_check
      %p175 = pneg %p174
    $region30: #{_lambda_.48} parent=5 // pred_check_branch
      %177 = sbr.rel (%p175) target = $region32
    $region31: #{_lambda_.48} parent=5 // pred_region
      // Predicated region
      $region33: #{_lambda_.48} parent=31 // pred_check
        %p178 = pneg %p31
      $region34: #{_lambda_.48} parent=31 // pred_check_branch
        %180 = sbr.rel (%p178) target = $region36
      $region35: #{_lambda_.48} parent=31 // pred_region
        %s181 = smul.u32 32, %s11
        %p182 = scmp.lt.s32.totalorder %s181, 63
        %s183 = scalar_select %p182, %s181, 63
        %s184 = smul.addr %s183, 4
        %s185 = scalar_lea.vmem %s0, %s184
        %s186 = smul.u32 32, %s11
      $region36: #{_lambda_.48} parent=31 // pred_fallthru
        _
    $region32: #{_lambda_.48} parent=5 // pred_fallthru
      _
    %p187 = scmp.le.s32.totalorder 1, %s11
    %p188 = scmp.lt.s32.totalorder %s11, 3
    %p189 = pnand %p187, %p188
    %p190 = pneg %p189
    // Predicated region
    $region37: #{_lambda_.48} parent=5 // pred_check
      _
    $region38: #{_lambda_.48} parent=5 // pred_check_branch
      %192 = sbr.rel (%p189) target = $region40
    $region39: #{_lambda_.48} parent=5 // pred_region
      %s193 = ssub.s32 %s11, 1
      %s194 = smul.u32 32, %s16
      %p195 = scmp.lt.s32.totalorder %s194, 63
      %s196 = scalar_select %p195, %s194, 63
      %s197 = smul.addr %s196, 4
      %s198 = scalar_lea.vmem %s0, %s197
      %p199 = pneg %p37
      %p200 = pneg %p34
      %p201 = pneg %p58
      %p202 = pneg %p55
      %p203 = pneg %p79
      %p204 = pneg %p76
      %p205 = pneg %p100
      %p206 = pneg %p97
      %p207 = pneg %p121
      %p208 = pneg %p118
      %p209 = pneg %p147
      %p210 = pneg %p144
      %s211 = smul.u32 32, %s16
      %p212 = scmp.lt.s32.totalorder %s211, 63
      %s213 = scalar_select %p212, %s211, 63
      %s214 = smul.addr %s213, 4
      %s215 = scalar_lea.vmem %s5, %s214
      %s216 = smul.u32 32, %s16
      %p217 = scmp.lt.s32.totalorder %s216, 63
      %s218 = scalar_select %p217, %s216, 63
      %s219 = smul.addr %s218, 4
      %s220 = scalar_lea.vmem %s0, %s219
      %s221 = smul.u32 32, %s16
      %s222 = smul.u32 32, %s16
      %p223 = scmp.lt.s32.totalorder %s222, 63
      %s224 = scalar_select %p223, %s222, 63
      %s225 = smul.addr %s224, 4
      %s226 = scalar_lea.vmem %s5, %s225
      %s227 = smul.u32 32, %s16
      %v229 = vld [vmem:[%s220] sm:$0xf]
      %v230 = vld [vmem:[%s220 + $0x4] sm:$0xf]
      %v231 = vld [vmem:[%s220 + $0x8] sm:$0xf]
      %v232 = vld [vmem:[%s220 + $0xc] sm:$0xf]
      %v233 = vld [vmem:[%s220 + $0x10] sm:$0xf]
      %v234 = vld [vmem:[%s220 + $0x14] sm:$0xf]
      %v235 = vld [vmem:[%s220 + $0x18] sm:$0xf]
      %v236 = vld [vmem:[%s220 + $0x1c] sm:$0xf]
      %v237 = vld [vmem:[%s220 + $0x20] sm:$0xf]
      %v238 = vld [vmem:[%s220 + $0x24] sm:$0xf]
      %v239 = vld [vmem:[%s220 + $0x28] sm:$0xf]
      %v240 = vld [vmem:[%s220 + $0x2c] sm:$0xf]
      %v241 = vld [vmem:[%s220 + $0x30] sm:$0xf]
      %v242 = vld [vmem:[%s220 + $0x34] sm:$0xf]
      %v243 = vld [vmem:[%s220 + $0x38] sm:$0xf]
      %v244 = vld [vmem:[%s220 + $0x3c] sm:$0xf]
      %v245 = vld [vmem:[%s220 + $0x40] sm:$0xf]
      %v246 = vld [vmem:[%s220 + $0x44] sm:$0xf]
      %v247 = vld [vmem:[%s220 + $0x48] sm:$0xf]
      %v248 = vld [vmem:[%s220 + $0x4c] sm:$0xf]
      %v249 = vld [vmem:[%s220 + $0x50] sm:$0xf]
      %v250 = vld [vmem:[%s220 + $0x54] sm:$0xf]
      %v251 = vld [vmem:[%s220 + $0x58] sm:$0xf]
      %v252 = vld [vmem:[%s220 + $0x5c] sm:$0xf]
      %v253 = vld [vmem:[%s220 + $0x60] sm:$0xf]
      %v254 = vld [vmem:[%s220 + $0x64] sm:$0xf]
      %v255 = vld [vmem:[%s220 + $0x68] sm:$0xf]
      %v256 = vld [vmem:[%s220 + $0x6c] sm:$0xf]
      %v257 = vld [vmem:[%s220 + $0x70] sm:$0xf]
      %v258 = vld [vmem:[%s220 + $0x74] sm:$0xf]
      %v259 = vld [vmem:[%s220 + $0x78] sm:$0xf]
      %v260 = vld [vmem:[%s220 + $0x7c] sm:$0xf]
      %v261 = vld [vmem:[%s1] sm:$0xf]
      %v262 = vld [vmem:[%s1 + $0x4] sm:$0xf]
      %v263 = vld [vmem:[%s1 + $0x8] sm:$0xf]
      %v264 = vld [vmem:[%s1 + $0xc] sm:$0xf]
      %v265 = vld [vmem:[%s1 + $0x10] sm:$0xf]
      %v266 = vld [vmem:[%s1 + $0x14] sm:$0xf]
      %v267 = vld [vmem:[%s1 + $0x18] sm:$0xf]
      %v268 = vld [vmem:[%s1 + $0x1c] sm:$0xf]
      %v269 = vld [vmem:[%s1 + $0x20] sm:$0xf]
      %v270 = vld [vmem:[%s1 + $0x24] sm:$0xf]
      %v271 = vld [vmem:[%s1 + $0x28] sm:$0xf]
      %v272 = vld [vmem:[%s1 + $0x2c] sm:$0x1]
      %v273 = vld [vmem:[%s2] sm:$0x1]
      %v275 = vlaneseq
      %v276 = vshrl.u32 %v275, 7
      %v277 = vsub.s32 0, %v276
      %v278 = vrot.slane %v273, %v277
      %v312 = vunpack.c.l.b16 %v229
      %v313 = vunpack.c.l.b16 %v230
      %v314 = vunpack.c.l.b16 %v231
      %v315 = vunpack.c.l.b16 %v232
      %v316 = vunpack.c.l.b16 %v233
      %v317 = vunpack.c.l.b16 %v234
      %v318 = vunpack.c.l.b16 %v235
      %v319 = vunpack.c.l.b16 %v236
      %v320 = vunpack.c.l.b16 %v237
      %v321 = vunpack.c.l.b16 %v238
      %v322 = vunpack.c.l.b16 %v239
      %v323 = vunpack.c.l.b16 %v240
      %v324 = vunpack.c.l.b16 %v241
      %v325 = vunpack.c.l.b16 %v242
      %v326 = vunpack.c.l.b16 %v243
      %v327 = vunpack.c.l.b16 %v244
      %v328 = vunpack.c.l.b16 %v245
      %v329 = vunpack.c.l.b16 %v246
      %v330 = vunpack.c.l.b16 %v247
      %v331 = vunpack.c.l.b16 %v248
      %v332 = vunpack.c.l.b16 %v249
      %v333 = vunpack.c.l.b16 %v250
      %v334 = vunpack.c.l.b16 %v251
      %v335 = vunpack.c.l.b16 %v252
      %v336 = vunpack.c.l.b16 %v253
      %v337 = vunpack.c.l.b16 %v254
      %v338 = vunpack.c.l.b16 %v255
      %v339 = vunpack.c.l.b16 %v256
      %v340 = vunpack.c.l.b16 %v257
      %v341 = vunpack.c.l.b16 %v258
      %v342 = vunpack.c.l.b16 %v259
      %v343 = vunpack.c.l.b16 %v260
      %v344 = vpack.c.b16 %v313, %v312
      %v345 = vpack.c.b16 %v315, %v314
      %v346 = vpack.c.b16 %v317, %v316
      %v347 = vpack.c.b16 %v319, %v318
      %v348 = vpack.c.b16 %v321, %v320
      %v349 = vpack.c.b16 %v323, %v322
      %v350 = vpack.c.b16 %v325, %v324
      %v351 = vpack.c.b16 %v327, %v326
      %v352 = vpack.c.b16 %v329, %v328
      %v353 = vpack.c.b16 %v331, %v330
      %v354 = vpack.c.b16 %v333, %v332
      %v355 = vpack.c.b16 %v335, %v334
      %v356 = vpack.c.b16 %v337, %v336
      %v357 = vpack.c.b16 %v339, %v338
      %v358 = vpack.c.b16 %v341, %v340
      %v359 = vpack.c.b16 %v343, %v342
      %v372 = vunpack.c.l.b16 %v261
      %v373 = vunpack.c.l.b16 %v262
      %v374 = vunpack.c.l.b16 %v263
      %v375 = vunpack.c.l.b16 %v264
      %v376 = vunpack.c.l.b16 %v265
      %v377 = vunpack.c.l.b16 %v266
      %v378 = vunpack.c.l.b16 %v267
      %v379 = vunpack.c.l.b16 %v268
      %v380 = vunpack.c.l.b16 %v269
      %v381 = vunpack.c.l.b16 %v270
      %v382 = vunpack.c.l.b16 %v271
      %v383 = vunpack.c.l.b16 %v272
      %v384 = vpack.c.b16 %v373, %v372
      %v385 = vpack.c.b16 %v375, %v374
      %v386 = vpack.c.b16 %v377, %v376
      %v387 = vpack.c.b16 %v379, %v378
      %v388 = vpack.c.b16 %v381, %v380
      %v389 = vpack.c.b16 %v383, %v382
      %vm395 = vcmask 736256
      %v397 = vsel %vm395, %v344, 0
      %v400 = vsel %vm395, %v345, 0
      %v403 = vsel %vm395, %v346, 0
      %v406 = vsel %vm395, %v347, 0
      %v409 = vsel %vm395, %v348, 0
      %v412 = vsel %vm395, %v349, 0
      %v415 = vsel %vm395, %v350, 0
      %v418 = vsel %vm395, %v351, 0
      %v421 = vsel %vm395, %v352, 0
      %v424 = vsel %vm395, %v353, 0
      %v427 = vsel %vm395, %v354, 0
      %v430 = vsel %vm395, %v355, 0
      %v433 = vsel %vm395, %v356, 0
      %v436 = vsel %vm395, %v357, 0
      %v439 = vsel %vm395, %v358, 0
      %v442 = vsel %vm395, %v359, 0
      %vm444 = vcmask 1044480
      %v446 = vsel %vm444, %v389, 0
      %448 = vmatprep.subr.bf16.mxu0 0
      %449 = vmatpush1.bf16.msra.mxu0 0
      %450 = vmatprep.subr.bf16.mxu0 0
      %451 = vmatpush1.bf16.msra.mxu0 0
      %452 = vmatprep.subr.bf16.mxu0 0
      %453 = vmatpush1.bf16.msra.mxu0 %v446
      %454 = vmatprep.subr.bf16.mxu0 0
      %455 = vmatpush1.bf16.msra.mxu0 %v388
      %456 = vmatprep.subr.bf16.mxu0 0
      %457 = vmatpush1.bf16.msra.mxu0 %v387
      %458 = vmatprep.subr.bf16.mxu0 0
      %459 = vmatpush1.bf16.msra.mxu0 %v386
      %460 = vmatprep.subr.bf16.mxu0 0
      %461 = vmatpush1.bf16.msra.mxu0 %v385
      %462 = vmatprep.subr.bf16.mxu0 0
      %463 = vmatpush1.bf16.msra.mxu0 %v384
      %464 = vmatprep.subr.bf16.mxu0 0
      %465 = vmatpush2.bf16.msra.mxu0 0
      %466 = vmatprep.subr.bf16.mxu0 0
      %467 = vmatpush2.bf16.msra.mxu0 0
      %468 = vmatprep.subr.bf16.mxu0 0
      %469 = vmatpush2.bf16.msra.mxu0 0
      %470 = vmatprep.subr.bf16.mxu0 0
      %471 = vmatpush2.bf16.msra.mxu0 0
      %472 = vmatprep.subr.bf16.mxu0 0
      %473 = vmatpush2.bf16.msra.mxu0 0
      %474 = vmatprep.subr.bf16.mxu0 0
      %475 = vmatpush2.bf16.msra.mxu0 0
      %476 = vmatprep.subr.bf16.mxu0 0
      %477 = vmatpush2.bf16.msra.mxu0 0
      %478 = vmatprep.subr.bf16.mxu0 0
      %479 = vmatpush2.bf16.msra.mxu0 0
      %480 = vmatprep.mubr.bf16.mxu0 0
      %481 = vmatmul.mubr.bf16.gmra.mxu0 %v397
      %v482 = vpop.f32.mrf.mxu0
      %v483 = vadd.f32 %v278, %v482
      %v484 = vpop.f32.mrf.mxu0
      %v485 = vpop.f32.mrf.mxu0
      %v486 = vadd.f32 %v278, %v485
      %v487 = vpop.f32.mrf.mxu0
      %488 = vmatprep.mubr.bf16.mxu0 0
      %489 = vmatmul.mubr.bf16.gmra.mxu0 %v400
      %v490 = vpop.f32.mrf.mxu0
      %v491 = vadd.f32 %v278, %v490
      %v492 = vpop.f32.mrf.mxu0
      %v493 = vpop.f32.mrf.mxu0
      %v494 = vadd.f32 %v278, %v493
      %v495 = vpop.f32.mrf.mxu0
      %496 = vmatprep.mubr.bf16.mxu0 0
      %497 = vmatmul.mubr.bf16.gmra.mxu0 %v403
      %v498 = vpop.f32.mrf.mxu0
      %v499 = vadd.f32 %v278, %v498
      %v500 = vpop.f32.mrf.mxu0
      %v501 = vpop.f32.mrf.mxu0
      %v502 = vadd.f32 %v278, %v501
      %v503 = vpop.f32.mrf.mxu0
      %504 = vmatprep.mubr.bf16.mxu0 0
      %505 = vmatmul.mubr.bf16.gmra.mxu0 %v406
      %v506 = vpop.f32.mrf.mxu0
      %v507 = vadd.f32 %v278, %v506
      %v508 = vpop.f32.mrf.mxu0
      %v509 = vpop.f32.mrf.mxu0
      %v510 = vadd.f32 %v278, %v509
      %v511 = vpop.f32.mrf.mxu0
      %512 = vmatprep.mubr.bf16.mxu0 0
      %513 = vmatmul.mubr.bf16.gmra.mxu0 %v409
      %v514 = vpop.f32.mrf.mxu0
      %v515 = vadd.f32 %v278, %v514
      %v516 = vpop.f32.mrf.mxu0
      %v517 = vpop.f32.mrf.mxu0
      %v518 = vadd.f32 %v278, %v517
      %v519 = vpop.f32.mrf.mxu0
      %520 = vmatprep.mubr.bf16.mxu0 0
      %521 = vmatmul.mubr.bf16.gmra.mxu0 %v412
      %v522 = vpop.f32.mrf.mxu0
      %v523 = vadd.f32 %v278, %v522
      %v524 = vpop.f32.mrf.mxu0
      %v525 = vpop.f32.mrf.mxu0
      %v526 = vadd.f32 %v278, %v525
      %v527 = vpop.f32.mrf.mxu0
      %528 = vmatprep.mubr.bf16.mxu0 0
      %529 = vmatmul.mubr.bf16.gmra.mxu0 %v415
      %v530 = vpop.f32.mrf.mxu0
      %v531 = vadd.f32 %v278, %v530
      %v532 = vpop.f32.mrf.mxu0
      %v533 = vpop.f32.mrf.mxu0
      %v534 = vadd.f32 %v278, %v533
      %v535 = vpop.f32.mrf.mxu0
      %536 = vmatprep.mubr.bf16.mxu0 0
      %537 = vmatmul.mubr.bf16.gmra.mxu0 %v418
      %v538 = vpop.f32.mrf.mxu0
      %v539 = vadd.f32 %v278, %v538
      %v540 = vpop.f32.mrf.mxu0
      %v541 = vpop.f32.mrf.mxu0
      %v542 = vadd.f32 %v278, %v541
      %v543 = vpop.f32.mrf.mxu0
      %544 = vmatprep.mubr.bf16.mxu0 0
      %545 = vmatmul.mubr.bf16.gmra.mxu0 %v421
      %v546 = vpop.f32.mrf.mxu0
      %v547 = vadd.f32 %v278, %v546
      %v548 = vpop.f32.mrf.mxu0
      %v549 = vpop.f32.mrf.mxu0
      %v550 = vadd.f32 %v278, %v549
      %v551 = vpop.f32.mrf.mxu0
      %552 = vmatprep.mubr.bf16.mxu0 0
      %553 = vmatmul.mubr.bf16.gmra.mxu0 %v424
      %v554 = vpop.f32.mrf.mxu0
      %v555 = vadd.f32 %v278, %v554
      %v556 = vpop.f32.mrf.mxu0
      %v557 = vpop.f32.mrf.mxu0
      %v558 = vadd.f32 %v278, %v557
      %v559 = vpop.f32.mrf.mxu0
      %560 = vmatprep.mubr.bf16.mxu0 0
      %561 = vmatmul.mubr.bf16.gmra.mxu0 %v427
      %v562 = vpop.f32.mrf.mxu0
      %v563 = vadd.f32 %v278, %v562
      %v564 = vpop.f32.mrf.mxu0
      %v565 = vpop.f32.mrf.mxu0
      %v566 = vadd.f32 %v278, %v565
      %v567 = vpop.f32.mrf.mxu0
      %568 = vmatprep.mubr.bf16.mxu0 0
      %569 = vmatmul.mubr.bf16.gmra.mxu0 %v430
      %v570 = vpop.f32.mrf.mxu0
      %v571 = vadd.f32 %v278, %v570
      %v572 = vpop.f32.mrf.mxu0
      %v573 = vpop.f32.mrf.mxu0
      %v574 = vadd.f32 %v278, %v573
      %v575 = vpop.f32.mrf.mxu0
      %576 = vmatprep.mubr.bf16.mxu0 0
      %577 = vmatmul.mubr.bf16.gmra.mxu0 %v433
      %v578 = vpop.f32.mrf.mxu0
      %v579 = vadd.f32 %v278, %v578
      %v580 = vpop.f32.mrf.mxu0
      %v581 = vpop.f32.mrf.mxu0
      %v582 = vadd.f32 %v278, %v581
      %v583 = vpop.f32.mrf.mxu0
      %584 = vmatprep.mubr.bf16.mxu0 0
      %585 = vmatmul.mubr.bf16.gmra.mxu0 %v436
      %v586 = vpop.f32.mrf.mxu0
      %v587 = vadd.f32 %v278, %v586
      %v588 = vpop.f32.mrf.mxu0
      %v589 = vpop.f32.mrf.mxu0
      %v590 = vadd.f32 %v278, %v589
      %v591 = vpop.f32.mrf.mxu0
      %592 = vmatprep.mubr.bf16.mxu0 0
      %593 = vmatmul.mubr.bf16.gmra.mxu0 %v439
      %v594 = vpop.f32.mrf.mxu0
      %v595 = vadd.f32 %v278, %v594
      %v596 = vpop.f32.mrf.mxu0
      %v597 = vpop.f32.mrf.mxu0
      %v598 = vadd.f32 %v278, %v597
      %v599 = vpop.f32.mrf.mxu0
      %600 = vmatprep.mubr.bf16.mxu0 0
      %601 = vmatmul.mubr.bf16.gmra.mxu0 %v442
      %v602 = vpop.f32.mrf.mxu0
      %v603 = vadd.f32 %v278, %v602
      %v604 = vpop.f32.mrf.mxu0
      %v605 = vpop.f32.mrf.mxu0
      %v606 = vadd.f32 %v278, %v605
      %v607 = vpop.f32.mrf.mxu0
      %608 = vdwg.mxu0
      %v609 = vmax.f32 %v483, 0.0
      %v610 = vmax.f32 %v486, 0.0
      %v611 = vmax.f32 %v491, 0.0
      %v612 = vmax.f32 %v494, 0.0
      %v613 = vmax.f32 %v499, 0.0
      %v614 = vmax.f32 %v502, 0.0
      %v615 = vmax.f32 %v507, 0.0
      %v616 = vmax.f32 %v510, 0.0
      %v617 = vmax.f32 %v515, 0.0
      %v618 = vmax.f32 %v518, 0.0
      %v619 = vmax.f32 %v523, 0.0
      %v620 = vmax.f32 %v526, 0.0
      %v621 = vmax.f32 %v531, 0.0
      %v622 = vmax.f32 %v534, 0.0
      %v623 = vmax.f32 %v539, 0.0
      %v624 = vmax.f32 %v542, 0.0
      %v625 = vmax.f32 %v547, 0.0
      %v626 = vmax.f32 %v550, 0.0
      %v627 = vmax.f32 %v555, 0.0
      %v628 = vmax.f32 %v558, 0.0
      %v629 = vmax.f32 %v563, 0.0
      %v630 = vmax.f32 %v566, 0.0
      %v631 = vmax.f32 %v571, 0.0
      %v632 = vmax.f32 %v574, 0.0
      %v633 = vmax.f32 %v579, 0.0
      %v634 = vmax.f32 %v582, 0.0
      %v635 = vmax.f32 %v587, 0.0
      %v636 = vmax.f32 %v590, 0.0
      %v637 = vmax.f32 %v595, 0.0
      %v638 = vmax.f32 %v598, 0.0
      %v639 = vmax.f32 %v603, 0.0
      %v640 = vmax.f32 %v606, 0.0
      %v641 = vpack.c.bf16 %v610, %v609
      %v642 = vpack.c.bf16 %v612, %v611
      %v643 = vpack.c.bf16 %v614, %v613
      %v644 = vpack.c.bf16 %v616, %v615
      %v645 = vpack.c.bf16 %v618, %v617
      %v646 = vpack.c.bf16 %v620, %v619
      %v647 = vpack.c.bf16 %v622, %v621
      %v648 = vpack.c.bf16 %v624, %v623
      %v649 = vpack.c.bf16 %v626, %v625
      %v650 = vpack.c.bf16 %v628, %v627
      %v651 = vpack.c.bf16 %v630, %v629
      %v652 = vpack.c.bf16 %v632, %v631
      %v653 = vpack.c.bf16 %v634, %v633
      %v654 = vpack.c.bf16 %v636, %v635
      %v655 = vpack.c.bf16 %v638, %v637
      %v656 = vpack.c.bf16 %v640, %v639
      %v657 = vld [vmem:[%s3] sm:$0xf]
      %v658 = vld [vmem:[%s3 + $0x4] sm:$0xf]
      %v659 = vld [vmem:[%s3 + $0x8] sm:$0xf]
      %v660 = vld [vmem:[%s3 + $0xc] sm:$0xf]
      %v661 = vld [vmem:[%s3 + $0x10] sm:$0xf]
      %v662 = vld [vmem:[%s4] sm:$0x1]
      %v664 = vlaneseq
      %v665 = vshrl.u32 %v664, 7
      %v666 = vsub.s32 0, %v665
      %v667 = vrot.slane %v662, %v666
      %v674 = vunpack.c.l.b16 %v657
      %v675 = vunpack.c.l.b16 %v658
      %v676 = vunpack.c.l.b16 %v659
      %v677 = vunpack.c.l.b16 %v660
      %v678 = vunpack.c.l.b16 %v661
      %v679 = vpack.c.b16 %v675, %v674
      %v680 = vpack.c.b16 %v677, %v676
      %v681 = vpack.c.b16 %v678, %v678
      %vm684 = vcmask 326656
      %v686 = vsel %vm684, %v641, 0
      %v689 = vsel %vm684, %v642, 0
      %v692 = vsel %vm684, %v643, 0
      %v695 = vsel %vm684, %v644, 0
      %v698 = vsel %vm684, %v645, 0
      %v701 = vsel %vm684, %v646, 0
      %v704 = vsel %vm684, %v647, 0
      %v707 = vsel %vm684, %v648, 0
      %v710 = vsel %vm684, %v649, 0
      %v713 = vsel %vm684, %v650, 0
      %v716 = vsel %vm684, %v651, 0
      %v719 = vsel %vm684, %v652, 0
      %v722 = vsel %vm684, %v653, 0
      %v725 = vsel %vm684, %v654, 0
      %v728 = vsel %vm684, %v655, 0
      %v731 = vsel %vm684, %v656, 0
      %vm733 = vcmask 1043456
      %v735 = vsel %vm733, %v681, 0
      %737 = vmatprep.subr.bf16.mxu0 0
      %738 = vmatpush1.bf16.msra.mxu0 0
      %739 = vmatprep.subr.bf16.mxu0 0
      %740 = vmatpush1.bf16.msra.mxu0 0
      %741 = vmatprep.subr.bf16.mxu0 0
      %742 = vmatpush1.bf16.msra.mxu0 0
      %743 = vmatprep.subr.bf16.mxu0 0
      %744 = vmatpush1.bf16.msra.mxu0 0
      %745 = vmatprep.subr.bf16.mxu0 0
      %746 = vmatpush1.bf16.msra.mxu0 0
      %747 = vmatprep.subr.bf16.mxu0 0
      %748 = vmatpush1.bf16.msra.mxu0 %v735
      %749 = vmatprep.subr.bf16.mxu0 0
      %750 = vmatpush1.bf16.msra.mxu0 %v680
      %751 = vmatprep.subr.bf16.mxu0 0
      %752 = vmatpush1.bf16.msra.mxu0 %v679
      %753 = vmatprep.subr.bf16.mxu0 0
      %754 = vmatpush2.bf16.msra.mxu0 0
      %755 = vmatprep.subr.bf16.mxu0 0
      %756 = vmatpush2.bf16.msra.mxu0 0
      %757 = vmatprep.subr.bf16.mxu0 0
      %758 = vmatpush2.bf16.msra.mxu0 0
      %759 = vmatprep.subr.bf16.mxu0 0
      %760 = vmatpush2.bf16.msra.mxu0 0
      %761 = vmatprep.subr.bf16.mxu0 0
      %762 = vmatpush2.bf16.msra.mxu0 0
      %763 = vmatprep.subr.bf16.mxu0 0
      %764 = vmatpush2.bf16.msra.mxu0 0
      %765 = vmatprep.subr.bf16.mxu0 0
      %766 = vmatpush2.bf16.msra.mxu0 0
      %767 = vmatprep.subr.bf16.mxu0 0
      %768 = vmatpush2.bf16.msra.mxu0 0
      %769 = vmatprep.mubr.bf16.mxu0 0
      %770 = vmatmul.mubr.bf16.gmra.mxu0 %v686
      %v771 = vpop.f32.mrf.mxu0
      %v772 = vadd.f32 %v667, %v771
      %v773 = vpop.f32.mrf.mxu0
      %v774 = vpop.f32.mrf.mxu0
      %v775 = vadd.f32 %v667, %v774
      %v776 = vpop.f32.mrf.mxu0
      %777 = vmatprep.mubr.bf16.mxu0 0
      %778 = vmatmul.mubr.bf16.gmra.mxu0 %v689
      %v779 = vpop.f32.mrf.mxu0
      %v780 = vadd.f32 %v667, %v779
      %v781 = vpop.f32.mrf.mxu0
      %v782 = vpop.f32.mrf.mxu0
      %v783 = vadd.f32 %v667, %v782
      %v784 = vpop.f32.mrf.mxu0
      %785 = vmatprep.mubr.bf16.mxu0 0
      %786 = vmatmul.mubr.bf16.gmra.mxu0 %v692
      %v787 = vpop.f32.mrf.mxu0
      %v788 = vadd.f32 %v667, %v787
      %v789 = vpop.f32.mrf.mxu0
      %v790 = vpop.f32.mrf.mxu0
      %v791 = vadd.f32 %v667, %v790
      %v792 = vpop.f32.mrf.mxu0
      %793 = vmatprep.mubr.bf16.mxu0 0
      %794 = vmatmul.mubr.bf16.gmra.mxu0 %v695
      %v795 = vpop.f32.mrf.mxu0
      %v796 = vadd.f32 %v667, %v795
      %v797 = vpop.f32.mrf.mxu0
      %v798 = vpop.f32.mrf.mxu0
      %v799 = vadd.f32 %v667, %v798
      %v800 = vpop.f32.mrf.mxu0
      %801 = vmatprep.mubr.bf16.mxu0 0
      %802 = vmatmul.mubr.bf16.gmra.mxu0 %v698
      %v803 = vpop.f32.mrf.mxu0
      %v804 = vadd.f32 %v667, %v803
      %v805 = vpop.f32.mrf.mxu0
      %v806 = vpop.f32.mrf.mxu0
      %v807 = vadd.f32 %v667, %v806
      %v808 = vpop.f32.mrf.mxu0
      %809 = vmatprep.mubr.bf16.mxu0 0
      %810 = vmatmul.mubr.bf16.gmra.mxu0 %v701
      %v811 = vpop.f32.mrf.mxu0
      %v812 = vadd.f32 %v667, %v811
      %v813 = vpop.f32.mrf.mxu0
      %v814 = vpop.f32.mrf.mxu0
      %v815 = vadd.f32 %v667, %v814
      %v816 = vpop.f32.mrf.mxu0
      %817 = vmatprep.mubr.bf16.mxu0 0
      %818 = vmatmul.mubr.bf16.gmra.mxu0 %v704
      %v819 = vpop.f32.mrf.mxu0
      %v820 = vadd.f32 %v667, %v819
      %v821 = vpop.f32.mrf.mxu0
      %v822 = vpop.f32.mrf.mxu0
      %v823 = vadd.f32 %v667, %v822
      %v824 = vpop.f32.mrf.mxu0
      %825 = vmatprep.mubr.bf16.mxu0 0
      %826 = vmatmul.mubr.bf16.gmra.mxu0 %v707
      %v827 = vpop.f32.mrf.mxu0
      %v828 = vadd.f32 %v667, %v827
      %v829 = vpop.f32.mrf.mxu0
      %v830 = vpop.f32.mrf.mxu0
      %v831 = vadd.f32 %v667, %v830
      %v832 = vpop.f32.mrf.mxu0
      %833 = vmatprep.mubr.bf16.mxu0 0
      %834 = vmatmul.mubr.bf16.gmra.mxu0 %v710
      %v835 = vpop.f32.mrf.mxu0
      %v836 = vadd.f32 %v667, %v835
      %v837 = vpop.f32.mrf.mxu0
      %v838 = vpop.f32.mrf.mxu0
      %v839 = vadd.f32 %v667, %v838
      %v840 = vpop.f32.mrf.mxu0
      %841 = vmatprep.mubr.bf16.mxu0 0
      %842 = vmatmul.mubr.bf16.gmra.mxu0 %v713
      %v843 = vpop.f32.mrf.mxu0
      %v844 = vadd.f32 %v667, %v843
      %v845 = vpop.f32.mrf.mxu0
      %v846 = vpop.f32.mrf.mxu0
      %v847 = vadd.f32 %v667, %v846
      %v848 = vpop.f32.mrf.mxu0
      %849 = vmatprep.mubr.bf16.mxu0 0
      %850 = vmatmul.mubr.bf16.gmra.mxu0 %v716
      %v851 = vpop.f32.mrf.mxu0
      %v852 = vadd.f32 %v667, %v851
      %v853 = vpop.f32.mrf.mxu0
      %v854 = vpop.f32.mrf.mxu0
      %v855 = vadd.f32 %v667, %v854
      %v856 = vpop.f32.mrf.mxu0
      %857 = vmatprep.mubr.bf16.mxu0 0
      %858 = vmatmul.mubr.bf16.gmra.mxu0 %v719
      %v859 = vpop.f32.mrf.mxu0
      %v860 = vadd.f32 %v667, %v859
      %v861 = vpop.f32.mrf.mxu0
      %v862 = vpop.f32.mrf.mxu0
      %v863 = vadd.f32 %v667, %v862
      %v864 = vpop.f32.mrf.mxu0
      %865 = vmatprep.mubr.bf16.mxu0 0
      %866 = vmatmul.mubr.bf16.gmra.mxu0 %v722
      %v867 = vpop.f32.mrf.mxu0
      %v868 = vadd.f32 %v667, %v867
      %v869 = vpop.f32.mrf.mxu0
      %v870 = vpop.f32.mrf.mxu0
      %v871 = vadd.f32 %v667, %v870
      %v872 = vpop.f32.mrf.mxu0
      %873 = vmatprep.mubr.bf16.mxu0 0
      %874 = vmatmul.mubr.bf16.gmra.mxu0 %v725
      %v875 = vpop.f32.mrf.mxu0
      %v876 = vadd.f32 %v667, %v875
      %v877 = vpop.f32.mrf.mxu0
      %v878 = vpop.f32.mrf.mxu0
      %v879 = vadd.f32 %v667, %v878
      %v880 = vpop.f32.mrf.mxu0
      %881 = vmatprep.mubr.bf16.mxu0 0
      %882 = vmatmul.mubr.bf16.gmra.mxu0 %v728
      %v883 = vpop.f32.mrf.mxu0
      %v884 = vadd.f32 %v667, %v883
      %v885 = vpop.f32.mrf.mxu0
      %v886 = vpop.f32.mrf.mxu0
      %v887 = vadd.f32 %v667, %v886
      %v888 = vpop.f32.mrf.mxu0
      %889 = vmatprep.mubr.bf16.mxu0 0
      %890 = vmatmul.mubr.bf16.gmra.mxu0 %v731
      %v891 = vpop.f32.mrf.mxu0
      %v892 = vadd.f32 %v667, %v891
      %v893 = vpop.f32.mrf.mxu0
      %v894 = vpop.f32.mrf.mxu0
      %v895 = vadd.f32 %v667, %v894
      %v896 = vpop.f32.mrf.mxu0
      %897 = vdwg.mxu0
      %v898 = vpack.c.bf16 %v775, %v772
      %v899 = vpack.c.bf16 %v783, %v780
      %v900 = vpack.c.bf16 %v791, %v788
      %v901 = vpack.c.bf16 %v799, %v796
      %v902 = vpack.c.bf16 %v807, %v804
      %v903 = vpack.c.bf16 %v815, %v812
      %v904 = vpack.c.bf16 %v823, %v820
      %v905 = vpack.c.bf16 %v831, %v828
      %v906 = vpack.c.bf16 %v839, %v836
      %v907 = vpack.c.bf16 %v847, %v844
      %v908 = vpack.c.bf16 %v855, %v852
      %v909 = vpack.c.bf16 %v863, %v860
      %v910 = vpack.c.bf16 %v871, %v868
      %v911 = vpack.c.bf16 %v879, %v876
      %v912 = vpack.c.bf16 %v887, %v884
      %v913 = vpack.c.bf16 %v895, %v892
      %v930 = vunpack.c.l.b16 %v898
      %v931 = vunpack.c.h.b16 %v898
      %v932 = vunpack.c.l.b16 %v899
      %v933 = vunpack.c.h.b16 %v899
      %v934 = vunpack.c.l.b16 %v900
      %v935 = vunpack.c.h.b16 %v900
      %v936 = vunpack.c.l.b16 %v901
      %v937 = vunpack.c.h.b16 %v901
      %v938 = vunpack.c.l.b16 %v902
      %v939 = vunpack.c.h.b16 %v902
      %v940 = vunpack.c.l.b16 %v903
      %v941 = vunpack.c.h.b16 %v903
      %v942 = vunpack.c.l.b16 %v904
      %v943 = vunpack.c.h.b16 %v904
      %v944 = vunpack.c.l.b16 %v905
      %v945 = vunpack.c.h.b16 %v905
      %v946 = vunpack.c.l.b16 %v906
      %v947 = vunpack.c.h.b16 %v906
      %v948 = vunpack.c.l.b16 %v907
      %v949 = vunpack.c.h.b16 %v907
      %v950 = vunpack.c.l.b16 %v908
      %v951 = vunpack.c.h.b16 %v908
      %v952 = vunpack.c.l.b16 %v909
      %v953 = vunpack.c.h.b16 %v909
      %v954 = vunpack.c.l.b16 %v910
      %v955 = vunpack.c.h.b16 %v910
      %v956 = vunpack.c.l.b16 %v911
      %v957 = vunpack.c.h.b16 %v911
      %v958 = vunpack.c.l.b16 %v912
      %v959 = vunpack.c.h.b16 %v912
      %v960 = vunpack.c.l.b16 %v913
      %v961 = vunpack.c.h.b16 %v913
      %v962 = vpack.c.b16 %v930, %v930
      %v963 = vpack.c.b16 %v931, %v931
      %v964 = vpack.c.b16 %v932, %v932
      %v965 = vpack.c.b16 %v933, %v933
      %v966 = vpack.c.b16 %v934, %v934
      %v967 = vpack.c.b16 %v935, %v935
      %v968 = vpack.c.b16 %v936, %v936
      %v969 = vpack.c.b16 %v937, %v937
      %v970 = vpack.c.b16 %v938, %v938
      %v971 = vpack.c.b16 %v939, %v939
      %v972 = vpack.c.b16 %v940, %v940
      %v973 = vpack.c.b16 %v941, %v941
      %v974 = vpack.c.b16 %v942, %v942
      %v975 = vpack.c.b16 %v943, %v943
      %v976 = vpack.c.b16 %v944, %v944
      %v977 = vpack.c.b16 %v945, %v945
      %v978 = vpack.c.b16 %v946, %v946
      %v979 = vpack.c.b16 %v947, %v947
      %v980 = vpack.c.b16 %v948, %v948
      %v981 = vpack.c.b16 %v949, %v949
      %v982 = vpack.c.b16 %v950, %v950
      %v983 = vpack.c.b16 %v951, %v951
      %v984 = vpack.c.b16 %v952, %v952
      %v985 = vpack.c.b16 %v953, %v953
      %v986 = vpack.c.b16 %v954, %v954
      %v987 = vpack.c.b16 %v955, %v955
      %v988 = vpack.c.b16 %v956, %v956
      %v989 = vpack.c.b16 %v957, %v957
      %v990 = vpack.c.b16 %v958, %v958
      %v991 = vpack.c.b16 %v959, %v959
      %v992 = vpack.c.b16 %v960, %v960
      %v993 = vpack.c.b16 %v961, %v961
      %vm1026 = vcmask 93184
      %1027 = vst.msk [vmem:[%s226] sm:$0xf] %vm1026, %v962
      %1028 = vst.msk [vmem:[%s226 + $0x4] sm:$0xf] %vm1026, %v963
      %1029 = vst.msk [vmem:[%s226 + $0x8] sm:$0xf] %vm1026, %v964
      %1030 = vst.msk [vmem:[%s226 + $0xc] sm:$0xf] %vm1026, %v965
      %1031 = vst.msk [vmem:[%s226 + $0x10] sm:$0xf] %vm1026, %v966
      %1032 = vst.msk [vmem:[%s226 + $0x14] sm:$0xf] %vm1026, %v967
      %1033 = vst.msk [vmem:[%s226 + $0x18] sm:$0xf] %vm1026, %v968
      %1034 = vst.msk [vmem:[%s226 + $0x1c] sm:$0xf] %vm1026, %v969
      %1035 = vst.msk [vmem:[%s226 + $0x20] sm:$0xf] %vm1026, %v970
      %1036 = vst.msk [vmem:[%s226 + $0x24] sm:$0xf] %vm1026, %v971
      %1037 = vst.msk [vmem:[%s226 + $0x28] sm:$0xf] %vm1026, %v972
      %1038 = vst.msk [vmem:[%s226 + $0x2c] sm:$0xf] %vm1026, %v973
      %1039 = vst.msk [vmem:[%s226 + $0x30] sm:$0xf] %vm1026, %v974
      %1040 = vst.msk [vmem:[%s226 + $0x34] sm:$0xf] %vm1026, %v975
      %1041 = vst.msk [vmem:[%s226 + $0x38] sm:$0xf] %vm1026, %v976
      %1042 = vst.msk [vmem:[%s226 + $0x3c] sm:$0xf] %vm1026, %v977
      %1043 = vst.msk [vmem:[%s226 + $0x40] sm:$0xf] %vm1026, %v978
      %1044 = vst.msk [vmem:[%s226 + $0x44] sm:$0xf] %vm1026, %v979
      %1045 = vst.msk [vmem:[%s226 + $0x48] sm:$0xf] %vm1026, %v980
      %1046 = vst.msk [vmem:[%s226 + $0x4c] sm:$0xf] %vm1026, %v981
      %1047 = vst.msk [vmem:[%s226 + $0x50] sm:$0xf] %vm1026, %v982
      %1048 = vst.msk [vmem:[%s226 + $0x54] sm:$0xf] %vm1026, %v983
      %1049 = vst.msk [vmem:[%s226 + $0x58] sm:$0xf] %vm1026, %v984
      %1050 = vst.msk [vmem:[%s226 + $0x5c] sm:$0xf] %vm1026, %v985
      %1051 = vst.msk [vmem:[%s226 + $0x60] sm:$0xf] %vm1026, %v986
      %1052 = vst.msk [vmem:[%s226 + $0x64] sm:$0xf] %vm1026, %v987
      %1053 = vst.msk [vmem:[%s226 + $0x68] sm:$0xf] %vm1026, %v988
      %1054 = vst.msk [vmem:[%s226 + $0x6c] sm:$0xf] %vm1026, %v989
      %1055 = vst.msk [vmem:[%s226 + $0x70] sm:$0xf] %vm1026, %v990
      %1056 = vst.msk [vmem:[%s226 + $0x74] sm:$0xf] %vm1026, %v991
      %1057 = vst.msk [vmem:[%s226 + $0x78] sm:$0xf] %vm1026, %v992
      %1058 = vst.msk [vmem:[%s226 + $0x7c] sm:$0xf] %vm1026, %v993
      %s1059 = smul.u32 32, %s16
      %p1060 = scmp.lt.s32.totalorder %s1059, 63
      %s1061 = scalar_select %p1060, %s1059, 63
      %s1062 = smul.addr %s1061, 4
      %s1063 = scalar_lea.vmem %s5, %s1062
      // Predicated region
      $region41: #{_lambda_.48} parent=39 // pred_check
        %p1064 = pneg %p144
      $region42: #{_lambda_.48} parent=39 // pred_check_branch
        %1066 = sbr.rel (%p1064) target = $region44
      $region43: #{_lambda_.48} parent=39 // pred_region
        %s1067 = smul.u32 32, %s16
      $region44: #{_lambda_.48} parent=39 // pred_fallthru
        _
    $region40: #{_lambda_.48} parent=5 // pred_fallthru
      _
    %p1068 = scmp.le.s32.totalorder 2, %s11
    // Predicated region
    $region45: #{_lambda_.48} parent=5 // pred_check
      %p1069 = pneg %p1068
    $region46: #{_lambda_.48} parent=5 // pred_check_branch
      %1071 = sbr.rel (%p1069) target = $region48
    $region47: #{_lambda_.48} parent=5 // pred_region
      %s1072 = ssub.s32 %s11, 2
      // Predicated region
      $region49: #{_lambda_.48} parent=47 // pred_check
        %p1073 = pneg %p150
      $region50: #{_lambda_.48} parent=47 // pred_check_branch
        %1075 = sbr.rel (%p1073) target = $region52
      $region51: #{_lambda_.48} parent=47 // pred_region
        %s1076 = smul.u32 32, %s17
        %p1077 = scmp.lt.s32.totalorder %s1076, 63
        %s1078 = scalar_select %p1077, %s1076, 63
        %s1079 = smul.addr %s1078, 4
        %s1080 = scalar_lea.vmem %s5, %s1079
      $region52: #{_lambda_.48} parent=47 // pred_fallthru
        _
    $region48: #{_lambda_.48} parent=5 // pred_fallthru
      _
  $region6: #{_lambda_.48} parent=0 // loop_footer
    %s15 = sadd.s32 1, %s11
  $region7: #{_lambda_.48} parent=0 // loop_footer_branch
    %10 = sbr.rel target = $region3
  $region8: #{_lambda_.48} parent=0 // loop_exit
    _

// kernel: _lambda_.49
$region0: #{_lambda_.49}
  #allocation0 [shape = 'u32[]', space=smem, size = 0x4, offset = 0x4, fixed_abs, tag = 'smem constant byte address 0x4 - core index']
  #allocation1 [shape = 'u32[144,128]{1,0:T(1,128)}', space=vmem, size = 0x12000, scoped, tag = 'internal scratch']
  %s0 = inlined_call_operand.vmem [shape: bf16[8,768], index: 0, kind: input, shape index: {}]
  %s1 = inlined_call_operand.vmem [shape: bf16[768,32], index: 1, kind: input, shape index: {}]
  %s2 = inlined_call_operand.vmem [shape: f32[1,32], index: 2, kind: input, shape index: {}]
  %s3 = inlined_call_operand.vmem [shape: f32[8,32], index: 3, kind: output, shape index: {}]
  %s4 = sld [smem:[#allocation0]]
  $region22: #{_lambda_.49} parent=0
    _
  %s6 = ssub.s32 1, %s4
  %s7 = scalar_select 0, %s6, %s4
  // Predicated region
  $region2: #{_lambda_.49} parent=0 // pred_check
    _
  $region3: #{_lambda_.49} parent=0 // pred_check_branch
    %9 = sbr.rel (0) target = $region5
  $region4: #{_lambda_.49} parent=0 // pred_region
    _
  $region5: #{_lambda_.49} parent=0 // pred_fallthru
    _
  // Predicated region
  $region6: #{_lambda_.49} parent=0 // pred_check
    _
  $region7: #{_lambda_.49} parent=0 // pred_check_branch
    %11 = sbr.rel (0) target = $region9
  $region8: #{_lambda_.49} parent=0 // pred_region
    _
  $region9: #{_lambda_.49} parent=0 // pred_fallthru
    _
  // Predicated region
  $region10: #{_lambda_.49} parent=0 // pred_check
    _
  $region11: #{_lambda_.49} parent=0 // pred_check_branch
    %13 = sbr.rel (0) target = $region13
  $region12: #{_lambda_.49} parent=0 // pred_region
    _
  $region13: #{_lambda_.49} parent=0 // pred_fallthru
    _
  %v15 = vld [vmem:[%s0] sm:$0xff]
  %v16 = vld [vmem:[%s0 + $0x8] sm:$0xff]
  %v17 = vld [vmem:[%s0 + $0x10] sm:$0xff]
  %v18 = vld [vmem:[%s1] sm:$0xf]
  %v19 = vld [vmem:[%s1 + $0x4] sm:$0xf]
  %v20 = vld [vmem:[%s1 + $0x8] sm:$0xf]
  %v21 = vld [vmem:[%s1 + $0xc] sm:$0xf]
  %v22 = vld [vmem:[%s1 + $0x10] sm:$0xf]
  %v23 = vld [vmem:[%s1 + $0x14] sm:$0xf]
  %v24 = vld [vmem:[%s1 + $0x18] sm:$0xf]
  %v25 = vld [vmem:[%s1 + $0x1c] sm:$0xf]
  %v26 = vld [vmem:[%s1 + $0x20] sm:$0xf]
  %v27 = vld [vmem:[%s1 + $0x24] sm:$0xf]
  %v28 = vld [vmem:[%s1 + $0x28] sm:$0xf]
  %v29 = vld [vmem:[%s1 + $0x2c] sm:$0xf]
  %v30 = vld [vmem:[%s1 + $0x30] sm:$0xf]
  %v31 = vld [vmem:[%s1 + $0x34] sm:$0xf]
  %v32 = vld [vmem:[%s1 + $0x38] sm:$0xf]
  %v33 = vld [vmem:[%s1 + $0x3c] sm:$0xf]
  %v34 = vld [vmem:[%s1 + $0x40] sm:$0xf]
  %v35 = vld [vmem:[%s1 + $0x44] sm:$0xf]
  %v36 = vld [vmem:[%s1 + $0x48] sm:$0xf]
  %v37 = vld [vmem:[%s1 + $0x4c] sm:$0xf]
  %v38 = vld [vmem:[%s1 + $0x50] sm:$0xf]
  %v39 = vld [vmem:[%s1 + $0x54] sm:$0xf]
  %v40 = vld [vmem:[%s1 + $0x58] sm:$0xf]
  %v41 = vld [vmem:[%s1 + $0x5c] sm:$0xf]
  %v42 = vld [vmem:[%s1 + $0x60] sm:$0xf]
  %v43 = vld [vmem:[%s1 + $0x64] sm:$0xf]
  %v44 = vld [vmem:[%s1 + $0x68] sm:$0xf]
  %v45 = vld [vmem:[%s1 + $0x6c] sm:$0xf]
  %v46 = vld [vmem:[%s1 + $0x70] sm:$0xf]
  %v47 = vld [vmem:[%s1 + $0x74] sm:$0xf]
  %v48 = vld [vmem:[%s1 + $0x78] sm:$0xf]
  %v49 = vld [vmem:[%s1 + $0x7c] sm:$0xf]
  %v50 = vld [vmem:[%s1 + $0x80] sm:$0xf]
  %v51 = vld [vmem:[%s1 + $0x84] sm:$0xf]
  %v52 = vld [vmem:[%s1 + $0x88] sm:$0xf]
  %v53 = vld [vmem:[%s1 + $0x8c] sm:$0xf]
  %v54 = vld [vmem:[%s1 + $0x90] sm:$0xf]
  %v55 = vld [vmem:[%s1 + $0x94] sm:$0xf]
  %v56 = vld [vmem:[%s1 + $0x98] sm:$0xf]
  %v57 = vld [vmem:[%s1 + $0x9c] sm:$0xf]
  %v58 = vld [vmem:[%s1 + $0xa0] sm:$0xf]
  %v59 = vld [vmem:[%s1 + $0xa4] sm:$0xf]
  %v60 = vld [vmem:[%s1 + $0xa8] sm:$0xf]
  %v61 = vld [vmem:[%s1 + $0xac] sm:$0xf]
  %v62 = vld [vmem:[%s1 + $0xb0] sm:$0xf]
  %v63 = vld [vmem:[%s1 + $0xb4] sm:$0xf]
  %v64 = vld [vmem:[%s1 + $0xb8] sm:$0xf]
  %v65 = vld [vmem:[%s1 + $0xbc] sm:$0xf]
  %v66 = vld [vmem:[%s1 + $0xc0] sm:$0xf]
  %v67 = vld [vmem:[%s1 + $0xc4] sm:$0xf]
  %v68 = vld [vmem:[%s1 + $0xc8] sm:$0xf]
  %v69 = vld [vmem:[%s1 + $0xcc] sm:$0xf]
  %v70 = vld [vmem:[%s1 + $0xd0] sm:$0xf]
  %v71 = vld [vmem:[%s1 + $0xd4] sm:$0xf]
  %v72 = vld [vmem:[%s1 + $0xd8] sm:$0xf]
  %v73 = vld [vmem:[%s1 + $0xdc] sm:$0xf]
  %v74 = vld [vmem:[%s1 + $0xe0] sm:$0xf]
  %v75 = vld [vmem:[%s1 + $0xe4] sm:$0xf]
  %v76 = vld [vmem:[%s1 + $0xe8] sm:$0xf]
  %v77 = vld [vmem:[%s1 + $0xec] sm:$0xf]
  %v78 = vld [vmem:[%s1 + $0xf0] sm:$0xf]
  %v79 = vld [vmem:[%s1 + $0xf4] sm:$0xf]
  %v80 = vld [vmem:[%s1 + $0xf8] sm:$0xf]
  %v81 = vld [vmem:[%s1 + $0xfc] sm:$0xf]
  %v82 = vld [vmem:[%s1 + $0x100] sm:$0xf]
  %v83 = vld [vmem:[%s1 + $0x104] sm:$0xf]
  %v84 = vld [vmem:[%s1 + $0x108] sm:$0xf]
  %v85 = vld [vmem:[%s1 + $0x10c] sm:$0xf]
  %v86 = vld [vmem:[%s1 + $0x110] sm:$0xf]
  %v87 = vld [vmem:[%s1 + $0x114] sm:$0xf]
  %v88 = vld [vmem:[%s1 + $0x118] sm:$0xf]
  %v89 = vld [vmem:[%s1 + $0x11c] sm:$0xf]
  %v90 = vld [vmem:[%s1 + $0x120] sm:$0xf]
  %v91 = vld [vmem:[%s1 + $0x124] sm:$0xf]
  %v92 = vld [vmem:[%s1 + $0x128] sm:$0xf]
  %v93 = vld [vmem:[%s1 + $0x12c] sm:$0xf]
  %v94 = vld [vmem:[%s1 + $0x130] sm:$0xf]
  %v95 = vld [vmem:[%s1 + $0x134] sm:$0xf]
  %v96 = vld [vmem:[%s1 + $0x138] sm:$0xf]
  %v97 = vld [vmem:[%s1 + $0x13c] sm:$0xf]
  %v98 = vld [vmem:[%s1 + $0x140] sm:$0xf]
  %v99 = vld [vmem:[%s1 + $0x144] sm:$0xf]
  %v100 = vld [vmem:[%s1 + $0x148] sm:$0xf]
  %v101 = vld [vmem:[%s1 + $0x14c] sm:$0xf]
  %v102 = vld [vmem:[%s1 + $0x150] sm:$0xf]
  %v103 = vld [vmem:[%s1 + $0x154] sm:$0xf]
  %v104 = vld [vmem:[%s1 + $0x158] sm:$0xf]
  %v105 = vld [vmem:[%s1 + $0x15c] sm:$0xf]
  %v106 = vld [vmem:[%s1 + $0x160] sm:$0xf]
  %v107 = vld [vmem:[%s1 + $0x164] sm:$0xf]
  %v108 = vld [vmem:[%s1 + $0x168] sm:$0xf]
  %v109 = vld [vmem:[%s1 + $0x16c] sm:$0xf]
  %v110 = vld [vmem:[%s1 + $0x170] sm:$0xf]
  %v111 = vld [vmem:[%s1 + $0x174] sm:$0xf]
  %v112 = vld [vmem:[%s1 + $0x178] sm:$0xf]
  %v113 = vld [vmem:[%s1 + $0x17c] sm:$0xf]
  %v114 = vld [vmem:[%s2] sm:$0x1]
  %v116 = vlaneseq
  %v117 = vshrl.u32 %v116, 7
  %v118 = vsub.s32 0, %v117
  %v119 = vrot.slane %v114, %v118
  %v124 = vunpack.c.l.b16 %v15
  %v125 = vunpack.c.h.b16 %v15
  %v126 = vunpack.c.l.b16 %v16
  %v127 = vunpack.c.h.b16 %v16
  %v128 = vunpack.c.l.b16 %v17
  %v129 = vunpack.c.h.b16 %v17
  %v130 = vpack.c.b16 %v124, %v124
  %v131 = vpack.c.b16 %v125, %v125
  %v132 = vpack.c.b16 %v126, %v126
  %v133 = vpack.c.b16 %v127, %v127
  %v134 = vpack.c.b16 %v128, %v128
  %v135 = vpack.c.b16 %v129, %v129
  %v238 = vunpack.c.l.b16 %v18
  %v239 = vunpack.c.l.b16 %v19
  %v240 = vunpack.c.l.b16 %v20
  %v241 = vunpack.c.l.b16 %v21
  %v242 = vunpack.c.l.b16 %v22
  %v243 = vunpack.c.l.b16 %v23
  %v244 = vunpack.c.l.b16 %v24
  %v245 = vunpack.c.l.b16 %v25
  %v246 = vunpack.c.l.b16 %v26
  %v247 = vunpack.c.l.b16 %v27
  %v248 = vunpack.c.l.b16 %v28
  %v249 = vunpack.c.l.b16 %v29
  %v250 = vunpack.c.l.b16 %v30
  %v251 = vunpack.c.l.b16 %v31
  %v252 = vunpack.c.l.b16 %v32
  %v253 = vunpack.c.l.b16 %v33
  %v254 = vunpack.c.l.b16 %v34
  %v255 = vunpack.c.l.b16 %v35
  %v256 = vunpack.c.l.b16 %v36
  %v257 = vunpack.c.l.b16 %v37
  %v258 = vunpack.c.l.b16 %v38
  %v259 = vunpack.c.l.b16 %v39
  %v260 = vunpack.c.l.b16 %v40
  %v261 = vunpack.c.l.b16 %v41
  %v262 = vunpack.c.l.b16 %v42
  %v263 = vunpack.c.l.b16 %v43
  %v264 = vunpack.c.l.b16 %v44
  %v265 = vunpack.c.l.b16 %v45
  %v266 = vunpack.c.l.b16 %v46
  %v267 = vunpack.c.l.b16 %v47
  %v268 = vunpack.c.l.b16 %v48
  %v269 = vunpack.c.l.b16 %v49
  %v270 = vunpack.c.l.b16 %v50
  %v271 = vunpack.c.l.b16 %v51
  %v272 = vunpack.c.l.b16 %v52
  %v273 = vunpack.c.l.b16 %v53
  %v274 = vunpack.c.l.b16 %v54
  %v275 = vunpack.c.l.b16 %v55
  %v276 = vunpack.c.l.b16 %v56
  %v277 = vunpack.c.l.b16 %v57
  %v278 = vunpack.c.l.b16 %v58
  %v279 = vunpack.c.l.b16 %v59
  %v280 = vunpack.c.l.b16 %v60
  %v281 = vunpack.c.l.b16 %v61
  %v282 = vunpack.c.l.b16 %v62
  %v283 = vunpack.c.l.b16 %v63
  %v284 = vunpack.c.l.b16 %v64
  %v285 = vunpack.c.l.b16 %v65
  %v286 = vunpack.c.l.b16 %v66
  %v287 = vunpack.c.l.b16 %v67
  %v288 = vunpack.c.l.b16 %v68
  %v289 = vunpack.c.l.b16 %v69
  %v290 = vunpack.c.l.b16 %v70
  %v291 = vunpack.c.l.b16 %v71
  %v292 = vunpack.c.l.b16 %v72
  %v293 = vunpack.c.l.b16 %v73
  %v294 = vunpack.c.l.b16 %v74
  %v295 = vunpack.c.l.b16 %v75
  %v296 = vunpack.c.l.b16 %v76
  %v297 = vunpack.c.l.b16 %v77
  %v298 = vunpack.c.l.b16 %v78
  %v299 = vunpack.c.l.b16 %v79
  %v300 = vunpack.c.l.b16 %v80
  %v301 = vunpack.c.l.b16 %v81
  %v302 = vunpack.c.l.b16 %v82
  %v303 = vunpack.c.l.b16 %v83
  %v304 = vunpack.c.l.b16 %v84
  %v305 = vunpack.c.l.b16 %v85
  %v306 = vunpack.c.l.b16 %v86
  %v307 = vunpack.c.l.b16 %v87
  %v308 = vunpack.c.l.b16 %v88
  %v309 = vunpack.c.l.b16 %v89
  %v310 = vunpack.c.l.b16 %v90
  %v311 = vunpack.c.l.b16 %v91
  %v312 = vunpack.c.l.b16 %v92
  %v313 = vunpack.c.l.b16 %v93
  %v314 = vunpack.c.l.b16 %v94
  %v315 = vunpack.c.l.b16 %v95
  %v316 = vunpack.c.l.b16 %v96
  %v317 = vunpack.c.l.b16 %v97
  %v318 = vunpack.c.l.b16 %v98
  %v319 = vunpack.c.l.b16 %v99
  %v320 = vunpack.c.l.b16 %v100
  %v321 = vunpack.c.l.b16 %v101
  %v322 = vunpack.c.l.b16 %v102
  %v323 = vunpack.c.l.b16 %v103
  %v324 = vunpack.c.l.b16 %v104
  %v325 = vunpack.c.l.b16 %v105
  %v326 = vunpack.c.l.b16 %v106
  %v327 = vunpack.c.l.b16 %v107
  %v328 = vunpack.c.l.b16 %v108
  %v329 = vunpack.c.l.b16 %v109
  %v330 = vunpack.c.l.b16 %v110
  %v331 = vunpack.c.l.b16 %v111
  %v332 = vunpack.c.l.b16 %v112
  %v333 = vunpack.c.l.b16 %v113
  %v334 = vpack.c.b16 %v239, %v238
  %v335 = vpack.c.b16 %v241, %v240
  %v336 = vpack.c.b16 %v243, %v242
  %v337 = vpack.c.b16 %v245, %v244
  %v338 = vpack.c.b16 %v247, %v246
  %v339 = vpack.c.b16 %v249, %v248
  %v340 = vpack.c.b16 %v251, %v250
  %v341 = vpack.c.b16 %v253, %v252
  %v342 = vpack.c.b16 %v255, %v254
  %v343 = vpack.c.b16 %v257, %v256
  %v344 = vpack.c.b16 %v259, %v258
  %v345 = vpack.c.b16 %v261, %v260
  %v346 = vpack.c.b16 %v263, %v262
  %v347 = vpack.c.b16 %v265, %v264
  %v348 = vpack.c.b16 %v267, %v266
  %v349 = vpack.c.b16 %v269, %v268
  %v350 = vpack.c.b16 %v271, %v270
  %v351 = vpack.c.b16 %v273, %v272
  %v352 = vpack.c.b16 %v275, %v274
  %v353 = vpack.c.b16 %v277, %v276
  %v354 = vpack.c.b16 %v279, %v278
  %v355 = vpack.c.b16 %v281, %v280
  %v356 = vpack.c.b16 %v283, %v282
  %v357 = vpack.c.b16 %v285, %v284
  %v358 = vpack.c.b16 %v287, %v286
  %v359 = vpack.c.b16 %v289, %v288
  %v360 = vpack.c.b16 %v291, %v290
  %v361 = vpack.c.b16 %v293, %v292
  %v362 = vpack.c.b16 %v295, %v294
  %v363 = vpack.c.b16 %v297, %v296
  %v364 = vpack.c.b16 %v299, %v298
  %v365 = vpack.c.b16 %v301, %v300
  %v366 = vpack.c.b16 %v303, %v302
  %v367 = vpack.c.b16 %v305, %v304
  %v368 = vpack.c.b16 %v307, %v306
  %v369 = vpack.c.b16 %v309, %v308
  %v370 = vpack.c.b16 %v311, %v310
  %v371 = vpack.c.b16 %v313, %v312
  %v372 = vpack.c.b16 %v315, %v314
  %v373 = vpack.c.b16 %v317, %v316
  %v374 = vpack.c.b16 %v319, %v318
  %v375 = vpack.c.b16 %v321, %v320
  %v376 = vpack.c.b16 %v323, %v322
  %v377 = vpack.c.b16 %v325, %v324
  %v378 = vpack.c.b16 %v327, %v326
  %v379 = vpack.c.b16 %v329, %v328
  %v380 = vpack.c.b16 %v331, %v330
  %v381 = vpack.c.b16 %v333, %v332
  %430 = vmatprep.subr.bf16.mxu0 0
  %431 = vmatpush1.bf16.msra.mxu0 %v341
  %432 = vmatprep.subr.bf16.mxu0 0
  %433 = vmatpush1.bf16.msra.mxu0 %v340
  %434 = vmatprep.subr.bf16.mxu0 0
  %435 = vmatpush1.bf16.msra.mxu0 %v339
  %436 = vmatprep.subr.bf16.mxu0 0
  %437 = vmatpush1.bf16.msra.mxu0 %v338
  %438 = vmatprep.subr.bf16.mxu0 0
  %439 = vmatpush1.bf16.msra.mxu0 %v337
  %440 = vmatprep.subr.bf16.mxu0 0
  %441 = vmatpush1.bf16.msra.mxu0 %v336
  %442 = vmatprep.subr.bf16.mxu0 0
  %443 = vmatpush1.bf16.msra.mxu0 %v335
  %444 = vmatprep.subr.bf16.mxu0 0
  %445 = vmatpush1.bf16.msra.mxu0 %v334
  %446 = vmatprep.subr.bf16.mxu0 0
  %447 = vmatpush2.bf16.msra.mxu0 %v349
  %448 = vmatprep.subr.bf16.mxu0 0
  %449 = vmatpush2.bf16.msra.mxu0 %v348
  %450 = vmatprep.subr.bf16.mxu0 0
  %451 = vmatpush2.bf16.msra.mxu0 %v347
  %452 = vmatprep.subr.bf16.mxu0 0
  %453 = vmatpush2.bf16.msra.mxu0 %v346
  %454 = vmatprep.subr.bf16.mxu0 0
  %455 = vmatpush2.bf16.msra.mxu0 %v345
  %456 = vmatprep.subr.bf16.mxu0 0
  %457 = vmatpush2.bf16.msra.mxu0 %v344
  %458 = vmatprep.subr.bf16.mxu0 0
  %459 = vmatpush2.bf16.msra.mxu0 %v343
  %460 = vmatprep.subr.bf16.mxu0 0
  %461 = vmatpush2.bf16.msra.mxu0 %v342
  %462 = vmatprep.mubr.bf16.mxu0 %v131
  %463 = vmatmul.mubr.bf16.gmra.mxu0 %v130
  %v464 = vpop.f32.mrf.mxu0
  %v465 = vadd.f32 %v119, %v464
  %v466 = vpop.f32.mrf.mxu0
  %v467 = vpop.f32.mrf.mxu0
  %v468 = vpop.f32.mrf.mxu0
  %469 = vdwg.mxu0
  %470 = vmatprep.subr.bf16.mxu0 0
  %471 = vmatpush1.bf16.msra.mxu0 %v357
  %472 = vmatprep.subr.bf16.mxu0 0
  %473 = vmatpush1.bf16.msra.mxu0 %v356
  %474 = vmatprep.subr.bf16.mxu0 0
  %475 = vmatpush1.bf16.msra.mxu0 %v355
  %476 = vmatprep.subr.bf16.mxu0 0
  %477 = vmatpush1.bf16.msra.mxu0 %v354
  %478 = vmatprep.subr.bf16.mxu0 0
  %479 = vmatpush1.bf16.msra.mxu0 %v353
  %480 = vmatprep.subr.bf16.mxu0 0
  %481 = vmatpush1.bf16.msra.mxu0 %v352
  %482 = vmatprep.subr.bf16.mxu0 0
  %483 = vmatpush1.bf16.msra.mxu0 %v351
  %484 = vmatprep.subr.bf16.mxu0 0
  %485 = vmatpush1.bf16.msra.mxu0 %v350
  %486 = vmatprep.subr.bf16.mxu0 0
  %487 = vmatpush2.bf16.msra.mxu0 %v365
  %488 = vmatprep.subr.bf16.mxu0 0
  %489 = vmatpush2.bf16.msra.mxu0 %v364
  %490 = vmatprep.subr.bf16.mxu0 0
  %491 = vmatpush2.bf16.msra.mxu0 %v363
  %492 = vmatprep.subr.bf16.mxu0 0
  %493 = vmatpush2.bf16.msra.mxu0 %v362
  %494 = vmatprep.subr.bf16.mxu0 0
  %495 = vmatpush2.bf16.msra.mxu0 %v361
  %496 = vmatprep.subr.bf16.mxu0 0
  %497 = vmatpush2.bf16.msra.mxu0 %v360
  %498 = vmatprep.subr.bf16.mxu0 0
  %499 = vmatpush2.bf16.msra.mxu0 %v359
  %500 = vmatprep.subr.bf16.mxu0 0
  %501 = vmatpush2.bf16.msra.mxu0 %v358
  %502 = vmatprep.mubr.bf16.mxu0 %v133
  %503 = vmatmul.mubr.bf16.gmra.mxu0 %v132
  %v504 = vpop.f32.mrf.mxu0
  %v505 = vadd.f32 %v465, %v504
  %v506 = vpop.f32.mrf.mxu0
  %v507 = vpop.f32.mrf.mxu0
  %v508 = vpop.f32.mrf.mxu0
  %509 = vdwg.mxu0
  %510 = vmatprep.subr.bf16.mxu0 0
  %511 = vmatpush1.bf16.msra.mxu0 %v373
  %512 = vmatprep.subr.bf16.mxu0 0
  %513 = vmatpush1.bf16.msra.mxu0 %v372
  %514 = vmatprep.subr.bf16.mxu0 0
  %515 = vmatpush1.bf16.msra.mxu0 %v371
  %516 = vmatprep.subr.bf16.mxu0 0
  %517 = vmatpush1.bf16.msra.mxu0 %v370
  %518 = vmatprep.subr.bf16.mxu0 0
  %519 = vmatpush1.bf16.msra.mxu0 %v369
  %520 = vmatprep.subr.bf16.mxu0 0
  %521 = vmatpush1.bf16.msra.mxu0 %v368
  %522 = vmatprep.subr.bf16.mxu0 0
  %523 = vmatpush1.bf16.msra.mxu0 %v367
  %524 = vmatprep.subr.bf16.mxu0 0
  %525 = vmatpush1.bf16.msra.mxu0 %v366
  %526 = vmatprep.subr.bf16.mxu0 0
  %527 = vmatpush2.bf16.msra.mxu0 %v381
  %528 = vmatprep.subr.bf16.mxu0 0
  %529 = vmatpush2.bf16.msra.mxu0 %v380
  %530 = vmatprep.subr.bf16.mxu0 0
  %531 = vmatpush2.bf16.msra.mxu0 %v379
  %532 = vmatprep.subr.bf16.mxu0 0
  %533 = vmatpush2.bf16.msra.mxu0 %v378
  %534 = vmatprep.subr.bf16.mxu0 0
  %535 = vmatpush2.bf16.msra.mxu0 %v377
  %536 = vmatprep.subr.bf16.mxu0 0
  %537 = vmatpush2.bf16.msra.mxu0 %v376
  %538 = vmatprep.subr.bf16.mxu0 0
  %539 = vmatpush2.bf16.msra.mxu0 %v375
  %540 = vmatprep.subr.bf16.mxu0 0
  %541 = vmatpush2.bf16.msra.mxu0 %v374
  %542 = vmatprep.mubr.bf16.mxu0 %v135
  %543 = vmatmul.mubr.bf16.gmra.mxu0 %v134
  %v544 = vpop.f32.mrf.mxu0
  %v545 = vadd.f32 %v505, %v544
  %v546 = vpop.f32.mrf.mxu0
  %v547 = vpop.f32.mrf.mxu0
  %v548 = vpop.f32.mrf.mxu0
  %549 = vdwg.mxu0
  %vm550 = vcmask 261120
  %551 = vst.msk [vmem:[%s3] sm:$0xff] %vm550, %v545
  // Predicated region
  $region14: #{_lambda_.49} parent=0 // pred_check
    _
  $region15: #{_lambda_.49} parent=0 // pred_check_branch
    %553 = sbr.rel (0) target = $region17
  $region16: #{_lambda_.49} parent=0 // pred_region
    _
  $region17: #{_lambda_.49} parent=0 // pred_fallthru
    _
  // Predicated region
  $region18: #{_lambda_.49} parent=0 // pred_check
    _
  $region19: #{_lambda_.49} parent=0 // pred_check_branch
    %555 = sbr.rel (0) target = $region21
  $region20: #{_lambda_.49} parent=0 // pred_region
    _
  $region21: #{_lambda_.49} parent=0 // pred_fallthru
    _

</llo_original>
